<compile_context>
chip_gen: v7x
topology: tpu7x:2x2x1
jax: 0.10.0
libtpu: 0.0.40
codegen_flags: <defaults>
</compile_context>

<pallas_src>
import math

import jax
import jax.numpy as jnp
from jax.experimental import pallas as pl
from jax.experimental.pallas import tpu as pltpu

# ----------------------------- small synthetic config -----------------------------
N_CHANNELS_MODEL = 4            # in_chans of the backbone
IMG_H = IMG_W = 16
BACKBONE_OUT = 120              # stand-in for efficientnet_b4 num_features (1792)
BACKBONE_PAD = 128              # padded to one full lane tile
AUX_DIM = 12                    # raw aux vector length
AUX_MODEL_IXS = tuple(range(8))               # len(AUX_MODEL_PROPS) == 8
N_FEATS = BACKBONE_OUT + len(AUX_MODEL_IXS)   # 128  (== BACKBONE_PAD here)
INNER_DIM = 256                 # self.inner_dim (1024 in the original, shrunk)
N_WPS_TARGETS = 8
N_AUX_TARGETS = 8               # len(AUX_TARGET_PROPS)
N_OBSNET = 8                    # len(OBSNET_PROPS)
OBSNET_HIDDEN = 256
BS = 2
BPTT = 4

assert N_FEATS == BACKBONE_PAD  # aux lands exactly on the zero-padded feature lanes

# fused-head packing: [wps(8) | aux_targets(8) | pad(112) | obsnet_layer1(256)] = 384 lanes
WPS_OFF = 0
AUXT_OFF = N_WPS_TARGETS
OBS1_OFF = 128
HEAD1_N = OBS1_OFF + OBSNET_HIDDEN            # 384, multiple of 128
OBS2_PAD = 128                                # obsnet layer-2 output padded 8 -> 128


# =============================== fused Pallas kernel ===============================
def _effnet_fused_kernel(x_ref, aux_ref, swT_ref, sb_ref,
                         f1w_ref, f1b_ref,
                         wih_ref, blstm_ref, whh_ref,
                         h0_ref, c0_ref,
                         w1_ref, b1_ref, w2_ref, b2_ref,
                         head1_ref, obs_ref, hn_ref, cn_ref,
                         pg_sc, y_sc):
    """Whole forward_rnn path in one invocation.

    x_ref:   (bt, C, hw) fp32   pixels on lanes, channels on sublanes, rows time-major
    aux_ref: (bt, 128)   fp32   aux values on lanes 120..127, zeros elsewhere
    swT/sb:  (128, C)/(128,1)   stem weight^T / bias, feature rows 120..127 zero
    f1w/f1b: (128, INNER)/(1, INNER)   fcs1_rnn weight^T (rows 120..127 = aux rows) / bias
    wih/whh: (INNER, 4H) bf16   LSTM weights^T, gate columns packed (i,f,o,g)
    blstm:   (1, 4H)            b_ih + b_hh, packed (i,f,o,g)
    h0/c0:   (bs, H)            initial hidden / cell
    w1/b1:   (INNER, 384)/(1, 384)  fused [wps | aux_t | pad | obsnet-l1] head
    w2/b2:   (256, 128)/(1, 128)    obsnet layer 2 (output padded to 128 lanes)
    """
    bt, n_ch, hw = x_ref.shape
    bs, H = h0_ref.shape
    bptt = bt // bs

    # ---- backbone stand-in: 1x1 conv as C broadcast FMAs on the VPU (K=C is far too
    #      thin for the MXU), SiLU, global average pool.  All fp32 (v5e VPU/EUP). ----
    x = x_ref[...]                                          # (bt, C, hw)
    swT = swT_ref[...]                                      # (128, C)
    acc = x[:, 0:1, :] * swT[None, :, 0:1]                  # (bt, 128, hw) lane-dense
    for cc in range(1, n_ch):                               # static tiny loop (C=4)
        acc = acc + x[:, cc:cc + 1, :] * swT[None, :, cc:cc + 1]
    acc = acc + sb_ref[...][None, :, :]
    act = acc * jax.nn.sigmoid(acc)                         # SiLU (EfficientNet act)
    pool = jnp.sum(act, axis=-1) * (1.0 / hw)               # (bt, 128); pad lanes stay 0

    # ---- "concat([backbone_feats, aux])": aux was pre-placed on lanes 120..127 and
    #      pool is exactly zero there, so a single add realizes the concat. ----
    feats = pool + aux_ref[...]                             # (bt, 128)

    # ---- fcs1_rnn (Linear + ReLU) + hoisted LSTM input projection (all timesteps) ----
    z = jnp.maximum(
        jnp.dot(feats.astype(jnp.bfloat16), f1w_ref[...],
                preferred_element_type=jnp.float32) + f1b_ref[...], 0.0)     # (bt, INNER)
    pg_sc[...] = (jnp.dot(z.astype(jnp.bfloat16), wih_ref[...],
                          preferred_element_type=jnp.float32)
                  + blstm_ref[...])                                           # (bt, 4H)

    # ---- 1-layer LSTM, whole time loop, h/c carried in registers.  Gate columns are
    #      packed (i,f,o,g): one sigmoid over 3H lanes + one tanh per step. ----
    # TODO(synk): for large real bptt (32+) use a partial unroll (unroll=4/8) instead.
    def step(t, carry):
        h_prev, c_prev = carry
        gates = (pg_sc[pl.ds(t * bs, bs), :]
                 + jnp.dot(h_prev.astype(jnp.bfloat16), whh_ref[...],
                           preferred_element_type=jnp.float32))              # (bs, 4H)
        s = jax.nn.sigmoid(gates[:, :3 * H])                 # i | f | o, one EUP pass
        g = jnp.tanh(gates[:, 3 * H:])
        c_new = s[:, H:2 * H] * c_prev + s[:, :H] * g        # fp32 element-wise
        h_new = s[:, 2 * H:] * jnp.tanh(c_new)
        y_sc[pl.ds(t * bs, bs), :] = h_new
        return (h_new, c_new)

    hn, cn = jax.lax.fori_loop(0, bptt, step, (h0_ref[...], c0_ref[...]), unroll=True)
    hn_ref[...] = hn                                         # written once, after loop
    cn_ref[...] = cn

    # ---- rnn_finisher: [wps | aux_targets | obsnet-l1] as one lane-dense matmul,
    #      obsnet layer 2 in the same kernel (y never touches HBM). ----
    n1 = w1_ref.shape[1]                                     # 384
    nh = w2_ref.shape[0]                                     # 256
    yf = y_sc[...].astype(jnp.bfloat16)                      # (bt, H)
    h1 = jnp.dot(yf, w1_ref[...], preferred_element_type=jnp.float32) + b1_ref[...]
    head1_ref[...] = h1                                      # (bt, 384), unmasked stores
    # TODO(synk): PyTorch detaches x before obsnet; forward values are identical,
    # the detach only matters for gradients.
    obs_h = jnp.maximum(h1[:, n1 - nh:], 0.0).astype(jnp.bfloat16)
    obs_ref[...] = (jnp.dot(obs_h, w2_ref[...], preferred_element_type=jnp.float32)
                    + b2_ref[...])                           # (bt, 128)


def pallas_effnet_fused(x_k, aux_pad, h0, c0, p):
    bt = x_k.shape[0]
    bs = h0.shape[0]
    vmem_spec = pl.BlockSpec(memory_space=pltpu.MemorySpace.VMEM)
    return pl.pallas_call(
        _effnet_fused_kernel,
        out_shape=(jax.ShapeDtypeStruct((bt, HEAD1_N), jnp.float32),
                   jax.ShapeDtypeStruct((bt, OBS2_PAD), jnp.float32),
                   jax.ShapeDtypeStruct((bs, INNER_DIM), jnp.float32),
                   jax.ShapeDtypeStruct((bs, INNER_DIM), jnp.float32)),
        in_specs=[vmem_spec] * 15,
        out_specs=(vmem_spec, vmem_spec, vmem_spec, vmem_spec),
        scratch_shapes=[pltpu.VMEM((bt, 4 * INNER_DIM), jnp.float32),   # pre-gates
                        pltpu.VMEM((bt, INNER_DIM), jnp.float32)],      # LSTM outputs
        compiler_params=pltpu.CompilerParams(vmem_limit_bytes=32 * 1024 * 1024),
    )(x_k, aux_pad, p["stem_wT"], p["stem_b"],
      p["fcs1_w"], p["fcs1_b"],
      p["w_ih"], p["b_lstm"], p["w_hh"],
      h0, c0,
      p["head1_w"], p["head1_b"], p["obs2_w"], p["obs2_b"])


# =============================== parameters ===============================
def init_params(key):
    ks = iter(jax.random.split(key, 32))

    def dense(fan_in, fan_out):
        bound = 1.0 / math.sqrt(fan_in)
        w = jax.random.uniform(next(ks), (fan_in, fan_out), jnp.float32, -bound, bound)
        b = jax.random.uniform(next(ks), (1, fan_out), jnp.float32, -bound, bound)
        return w, b

    p = {}
    # backbone stand-in 1x1 conv, stored transposed (feat_pad, C) for the VPU-FMA stem;
    # feature rows 120..127 are zero so the pooled lanes reserved for aux stay exactly 0.
    stem_w, stem_b = dense(N_CHANNELS_MODEL, BACKBONE_OUT)
    pad = BACKBONE_PAD - BACKBONE_OUT
    p["stem_wT"] = jnp.pad(stem_w, ((0, 0), (0, pad))).T            # (128, C) fp32
    p["stem_b"] = jnp.pad(stem_b, ((0, 0), (0, pad))).T             # (128, 1) fp32

    # fcs1_rnn: Linear(N_FEATS=128, INNER) + ReLU, stored (K, N) = weight.T.
    # Rows 0..119 multiply backbone features, rows 120..127 multiply aux (the concat).
    fcs1_w, fcs1_b = dense(N_FEATS, INNER_DIM)
    p["fcs1_w"] = fcs1_w.astype(jnp.bfloat16)
    p["fcs1_b"] = fcs1_b

    # LSTM(inner_dim, inner_dim, 1): weights transposed (H, 4H), biases combined,
    # gate columns repacked from PyTorch (i, f, g, o) to (i, f, o, g).
    bound = 1.0 / math.sqrt(INNER_DIM)

    def lstm_uniform(shape):
        return jax.random.uniform(next(ks), shape, jnp.float32, -bound, bound)

    def repack(a):  # (..., 4H) (i,f,g,o) -> (i,f,o,g)
        Hh = INNER_DIM
        return jnp.concatenate([a[..., :2 * Hh], a[..., 3 * Hh:], a[..., 2 * Hh:3 * Hh]],
                               axis=-1)

    w_ih = lstm_uniform((INNER_DIM, 4 * INNER_DIM))
    w_hh = lstm_uniform((INNER_DIM, 4 * INNER_DIM))
    b_ih = lstm_uniform((1, 4 * INNER_DIM))
    b_hh = lstm_uniform((1, 4 * INNER_DIM))
    p["w_ih"] = repack(w_ih).astype(jnp.bfloat16)
    p["w_hh"] = repack(w_hh).astype(jnp.bfloat16)
    p["b_lstm"] = repack(b_ih + b_hh)
    # hidden/cell init params, xavier_uniform on shape (1, 1, inner_dim)
    xb = math.sqrt(6.0 / (1.0 + INNER_DIM))
    p["hidden_init"] = jax.random.uniform(next(ks), (1, 1, INNER_DIM), jnp.float32, -xb, xb)
    p["cell_init"] = jax.random.uniform(next(ks), (1, 1, INNER_DIM), jnp.float32, -xb, xb)

    # rnn_finisher heads, packed lane-dense: [wps | aux_targets | pad | obsnet-layer1]
    wps_w, wps_b = dense(INNER_DIM, N_WPS_TARGETS)
    auxt_w, auxt_b = dense(INNER_DIM, N_AUX_TARGETS)
    obs1_w, obs1_b = dense(INNER_DIM, OBSNET_HIDDEN)
    obs2_w, obs2_b = dense(OBSNET_HIDDEN, N_OBSNET)

    w1 = jnp.zeros((INNER_DIM, HEAD1_N), jnp.float32)
    w1 = w1.at[:, WPS_OFF:WPS_OFF + N_WPS_TARGETS].set(wps_w)
    w1 = w1.at[:, AUXT_OFF:AUXT_OFF + N_AUX_TARGETS].set(auxt_w)
    w1 = w1.at[:, OBS1_OFF:OBS1_OFF + OBSNET_HIDDEN].set(obs1_w)
    b1 = jnp.zeros((1, HEAD1_N), jnp.float32)
    b1 = b1.at[:, WPS_OFF:WPS_OFF + N_WPS_TARGETS].set(wps_b)
    b1 = b1.at[:, AUXT_OFF:AUXT_OFF + N_AUX_TARGETS].set(auxt_b)
    b1 = b1.at[:, OBS1_OFF:OBS1_OFF + OBSNET_HIDDEN].set(obs1_b)
    p["head1_w"] = w1.astype(jnp.bfloat16)
    p["head1_b"] = b1

    w2 = jnp.zeros((OBSNET_HIDDEN, OBS2_PAD), jnp.float32).at[:, :N_OBSNET].set(obs2_w)
    b2 = jnp.zeros((1, OBS2_PAD), jnp.float32).at[:, :N_OBSNET].set(obs2_b)
    p["obs2_w"] = w2.astype(jnp.bfloat16)
    p["obs2_b"] = b2
    return p


# ======================= forward (== EffNet.forward_rnn) =======================
def effnet_forward(params, x, aux):
    bs, bptt, c, h, w = x.shape
    bt = bs * bptt
    hw = h * w

    # Time-major flattening (row = t*bs + b) so every LSTM step reads a contiguous row
    # block; channels go to sublanes / pixels to lanes for the VPU-FMA stem.
    x_k = jnp.transpose(x, (1, 0, 2, 3, 4)).reshape(bt, c, hw)
    aux_sel = jnp.transpose(aux[:, :, jnp.array(AUX_MODEL_IXS)], (1, 0, 2))
    aux_sel = aux_sel.reshape(bt, len(AUX_MODEL_IXS))
    # place aux on lanes BACKBONE_OUT..127 (the zero-padded pooled-feature lanes)
    aux_pad = jnp.pad(aux_sel, ((0, 0), (BACKBONE_OUT, 0)))            # (bt, 128)

    h0 = jnp.broadcast_to(params["hidden_init"][0], (bs, INNER_DIM))
    c0 = jnp.broadcast_to(params["cell_init"][0], (bs, INNER_DIM))

    head1, obs, _hn, _cn = pallas_effnet_fused(x_k, aux_pad, h0, c0, params)

    def unflat(a):  # (bt, n) time-major -> (bs, bptt, n)
        return jnp.transpose(a.reshape(bptt, bs, -1), (1, 0, 2))

    wps_preds = unflat(head1[:, WPS_OFF:WPS_OFF + N_WPS_TARGETS])
    aux_preds = unflat(head1[:, AUXT_OFF:AUXT_OFF + N_AUX_TARGETS])
    obsnet_out = unflat(obs[:, :N_OBSNET])
    return wps_preds, aux_preds, obsnet_out


if __name__ == "__main__":
    key = jax.random.PRNGKey(0)
    kp, kx, ka = jax.random.split(key, 3)
    params = init_params(kp)
    x = jax.random.normal(kx, (BS, BPTT, N_CHANNELS_MODEL, IMG_H, IMG_W), jnp.float32)
    aux = jax.random.normal(ka, (BS, BPTT, AUX_DIM), jnp.float32)

    wps, auxp, obs = jax.jit(effnet_forward)(params, x, aux)
    jax.block_until_ready((wps, auxp, obs))
    assert wps.shape == (BS, BPTT, N_WPS_TARGETS)
    assert auxp.shape == (BS, BPTT, N_AUX_TARGETS)
    assert obs.shape == (BS, BPTT, N_OBSNET)
    assert bool(jnp.all(jnp.isfinite(wps)) & jnp.all(jnp.isfinite(auxp)) & jnp.all(jnp.isfinite(obs)))
    print("KERNEL_OK")
</pallas_src>

<mosaic_0001>
module attributes {stable_mosaic.version = 11 : i64} {
  func.func @_effnet_fused_kernel(%arg0: memref<8x4x256xf32, #tpu.memory_space<vmem>>, %arg1: memref<8x128xf32, #tpu.memory_space<vmem>>, %arg2: memref<128x4xf32, #tpu.memory_space<vmem>>, %arg3: memref<128x1xf32, #tpu.memory_space<vmem>>, %arg4: memref<128x256xbf16, #tpu.memory_space<vmem>>, %arg5: memref<1x256xf32, #tpu.memory_space<vmem>>, %arg6: memref<256x1024xbf16, #tpu.memory_space<vmem>>, %arg7: memref<1x1024xf32, #tpu.memory_space<vmem>>, %arg8: memref<256x1024xbf16, #tpu.memory_space<vmem>>, %arg9: memref<2x256xf32, #tpu.memory_space<vmem>>, %arg10: memref<2x256xf32, #tpu.memory_space<vmem>>, %arg11: memref<256x384xbf16, #tpu.memory_space<vmem>>, %arg12: memref<1x384xf32, #tpu.memory_space<vmem>>, %arg13: memref<256x128xbf16, #tpu.memory_space<vmem>>, %arg14: memref<1x128xf32, #tpu.memory_space<vmem>>, %arg15: memref<8x384xf32, #tpu.memory_space<vmem>>, %arg16: memref<8x128xf32, #tpu.memory_space<vmem>>, %arg17: memref<2x256xf32, #tpu.memory_space<vmem>>, %arg18: memref<2x256xf32, #tpu.memory_space<vmem>>, %arg19: memref<8x1024xf32, #tpu.memory_space<vmem>>, %arg20: memref<8x256xf32, #tpu.memory_space<vmem>>) attributes {dimension_semantics = [], scalar_prefetch = 0 : i64, scratch_operands = 2 : i64, tpu.core_type = #tpu.core_type<tc>} {
    %c0 = arith.constant 0 : index
    %c0_0 = arith.constant 0 : index
    %c0_1 = arith.constant 0 : index
    %0 = vector.load %arg0[%c0, %c0_0, %c0_1] : memref<8x4x256xf32, #tpu.memory_space<vmem>>, vector<8x4x256xf32>
    %c0_2 = arith.constant 0 : index
    %c0_3 = arith.constant 0 : index
    %1 = vector.load %arg2[%c0_2, %c0_3] : memref<128x4xf32, #tpu.memory_space<vmem>>, vector<128x4xf32>
    %2 = vector.extract_strided_slice %0 {offsets = [0, 0, 0], sizes = [8, 1, 256], strides = [1, 1, 1]} : vector<8x4x256xf32> to vector<8x1x256xf32>
    %3 = vector.extract_strided_slice %1 {offsets = [0, 0], sizes = [128, 1], strides = [1, 1]} : vector<128x4xf32> to vector<128x1xf32>
    %4 = vector.shape_cast %3 : vector<128x1xf32> to vector<1x128x1xf32>
    %5 = vector.broadcast %2 : vector<8x1x256xf32> to vector<8x128x256xf32>
    %6 = vector.broadcast %4 : vector<1x128x1xf32> to vector<8x128x256xf32>
    %7 = arith.mulf %5, %6 : vector<8x128x256xf32>
    %8 = vector.extract_strided_slice %0 {offsets = [0, 1, 0], sizes = [8, 1, 256], strides = [1, 1, 1]} : vector<8x4x256xf32> to vector<8x1x256xf32>
    %9 = vector.extract_strided_slice %1 {offsets = [0, 1], sizes = [128, 1], strides = [1, 1]} : vector<128x4xf32> to vector<128x1xf32>
    %10 = vector.shape_cast %9 : vector<128x1xf32> to vector<1x128x1xf32>
    %11 = vector.broadcast %8 : vector<8x1x256xf32> to vector<8x128x256xf32>
    %12 = vector.broadcast %10 : vector<1x128x1xf32> to vector<8x128x256xf32>
    %13 = arith.mulf %11, %12 : vector<8x128x256xf32>
    %14 = arith.addf %7, %13 : vector<8x128x256xf32>
    %15 = vector.extract_strided_slice %0 {offsets = [0, 2, 0], sizes = [8, 1, 256], strides = [1, 1, 1]} : vector<8x4x256xf32> to vector<8x1x256xf32>
    %16 = vector.extract_strided_slice %1 {offsets = [0, 2], sizes = [128, 1], strides = [1, 1]} : vector<128x4xf32> to vector<128x1xf32>
    %17 = vector.shape_cast %16 : vector<128x1xf32> to vector<1x128x1xf32>
    %18 = vector.broadcast %15 : vector<8x1x256xf32> to vector<8x128x256xf32>
    %19 = vector.broadcast %17 : vector<1x128x1xf32> to vector<8x128x256xf32>
    %20 = arith.mulf %18, %19 : vector<8x128x256xf32>
    %21 = arith.addf %14, %20 : vector<8x128x256xf32>
    %22 = vector.extract_strided_slice %0 {offsets = [0, 3, 0], sizes = [8, 1, 256], strides = [1, 1, 1]} : vector<8x4x256xf32> to vector<8x1x256xf32>
    %23 = vector.extract_strided_slice %1 {offsets = [0, 3], sizes = [128, 1], strides = [1, 1]} : vector<128x4xf32> to vector<128x1xf32>
    %24 = vector.shape_cast %23 : vector<128x1xf32> to vector<1x128x1xf32>
    %25 = vector.broadcast %22 : vector<8x1x256xf32> to vector<8x128x256xf32>
    %26 = vector.broadcast %24 : vector<1x128x1xf32> to vector<8x128x256xf32>
    %27 = arith.mulf %25, %26 : vector<8x128x256xf32>
    %28 = arith.addf %21, %27 : vector<8x128x256xf32>
    %c0_4 = arith.constant 0 : index
    %c0_5 = arith.constant 0 : index
    %29 = vector.load %arg3[%c0_4, %c0_5] : memref<128x1xf32, #tpu.memory_space<vmem>>, vector<128x1xf32>
    %30 = vector.shape_cast %29 : vector<128x1xf32> to vector<1x128x1xf32>
    %31 = vector.broadcast %30 : vector<1x128x1xf32> to vector<8x128x256xf32>
    %32 = arith.addf %28, %31 : vector<8x128x256xf32>
    %33 = arith.negf %32 : vector<8x128x256xf32>
    %34 = math.exp %33 : vector<8x128x256xf32>
    %cst = arith.constant 1.000000e+00 : f32
    %35 = vector.broadcast %cst : f32 to vector<8x128x256xf32>
    %36 = arith.addf %35, %34 : vector<8x128x256xf32>
    %37 = arith.divf %35, %36 : vector<8x128x256xf32>
    %38 = arith.mulf %32, %37 : vector<8x128x256xf32>
    %cst_6 = arith.constant dense<0.000000e+00> : vector<8x128xf32>
    %39 = vector.multi_reduction <add>, %38, %cst_6 [2] : vector<8x128x256xf32> to vector<8x128xf32>
    %cst_7 = arith.constant 3.906250e-03 : f32
    %40 = vector.broadcast %cst_7 : f32 to vector<8x128xf32>
    %41 = arith.mulf %39, %40 : vector<8x128xf32>
    %c0_8 = arith.constant 0 : index
    %c0_9 = arith.constant 0 : index
    %42 = vector.load %arg1[%c0_8, %c0_9] : memref<8x128xf32, #tpu.memory_space<vmem>>, vector<8x128xf32>
    %43 = arith.addf %41, %42 : vector<8x128xf32>
    %44 = arith.truncf %43 : vector<8x128xf32> to vector<8x128xbf16>
    %c0_10 = arith.constant 0 : index
    %c0_11 = arith.constant 0 : index
    %45 = vector.load %arg4[%c0_10, %c0_11] : memref<128x256xbf16, #tpu.memory_space<vmem>>, vector<128x256xbf16>
    %cst_12 = arith.constant dense<0.000000e+00> : vector<8x256xf32>
    %46 = tpu.matmul %44, %45, %cst_12 {dimension_numbers = #tpu.dot_dimension_numbers<[1], [0], [0], [1], [0, 0, 1, 1], [], []>} : vector<8x128xbf16>, vector<128x256xbf16>, vector<8x256xf32> -> vector<8x256xf32>
    %c0_13 = arith.constant 0 : index
    %c0_14 = arith.constant 0 : index
    %47 = vector.load %arg5[%c0_13, %c0_14] : memref<1x256xf32, #tpu.memory_space<vmem>>, vector<1x256xf32>
    %48 = vector.broadcast %47 : vector<1x256xf32> to vector<8x256xf32>
    %49 = arith.addf %46, %48 : vector<8x256xf32>
    %cst_15 = arith.constant 0.000000e+00 : f32
    %50 = vector.broadcast %cst_15 : f32 to vector<8x256xf32>
    %51 = arith.maximumf %49, %50 : vector<8x256xf32>
    %52 = arith.truncf %51 : vector<8x256xf32> to vector<8x256xbf16>
    %c0_16 = arith.constant 0 : index
    %c0_17 = arith.constant 0 : index
    %53 = vector.load %arg6[%c0_16, %c0_17] : memref<256x1024xbf16, #tpu.memory_space<vmem>>, vector<256x1024xbf16>
    %cst_18 = arith.constant dense<0.000000e+00> : vector<8x1024xf32>
    %54 = tpu.matmul %52, %53, %cst_18 {dimension_numbers = #tpu.dot_dimension_numbers<[1], [0], [0], [1], [0, 0, 1, 1], [], []>} : vector<8x256xbf16>, vector<256x1024xbf16>, vector<8x1024xf32> -> vector<8x1024xf32>
    %c0_19 = arith.constant 0 : index
    %c0_20 = arith.constant 0 : index
    %55 = vector.load %arg7[%c0_19, %c0_20] : memref<1x1024xf32, #tpu.memory_space<vmem>>, vector<1x1024xf32>
    %56 = vector.broadcast %55 : vector<1x1024xf32> to vector<8x1024xf32>
    %57 = arith.addf %54, %56 : vector<8x1024xf32>
    %c0_21 = arith.constant 0 : index
    %c0_22 = arith.constant 0 : index
    %58 = vector.load %arg19[%c0_21, %c0_22] : memref<8x1024xf32, #tpu.memory_space<vmem>>, vector<8x1024xf32>
    tpu.vector_store %arg19[%c0_21, %c0_22], %57 {strides = array<i32>} : memref<8x1024xf32, #tpu.memory_space<vmem>>, vector<8x1024xf32>,
    %c0_23 = arith.constant 0 : index
    %c0_24 = arith.constant 0 : index
    %59 = vector.load %arg9[%c0_23, %c0_24] : memref<2x256xf32, #tpu.memory_space<vmem>>, vector<2x256xf32>
    %c0_25 = arith.constant 0 : index
    %c0_26 = arith.constant 0 : index
    %60 = vector.load %arg10[%c0_25, %c0_26] : memref<2x256xf32, #tpu.memory_space<vmem>>, vector<2x256xf32>
    %c0_i32 = arith.constant 0 : i32
    %c2_i32 = arith.constant 2 : i32
    %61 = arith.muli %c0_i32, %c2_i32 : i32
    %62 = arith.index_cast %61 : i32 to index
    %c0_27 = arith.constant 0 : index
    %63 = vector.load %arg19[%62, %c0_27] : memref<8x1024xf32, #tpu.memory_space<vmem>>, vector<2x1024xf32>
    %64 = arith.truncf %59 : vector<2x256xf32> to vector<2x256xbf16>
    %c0_28 = arith.constant 0 : index
    %c0_29 = arith.constant 0 : index
    %65 = vector.load %arg8[%c0_28, %c0_29] : memref<256x1024xbf16, #tpu.memory_space<vmem>>, vector<256x1024xbf16>
    %cst_30 = arith.constant dense<0.000000e+00> : vector<2x1024xf32>
    %66 = tpu.matmul %64, %65, %cst_30 {dimension_numbers = #tpu.dot_dimension_numbers<[1], [0], [0], [1], [0, 0, 1, 1], [], []>} : vector<2x256xbf16>, vector<256x1024xbf16>, vector<2x1024xf32> -> vector<2x1024xf32>
    %67 = arith.addf %63, %66 : vector<2x1024xf32>
    %68 = vector.extract_strided_slice %67 {offsets = [0, 0], sizes = [2, 768], strides = [1, 1]} : vector<2x1024xf32> to vector<2x768xf32>
    %69 = arith.negf %68 : vector<2x768xf32>
    %70 = math.exp %69 : vector<2x768xf32>
    %cst_31 = arith.constant 1.000000e+00 : f32
    %71 = vector.broadcast %cst_31 : f32 to vector<2x768xf32>
    %72 = arith.addf %71, %70 : vector<2x768xf32>
    %73 = arith.divf %71, %72 : vector<2x768xf32>
    %74 = vector.extract_strided_slice %67 {offsets = [0, 768], sizes = [2, 256], strides = [1, 1]} : vector<2x1024xf32> to vector<2x256xf32>
    %75 = math.tanh %74 : vector<2x256xf32>
    %76 = vector.extract_strided_slice %73 {offsets = [0, 256], sizes = [2, 256], strides = [1, 1]} : vector<2x768xf32> to vector<2x256xf32>
    %77 = arith.mulf %76, %60 : vector<2x256xf32>
    %78 = vector.extract_strided_slice %73 {offsets = [0, 0], sizes = [2, 256], strides = [1, 1]} : vector<2x768xf32> to vector<2x256xf32>
    %79 = arith.mulf %78, %75 : vector<2x256xf32>
    %80 = arith.addf %77, %79 : vector<2x256xf32>
    %81 = vector.extract_strided_slice %73 {offsets = [0, 512], sizes = [2, 256], strides = [1, 1]} : vector<2x768xf32> to vector<2x256xf32>
    %82 = math.tanh %80 : vector<2x256xf32>
    %83 = arith.mulf %81, %82 : vector<2x256xf32>
    %c2_i32_32 = arith.constant 2 : i32
    %84 = arith.muli %c0_i32, %c2_i32_32 : i32
    %85 = arith.index_cast %84 : i32 to index
    %c0_33 = arith.constant 0 : index
    %86 = vector.load %arg20[%85, %c0_33] : memref<8x256xf32, #tpu.memory_space<vmem>>, vector<2x256xf32>
    tpu.vector_store %arg20[%85, %c0_33], %83 {strides = array<i32>} : memref<8x256xf32, #tpu.memory_space<vmem>>, vector<2x256xf32>,
    %c1_i32 = arith.constant 1 : i32
    %c2_i32_34 = arith.constant 2 : i32
    %87 = arith.muli %c1_i32, %c2_i32_34 : i32
    %88 = arith.index_cast %87 : i32 to index
    %c0_35 = arith.constant 0 : index
    %89 = vector.load %arg19[%88, %c0_35] : memref<8x1024xf32, #tpu.memory_space<vmem>>, vector<2x1024xf32>
    %90 = arith.truncf %83 : vector<2x256xf32> to vector<2x256xbf16>
    %c0_36 = arith.constant 0 : index
    %c0_37 = arith.constant 0 : index
    %91 = vector.load %arg8[%c0_36, %c0_37] : memref<256x1024xbf16, #tpu.memory_space<vmem>>, vector<256x1024xbf16>
    %cst_38 = arith.constant dense<0.000000e+00> : vector<2x1024xf32>
    %92 = tpu.matmul %90, %91, %cst_38 {dimension_numbers = #tpu.dot_dimension_numbers<[1], [0], [0], [1], [0, 0, 1, 1], [], []>} : vector<2x256xbf16>, vector<256x1024xbf16>, vector<2x1024xf32> -> vector<2x1024xf32>
    %93 = arith.addf %89, %92 : vector<2x1024xf32>
    %94 = vector.extract_strided_slice %93 {offsets = [0, 0], sizes = [2, 768], strides = [1, 1]} : vector<2x1024xf32> to vector<2x768xf32>
    %95 = arith.negf %94 : vector<2x768xf32>
    %96 = math.exp %95 : vector<2x768xf32>
    %cst_39 = arith.constant 1.000000e+00 : f32
    %97 = vector.broadcast %cst_39 : f32 to vector<2x768xf32>
    %98 = arith.addf %97, %96 : vector<2x768xf32>
    %99 = arith.divf %97, %98 : vector<2x768xf32>
    %100 = vector.extract_strided_slice %93 {offsets = [0, 768], sizes = [2, 256], strides = [1, 1]} : vector<2x1024xf32> to vector<2x256xf32>
    %101 = math.tanh %100 : vector<2x256xf32>
    %102 = vector.extract_strided_slice %99 {offsets = [0, 256], sizes = [2, 256], strides = [1, 1]} : vector<2x768xf32> to vector<2x256xf32>
    %103 = arith.mulf %102, %80 : vector<2x256xf32>
    %104 = vector.extract_strided_slice %99 {offsets = [0, 0], sizes = [2, 256], strides = [1, 1]} : vector<2x768xf32> to vector<2x256xf32>
    %105 = arith.mulf %104, %101 : vector<2x256xf32>
    %106 = arith.addf %103, %105 : vector<2x256xf32>
    %107 = vector.extract_strided_slice %99 {offsets = [0, 512], sizes = [2, 256], strides = [1, 1]} : vector<2x768xf32> to vector<2x256xf32>
    %108 = math.tanh %106 : vector<2x256xf32>
    %109 = arith.mulf %107, %108 : vector<2x256xf32>
    %c2_i32_40 = arith.constant 2 : i32
    %110 = arith.muli %c1_i32, %c2_i32_40 : i32
    %111 = arith.index_cast %110 : i32 to index
    %c0_41 = arith.constant 0 : index
    %112 = vector.load %arg20[%111, %c0_41] : memref<8x256xf32, #tpu.memory_space<vmem>>, vector<2x256xf32>
    tpu.vector_store %arg20[%111, %c0_41], %109 {strides = array<i32>} : memref<8x256xf32, #tpu.memory_space<vmem>>, vector<2x256xf32>,
    %c2_i32_42 = arith.constant 2 : i32
    %c2_i32_43 = arith.constant 2 : i32
    %113 = arith.muli %c2_i32_42, %c2_i32_43 : i32
    %114 = arith.index_cast %113 : i32 to index
    %c0_44 = arith.constant 0 : index
    %115 = vector.load %arg19[%114, %c0_44] : memref<8x1024xf32, #tpu.memory_space<vmem>>, vector<2x1024xf32>
    %116 = arith.truncf %109 : vector<2x256xf32> to vector<2x256xbf16>
    %c0_45 = arith.constant 0 : index
    %c0_46 = arith.constant 0 : index
    %117 = vector.load %arg8[%c0_45, %c0_46] : memref<256x1024xbf16, #tpu.memory_space<vmem>>, vector<256x1024xbf16>
    %cst_47 = arith.constant dense<0.000000e+00> : vector<2x1024xf32>
    %118 = tpu.matmul %116, %117, %cst_47 {dimension_numbers = #tpu.dot_dimension_numbers<[1], [0], [0], [1], [0, 0, 1, 1], [], []>} : vector<2x256xbf16>, vector<256x1024xbf16>, vector<2x1024xf32> -> vector<2x1024xf32>
    %119 = arith.addf %115, %118 : vector<2x1024xf32>
    %120 = vector.extract_strided_slice %119 {offsets = [0, 0], sizes = [2, 768], strides = [1, 1]} : vector<2x1024xf32> to vector<2x768xf32>
    %121 = arith.negf %120 : vector<2x768xf32>
    %122 = math.exp %121 : vector<2x768xf32>
    %cst_48 = arith.constant 1.000000e+00 : f32
    %123 = vector.broadcast %cst_48 : f32 to vector<2x768xf32>
    %124 = arith.addf %123, %122 : vector<2x768xf32>
    %125 = arith.divf %123, %124 : vector<2x768xf32>
    %126 = vector.extract_strided_slice %119 {offsets = [0, 768], sizes = [2, 256], strides = [1, 1]} : vector<2x1024xf32> to vector<2x256xf32>
    %127 = math.tanh %126 : vector<2x256xf32>
    %128 = vector.extract_strided_slice %125 {offsets = [0, 256], sizes = [2, 256], strides = [1, 1]} : vector<2x768xf32> to vector<2x256xf32>
    %129 = arith.mulf %128, %106 : vector<2x256xf32>
    %130 = vector.extract_strided_slice %125 {offsets = [0, 0], sizes = [2, 256], strides = [1, 1]} : vector<2x768xf32> to vector<2x256xf32>
    %131 = arith.mulf %130, %127 : vector<2x256xf32>
    %132 = arith.addf %129, %131 : vector<2x256xf32>
    %133 = vector.extract_strided_slice %125 {offsets = [0, 512], sizes = [2, 256], strides = [1, 1]} : vector<2x768xf32> to vector<2x256xf32>
    %134 = math.tanh %132 : vector<2x256xf32>
    %135 = arith.mulf %133, %134 : vector<2x256xf32>
    %c2_i32_49 = arith.constant 2 : i32
    %136 = arith.muli %c2_i32_42, %c2_i32_49 : i32
    %137 = arith.index_cast %136 : i32 to index
    %c0_50 = arith.constant 0 : index
    %138 = vector.load %arg20[%137, %c0_50] : memref<8x256xf32, #tpu.memory_space<vmem>>, vector<2x256xf32>
    tpu.vector_store %arg20[%137, %c0_50], %135 {strides = array<i32>} : memref<8x256xf32, #tpu.memory_space<vmem>>, vector<2x256xf32>,
    %c3_i32 = arith.constant 3 : i32
    %c2_i32_51 = arith.constant 2 : i32
    %139 = arith.muli %c3_i32, %c2_i32_51 : i32
    %140 = arith.index_cast %139 : i32 to index
    %c0_52 = arith.constant 0 : index
    %141 = vector.load %arg19[%140, %c0_52] : memref<8x1024xf32, #tpu.memory_space<vmem>>, vector<2x1024xf32>
    %142 = arith.truncf %135 : vector<2x256xf32> to vector<2x256xbf16>
    %c0_53 = arith.constant 0 : index
    %c0_54 = arith.constant 0 : index
    %143 = vector.load %arg8[%c0_53, %c0_54] : memref<256x1024xbf16, #tpu.memory_space<vmem>>, vector<256x1024xbf16>
    %cst_55 = arith.constant dense<0.000000e+00> : vector<2x1024xf32>
    %144 = tpu.matmul %142, %143, %cst_55 {dimension_numbers = #tpu.dot_dimension_numbers<[1], [0], [0], [1], [0, 0, 1, 1], [], []>} : vector<2x256xbf16>, vector<256x1024xbf16>, vector<2x1024xf32> -> vector<2x1024xf32>
    %145 = arith.addf %141, %144 : vector<2x1024xf32>
    %146 = vector.extract_strided_slice %145 {offsets = [0, 0], sizes = [2, 768], strides = [1, 1]} : vector<2x1024xf32> to vector<2x768xf32>
    %147 = arith.negf %146 : vector<2x768xf32>
    %148 = math.exp %147 : vector<2x768xf32>
    %cst_56 = arith.constant 1.000000e+00 : f32
    %149 = vector.broadcast %cst_56 : f32 to vector<2x768xf32>
    %150 = arith.addf %149, %148 : vector<2x768xf32>
    %151 = arith.divf %149, %150 : vector<2x768xf32>
    %152 = vector.extract_strided_slice %145 {offsets = [0, 768], sizes = [2, 256], strides = [1, 1]} : vector<2x1024xf32> to vector<2x256xf32>
    %153 = math.tanh %152 : vector<2x256xf32>
    %154 = vector.extract_strided_slice %151 {offsets = [0, 256], sizes = [2, 256], strides = [1, 1]} : vector<2x768xf32> to vector<2x256xf32>
    %155 = arith.mulf %154, %132 : vector<2x256xf32>
    %156 = vector.extract_strided_slice %151 {offsets = [0, 0], sizes = [2, 256], strides = [1, 1]} : vector<2x768xf32> to vector<2x256xf32>
    %157 = arith.mulf %156, %153 : vector<2x256xf32>
    %158 = arith.addf %155, %157 : vector<2x256xf32>
    %159 = vector.extract_strided_slice %151 {offsets = [0, 512], sizes = [2, 256], strides = [1, 1]} : vector<2x768xf32> to vector<2x256xf32>
    %160 = math.tanh %158 : vector<2x256xf32>
    %161 = arith.mulf %159, %160 : vector<2x256xf32>
    %c2_i32_57 = arith.constant 2 : i32
    %162 = arith.muli %c3_i32, %c2_i32_57 : i32
    %163 = arith.index_cast %162 : i32 to index
    %c0_58 = arith.constant 0 : index
    %164 = vector.load %arg20[%163, %c0_58] : memref<8x256xf32, #tpu.memory_space<vmem>>, vector<2x256xf32>
    tpu.vector_store %arg20[%163, %c0_58], %161 {strides = array<i32>} : memref<8x256xf32, #tpu.memory_space<vmem>>, vector<2x256xf32>,
    %c4_i32 = arith.constant 4 : i32
    %c0_59 = arith.constant 0 : index
    %c0_60 = arith.constant 0 : index
    %165 = vector.load %arg17[%c0_59, %c0_60] : memref<2x256xf32, #tpu.memory_space<vmem>>, vector<2x256xf32>
    tpu.vector_store %arg17[%c0_59, %c0_60], %161 {strides = array<i32>} : memref<2x256xf32, #tpu.memory_space<vmem>>, vector<2x256xf32>,
    %c0_61 = arith.constant 0 : index
    %c0_62 = arith.constant 0 : index
    %166 = vector.load %arg18[%c0_61, %c0_62] : memref<2x256xf32, #tpu.memory_space<vmem>>, vector<2x256xf32>
    tpu.vector_store %arg18[%c0_61, %c0_62], %158 {strides = array<i32>} : memref<2x256xf32, #tpu.memory_space<vmem>>, vector<2x256xf32>,
    %c0_63 = arith.constant 0 : index
    %c0_64 = arith.constant 0 : index
    %167 = vector.load %arg20[%c0_63, %c0_64] : memref<8x256xf32, #tpu.memory_space<vmem>>, vector<8x256xf32>
    %168 = arith.truncf %167 : vector<8x256xf32> to vector<8x256xbf16>
    %c0_65 = arith.constant 0 : index
    %c0_66 = arith.constant 0 : index
    %169 = vector.load %arg11[%c0_65, %c0_66] : memref<256x384xbf16, #tpu.memory_space<vmem>>, vector<256x384xbf16>
    %cst_67 = arith.constant dense<0.000000e+00> : vector<8x384xf32>
    %170 = tpu.matmul %168, %169, %cst_67 {dimension_numbers = #tpu.dot_dimension_numbers<[1], [0], [0], [1], [0, 0, 1, 1], [], []>} : vector<8x256xbf16>, vector<256x384xbf16>, vector<8x384xf32> -> vector<8x384xf32>
    %c0_68 = arith.constant 0 : index
    %c0_69 = arith.constant 0 : index
    %171 = vector.load %arg12[%c0_68, %c0_69] : memref<1x384xf32, #tpu.memory_space<vmem>>, vector<1x384xf32>
    %172 = vector.broadcast %171 : vector<1x384xf32> to vector<8x384xf32>
    %173 = arith.addf %170, %172 : vector<8x384xf32>
    %c0_70 = arith.constant 0 : index
    %c0_71 = arith.constant 0 : index
    %174 = vector.load %arg15[%c0_70, %c0_71] : memref<8x384xf32, #tpu.memory_space<vmem>>, vector<8x384xf32>
    tpu.vector_store %arg15[%c0_70, %c0_71], %173 {strides = array<i32>} : memref<8x384xf32, #tpu.memory_space<vmem>>, vector<8x384xf32>,
    %175 = vector.extract_strided_slice %173 {offsets = [0, 128], sizes = [8, 256], strides = [1, 1]} : vector<8x384xf32> to vector<8x256xf32>
    %cst_72 = arith.constant 0.000000e+00 : f32
    %176 = vector.broadcast %cst_72 : f32 to vector<8x256xf32>
    %177 = arith.maximumf %175, %176 : vector<8x256xf32>
    %178 = arith.truncf %177 : vector<8x256xf32> to vector<8x256xbf16>
    %c0_73 = arith.constant 0 : index
    %c0_74 = arith.constant 0 : index
    %179 = vector.load %arg13[%c0_73, %c0_74] : memref<256x128xbf16, #tpu.memory_space<vmem>>, vector<256x128xbf16>
    %cst_75 = arith.constant dense<0.000000e+00> : vector<8x128xf32>
    %180 = tpu.matmul %178, %179, %cst_75 {dimension_numbers = #tpu.dot_dimension_numbers<[1], [0], [0], [1], [0, 0, 1, 1], [], []>} : vector<8x256xbf16>, vector<256x128xbf16>, vector<8x128xf32> -> vector<8x128xf32>
    %c0_76 = arith.constant 0 : index
    %c0_77 = arith.constant 0 : index
    %181 = vector.load %arg14[%c0_76, %c0_77] : memref<1x128xf32, #tpu.memory_space<vmem>>, vector<1x128xf32>
    %182 = vector.broadcast %181 : vector<1x128xf32> to vector<8x128xf32>
    %183 = arith.addf %180, %182 : vector<8x128xf32>
    %c0_78 = arith.constant 0 : index
    %c0_79 = arith.constant 0 : index
    %184 = vector.load %arg16[%c0_78, %c0_79] : memref<8x128xf32, #tpu.memory_space<vmem>>, vector<8x128xf32>
    tpu.vector_store %arg16[%c0_78, %c0_79], %183 {strides = array<i32>} : memref<8x128xf32, #tpu.memory_space<vmem>>, vector<8x128xf32>,
    return
  }
}

</mosaic_0001>

<llo_original>
// kernel: effnet_forward.1
$region0: #{effnet_forward.1}
  #allocation0 [shape = 'u32[]', space=smem, size = 0x4, offset = 0x4, fixed_abs, tag = 'smem constant byte address 0x4 - core index']
  #allocation1 [shape = 'u32[144,128]{1,0:T(1,128)}', space=vmem, size = 0x12000, scoped, tag = 'internal scratch']
  #allocation2 [shape = 'f32[8,1024]{1,0:T(8,128)}', space=vmem, size = 0x8000, scoped, tag = 'scratch operand']
  #allocation3 [shape = 'f32[8,256]{1,0:T(8,128)}', space=vmem, size = 0x2000, scoped, tag = 'scratch operand']
  %s0 = inlined_call_operand.vmem [shape: f32[8,4,256], index: 0, kind: input, shape index: {}]
  %s1 = inlined_call_operand.vmem [shape: f32[8,128], index: 1, kind: input, shape index: {}]
  %s2 = inlined_call_operand.vmem [shape: f32[128,4], index: 2, kind: input, shape index: {}]
  %s3 = inlined_call_operand.vmem [shape: f32[128,1], index: 3, kind: input, shape index: {}]
  %s4 = inlined_call_operand.vmem [shape: bf16[128,256], index: 4, kind: input, shape index: {}]
  %s5 = inlined_call_operand.vmem [shape: f32[1,256], index: 5, kind: input, shape index: {}]
  %s6 = inlined_call_operand.vmem [shape: bf16[256,1024], index: 6, kind: input, shape index: {}]
  %s7 = inlined_call_operand.vmem [shape: f32[1,1024], index: 7, kind: input, shape index: {}]
  %s8 = inlined_call_operand.hbm [shape: bf16[256,1024], index: 8, kind: input, shape index: {}]
  %s9 = inlined_call_operand.vmem [shape: f32[2,256], index: 9, kind: input, shape index: {}]
  %s10 = inlined_call_operand.vmem [shape: f32[2,256], index: 10, kind: input, shape index: {}]
  %s11 = inlined_call_operand.vmem [shape: bf16[256,384], index: 11, kind: input, shape index: {}]
  %s12 = inlined_call_operand.vmem [shape: f32[1,384], index: 12, kind: input, shape index: {}]
  %s13 = inlined_call_operand.vmem [shape: bf16[256,128], index: 13, kind: input, shape index: {}]
  %s14 = inlined_call_operand.vmem [shape: f32[1,128], index: 14, kind: input, shape index: {}]
  %s15 = inlined_call_operand.vmem [shape: f32[8,384], index: 15, kind: output, shape index: {0}]
  %s16 = inlined_call_operand.vmem [shape: f32[8,128], index: 16, kind: output, shape index: {1}]
  %s17 = inlined_call_operand.hbm [shape: f32[2,256], index: 17, kind: output, shape index: {2}]
  %s18 = inlined_call_operand.hbm [shape: f32[2,256], index: 18, kind: output, shape index: {3}]
  %19 = xla_tuple %s15, %s16, %s17, %s18
  %s20 = sld [smem:[#allocation0]]
  $region98: #{effnet_forward.1} parent=0
    _
  %s22 = ssub.s32 1, %s20
  %s23 = scalar_select 0, %s22, %s20
  $region1: #{effnet_forward.1} parent=0
    #allocation4 [shape = 'u8[524288]{0}', space=vmem, size = 0x80000, scoped, tag = 'input window, operand 8, single buffered']
    #allocation5 [shape = 's32[1]{0}', space=sflag, size = 0x4, scoped, tag = 'scoped memory for effnet_forward.1']
    #allocation6 [shape = 's32[1]{0}', space=sflag, size = 0x4, scoped, tag = 'scoped memory for effnet_forward.1']
    #allocation7 [shape = 'u8[2048]{0}', space=vmem, size = 0x800, scoped, tag = 'output window, operand 2, single buffered']
    #allocation8 [shape = 'u8[2048]{0}', space=vmem, size = 0x800, scoped, tag = 'output window, operand 3, single buffered']
    #allocation9 [shape = 's32[1]{0}', space=sflag, size = 0x4, scoped, tag = 'scoped memory for effnet_forward.1']
    %24 = vsyncpa [#allocation5], 0
    %25 = vsyncpa [#allocation6], 0
    %26 = vsyncpa [#allocation9], 0
    // Predicated region
    $region2: #{effnet_forward.1} parent=1 // pred_check
      _
    $region3: #{effnet_forward.1} parent=1 // pred_check_branch
      %28 = sbr.rel (0) target = $region5
    $region4: #{effnet_forward.1} parent=1 // pred_region
      _
    $region5: #{effnet_forward.1} parent=1 // pred_fallthru
      _
    // Predicated region
    $region6: #{effnet_forward.1} parent=1 // pred_check
      _
    $region7: #{effnet_forward.1} parent=1 // pred_check_branch
      %30 = sbr.rel (0) target = $region9
    $region8: #{effnet_forward.1} parent=1 // pred_region
      _
    $region9: #{effnet_forward.1} parent=1 // pred_fallthru
      _
    // Predicated region
    $region10: #{effnet_forward.1} parent=1 // pred_check
      _
    $region11: #{effnet_forward.1} parent=1 // pred_check_branch
      %32 = sbr.rel (0) target = $region13
    $region12: #{effnet_forward.1} parent=1 // pred_region
      _
    $region13: #{effnet_forward.1} parent=1 // pred_fallthru
      _
    // Predicated region
    $region14: #{effnet_forward.1} parent=1 // pred_check
      _
    $region15: #{effnet_forward.1} parent=1 // pred_check_branch
      %34 = sbr.rel (0) target = $region17
    $region16: #{effnet_forward.1} parent=1 // pred_region
      _
    $region17: #{effnet_forward.1} parent=1 // pred_fallthru
      _
    // Predicated region
    $region18: #{effnet_forward.1} parent=1 // pred_check
      _
    $region19: #{effnet_forward.1} parent=1 // pred_check_branch
      %36 = sbr.rel (0) target = $region21
    $region20: #{effnet_forward.1} parent=1 // pred_region
      _
    $region21: #{effnet_forward.1} parent=1 // pred_fallthru
      _
    // Predicated region
    $region22: #{effnet_forward.1} parent=1 // pred_check
      _
    $region23: #{effnet_forward.1} parent=1 // pred_check_branch
      %38 = sbr.rel (0) target = $region25
    $region24: #{effnet_forward.1} parent=1 // pred_region
      _
    $region25: #{effnet_forward.1} parent=1 // pred_fallthru
      _
    // Predicated region
    $region26: #{effnet_forward.1} parent=1 // pred_check
      _
    $region27: #{effnet_forward.1} parent=1 // pred_check_branch
      %40 = sbr.rel (0) target = $region29
    $region28: #{effnet_forward.1} parent=1 // pred_region
      _
    $region29: #{effnet_forward.1} parent=1 // pred_fallthru
      _
    // Predicated region
    $region30: #{effnet_forward.1} parent=1 // pred_check
      _
    $region31: #{effnet_forward.1} parent=1 // pred_check_branch
      %42 = sbr.rel (0) target = $region33
    $region32: #{effnet_forward.1} parent=1 // pred_region
      _
    $region33: #{effnet_forward.1} parent=1 // pred_fallthru
      _
    // Predicated region
    $region34: #{effnet_forward.1} parent=1 // pred_check
      _
    $region35: #{effnet_forward.1} parent=1 // pred_check_branch
      %44 = sbr.rel (0) target = $region37
    $region36: #{effnet_forward.1} parent=1 // pred_region
      %s46 = ssub.s32 16384, 16384
      %47 = vsyncadd [#allocation5], %s46
      %s48 = sshll.u32 [#allocation4], 4
      %s49 = int_to_ptr.vmem [resolvable:$true] %s48
      %54 = dma.hbm_to_vmem [thread:$0]  %s8, 16384, %s49, [#allocation5], 512, 512, 32
    $region37: #{effnet_forward.1} parent=1 // pred_fallthru
      _
    // Predicated region
    $region38: #{effnet_forward.1} parent=1 // pred_check
      _
    $region39: #{effnet_forward.1} parent=1 // pred_check_branch
      %56 = sbr.rel (0) target = $region41
    $region40: #{effnet_forward.1} parent=1 // pred_region
      _
    $region41: #{effnet_forward.1} parent=1 // pred_fallthru
      _
    // Predicated region
    $region42: #{effnet_forward.1} parent=1 // pred_check
      _
    $region43: #{effnet_forward.1} parent=1 // pred_check_branch
      %58 = sbr.rel (0) target = $region45
    $region44: #{effnet_forward.1} parent=1 // pred_region
      _
    $region45: #{effnet_forward.1} parent=1 // pred_fallthru
      _
    // Predicated region
    $region46: #{effnet_forward.1} parent=1 // pred_check
      _
    $region47: #{effnet_forward.1} parent=1 // pred_check_branch
      %60 = sbr.rel (0) target = $region49
    $region48: #{effnet_forward.1} parent=1 // pred_region
      _
    $region49: #{effnet_forward.1} parent=1 // pred_fallthru
      _
    // Predicated region
    $region50: #{effnet_forward.1} parent=1 // pred_check
      _
    $region51: #{effnet_forward.1} parent=1 // pred_check_branch
      %62 = sbr.rel (0) target = $region53
    $region52: #{effnet_forward.1} parent=1 // pred_region
      _
    $region53: #{effnet_forward.1} parent=1 // pred_fallthru
      _
    // Predicated region
    $region54: #{effnet_forward.1} parent=1 // pred_check
      _
    $region55: #{effnet_forward.1} parent=1 // pred_check_branch
      %64 = sbr.rel (0) target = $region57
    $region56: #{effnet_forward.1} parent=1 // pred_region
      _
    $region57: #{effnet_forward.1} parent=1 // pred_fallthru
      _
    // Predicated region
    $region58: #{effnet_forward.1} parent=1 // pred_check
      _
    $region59: #{effnet_forward.1} parent=1 // pred_check_branch
      %66 = sbr.rel (0) target = $region61
    $region60: #{effnet_forward.1} parent=1 // pred_region
      _
    $region61: #{effnet_forward.1} parent=1 // pred_fallthru
      _
    // Predicated region
    $region62: #{effnet_forward.1} parent=1 // pred_check
      _
    $region63: #{effnet_forward.1} parent=1 // pred_check_branch
      %68 = sbr.rel (0) target = $region65
    $region64: #{effnet_forward.1} parent=1 // pred_region
      %69 = dma.done [#allocation5], 16384
    $region65: #{effnet_forward.1} parent=1 // pred_fallthru
      _
    %v71 = vld [vmem:[%s0] sm:$0xff]
    %v72 = vld [vmem:[%s0 + $0x8] sm:$0xff]
    %v73 = vld [vmem:[%s0 + $0x10] sm:$0xff]
    %v74 = vld [vmem:[%s0 + $0x18] sm:$0xff]
    %v75 = vld [vmem:[%s0 + $0x20] sm:$0xff]
    %v76 = vld [vmem:[%s0 + $0x28] sm:$0xff]
    %v77 = vld [vmem:[%s0 + $0x30] sm:$0xff]
    %v78 = vld [vmem:[%s0 + $0x38] sm:$0xff]
    %v79 = vld [vmem:[%s2] sm:$0xff]
    %v80 = vld [vmem:[%s2 + $0x8] sm:$0xff]
    %v81 = vld [vmem:[%s2 + $0x10] sm:$0xff]
    %v82 = vld [vmem:[%s2 + $0x18] sm:$0xff]
    %v83 = vld [vmem:[%s2 + $0x20] sm:$0xff]
    %v84 = vld [vmem:[%s2 + $0x28] sm:$0xff]
    %v85 = vld [vmem:[%s2 + $0x30] sm:$0xff]
    %v86 = vld [vmem:[%s2 + $0x38] sm:$0xff]
    %v87 = vld [vmem:[%s2 + $0x40] sm:$0xff]
    %v88 = vld [vmem:[%s2 + $0x48] sm:$0xff]
    %v89 = vld [vmem:[%s2 + $0x50] sm:$0xff]
    %v90 = vld [vmem:[%s2 + $0x58] sm:$0xff]
    %v91 = vld [vmem:[%s2 + $0x60] sm:$0xff]
    %v92 = vld [vmem:[%s2 + $0x68] sm:$0xff]
    %v93 = vld [vmem:[%s2 + $0x70] sm:$0xff]
    %v94 = vld [vmem:[%s2 + $0x78] sm:$0xff]
    %v103 = vlaneseq
    %v104 = vshrl.u32 %v103, 7
    %v105 = vsub.s32 0, %v104
    %v106 = vrot.slane %v71, %v105
    %v107 = vlaneseq
    %v108 = vshrl.u32 %v107, 7
    %v109 = vsub.s32 4, %v108
    %v110 = vrot.slane %v71, %v109
    %v111 = vlaneseq
    %v112 = vshrl.u32 %v111, 7
    %v113 = vsub.s32 0, %v112
    %v114 = vrot.slane %v72, %v113
    %v115 = vlaneseq
    %v116 = vshrl.u32 %v115, 7
    %v117 = vsub.s32 4, %v116
    %v118 = vrot.slane %v72, %v117
    %v119 = vlaneseq
    %v120 = vshrl.u32 %v119, 7
    %v121 = vsub.s32 0, %v120
    %v122 = vrot.slane %v73, %v121
    %v123 = vlaneseq
    %v124 = vshrl.u32 %v123, 7
    %v125 = vsub.s32 4, %v124
    %v126 = vrot.slane %v73, %v125
    %v127 = vlaneseq
    %v128 = vshrl.u32 %v127, 7
    %v129 = vsub.s32 0, %v128
    %v130 = vrot.slane %v74, %v129
    %v131 = vlaneseq
    %v132 = vshrl.u32 %v131, 7
    %v133 = vsub.s32 4, %v132
    %v134 = vrot.slane %v74, %v133
    %v135 = vlaneseq
    %v136 = vshrl.u32 %v135, 7
    %v137 = vsub.s32 0, %v136
    %v138 = vrot.slane %v75, %v137
    %v139 = vlaneseq
    %v140 = vshrl.u32 %v139, 7
    %v141 = vsub.s32 4, %v140
    %v142 = vrot.slane %v75, %v141
    %v143 = vlaneseq
    %v144 = vshrl.u32 %v143, 7
    %v145 = vsub.s32 0, %v144
    %v146 = vrot.slane %v76, %v145
    %v147 = vlaneseq
    %v148 = vshrl.u32 %v147, 7
    %v149 = vsub.s32 4, %v148
    %v150 = vrot.slane %v76, %v149
    %v151 = vlaneseq
    %v152 = vshrl.u32 %v151, 7
    %v153 = vsub.s32 0, %v152
    %v154 = vrot.slane %v77, %v153
    %v155 = vlaneseq
    %v156 = vshrl.u32 %v155, 7
    %v157 = vsub.s32 4, %v156
    %v158 = vrot.slane %v77, %v157
    %v159 = vlaneseq
    %v160 = vshrl.u32 %v159, 7
    %v161 = vsub.s32 0, %v160
    %v162 = vrot.slane %v78, %v161
    %v163 = vlaneseq
    %v164 = vshrl.u32 %v163, 7
    %v165 = vsub.s32 4, %v164
    %v166 = vrot.slane %v78, %v165
    %v183 = vlaneseq
    %v184 = vshrl.u32 %v183, 7
    %v185 = vsub.s32 0, %v184
    %v186 = vrot.slane %v106, %v185
    %v187 = vlaneseq
    %v188 = vshrl.u32 %v187, 7
    %v189 = vsub.s32 0, %v188
    %v190 = vrot.slane %v110, %v189
    %v191 = vlaneseq
    %v192 = vshrl.u32 %v191, 7
    %v193 = vsub.s32 0, %v192
    %v194 = vrot.slane %v114, %v193
    %v195 = vlaneseq
    %v196 = vshrl.u32 %v195, 7
    %v197 = vsub.s32 0, %v196
    %v198 = vrot.slane %v118, %v197
    %v199 = vlaneseq
    %v200 = vshrl.u32 %v199, 7
    %v201 = vsub.s32 0, %v200
    %v202 = vrot.slane %v122, %v201
    %v203 = vlaneseq
    %v204 = vshrl.u32 %v203, 7
    %v205 = vsub.s32 0, %v204
    %v206 = vrot.slane %v126, %v205
    %v207 = vlaneseq
    %v208 = vshrl.u32 %v207, 7
    %v209 = vsub.s32 0, %v208
    %v210 = vrot.slane %v130, %v209
    %v211 = vlaneseq
    %v212 = vshrl.u32 %v211, 7
    %v213 = vsub.s32 0, %v212
    %v214 = vrot.slane %v134, %v213
    %v215 = vlaneseq
    %v216 = vshrl.u32 %v215, 7
    %v217 = vsub.s32 0, %v216
    %v218 = vrot.slane %v138, %v217
    %v219 = vlaneseq
    %v220 = vshrl.u32 %v219, 7
    %v221 = vsub.s32 0, %v220
    %v222 = vrot.slane %v142, %v221
    %v223 = vlaneseq
    %v224 = vshrl.u32 %v223, 7
    %v225 = vsub.s32 0, %v224
    %v226 = vrot.slane %v146, %v225
    %v227 = vlaneseq
    %v228 = vshrl.u32 %v227, 7
    %v229 = vsub.s32 0, %v228
    %v230 = vrot.slane %v150, %v229
    %v231 = vlaneseq
    %v232 = vshrl.u32 %v231, 7
    %v233 = vsub.s32 0, %v232
    %v234 = vrot.slane %v154, %v233
    %v235 = vlaneseq
    %v236 = vshrl.u32 %v235, 7
    %v237 = vsub.s32 0, %v236
    %v238 = vrot.slane %v158, %v237
    %v239 = vlaneseq
    %v240 = vshrl.u32 %v239, 7
    %v241 = vsub.s32 0, %v240
    %v242 = vrot.slane %v162, %v241
    %v243 = vlaneseq
    %v244 = vshrl.u32 %v243, 7
    %v245 = vsub.s32 0, %v244
    %v246 = vrot.slane %v166, %v245
    %248 = vset.pattern.permute.xlu0 0
    %249 = vperm.xlu0 %248, %v79
    %v250 = vpop.permute.xlu0 %249
    %253 = vset.pattern.permute.xlu0 0
    %254 = vperm.xlu0 %253, %v80
    %v255 = vpop.permute.xlu0 %254
    %258 = vset.pattern.permute.xlu0 0
    %259 = vperm.xlu0 %258, %v81
    %v260 = vpop.permute.xlu0 %259
    %263 = vset.pattern.permute.xlu0 0
    %264 = vperm.xlu0 %263, %v82
    %v265 = vpop.permute.xlu0 %264
    %268 = vset.pattern.permute.xlu0 0
    %269 = vperm.xlu0 %268, %v83
    %v270 = vpop.permute.xlu0 %269
    %273 = vset.pattern.permute.xlu0 0
    %274 = vperm.xlu0 %273, %v84
    %v275 = vpop.permute.xlu0 %274
    %278 = vset.pattern.permute.xlu0 0
    %279 = vperm.xlu0 %278, %v85
    %v280 = vpop.permute.xlu0 %279
    %283 = vset.pattern.permute.xlu0 0
    %284 = vperm.xlu0 %283, %v86
    %v285 = vpop.permute.xlu0 %284
    %288 = vset.pattern.permute.xlu0 0
    %289 = vperm.xlu0 %288, %v87
    %v290 = vpop.permute.xlu0 %289
    %293 = vset.pattern.permute.xlu0 0
    %294 = vperm.xlu0 %293, %v88
    %v295 = vpop.permute.xlu0 %294
    %298 = vset.pattern.permute.xlu0 0
    %299 = vperm.xlu0 %298, %v89
    %v300 = vpop.permute.xlu0 %299
    %303 = vset.pattern.permute.xlu0 0
    %304 = vperm.xlu0 %303, %v90
    %v305 = vpop.permute.xlu0 %304
    %308 = vset.pattern.permute.xlu0 0
    %309 = vperm.xlu0 %308, %v91
    %v310 = vpop.permute.xlu0 %309
    %313 = vset.pattern.permute.xlu0 0
    %314 = vperm.xlu0 %313, %v92
    %v315 = vpop.permute.xlu0 %314
    %318 = vset.pattern.permute.xlu0 0
    %319 = vperm.xlu0 %318, %v93
    %v320 = vpop.permute.xlu0 %319
    %323 = vset.pattern.permute.xlu0 0
    %324 = vperm.xlu0 %323, %v94
    %v325 = vpop.permute.xlu0 %324
    %v327 = vmul.f32 %v186, %v250
    %v328 = vmul.f32 %v190, %v250
    %v329 = vmul.f32 %v186, %v255
    %v330 = vmul.f32 %v190, %v255
    %v331 = vmul.f32 %v186, %v260
    %v332 = vmul.f32 %v190, %v260
    %v333 = vmul.f32 %v186, %v265
    %v334 = vmul.f32 %v190, %v265
    %v335 = vmul.f32 %v186, %v270
    %v336 = vmul.f32 %v190, %v270
    %v337 = vmul.f32 %v186, %v275
    %v338 = vmul.f32 %v190, %v275
    %v339 = vmul.f32 %v186, %v280
    %v340 = vmul.f32 %v190, %v280
    %v341 = vmul.f32 %v186, %v285
    %v342 = vmul.f32 %v190, %v285
    %v343 = vmul.f32 %v186, %v290
    %v344 = vmul.f32 %v190, %v290
    %v345 = vmul.f32 %v186, %v295
    %v346 = vmul.f32 %v190, %v295
    %v347 = vmul.f32 %v186, %v300
    %v348 = vmul.f32 %v190, %v300
    %v349 = vmul.f32 %v186, %v305
    %v350 = vmul.f32 %v190, %v305
    %v351 = vmul.f32 %v186, %v310
    %v352 = vmul.f32 %v190, %v310
    %v353 = vmul.f32 %v186, %v315
    %v354 = vmul.f32 %v190, %v315
    %v355 = vmul.f32 %v186, %v320
    %v356 = vmul.f32 %v190, %v320
    %v357 = vmul.f32 %v186, %v325
    %v358 = vmul.f32 %v190, %v325
    %v359 = vmul.f32 %v194, %v250
    %v360 = vmul.f32 %v198, %v250
    %v361 = vmul.f32 %v194, %v255
    %v362 = vmul.f32 %v198, %v255
    %v363 = vmul.f32 %v194, %v260
    %v364 = vmul.f32 %v198, %v260
    %v365 = vmul.f32 %v194, %v265
    %v366 = vmul.f32 %v198, %v265
    %v367 = vmul.f32 %v194, %v270
    %v368 = vmul.f32 %v198, %v270
    %v369 = vmul.f32 %v194, %v275
    %v370 = vmul.f32 %v198, %v275
    %v371 = vmul.f32 %v194, %v280
    %v372 = vmul.f32 %v198, %v280
    %v373 = vmul.f32 %v194, %v285
    %v374 = vmul.f32 %v198, %v285
    %v375 = vmul.f32 %v194, %v290
    %v376 = vmul.f32 %v198, %v290
    %v377 = vmul.f32 %v194, %v295
    %v378 = vmul.f32 %v198, %v295
    %v379 = vmul.f32 %v194, %v300
    %v380 = vmul.f32 %v198, %v300
    %v381 = vmul.f32 %v194, %v305
    %v382 = vmul.f32 %v198, %v305
    %v383 = vmul.f32 %v194, %v310
    %v384 = vmul.f32 %v198, %v310
    %v385 = vmul.f32 %v194, %v315
    %v386 = vmul.f32 %v198, %v315
    %v387 = vmul.f32 %v194, %v320
    %v388 = vmul.f32 %v198, %v320
    %v389 = vmul.f32 %v194, %v325
    %v390 = vmul.f32 %v198, %v325
    %v391 = vmul.f32 %v202, %v250
    %v392 = vmul.f32 %v206, %v250
    %v393 = vmul.f32 %v202, %v255
    %v394 = vmul.f32 %v206, %v255
    %v395 = vmul.f32 %v202, %v260
    %v396 = vmul.f32 %v206, %v260
    %v397 = vmul.f32 %v202, %v265
    %v398 = vmul.f32 %v206, %v265
    %v399 = vmul.f32 %v202, %v270
    %v400 = vmul.f32 %v206, %v270
    %v401 = vmul.f32 %v202, %v275
    %v402 = vmul.f32 %v206, %v275
    %v403 = vmul.f32 %v202, %v280
    %v404 = vmul.f32 %v206, %v280
    %v405 = vmul.f32 %v202, %v285
    %v406 = vmul.f32 %v206, %v285
    %v407 = vmul.f32 %v202, %v290
    %v408 = vmul.f32 %v206, %v290
    %v409 = vmul.f32 %v202, %v295
    %v410 = vmul.f32 %v206, %v295
    %v411 = vmul.f32 %v202, %v300
    %v412 = vmul.f32 %v206, %v300
    %v413 = vmul.f32 %v202, %v305
    %v414 = vmul.f32 %v206, %v305
    %v415 = vmul.f32 %v202, %v310
    %v416 = vmul.f32 %v206, %v310
    %v417 = vmul.f32 %v202, %v315
    %v418 = vmul.f32 %v206, %v315
    %v419 = vmul.f32 %v202, %v320
    %v420 = vmul.f32 %v206, %v320
    %v421 = vmul.f32 %v202, %v325
    %v422 = vmul.f32 %v206, %v325
    %v423 = vmul.f32 %v210, %v250
    %v424 = vmul.f32 %v214, %v250
    %v425 = vmul.f32 %v210, %v255
    %v426 = vmul.f32 %v214, %v255
    %v427 = vmul.f32 %v210, %v260
    %v428 = vmul.f32 %v214, %v260
    %v429 = vmul.f32 %v210, %v265
    %v430 = vmul.f32 %v214, %v265
    %v431 = vmul.f32 %v210, %v270
    %v432 = vmul.f32 %v214, %v270
    %v433 = vmul.f32 %v210, %v275
    %v434 = vmul.f32 %v214, %v275
    %v435 = vmul.f32 %v210, %v280
    %v436 = vmul.f32 %v214, %v280
    %v437 = vmul.f32 %v210, %v285
    %v438 = vmul.f32 %v214, %v285
    %v439 = vmul.f32 %v210, %v290
    %v440 = vmul.f32 %v214, %v290
    %v441 = vmul.f32 %v210, %v295
    %v442 = vmul.f32 %v214, %v295
    %v443 = vmul.f32 %v210, %v300
    %v444 = vmul.f32 %v214, %v300
    %v445 = vmul.f32 %v210, %v305
    %v446 = vmul.f32 %v214, %v305
    %v447 = vmul.f32 %v210, %v310
    %v448 = vmul.f32 %v214, %v310
    %v449 = vmul.f32 %v210, %v315
    %v450 = vmul.f32 %v214, %v315
    %v451 = vmul.f32 %v210, %v320
    %v452 = vmul.f32 %v214, %v320
    %v453 = vmul.f32 %v210, %v325
    %v454 = vmul.f32 %v214, %v325
    %v455 = vmul.f32 %v218, %v250
    %v456 = vmul.f32 %v222, %v250
    %v457 = vmul.f32 %v218, %v255
    %v458 = vmul.f32 %v222, %v255
    %v459 = vmul.f32 %v218, %v260
    %v460 = vmul.f32 %v222, %v260
    %v461 = vmul.f32 %v218, %v265
    %v462 = vmul.f32 %v222, %v265
    %v463 = vmul.f32 %v218, %v270
    %v464 = vmul.f32 %v222, %v270
    %v465 = vmul.f32 %v218, %v275
    %v466 = vmul.f32 %v222, %v275
    %v467 = vmul.f32 %v218, %v280
    %v468 = vmul.f32 %v222, %v280
    %v469 = vmul.f32 %v218, %v285
    %v470 = vmul.f32 %v222, %v285
    %v471 = vmul.f32 %v218, %v290
    %v472 = vmul.f32 %v222, %v290
    %v473 = vmul.f32 %v218, %v295
    %v474 = vmul.f32 %v222, %v295
    %v475 = vmul.f32 %v218, %v300
    %v476 = vmul.f32 %v222, %v300
    %v477 = vmul.f32 %v218, %v305
    %v478 = vmul.f32 %v222, %v305
    %v479 = vmul.f32 %v218, %v310
    %v480 = vmul.f32 %v222, %v310
    %v481 = vmul.f32 %v218, %v315
    %v482 = vmul.f32 %v222, %v315
    %v483 = vmul.f32 %v218, %v320
    %v484 = vmul.f32 %v222, %v320
    %v485 = vmul.f32 %v218, %v325
    %v486 = vmul.f32 %v222, %v325
    %v487 = vmul.f32 %v226, %v250
    %v488 = vmul.f32 %v230, %v250
    %v489 = vmul.f32 %v226, %v255
    %v490 = vmul.f32 %v230, %v255
    %v491 = vmul.f32 %v226, %v260
    %v492 = vmul.f32 %v230, %v260
    %v493 = vmul.f32 %v226, %v265
    %v494 = vmul.f32 %v230, %v265
    %v495 = vmul.f32 %v226, %v270
    %v496 = vmul.f32 %v230, %v270
    %v497 = vmul.f32 %v226, %v275
    %v498 = vmul.f32 %v230, %v275
    %v499 = vmul.f32 %v226, %v280
    %v500 = vmul.f32 %v230, %v280
    %v501 = vmul.f32 %v226, %v285
    %v502 = vmul.f32 %v230, %v285
    %v503 = vmul.f32 %v226, %v290
    %v504 = vmul.f32 %v230, %v290
    %v505 = vmul.f32 %v226, %v295
    %v506 = vmul.f32 %v230, %v295
    %v507 = vmul.f32 %v226, %v300
    %v508 = vmul.f32 %v230, %v300
    %v509 = vmul.f32 %v226, %v305
    %v510 = vmul.f32 %v230, %v305
    %v511 = vmul.f32 %v226, %v310
    %v512 = vmul.f32 %v230, %v310
    %v513 = vmul.f32 %v226, %v315
    %v514 = vmul.f32 %v230, %v315
    %v515 = vmul.f32 %v226, %v320
    %v516 = vmul.f32 %v230, %v320
    %v517 = vmul.f32 %v226, %v325
    %v518 = vmul.f32 %v230, %v325
    %v519 = vmul.f32 %v234, %v250
    %v520 = vmul.f32 %v238, %v250
    %v521 = vmul.f32 %v234, %v255
    %v522 = vmul.f32 %v238, %v255
    %v523 = vmul.f32 %v234, %v260
    %v524 = vmul.f32 %v238, %v260
    %v525 = vmul.f32 %v234, %v265
    %v526 = vmul.f32 %v238, %v265
    %v527 = vmul.f32 %v234, %v270
    %v528 = vmul.f32 %v238, %v270
    %v529 = vmul.f32 %v234, %v275
    %v530 = vmul.f32 %v238, %v275
    %v531 = vmul.f32 %v234, %v280
    %v532 = vmul.f32 %v238, %v280
    %v533 = vmul.f32 %v234, %v285
    %v534 = vmul.f32 %v238, %v285
    %v535 = vmul.f32 %v234, %v290
    %v536 = vmul.f32 %v238, %v290
    %v537 = vmul.f32 %v234, %v295
    %v538 = vmul.f32 %v238, %v295
    %v539 = vmul.f32 %v234, %v300
    %v540 = vmul.f32 %v238, %v300
    %v541 = vmul.f32 %v234, %v305
    %v542 = vmul.f32 %v238, %v305
    %v543 = vmul.f32 %v234, %v310
    %v544 = vmul.f32 %v238, %v310
    %v545 = vmul.f32 %v234, %v315
    %v546 = vmul.f32 %v238, %v315
    %v547 = vmul.f32 %v234, %v320
    %v548 = vmul.f32 %v238, %v320
    %v549 = vmul.f32 %v234, %v325
    %v550 = vmul.f32 %v238, %v325
    %v551 = vmul.f32 %v242, %v250
    %v552 = vmul.f32 %v246, %v250
    %v553 = vmul.f32 %v242, %v255
    %v554 = vmul.f32 %v246, %v255
    %v555 = vmul.f32 %v242, %v260
    %v556 = vmul.f32 %v246, %v260
    %v557 = vmul.f32 %v242, %v265
    %v558 = vmul.f32 %v246, %v265
    %v559 = vmul.f32 %v242, %v270
    %v560 = vmul.f32 %v246, %v270
    %v561 = vmul.f32 %v242, %v275
    %v562 = vmul.f32 %v246, %v275
    %v563 = vmul.f32 %v242, %v280
    %v564 = vmul.f32 %v246, %v280
    %v565 = vmul.f32 %v242, %v285
    %v566 = vmul.f32 %v246, %v285
    %v567 = vmul.f32 %v242, %v290
    %v568 = vmul.f32 %v246, %v290
    %v569 = vmul.f32 %v242, %v295
    %v570 = vmul.f32 %v246, %v295
    %v571 = vmul.f32 %v242, %v300
    %v572 = vmul.f32 %v246, %v300
    %v573 = vmul.f32 %v242, %v305
    %v574 = vmul.f32 %v246, %v305
    %v575 = vmul.f32 %v242, %v310
    %v576 = vmul.f32 %v246, %v310
    %v577 = vmul.f32 %v242, %v315
    %v578 = vmul.f32 %v246, %v315
    %v579 = vmul.f32 %v242, %v320
    %v580 = vmul.f32 %v246, %v320
    %v581 = vmul.f32 %v242, %v325
    %v582 = vmul.f32 %v246, %v325
    %v583 = vlaneseq
    %v584 = vshrl.u32 %v583, 7
    %v585 = vsub.s32 1, %v584
    %v586 = vrot.slane %v71, %v585
    %v587 = vlaneseq
    %v588 = vshrl.u32 %v587, 7
    %v589 = vsub.s32 5, %v588
    %v590 = vrot.slane %v71, %v589
    %v591 = vlaneseq
    %v592 = vshrl.u32 %v591, 7
    %v593 = vsub.s32 1, %v592
    %v594 = vrot.slane %v72, %v593
    %v595 = vlaneseq
    %v596 = vshrl.u32 %v595, 7
    %v597 = vsub.s32 5, %v596
    %v598 = vrot.slane %v72, %v597
    %v599 = vlaneseq
    %v600 = vshrl.u32 %v599, 7
    %v601 = vsub.s32 1, %v600
    %v602 = vrot.slane %v73, %v601
    %v603 = vlaneseq
    %v604 = vshrl.u32 %v603, 7
    %v605 = vsub.s32 5, %v604
    %v606 = vrot.slane %v73, %v605
    %v607 = vlaneseq
    %v608 = vshrl.u32 %v607, 7
    %v609 = vsub.s32 1, %v608
    %v610 = vrot.slane %v74, %v609
    %v611 = vlaneseq
    %v612 = vshrl.u32 %v611, 7
    %v613 = vsub.s32 5, %v612
    %v614 = vrot.slane %v74, %v613
    %v615 = vlaneseq
    %v616 = vshrl.u32 %v615, 7
    %v617 = vsub.s32 1, %v616
    %v618 = vrot.slane %v75, %v617
    %v619 = vlaneseq
    %v620 = vshrl.u32 %v619, 7
    %v621 = vsub.s32 5, %v620
    %v622 = vrot.slane %v75, %v621
    %v623 = vlaneseq
    %v624 = vshrl.u32 %v623, 7
    %v625 = vsub.s32 1, %v624
    %v626 = vrot.slane %v76, %v625
    %v627 = vlaneseq
    %v628 = vshrl.u32 %v627, 7
    %v629 = vsub.s32 5, %v628
    %v630 = vrot.slane %v76, %v629
    %v631 = vlaneseq
    %v632 = vshrl.u32 %v631, 7
    %v633 = vsub.s32 1, %v632
    %v634 = vrot.slane %v77, %v633
    %v635 = vlaneseq
    %v636 = vshrl.u32 %v635, 7
    %v637 = vsub.s32 5, %v636
    %v638 = vrot.slane %v77, %v637
    %v639 = vlaneseq
    %v640 = vshrl.u32 %v639, 7
    %v641 = vsub.s32 1, %v640
    %v642 = vrot.slane %v78, %v641
    %v643 = vlaneseq
    %v644 = vshrl.u32 %v643, 7
    %v645 = vsub.s32 5, %v644
    %v646 = vrot.slane %v78, %v645
    %v663 = vlaneseq
    %v664 = vshrl.u32 %v663, 7
    %v665 = vsub.s32 1, %v664
    %v666 = vrot.slane %v586, %v665
    %v667 = vlaneseq
    %v668 = vshrl.u32 %v667, 7
    %v669 = vsub.s32 1, %v668
    %v670 = vrot.slane %v590, %v669
    %v671 = vlaneseq
    %v672 = vshrl.u32 %v671, 7
    %v673 = vsub.s32 1, %v672
    %v674 = vrot.slane %v594, %v673
    %v675 = vlaneseq
    %v676 = vshrl.u32 %v675, 7
    %v677 = vsub.s32 1, %v676
    %v678 = vrot.slane %v598, %v677
    %v679 = vlaneseq
    %v680 = vshrl.u32 %v679, 7
    %v681 = vsub.s32 1, %v680
    %v682 = vrot.slane %v602, %v681
    %v683 = vlaneseq
    %v684 = vshrl.u32 %v683, 7
    %v685 = vsub.s32 1, %v684
    %v686 = vrot.slane %v606, %v685
    %v687 = vlaneseq
    %v688 = vshrl.u32 %v687, 7
    %v689 = vsub.s32 1, %v688
    %v690 = vrot.slane %v610, %v689
    %v691 = vlaneseq
    %v692 = vshrl.u32 %v691, 7
    %v693 = vsub.s32 1, %v692
    %v694 = vrot.slane %v614, %v693
    %v695 = vlaneseq
    %v696 = vshrl.u32 %v695, 7
    %v697 = vsub.s32 1, %v696
    %v698 = vrot.slane %v618, %v697
    %v699 = vlaneseq
    %v700 = vshrl.u32 %v699, 7
    %v701 = vsub.s32 1, %v700
    %v702 = vrot.slane %v622, %v701
    %v703 = vlaneseq
    %v704 = vshrl.u32 %v703, 7
    %v705 = vsub.s32 1, %v704
    %v706 = vrot.slane %v626, %v705
    %v707 = vlaneseq
    %v708 = vshrl.u32 %v707, 7
    %v709 = vsub.s32 1, %v708
    %v710 = vrot.slane %v630, %v709
    %v711 = vlaneseq
    %v712 = vshrl.u32 %v711, 7
    %v713 = vsub.s32 1, %v712
    %v714 = vrot.slane %v634, %v713
    %v715 = vlaneseq
    %v716 = vshrl.u32 %v715, 7
    %v717 = vsub.s32 1, %v716
    %v718 = vrot.slane %v638, %v717
    %v719 = vlaneseq
    %v720 = vshrl.u32 %v719, 7
    %v721 = vsub.s32 1, %v720
    %v722 = vrot.slane %v642, %v721
    %v723 = vlaneseq
    %v724 = vshrl.u32 %v723, 7
    %v725 = vsub.s32 1, %v724
    %v726 = vrot.slane %v646, %v725
    %727 = vset.pattern.permute.xlu0 1
    %728 = vperm.xlu0 %727, %v79
    %v729 = vpop.permute.xlu0 %728
    %731 = vset.pattern.permute.xlu0 1
    %732 = vperm.xlu0 %731, %v80
    %v733 = vpop.permute.xlu0 %732
    %735 = vset.pattern.permute.xlu0 1
    %736 = vperm.xlu0 %735, %v81
    %v737 = vpop.permute.xlu0 %736
    %739 = vset.pattern.permute.xlu0 1
    %740 = vperm.xlu0 %739, %v82
    %v741 = vpop.permute.xlu0 %740
    %743 = vset.pattern.permute.xlu0 1
    %744 = vperm.xlu0 %743, %v83
    %v745 = vpop.permute.xlu0 %744
    %747 = vset.pattern.permute.xlu0 1
    %748 = vperm.xlu0 %747, %v84
    %v749 = vpop.permute.xlu0 %748
    %751 = vset.pattern.permute.xlu0 1
    %752 = vperm.xlu0 %751, %v85
    %v753 = vpop.permute.xlu0 %752
    %755 = vset.pattern.permute.xlu0 1
    %756 = vperm.xlu0 %755, %v86
    %v757 = vpop.permute.xlu0 %756
    %759 = vset.pattern.permute.xlu0 1
    %760 = vperm.xlu0 %759, %v87
    %v761 = vpop.permute.xlu0 %760
    %763 = vset.pattern.permute.xlu0 1
    %764 = vperm.xlu0 %763, %v88
    %v765 = vpop.permute.xlu0 %764
    %767 = vset.pattern.permute.xlu0 1
    %768 = vperm.xlu0 %767, %v89
    %v769 = vpop.permute.xlu0 %768
    %771 = vset.pattern.permute.xlu0 1
    %772 = vperm.xlu0 %771, %v90
    %v773 = vpop.permute.xlu0 %772
    %775 = vset.pattern.permute.xlu0 1
    %776 = vperm.xlu0 %775, %v91
    %v777 = vpop.permute.xlu0 %776
    %779 = vset.pattern.permute.xlu0 1
    %780 = vperm.xlu0 %779, %v92
    %v781 = vpop.permute.xlu0 %780
    %783 = vset.pattern.permute.xlu0 1
    %784 = vperm.xlu0 %783, %v93
    %v785 = vpop.permute.xlu0 %784
    %787 = vset.pattern.permute.xlu0 1
    %788 = vperm.xlu0 %787, %v94
    %v789 = vpop.permute.xlu0 %788
    %v791 = vmul.f32 %v666, %v729
    %v792 = vmul.f32 %v670, %v729
    %v793 = vmul.f32 %v666, %v733
    %v794 = vmul.f32 %v670, %v733
    %v795 = vmul.f32 %v666, %v737
    %v796 = vmul.f32 %v670, %v737
    %v797 = vmul.f32 %v666, %v741
    %v798 = vmul.f32 %v670, %v741
    %v799 = vmul.f32 %v666, %v745
    %v800 = vmul.f32 %v670, %v745
    %v801 = vmul.f32 %v666, %v749
    %v802 = vmul.f32 %v670, %v749
    %v803 = vmul.f32 %v666, %v753
    %v804 = vmul.f32 %v670, %v753
    %v805 = vmul.f32 %v666, %v757
    %v806 = vmul.f32 %v670, %v757
    %v807 = vmul.f32 %v666, %v761
    %v808 = vmul.f32 %v670, %v761
    %v809 = vmul.f32 %v666, %v765
    %v810 = vmul.f32 %v670, %v765
    %v811 = vmul.f32 %v666, %v769
    %v812 = vmul.f32 %v670, %v769
    %v813 = vmul.f32 %v666, %v773
    %v814 = vmul.f32 %v670, %v773
    %v815 = vmul.f32 %v666, %v777
    %v816 = vmul.f32 %v670, %v777
    %v817 = vmul.f32 %v666, %v781
    %v818 = vmul.f32 %v670, %v781
    %v819 = vmul.f32 %v666, %v785
    %v820 = vmul.f32 %v670, %v785
    %v821 = vmul.f32 %v666, %v789
    %v822 = vmul.f32 %v670, %v789
    %v823 = vmul.f32 %v674, %v729
    %v824 = vmul.f32 %v678, %v729
    %v825 = vmul.f32 %v674, %v733
    %v826 = vmul.f32 %v678, %v733
    %v827 = vmul.f32 %v674, %v737
    %v828 = vmul.f32 %v678, %v737
    %v829 = vmul.f32 %v674, %v741
    %v830 = vmul.f32 %v678, %v741
    %v831 = vmul.f32 %v674, %v745
    %v832 = vmul.f32 %v678, %v745
    %v833 = vmul.f32 %v674, %v749
    %v834 = vmul.f32 %v678, %v749
    %v835 = vmul.f32 %v674, %v753
    %v836 = vmul.f32 %v678, %v753
    %v837 = vmul.f32 %v674, %v757
    %v838 = vmul.f32 %v678, %v757
    %v839 = vmul.f32 %v674, %v761
    %v840 = vmul.f32 %v678, %v761
    %v841 = vmul.f32 %v674, %v765
    %v842 = vmul.f32 %v678, %v765
    %v843 = vmul.f32 %v674, %v769
    %v844 = vmul.f32 %v678, %v769
    %v845 = vmul.f32 %v674, %v773
    %v846 = vmul.f32 %v678, %v773
    %v847 = vmul.f32 %v674, %v777
    %v848 = vmul.f32 %v678, %v777
    %v849 = vmul.f32 %v674, %v781
    %v850 = vmul.f32 %v678, %v781
    %v851 = vmul.f32 %v674, %v785
    %v852 = vmul.f32 %v678, %v785
    %v853 = vmul.f32 %v674, %v789
    %v854 = vmul.f32 %v678, %v789
    %v855 = vmul.f32 %v682, %v729
    %v856 = vmul.f32 %v686, %v729
    %v857 = vmul.f32 %v682, %v733
    %v858 = vmul.f32 %v686, %v733
    %v859 = vmul.f32 %v682, %v737
    %v860 = vmul.f32 %v686, %v737
    %v861 = vmul.f32 %v682, %v741
    %v862 = vmul.f32 %v686, %v741
    %v863 = vmul.f32 %v682, %v745
    %v864 = vmul.f32 %v686, %v745
    %v865 = vmul.f32 %v682, %v749
    %v866 = vmul.f32 %v686, %v749
    %v867 = vmul.f32 %v682, %v753
    %v868 = vmul.f32 %v686, %v753
    %v869 = vmul.f32 %v682, %v757
    %v870 = vmul.f32 %v686, %v757
    %v871 = vmul.f32 %v682, %v761
    %v872 = vmul.f32 %v686, %v761
    %v873 = vmul.f32 %v682, %v765
    %v874 = vmul.f32 %v686, %v765
    %v875 = vmul.f32 %v682, %v769
    %v876 = vmul.f32 %v686, %v769
    %v877 = vmul.f32 %v682, %v773
    %v878 = vmul.f32 %v686, %v773
    %v879 = vmul.f32 %v682, %v777
    %v880 = vmul.f32 %v686, %v777
    %v881 = vmul.f32 %v682, %v781
    %v882 = vmul.f32 %v686, %v781
    %v883 = vmul.f32 %v682, %v785
    %v884 = vmul.f32 %v686, %v785
    %v885 = vmul.f32 %v682, %v789
    %v886 = vmul.f32 %v686, %v789
    %v887 = vmul.f32 %v690, %v729
    %v888 = vmul.f32 %v694, %v729
    %v889 = vmul.f32 %v690, %v733
    %v890 = vmul.f32 %v694, %v733
    %v891 = vmul.f32 %v690, %v737
    %v892 = vmul.f32 %v694, %v737
    %v893 = vmul.f32 %v690, %v741
    %v894 = vmul.f32 %v694, %v741
    %v895 = vmul.f32 %v690, %v745
    %v896 = vmul.f32 %v694, %v745
    %v897 = vmul.f32 %v690, %v749
    %v898 = vmul.f32 %v694, %v749
    %v899 = vmul.f32 %v690, %v753
    %v900 = vmul.f32 %v694, %v753
    %v901 = vmul.f32 %v690, %v757
    %v902 = vmul.f32 %v694, %v757
    %v903 = vmul.f32 %v690, %v761
    %v904 = vmul.f32 %v694, %v761
    %v905 = vmul.f32 %v690, %v765
    %v906 = vmul.f32 %v694, %v765
    %v907 = vmul.f32 %v690, %v769
    %v908 = vmul.f32 %v694, %v769
    %v909 = vmul.f32 %v690, %v773
    %v910 = vmul.f32 %v694, %v773
    %v911 = vmul.f32 %v690, %v777
    %v912 = vmul.f32 %v694, %v777
    %v913 = vmul.f32 %v690, %v781
    %v914 = vmul.f32 %v694, %v781
    %v915 = vmul.f32 %v690, %v785
    %v916 = vmul.f32 %v694, %v785
    %v917 = vmul.f32 %v690, %v789
    %v918 = vmul.f32 %v694, %v789
    %v919 = vmul.f32 %v698, %v729
    %v920 = vmul.f32 %v702, %v729
    %v921 = vmul.f32 %v698, %v733
    %v922 = vmul.f32 %v702, %v733
    %v923 = vmul.f32 %v698, %v737
    %v924 = vmul.f32 %v702, %v737
    %v925 = vmul.f32 %v698, %v741
    %v926 = vmul.f32 %v702, %v741
    %v927 = vmul.f32 %v698, %v745
    %v928 = vmul.f32 %v702, %v745
    %v929 = vmul.f32 %v698, %v749
    %v930 = vmul.f32 %v702, %v749
    %v931 = vmul.f32 %v698, %v753
    %v932 = vmul.f32 %v702, %v753
    %v933 = vmul.f32 %v698, %v757
    %v934 = vmul.f32 %v702, %v757
    %v935 = vmul.f32 %v698, %v761
    %v936 = vmul.f32 %v702, %v761
    %v937 = vmul.f32 %v698, %v765
    %v938 = vmul.f32 %v702, %v765
    %v939 = vmul.f32 %v698, %v769
    %v940 = vmul.f32 %v702, %v769
    %v941 = vmul.f32 %v698, %v773
    %v942 = vmul.f32 %v702, %v773
    %v943 = vmul.f32 %v698, %v777
    %v944 = vmul.f32 %v702, %v777
    %v945 = vmul.f32 %v698, %v781
    %v946 = vmul.f32 %v702, %v781
    %v947 = vmul.f32 %v698, %v785
    %v948 = vmul.f32 %v702, %v785
    %v949 = vmul.f32 %v698, %v789
    %v950 = vmul.f32 %v702, %v789
    %v951 = vmul.f32 %v706, %v729
    %v952 = vmul.f32 %v710, %v729
    %v953 = vmul.f32 %v706, %v733
    %v954 = vmul.f32 %v710, %v733
    %v955 = vmul.f32 %v706, %v737
    %v956 = vmul.f32 %v710, %v737
    %v957 = vmul.f32 %v706, %v741
    %v958 = vmul.f32 %v710, %v741
    %v959 = vmul.f32 %v706, %v745
    %v960 = vmul.f32 %v710, %v745
    %v961 = vmul.f32 %v706, %v749
    %v962 = vmul.f32 %v710, %v749
    %v963 = vmul.f32 %v706, %v753
    %v964 = vmul.f32 %v710, %v753
    %v965 = vmul.f32 %v706, %v757
    %v966 = vmul.f32 %v710, %v757
    %v967 = vmul.f32 %v706, %v761
    %v968 = vmul.f32 %v710, %v761
    %v969 = vmul.f32 %v706, %v765
    %v970 = vmul.f32 %v710, %v765
    %v971 = vmul.f32 %v706, %v769
    %v972 = vmul.f32 %v710, %v769
    %v973 = vmul.f32 %v706, %v773
    %v974 = vmul.f32 %v710, %v773
    %v975 = vmul.f32 %v706, %v777
    %v976 = vmul.f32 %v710, %v777
    %v977 = vmul.f32 %v706, %v781
    %v978 = vmul.f32 %v710, %v781
    %v979 = vmul.f32 %v706, %v785
    %v980 = vmul.f32 %v710, %v785
    %v981 = vmul.f32 %v706, %v789
    %v982 = vmul.f32 %v710, %v789
    %v983 = vmul.f32 %v714, %v729
    %v984 = vmul.f32 %v718, %v729
    %v985 = vmul.f32 %v714, %v733
    %v986 = vmul.f32 %v718, %v733
    %v987 = vmul.f32 %v714, %v737
    %v988 = vmul.f32 %v718, %v737
    %v989 = vmul.f32 %v714, %v741
    %v990 = vmul.f32 %v718, %v741
    %v991 = vmul.f32 %v714, %v745
    %v992 = vmul.f32 %v718, %v745
    %v993 = vmul.f32 %v714, %v749
    %v994 = vmul.f32 %v718, %v749
    %v995 = vmul.f32 %v714, %v753
    %v996 = vmul.f32 %v718, %v753
    %v997 = vmul.f32 %v714, %v757
    %v998 = vmul.f32 %v718, %v757
    %v999 = vmul.f32 %v714, %v761
    %v1000 = vmul.f32 %v718, %v761
    %v1001 = vmul.f32 %v714, %v765
    %v1002 = vmul.f32 %v718, %v765
    %v1003 = vmul.f32 %v714, %v769
    %v1004 = vmul.f32 %v718, %v769
    %v1005 = vmul.f32 %v714, %v773
    %v1006 = vmul.f32 %v718, %v773
    %v1007 = vmul.f32 %v714, %v777
    %v1008 = vmul.f32 %v718, %v777
    %v1009 = vmul.f32 %v714, %v781
    %v1010 = vmul.f32 %v718, %v781
    %v1011 = vmul.f32 %v714, %v785
    %v1012 = vmul.f32 %v718, %v785
    %v1013 = vmul.f32 %v714, %v789
    %v1014 = vmul.f32 %v718, %v789
    %v1015 = vmul.f32 %v722, %v729
    %v1016 = vmul.f32 %v726, %v729
    %v1017 = vmul.f32 %v722, %v733
    %v1018 = vmul.f32 %v726, %v733
    %v1019 = vmul.f32 %v722, %v737
    %v1020 = vmul.f32 %v726, %v737
    %v1021 = vmul.f32 %v722, %v741
    %v1022 = vmul.f32 %v726, %v741
    %v1023 = vmul.f32 %v722, %v745
    %v1024 = vmul.f32 %v726, %v745
    %v1025 = vmul.f32 %v722, %v749
    %v1026 = vmul.f32 %v726, %v749
    %v1027 = vmul.f32 %v722, %v753
    %v1028 = vmul.f32 %v726, %v753
    %v1029 = vmul.f32 %v722, %v757
    %v1030 = vmul.f32 %v726, %v757
    %v1031 = vmul.f32 %v722, %v761
    %v1032 = vmul.f32 %v726, %v761
    %v1033 = vmul.f32 %v722, %v765
    %v1034 = vmul.f32 %v726, %v765
    %v1035 = vmul.f32 %v722, %v769
    %v1036 = vmul.f32 %v726, %v769
    %v1037 = vmul.f32 %v722, %v773
    %v1038 = vmul.f32 %v726, %v773
    %v1039 = vmul.f32 %v722, %v777
    %v1040 = vmul.f32 %v726, %v777
    %v1041 = vmul.f32 %v722, %v781
    %v1042 = vmul.f32 %v726, %v781
    %v1043 = vmul.f32 %v722, %v785
    %v1044 = vmul.f32 %v726, %v785
    %v1045 = vmul.f32 %v722, %v789
    %v1046 = vmul.f32 %v726, %v789
    %v1047 = vadd.f32 %v327, %v791
    %v1048 = vadd.f32 %v328, %v792
    %v1049 = vadd.f32 %v329, %v793
    %v1050 = vadd.f32 %v330, %v794
    %v1051 = vadd.f32 %v331, %v795
    %v1052 = vadd.f32 %v332, %v796
    %v1053 = vadd.f32 %v333, %v797
    %v1054 = vadd.f32 %v334, %v798
    %v1055 = vadd.f32 %v335, %v799
    %v1056 = vadd.f32 %v336, %v800
    %v1057 = vadd.f32 %v337, %v801
    %v1058 = vadd.f32 %v338, %v802
    %v1059 = vadd.f32 %v339, %v803
    %v1060 = vadd.f32 %v340, %v804
    %v1061 = vadd.f32 %v341, %v805
    %v1062 = vadd.f32 %v342, %v806
    %v1063 = vadd.f32 %v343, %v807
    %v1064 = vadd.f32 %v344, %v808
    %v1065 = vadd.f32 %v345, %v809
    %v1066 = vadd.f32 %v346, %v810
    %v1067 = vadd.f32 %v347, %v811
    %v1068 = vadd.f32 %v348, %v812
    %v1069 = vadd.f32 %v349, %v813
    %v1070 = vadd.f32 %v350, %v814
    %v1071 = vadd.f32 %v351, %v815
    %v1072 = vadd.f32 %v352, %v816
    %v1073 = vadd.f32 %v353, %v817
    %v1074 = vadd.f32 %v354, %v818
    %v1075 = vadd.f32 %v355, %v819
    %v1076 = vadd.f32 %v356, %v820
    %v1077 = vadd.f32 %v357, %v821
    %v1078 = vadd.f32 %v358, %v822
    %v1079 = vadd.f32 %v359, %v823
    %v1080 = vadd.f32 %v360, %v824
    %v1081 = vadd.f32 %v361, %v825
    %v1082 = vadd.f32 %v362, %v826
    %v1083 = vadd.f32 %v363, %v827
    %v1084 = vadd.f32 %v364, %v828
    %v1085 = vadd.f32 %v365, %v829
    %v1086 = vadd.f32 %v366, %v830
    %v1087 = vadd.f32 %v367, %v831
    %v1088 = vadd.f32 %v368, %v832
    %v1089 = vadd.f32 %v369, %v833
    %v1090 = vadd.f32 %v370, %v834
    %v1091 = vadd.f32 %v371, %v835
    %v1092 = vadd.f32 %v372, %v836
    %v1093 = vadd.f32 %v373, %v837
    %v1094 = vadd.f32 %v374, %v838
    %v1095 = vadd.f32 %v375, %v839
    %v1096 = vadd.f32 %v376, %v840
    %v1097 = vadd.f32 %v377, %v841
    %v1098 = vadd.f32 %v378, %v842
    %v1099 = vadd.f32 %v379, %v843
    %v1100 = vadd.f32 %v380, %v844
    %v1101 = vadd.f32 %v381, %v845
    %v1102 = vadd.f32 %v382, %v846
    %v1103 = vadd.f32 %v383, %v847
    %v1104 = vadd.f32 %v384, %v848
    %v1105 = vadd.f32 %v385, %v849
    %v1106 = vadd.f32 %v386, %v850
    %v1107 = vadd.f32 %v387, %v851
    %v1108 = vadd.f32 %v388, %v852
    %v1109 = vadd.f32 %v389, %v853
    %v1110 = vadd.f32 %v390, %v854
    %v1111 = vadd.f32 %v391, %v855
    %v1112 = vadd.f32 %v392, %v856
    %v1113 = vadd.f32 %v393, %v857
    %v1114 = vadd.f32 %v394, %v858
    %v1115 = vadd.f32 %v395, %v859
    %v1116 = vadd.f32 %v396, %v860
    %v1117 = vadd.f32 %v397, %v861
    %v1118 = vadd.f32 %v398, %v862
    %v1119 = vadd.f32 %v399, %v863
    %v1120 = vadd.f32 %v400, %v864
    %v1121 = vadd.f32 %v401, %v865
    %v1122 = vadd.f32 %v402, %v866
    %v1123 = vadd.f32 %v403, %v867
    %v1124 = vadd.f32 %v404, %v868
    %v1125 = vadd.f32 %v405, %v869
    %v1126 = vadd.f32 %v406, %v870
    %v1127 = vadd.f32 %v407, %v871
    %v1128 = vadd.f32 %v408, %v872
    %v1129 = vadd.f32 %v409, %v873
    %v1130 = vadd.f32 %v410, %v874
    %v1131 = vadd.f32 %v411, %v875
    %v1132 = vadd.f32 %v412, %v876
    %v1133 = vadd.f32 %v413, %v877
    %v1134 = vadd.f32 %v414, %v878
    %v1135 = vadd.f32 %v415, %v879
    %v1136 = vadd.f32 %v416, %v880
    %v1137 = vadd.f32 %v417, %v881
    %v1138 = vadd.f32 %v418, %v882
    %v1139 = vadd.f32 %v419, %v883
    %v1140 = vadd.f32 %v420, %v884
    %v1141 = vadd.f32 %v421, %v885
    %v1142 = vadd.f32 %v422, %v886
    %v1143 = vadd.f32 %v423, %v887
    %v1144 = vadd.f32 %v424, %v888
    %v1145 = vadd.f32 %v425, %v889
    %v1146 = vadd.f32 %v426, %v890
    %v1147 = vadd.f32 %v427, %v891
    %v1148 = vadd.f32 %v428, %v892
    %v1149 = vadd.f32 %v429, %v893
    %v1150 = vadd.f32 %v430, %v894
    %v1151 = vadd.f32 %v431, %v895
    %v1152 = vadd.f32 %v432, %v896
    %v1153 = vadd.f32 %v433, %v897
    %v1154 = vadd.f32 %v434, %v898
    %v1155 = vadd.f32 %v435, %v899
    %v1156 = vadd.f32 %v436, %v900
    %v1157 = vadd.f32 %v437, %v901
    %v1158 = vadd.f32 %v438, %v902
    %v1159 = vadd.f32 %v439, %v903
    %v1160 = vadd.f32 %v440, %v904
    %v1161 = vadd.f32 %v441, %v905
    %v1162 = vadd.f32 %v442, %v906
    %v1163 = vadd.f32 %v443, %v907
    %v1164 = vadd.f32 %v444, %v908
    %v1165 = vadd.f32 %v445, %v909
    %v1166 = vadd.f32 %v446, %v910
    %v1167 = vadd.f32 %v447, %v911
    %v1168 = vadd.f32 %v448, %v912
    %v1169 = vadd.f32 %v449, %v913
    %v1170 = vadd.f32 %v450, %v914
    %v1171 = vadd.f32 %v451, %v915
    %v1172 = vadd.f32 %v452, %v916
    %v1173 = vadd.f32 %v453, %v917
    %v1174 = vadd.f32 %v454, %v918
    %v1175 = vadd.f32 %v455, %v919
    %v1176 = vadd.f32 %v456, %v920
    %v1177 = vadd.f32 %v457, %v921
    %v1178 = vadd.f32 %v458, %v922
    %v1179 = vadd.f32 %v459, %v923
    %v1180 = vadd.f32 %v460, %v924
    %v1181 = vadd.f32 %v461, %v925
    %v1182 = vadd.f32 %v462, %v926
    %v1183 = vadd.f32 %v463, %v927
    %v1184 = vadd.f32 %v464, %v928
    %v1185 = vadd.f32 %v465, %v929
    %v1186 = vadd.f32 %v466, %v930
    %v1187 = vadd.f32 %v467, %v931
    %v1188 = vadd.f32 %v468, %v932
    %v1189 = vadd.f32 %v469, %v933
    %v1190 = vadd.f32 %v470, %v934
    %v1191 = vadd.f32 %v471, %v935
    %v1192 = vadd.f32 %v472, %v936
    %v1193 = vadd.f32 %v473, %v937
    %v1194 = vadd.f32 %v474, %v938
    %v1195 = vadd.f32 %v475, %v939
    %v1196 = vadd.f32 %v476, %v940
    %v1197 = vadd.f32 %v477, %v941
    %v1198 = vadd.f32 %v478, %v942
    %v1199 = vadd.f32 %v479, %v943
    %v1200 = vadd.f32 %v480, %v944
    %v1201 = vadd.f32 %v481, %v945
    %v1202 = vadd.f32 %v482, %v946
    %v1203 = vadd.f32 %v483, %v947
    %v1204 = vadd.f32 %v484, %v948
    %v1205 = vadd.f32 %v485, %v949
    %v1206 = vadd.f32 %v486, %v950
    %v1207 = vadd.f32 %v487, %v951
    %v1208 = vadd.f32 %v488, %v952
    %v1209 = vadd.f32 %v489, %v953
    %v1210 = vadd.f32 %v490, %v954
    %v1211 = vadd.f32 %v491, %v955
    %v1212 = vadd.f32 %v492, %v956
    %v1213 = vadd.f32 %v493, %v957
    %v1214 = vadd.f32 %v494, %v958
    %v1215 = vadd.f32 %v495, %v959
    %v1216 = vadd.f32 %v496, %v960
    %v1217 = vadd.f32 %v497, %v961
    %v1218 = vadd.f32 %v498, %v962
    %v1219 = vadd.f32 %v499, %v963
    %v1220 = vadd.f32 %v500, %v964
    %v1221 = vadd.f32 %v501, %v965
    %v1222 = vadd.f32 %v502, %v966
    %v1223 = vadd.f32 %v503, %v967
    %v1224 = vadd.f32 %v504, %v968
    %v1225 = vadd.f32 %v505, %v969
    %v1226 = vadd.f32 %v506, %v970
    %v1227 = vadd.f32 %v507, %v971
    %v1228 = vadd.f32 %v508, %v972
    %v1229 = vadd.f32 %v509, %v973
    %v1230 = vadd.f32 %v510, %v974
    %v1231 = vadd.f32 %v511, %v975
    %v1232 = vadd.f32 %v512, %v976
    %v1233 = vadd.f32 %v513, %v977
    %v1234 = vadd.f32 %v514, %v978
    %v1235 = vadd.f32 %v515, %v979
    %v1236 = vadd.f32 %v516, %v980
    %v1237 = vadd.f32 %v517, %v981
    %v1238 = vadd.f32 %v518, %v982
    %v1239 = vadd.f32 %v519, %v983
    %v1240 = vadd.f32 %v520, %v984
    %v1241 = vadd.f32 %v521, %v985
    %v1242 = vadd.f32 %v522, %v986
    %v1243 = vadd.f32 %v523, %v987
    %v1244 = vadd.f32 %v524, %v988
    %v1245 = vadd.f32 %v525, %v989
    %v1246 = vadd.f32 %v526, %v990
    %v1247 = vadd.f32 %v527, %v991
    %v1248 = vadd.f32 %v528, %v992
    %v1249 = vadd.f32 %v529, %v993
    %v1250 = vadd.f32 %v530, %v994
    %v1251 = vadd.f32 %v531, %v995
    %v1252 = vadd.f32 %v532, %v996
    %v1253 = vadd.f32 %v533, %v997
    %v1254 = vadd.f32 %v534, %v998
    %v1255 = vadd.f32 %v535, %v999
    %v1256 = vadd.f32 %v536, %v1000
    %v1257 = vadd.f32 %v537, %v1001
    %v1258 = vadd.f32 %v538, %v1002
    %v1259 = vadd.f32 %v539, %v1003
    %v1260 = vadd.f32 %v540, %v1004
    %v1261 = vadd.f32 %v541, %v1005
    %v1262 = vadd.f32 %v542, %v1006
    %v1263 = vadd.f32 %v543, %v1007
    %v1264 = vadd.f32 %v544, %v1008
    %v1265 = vadd.f32 %v545, %v1009
    %v1266 = vadd.f32 %v546, %v1010
    %v1267 = vadd.f32 %v547, %v1011
    %v1268 = vadd.f32 %v548, %v1012
    %v1269 = vadd.f32 %v549, %v1013
    %v1270 = vadd.f32 %v550, %v1014
    %v1271 = vadd.f32 %v551, %v1015
    %v1272 = vadd.f32 %v552, %v1016
    %v1273 = vadd.f32 %v553, %v1017
    %v1274 = vadd.f32 %v554, %v1018
    %v1275 = vadd.f32 %v555, %v1019
    %v1276 = vadd.f32 %v556, %v1020
    %v1277 = vadd.f32 %v557, %v1021
    %v1278 = vadd.f32 %v558, %v1022
    %v1279 = vadd.f32 %v559, %v1023
    %v1280 = vadd.f32 %v560, %v1024
    %v1281 = vadd.f32 %v561, %v1025
    %v1282 = vadd.f32 %v562, %v1026
    %v1283 = vadd.f32 %v563, %v1027
    %v1284 = vadd.f32 %v564, %v1028
    %v1285 = vadd.f32 %v565, %v1029
    %v1286 = vadd.f32 %v566, %v1030
    %v1287 = vadd.f32 %v567, %v1031
    %v1288 = vadd.f32 %v568, %v1032
    %v1289 = vadd.f32 %v569, %v1033
    %v1290 = vadd.f32 %v570, %v1034
    %v1291 = vadd.f32 %v571, %v1035
    %v1292 = vadd.f32 %v572, %v1036
    %v1293 = vadd.f32 %v573, %v1037
    %v1294 = vadd.f32 %v574, %v1038
    %v1295 = vadd.f32 %v575, %v1039
    %v1296 = vadd.f32 %v576, %v1040
    %v1297 = vadd.f32 %v577, %v1041
    %v1298 = vadd.f32 %v578, %v1042
    %v1299 = vadd.f32 %v579, %v1043
    %v1300 = vadd.f32 %v580, %v1044
    %v1301 = vadd.f32 %v581, %v1045
    %v1302 = vadd.f32 %v582, %v1046
    %v1303 = vlaneseq
    %v1304 = vshrl.u32 %v1303, 7
    %v1305 = vsub.s32 2, %v1304
    %v1306 = vrot.slane %v71, %v1305
    %v1307 = vlaneseq
    %v1308 = vshrl.u32 %v1307, 7
    %v1309 = vsub.s32 6, %v1308
    %v1310 = vrot.slane %v71, %v1309
    %v1311 = vlaneseq
    %v1312 = vshrl.u32 %v1311, 7
    %v1313 = vsub.s32 2, %v1312
    %v1314 = vrot.slane %v72, %v1313
    %v1315 = vlaneseq
    %v1316 = vshrl.u32 %v1315, 7
    %v1317 = vsub.s32 6, %v1316
    %v1318 = vrot.slane %v72, %v1317
    %v1319 = vlaneseq
    %v1320 = vshrl.u32 %v1319, 7
    %v1321 = vsub.s32 2, %v1320
    %v1322 = vrot.slane %v73, %v1321
    %v1323 = vlaneseq
    %v1324 = vshrl.u32 %v1323, 7
    %v1325 = vsub.s32 6, %v1324
    %v1326 = vrot.slane %v73, %v1325
    %v1327 = vlaneseq
    %v1328 = vshrl.u32 %v1327, 7
    %v1329 = vsub.s32 2, %v1328
    %v1330 = vrot.slane %v74, %v1329
    %v1331 = vlaneseq
    %v1332 = vshrl.u32 %v1331, 7
    %v1333 = vsub.s32 6, %v1332
    %v1334 = vrot.slane %v74, %v1333
    %v1335 = vlaneseq
    %v1336 = vshrl.u32 %v1335, 7
    %v1337 = vsub.s32 2, %v1336
    %v1338 = vrot.slane %v75, %v1337
    %v1339 = vlaneseq
    %v1340 = vshrl.u32 %v1339, 7
    %v1341 = vsub.s32 6, %v1340
    %v1342 = vrot.slane %v75, %v1341
    %v1343 = vlaneseq
    %v1344 = vshrl.u32 %v1343, 7
    %v1345 = vsub.s32 2, %v1344
    %v1346 = vrot.slane %v76, %v1345
    %v1347 = vlaneseq
    %v1348 = vshrl.u32 %v1347, 7
    %v1349 = vsub.s32 6, %v1348
    %v1350 = vrot.slane %v76, %v1349
    %v1351 = vlaneseq
    %v1352 = vshrl.u32 %v1351, 7
    %v1353 = vsub.s32 2, %v1352
    %v1354 = vrot.slane %v77, %v1353
    %v1355 = vlaneseq
    %v1356 = vshrl.u32 %v1355, 7
    %v1357 = vsub.s32 6, %v1356
    %v1358 = vrot.slane %v77, %v1357
    %v1359 = vlaneseq
    %v1360 = vshrl.u32 %v1359, 7
    %v1361 = vsub.s32 2, %v1360
    %v1362 = vrot.slane %v78, %v1361
    %v1363 = vlaneseq
    %v1364 = vshrl.u32 %v1363, 7
    %v1365 = vsub.s32 6, %v1364
    %v1366 = vrot.slane %v78, %v1365
    %v1383 = vlaneseq
    %v1384 = vshrl.u32 %v1383, 7
    %v1385 = vsub.s32 2, %v1384
    %v1386 = vrot.slane %v1306, %v1385
    %v1387 = vlaneseq
    %v1388 = vshrl.u32 %v1387, 7
    %v1389 = vsub.s32 2, %v1388
    %v1390 = vrot.slane %v1310, %v1389
    %v1391 = vlaneseq
    %v1392 = vshrl.u32 %v1391, 7
    %v1393 = vsub.s32 2, %v1392
    %v1394 = vrot.slane %v1314, %v1393
    %v1395 = vlaneseq
    %v1396 = vshrl.u32 %v1395, 7
    %v1397 = vsub.s32 2, %v1396
    %v1398 = vrot.slane %v1318, %v1397
    %v1399 = vlaneseq
    %v1400 = vshrl.u32 %v1399, 7
    %v1401 = vsub.s32 2, %v1400
    %v1402 = vrot.slane %v1322, %v1401
    %v1403 = vlaneseq
    %v1404 = vshrl.u32 %v1403, 7
    %v1405 = vsub.s32 2, %v1404
    %v1406 = vrot.slane %v1326, %v1405
    %v1407 = vlaneseq
    %v1408 = vshrl.u32 %v1407, 7
    %v1409 = vsub.s32 2, %v1408
    %v1410 = vrot.slane %v1330, %v1409
    %v1411 = vlaneseq
    %v1412 = vshrl.u32 %v1411, 7
    %v1413 = vsub.s32 2, %v1412
    %v1414 = vrot.slane %v1334, %v1413
    %v1415 = vlaneseq
    %v1416 = vshrl.u32 %v1415, 7
    %v1417 = vsub.s32 2, %v1416
    %v1418 = vrot.slane %v1338, %v1417
    %v1419 = vlaneseq
    %v1420 = vshrl.u32 %v1419, 7
    %v1421 = vsub.s32 2, %v1420
    %v1422 = vrot.slane %v1342, %v1421
    %v1423 = vlaneseq
    %v1424 = vshrl.u32 %v1423, 7
    %v1425 = vsub.s32 2, %v1424
    %v1426 = vrot.slane %v1346, %v1425
    %v1427 = vlaneseq
    %v1428 = vshrl.u32 %v1427, 7
    %v1429 = vsub.s32 2, %v1428
    %v1430 = vrot.slane %v1350, %v1429
    %v1431 = vlaneseq
    %v1432 = vshrl.u32 %v1431, 7
    %v1433 = vsub.s32 2, %v1432
    %v1434 = vrot.slane %v1354, %v1433
    %v1435 = vlaneseq
    %v1436 = vshrl.u32 %v1435, 7
    %v1437 = vsub.s32 2, %v1436
    %v1438 = vrot.slane %v1358, %v1437
    %v1439 = vlaneseq
    %v1440 = vshrl.u32 %v1439, 7
    %v1441 = vsub.s32 2, %v1440
    %v1442 = vrot.slane %v1362, %v1441
    %v1443 = vlaneseq
    %v1444 = vshrl.u32 %v1443, 7
    %v1445 = vsub.s32 2, %v1444
    %v1446 = vrot.slane %v1366, %v1445
    %1447 = vset.pattern.permute.xlu0 2
    %1448 = vperm.xlu0 %1447, %v79
    %v1449 = vpop.permute.xlu0 %1448
    %1451 = vset.pattern.permute.xlu0 2
    %1452 = vperm.xlu0 %1451, %v80
    %v1453 = vpop.permute.xlu0 %1452
    %1455 = vset.pattern.permute.xlu0 2
    %1456 = vperm.xlu0 %1455, %v81
    %v1457 = vpop.permute.xlu0 %1456
    %1459 = vset.pattern.permute.xlu0 2
    %1460 = vperm.xlu0 %1459, %v82
    %v1461 = vpop.permute.xlu0 %1460
    %1463 = vset.pattern.permute.xlu0 2
    %1464 = vperm.xlu0 %1463, %v83
    %v1465 = vpop.permute.xlu0 %1464
    %1467 = vset.pattern.permute.xlu0 2
    %1468 = vperm.xlu0 %1467, %v84
    %v1469 = vpop.permute.xlu0 %1468
    %1471 = vset.pattern.permute.xlu0 2
    %1472 = vperm.xlu0 %1471, %v85
    %v1473 = vpop.permute.xlu0 %1472
    %1475 = vset.pattern.permute.xlu0 2
    %1476 = vperm.xlu0 %1475, %v86
    %v1477 = vpop.permute.xlu0 %1476
    %1479 = vset.pattern.permute.xlu0 2
    %1480 = vperm.xlu0 %1479, %v87
    %v1481 = vpop.permute.xlu0 %1480
    %1483 = vset.pattern.permute.xlu0 2
    %1484 = vperm.xlu0 %1483, %v88
    %v1485 = vpop.permute.xlu0 %1484
    %1487 = vset.pattern.permute.xlu0 2
    %1488 = vperm.xlu0 %1487, %v89
    %v1489 = vpop.permute.xlu0 %1488
    %1491 = vset.pattern.permute.xlu0 2
    %1492 = vperm.xlu0 %1491, %v90
    %v1493 = vpop.permute.xlu0 %1492
    %1495 = vset.pattern.permute.xlu0 2
    %1496 = vperm.xlu0 %1495, %v91
    %v1497 = vpop.permute.xlu0 %1496
    %1499 = vset.pattern.permute.xlu0 2
    %1500 = vperm.xlu0 %1499, %v92
    %v1501 = vpop.permute.xlu0 %1500
    %1503 = vset.pattern.permute.xlu0 2
    %1504 = vperm.xlu0 %1503, %v93
    %v1505 = vpop.permute.xlu0 %1504
    %1507 = vset.pattern.permute.xlu0 2
    %1508 = vperm.xlu0 %1507, %v94
    %v1509 = vpop.permute.xlu0 %1508
    %v1511 = vmul.f32 %v1386, %v1449
    %v1512 = vmul.f32 %v1390, %v1449
    %v1513 = vmul.f32 %v1386, %v1453
    %v1514 = vmul.f32 %v1390, %v1453
    %v1515 = vmul.f32 %v1386, %v1457
    %v1516 = vmul.f32 %v1390, %v1457
    %v1517 = vmul.f32 %v1386, %v1461
    %v1518 = vmul.f32 %v1390, %v1461
    %v1519 = vmul.f32 %v1386, %v1465
    %v1520 = vmul.f32 %v1390, %v1465
    %v1521 = vmul.f32 %v1386, %v1469
    %v1522 = vmul.f32 %v1390, %v1469
    %v1523 = vmul.f32 %v1386, %v1473
    %v1524 = vmul.f32 %v1390, %v1473
    %v1525 = vmul.f32 %v1386, %v1477
    %v1526 = vmul.f32 %v1390, %v1477
    %v1527 = vmul.f32 %v1386, %v1481
    %v1528 = vmul.f32 %v1390, %v1481
    %v1529 = vmul.f32 %v1386, %v1485
    %v1530 = vmul.f32 %v1390, %v1485
    %v1531 = vmul.f32 %v1386, %v1489
    %v1532 = vmul.f32 %v1390, %v1489
    %v1533 = vmul.f32 %v1386, %v1493
    %v1534 = vmul.f32 %v1390, %v1493
    %v1535 = vmul.f32 %v1386, %v1497
    %v1536 = vmul.f32 %v1390, %v1497
    %v1537 = vmul.f32 %v1386, %v1501
    %v1538 = vmul.f32 %v1390, %v1501
    %v1539 = vmul.f32 %v1386, %v1505
    %v1540 = vmul.f32 %v1390, %v1505
    %v1541 = vmul.f32 %v1386, %v1509
    %v1542 = vmul.f32 %v1390, %v1509
    %v1543 = vmul.f32 %v1394, %v1449
    %v1544 = vmul.f32 %v1398, %v1449
    %v1545 = vmul.f32 %v1394, %v1453
    %v1546 = vmul.f32 %v1398, %v1453
    %v1547 = vmul.f32 %v1394, %v1457
    %v1548 = vmul.f32 %v1398, %v1457
    %v1549 = vmul.f32 %v1394, %v1461
    %v1550 = vmul.f32 %v1398, %v1461
    %v1551 = vmul.f32 %v1394, %v1465
    %v1552 = vmul.f32 %v1398, %v1465
    %v1553 = vmul.f32 %v1394, %v1469
    %v1554 = vmul.f32 %v1398, %v1469
    %v1555 = vmul.f32 %v1394, %v1473
    %v1556 = vmul.f32 %v1398, %v1473
    %v1557 = vmul.f32 %v1394, %v1477
    %v1558 = vmul.f32 %v1398, %v1477
    %v1559 = vmul.f32 %v1394, %v1481
    %v1560 = vmul.f32 %v1398, %v1481
    %v1561 = vmul.f32 %v1394, %v1485
    %v1562 = vmul.f32 %v1398, %v1485
    %v1563 = vmul.f32 %v1394, %v1489
    %v1564 = vmul.f32 %v1398, %v1489
    %v1565 = vmul.f32 %v1394, %v1493
    %v1566 = vmul.f32 %v1398, %v1493
    %v1567 = vmul.f32 %v1394, %v1497
    %v1568 = vmul.f32 %v1398, %v1497
    %v1569 = vmul.f32 %v1394, %v1501
    %v1570 = vmul.f32 %v1398, %v1501
    %v1571 = vmul.f32 %v1394, %v1505
    %v1572 = vmul.f32 %v1398, %v1505
    %v1573 = vmul.f32 %v1394, %v1509
    %v1574 = vmul.f32 %v1398, %v1509
    %v1575 = vmul.f32 %v1402, %v1449
    %v1576 = vmul.f32 %v1406, %v1449
    %v1577 = vmul.f32 %v1402, %v1453
    %v1578 = vmul.f32 %v1406, %v1453
    %v1579 = vmul.f32 %v1402, %v1457
    %v1580 = vmul.f32 %v1406, %v1457
    %v1581 = vmul.f32 %v1402, %v1461
    %v1582 = vmul.f32 %v1406, %v1461
    %v1583 = vmul.f32 %v1402, %v1465
    %v1584 = vmul.f32 %v1406, %v1465
    %v1585 = vmul.f32 %v1402, %v1469
    %v1586 = vmul.f32 %v1406, %v1469
    %v1587 = vmul.f32 %v1402, %v1473
    %v1588 = vmul.f32 %v1406, %v1473
    %v1589 = vmul.f32 %v1402, %v1477
    %v1590 = vmul.f32 %v1406, %v1477
    %v1591 = vmul.f32 %v1402, %v1481
    %v1592 = vmul.f32 %v1406, %v1481
    %v1593 = vmul.f32 %v1402, %v1485
    %v1594 = vmul.f32 %v1406, %v1485
    %v1595 = vmul.f32 %v1402, %v1489
    %v1596 = vmul.f32 %v1406, %v1489
    %v1597 = vmul.f32 %v1402, %v1493
    %v1598 = vmul.f32 %v1406, %v1493
    %v1599 = vmul.f32 %v1402, %v1497
    %v1600 = vmul.f32 %v1406, %v1497
    %v1601 = vmul.f32 %v1402, %v1501
    %v1602 = vmul.f32 %v1406, %v1501
    %v1603 = vmul.f32 %v1402, %v1505
    %v1604 = vmul.f32 %v1406, %v1505
    %v1605 = vmul.f32 %v1402, %v1509
    %v1606 = vmul.f32 %v1406, %v1509
    %v1607 = vmul.f32 %v1410, %v1449
    %v1608 = vmul.f32 %v1414, %v1449
    %v1609 = vmul.f32 %v1410, %v1453
    %v1610 = vmul.f32 %v1414, %v1453
    %v1611 = vmul.f32 %v1410, %v1457
    %v1612 = vmul.f32 %v1414, %v1457
    %v1613 = vmul.f32 %v1410, %v1461
    %v1614 = vmul.f32 %v1414, %v1461
    %v1615 = vmul.f32 %v1410, %v1465
    %v1616 = vmul.f32 %v1414, %v1465
    %v1617 = vmul.f32 %v1410, %v1469
    %v1618 = vmul.f32 %v1414, %v1469
    %v1619 = vmul.f32 %v1410, %v1473
    %v1620 = vmul.f32 %v1414, %v1473
    %v1621 = vmul.f32 %v1410, %v1477
    %v1622 = vmul.f32 %v1414, %v1477
    %v1623 = vmul.f32 %v1410, %v1481
    %v1624 = vmul.f32 %v1414, %v1481
    %v1625 = vmul.f32 %v1410, %v1485
    %v1626 = vmul.f32 %v1414, %v1485
    %v1627 = vmul.f32 %v1410, %v1489
    %v1628 = vmul.f32 %v1414, %v1489
    %v1629 = vmul.f32 %v1410, %v1493
    %v1630 = vmul.f32 %v1414, %v1493
    %v1631 = vmul.f32 %v1410, %v1497
    %v1632 = vmul.f32 %v1414, %v1497
    %v1633 = vmul.f32 %v1410, %v1501
    %v1634 = vmul.f32 %v1414, %v1501
    %v1635 = vmul.f32 %v1410, %v1505
    %v1636 = vmul.f32 %v1414, %v1505
    %v1637 = vmul.f32 %v1410, %v1509
    %v1638 = vmul.f32 %v1414, %v1509
    %v1639 = vmul.f32 %v1418, %v1449
    %v1640 = vmul.f32 %v1422, %v1449
    %v1641 = vmul.f32 %v1418, %v1453
    %v1642 = vmul.f32 %v1422, %v1453
    %v1643 = vmul.f32 %v1418, %v1457
    %v1644 = vmul.f32 %v1422, %v1457
    %v1645 = vmul.f32 %v1418, %v1461
    %v1646 = vmul.f32 %v1422, %v1461
    %v1647 = vmul.f32 %v1418, %v1465
    %v1648 = vmul.f32 %v1422, %v1465
    %v1649 = vmul.f32 %v1418, %v1469
    %v1650 = vmul.f32 %v1422, %v1469
    %v1651 = vmul.f32 %v1418, %v1473
    %v1652 = vmul.f32 %v1422, %v1473
    %v1653 = vmul.f32 %v1418, %v1477
    %v1654 = vmul.f32 %v1422, %v1477
    %v1655 = vmul.f32 %v1418, %v1481
    %v1656 = vmul.f32 %v1422, %v1481
    %v1657 = vmul.f32 %v1418, %v1485
    %v1658 = vmul.f32 %v1422, %v1485
    %v1659 = vmul.f32 %v1418, %v1489
    %v1660 = vmul.f32 %v1422, %v1489
    %v1661 = vmul.f32 %v1418, %v1493
    %v1662 = vmul.f32 %v1422, %v1493
    %v1663 = vmul.f32 %v1418, %v1497
    %v1664 = vmul.f32 %v1422, %v1497
    %v1665 = vmul.f32 %v1418, %v1501
    %v1666 = vmul.f32 %v1422, %v1501
    %v1667 = vmul.f32 %v1418, %v1505
    %v1668 = vmul.f32 %v1422, %v1505
    %v1669 = vmul.f32 %v1418, %v1509
    %v1670 = vmul.f32 %v1422, %v1509
    %v1671 = vmul.f32 %v1426, %v1449
    %v1672 = vmul.f32 %v1430, %v1449
    %v1673 = vmul.f32 %v1426, %v1453
    %v1674 = vmul.f32 %v1430, %v1453
    %v1675 = vmul.f32 %v1426, %v1457
    %v1676 = vmul.f32 %v1430, %v1457
    %v1677 = vmul.f32 %v1426, %v1461
    %v1678 = vmul.f32 %v1430, %v1461
    %v1679 = vmul.f32 %v1426, %v1465
    %v1680 = vmul.f32 %v1430, %v1465
    %v1681 = vmul.f32 %v1426, %v1469
    %v1682 = vmul.f32 %v1430, %v1469
    %v1683 = vmul.f32 %v1426, %v1473
    %v1684 = vmul.f32 %v1430, %v1473
    %v1685 = vmul.f32 %v1426, %v1477
    %v1686 = vmul.f32 %v1430, %v1477
    %v1687 = vmul.f32 %v1426, %v1481
    %v1688 = vmul.f32 %v1430, %v1481
    %v1689 = vmul.f32 %v1426, %v1485
    %v1690 = vmul.f32 %v1430, %v1485
    %v1691 = vmul.f32 %v1426, %v1489
    %v1692 = vmul.f32 %v1430, %v1489
    %v1693 = vmul.f32 %v1426, %v1493
    %v1694 = vmul.f32 %v1430, %v1493
    %v1695 = vmul.f32 %v1426, %v1497
    %v1696 = vmul.f32 %v1430, %v1497
    %v1697 = vmul.f32 %v1426, %v1501
    %v1698 = vmul.f32 %v1430, %v1501
    %v1699 = vmul.f32 %v1426, %v1505
    %v1700 = vmul.f32 %v1430, %v1505
    %v1701 = vmul.f32 %v1426, %v1509
    %v1702 = vmul.f32 %v1430, %v1509
    %v1703 = vmul.f32 %v1434, %v1449
    %v1704 = vmul.f32 %v1438, %v1449
    %v1705 = vmul.f32 %v1434, %v1453
    %v1706 = vmul.f32 %v1438, %v1453
    %v1707 = vmul.f32 %v1434, %v1457
    %v1708 = vmul.f32 %v1438, %v1457
    %v1709 = vmul.f32 %v1434, %v1461
    %v1710 = vmul.f32 %v1438, %v1461
    %v1711 = vmul.f32 %v1434, %v1465
    %v1712 = vmul.f32 %v1438, %v1465
    %v1713 = vmul.f32 %v1434, %v1469
    %v1714 = vmul.f32 %v1438, %v1469
    %v1715 = vmul.f32 %v1434, %v1473
    %v1716 = vmul.f32 %v1438, %v1473
    %v1717 = vmul.f32 %v1434, %v1477
    %v1718 = vmul.f32 %v1438, %v1477
    %v1719 = vmul.f32 %v1434, %v1481
    %v1720 = vmul.f32 %v1438, %v1481
    %v1721 = vmul.f32 %v1434, %v1485
    %v1722 = vmul.f32 %v1438, %v1485
    %v1723 = vmul.f32 %v1434, %v1489
    %v1724 = vmul.f32 %v1438, %v1489
    %v1725 = vmul.f32 %v1434, %v1493
    %v1726 = vmul.f32 %v1438, %v1493
    %v1727 = vmul.f32 %v1434, %v1497
    %v1728 = vmul.f32 %v1438, %v1497
    %v1729 = vmul.f32 %v1434, %v1501
    %v1730 = vmul.f32 %v1438, %v1501
    %v1731 = vmul.f32 %v1434, %v1505
    %v1732 = vmul.f32 %v1438, %v1505
    %v1733 = vmul.f32 %v1434, %v1509
    %v1734 = vmul.f32 %v1438, %v1509
    %v1735 = vmul.f32 %v1442, %v1449
    %v1736 = vmul.f32 %v1446, %v1449
    %v1737 = vmul.f32 %v1442, %v1453
    %v1738 = vmul.f32 %v1446, %v1453
    %v1739 = vmul.f32 %v1442, %v1457
    %v1740 = vmul.f32 %v1446, %v1457
    %v1741 = vmul.f32 %v1442, %v1461
    %v1742 = vmul.f32 %v1446, %v1461
    %v1743 = vmul.f32 %v1442, %v1465
    %v1744 = vmul.f32 %v1446, %v1465
    %v1745 = vmul.f32 %v1442, %v1469
    %v1746 = vmul.f32 %v1446, %v1469
    %v1747 = vmul.f32 %v1442, %v1473
    %v1748 = vmul.f32 %v1446, %v1473
    %v1749 = vmul.f32 %v1442, %v1477
    %v1750 = vmul.f32 %v1446, %v1477
    %v1751 = vmul.f32 %v1442, %v1481
    %v1752 = vmul.f32 %v1446, %v1481
    %v1753 = vmul.f32 %v1442, %v1485
    %v1754 = vmul.f32 %v1446, %v1485
    %v1755 = vmul.f32 %v1442, %v1489
    %v1756 = vmul.f32 %v1446, %v1489
    %v1757 = vmul.f32 %v1442, %v1493
    %v1758 = vmul.f32 %v1446, %v1493
    %v1759 = vmul.f32 %v1442, %v1497
    %v1760 = vmul.f32 %v1446, %v1497
    %v1761 = vmul.f32 %v1442, %v1501
    %v1762 = vmul.f32 %v1446, %v1501
    %v1763 = vmul.f32 %v1442, %v1505
    %v1764 = vmul.f32 %v1446, %v1505
    %v1765 = vmul.f32 %v1442, %v1509
    %v1766 = vmul.f32 %v1446, %v1509
    %v1767 = vadd.f32 %v1047, %v1511
    %v1768 = vadd.f32 %v1048, %v1512
    %v1769 = vadd.f32 %v1049, %v1513
    %v1770 = vadd.f32 %v1050, %v1514
    %v1771 = vadd.f32 %v1051, %v1515
    %v1772 = vadd.f32 %v1052, %v1516
    %v1773 = vadd.f32 %v1053, %v1517
    %v1774 = vadd.f32 %v1054, %v1518
    %v1775 = vadd.f32 %v1055, %v1519
    %v1776 = vadd.f32 %v1056, %v1520
    %v1777 = vadd.f32 %v1057, %v1521
    %v1778 = vadd.f32 %v1058, %v1522
    %v1779 = vadd.f32 %v1059, %v1523
    %v1780 = vadd.f32 %v1060, %v1524
    %v1781 = vadd.f32 %v1061, %v1525
    %v1782 = vadd.f32 %v1062, %v1526
    %v1783 = vadd.f32 %v1063, %v1527
    %v1784 = vadd.f32 %v1064, %v1528
    %v1785 = vadd.f32 %v1065, %v1529
    %v1786 = vadd.f32 %v1066, %v1530
    %v1787 = vadd.f32 %v1067, %v1531
    %v1788 = vadd.f32 %v1068, %v1532
    %v1789 = vadd.f32 %v1069, %v1533
    %v1790 = vadd.f32 %v1070, %v1534
    %v1791 = vadd.f32 %v1071, %v1535
    %v1792 = vadd.f32 %v1072, %v1536
    %v1793 = vadd.f32 %v1073, %v1537
    %v1794 = vadd.f32 %v1074, %v1538
    %v1795 = vadd.f32 %v1075, %v1539
    %v1796 = vadd.f32 %v1076, %v1540
    %v1797 = vadd.f32 %v1077, %v1541
    %v1798 = vadd.f32 %v1078, %v1542
    %v1799 = vadd.f32 %v1079, %v1543
    %v1800 = vadd.f32 %v1080, %v1544
    %v1801 = vadd.f32 %v1081, %v1545
    %v1802 = vadd.f32 %v1082, %v1546
    %v1803 = vadd.f32 %v1083, %v1547
    %v1804 = vadd.f32 %v1084, %v1548
    %v1805 = vadd.f32 %v1085, %v1549
    %v1806 = vadd.f32 %v1086, %v1550
    %v1807 = vadd.f32 %v1087, %v1551
    %v1808 = vadd.f32 %v1088, %v1552
    %v1809 = vadd.f32 %v1089, %v1553
    %v1810 = vadd.f32 %v1090, %v1554
    %v1811 = vadd.f32 %v1091, %v1555
    %v1812 = vadd.f32 %v1092, %v1556
    %v1813 = vadd.f32 %v1093, %v1557
    %v1814 = vadd.f32 %v1094, %v1558
    %v1815 = vadd.f32 %v1095, %v1559
    %v1816 = vadd.f32 %v1096, %v1560
    %v1817 = vadd.f32 %v1097, %v1561
    %v1818 = vadd.f32 %v1098, %v1562
    %v1819 = vadd.f32 %v1099, %v1563
    %v1820 = vadd.f32 %v1100, %v1564
    %v1821 = vadd.f32 %v1101, %v1565
    %v1822 = vadd.f32 %v1102, %v1566
    %v1823 = vadd.f32 %v1103, %v1567
    %v1824 = vadd.f32 %v1104, %v1568
    %v1825 = vadd.f32 %v1105, %v1569
    %v1826 = vadd.f32 %v1106, %v1570
    %v1827 = vadd.f32 %v1107, %v1571
    %v1828 = vadd.f32 %v1108, %v1572
    %v1829 = vadd.f32 %v1109, %v1573
    %v1830 = vadd.f32 %v1110, %v1574
    %v1831 = vadd.f32 %v1111, %v1575
    %v1832 = vadd.f32 %v1112, %v1576
    %v1833 = vadd.f32 %v1113, %v1577
    %v1834 = vadd.f32 %v1114, %v1578
    %v1835 = vadd.f32 %v1115, %v1579
    %v1836 = vadd.f32 %v1116, %v1580
    %v1837 = vadd.f32 %v1117, %v1581
    %v1838 = vadd.f32 %v1118, %v1582
    %v1839 = vadd.f32 %v1119, %v1583
    %v1840 = vadd.f32 %v1120, %v1584
    %v1841 = vadd.f32 %v1121, %v1585
    %v1842 = vadd.f32 %v1122, %v1586
    %v1843 = vadd.f32 %v1123, %v1587
    %v1844 = vadd.f32 %v1124, %v1588
    %v1845 = vadd.f32 %v1125, %v1589
    %v1846 = vadd.f32 %v1126, %v1590
    %v1847 = vadd.f32 %v1127, %v1591
    %v1848 = vadd.f32 %v1128, %v1592
    %v1849 = vadd.f32 %v1129, %v1593
    %v1850 = vadd.f32 %v1130, %v1594
    %v1851 = vadd.f32 %v1131, %v1595
    %v1852 = vadd.f32 %v1132, %v1596
    %v1853 = vadd.f32 %v1133, %v1597
    %v1854 = vadd.f32 %v1134, %v1598
    %v1855 = vadd.f32 %v1135, %v1599
    %v1856 = vadd.f32 %v1136, %v1600
    %v1857 = vadd.f32 %v1137, %v1601
    %v1858 = vadd.f32 %v1138, %v1602
    %v1859 = vadd.f32 %v1139, %v1603
    %v1860 = vadd.f32 %v1140, %v1604
    %v1861 = vadd.f32 %v1141, %v1605
    %v1862 = vadd.f32 %v1142, %v1606
    %v1863 = vadd.f32 %v1143, %v1607
    %v1864 = vadd.f32 %v1144, %v1608
    %v1865 = vadd.f32 %v1145, %v1609
    %v1866 = vadd.f32 %v1146, %v1610
    %v1867 = vadd.f32 %v1147, %v1611
    %v1868 = vadd.f32 %v1148, %v1612
    %v1869 = vadd.f32 %v1149, %v1613
    %v1870 = vadd.f32 %v1150, %v1614
    %v1871 = vadd.f32 %v1151, %v1615
    %v1872 = vadd.f32 %v1152, %v1616
    %v1873 = vadd.f32 %v1153, %v1617
    %v1874 = vadd.f32 %v1154, %v1618
    %v1875 = vadd.f32 %v1155, %v1619
    %v1876 = vadd.f32 %v1156, %v1620
    %v1877 = vadd.f32 %v1157, %v1621
    %v1878 = vadd.f32 %v1158, %v1622
    %v1879 = vadd.f32 %v1159, %v1623
    %v1880 = vadd.f32 %v1160, %v1624
    %v1881 = vadd.f32 %v1161, %v1625
    %v1882 = vadd.f32 %v1162, %v1626
    %v1883 = vadd.f32 %v1163, %v1627
    %v1884 = vadd.f32 %v1164, %v1628
    %v1885 = vadd.f32 %v1165, %v1629
    %v1886 = vadd.f32 %v1166, %v1630
    %v1887 = vadd.f32 %v1167, %v1631
    %v1888 = vadd.f32 %v1168, %v1632
    %v1889 = vadd.f32 %v1169, %v1633
    %v1890 = vadd.f32 %v1170, %v1634
    %v1891 = vadd.f32 %v1171, %v1635
    %v1892 = vadd.f32 %v1172, %v1636
    %v1893 = vadd.f32 %v1173, %v1637
    %v1894 = vadd.f32 %v1174, %v1638
    %v1895 = vadd.f32 %v1175, %v1639
    %v1896 = vadd.f32 %v1176, %v1640
    %v1897 = vadd.f32 %v1177, %v1641
    %v1898 = vadd.f32 %v1178, %v1642
    %v1899 = vadd.f32 %v1179, %v1643
    %v1900 = vadd.f32 %v1180, %v1644
    %v1901 = vadd.f32 %v1181, %v1645
    %v1902 = vadd.f32 %v1182, %v1646
    %v1903 = vadd.f32 %v1183, %v1647
    %v1904 = vadd.f32 %v1184, %v1648
    %v1905 = vadd.f32 %v1185, %v1649
    %v1906 = vadd.f32 %v1186, %v1650
    %v1907 = vadd.f32 %v1187, %v1651
    %v1908 = vadd.f32 %v1188, %v1652
    %v1909 = vadd.f32 %v1189, %v1653
    %v1910 = vadd.f32 %v1190, %v1654
    %v1911 = vadd.f32 %v1191, %v1655
    %v1912 = vadd.f32 %v1192, %v1656
    %v1913 = vadd.f32 %v1193, %v1657
    %v1914 = vadd.f32 %v1194, %v1658
    %v1915 = vadd.f32 %v1195, %v1659
    %v1916 = vadd.f32 %v1196, %v1660
    %v1917 = vadd.f32 %v1197, %v1661
    %v1918 = vadd.f32 %v1198, %v1662
    %v1919 = vadd.f32 %v1199, %v1663
    %v1920 = vadd.f32 %v1200, %v1664
    %v1921 = vadd.f32 %v1201, %v1665
    %v1922 = vadd.f32 %v1202, %v1666
    %v1923 = vadd.f32 %v1203, %v1667
    %v1924 = vadd.f32 %v1204, %v1668
    %v1925 = vadd.f32 %v1205, %v1669
    %v1926 = vadd.f32 %v1206, %v1670
    %v1927 = vadd.f32 %v1207, %v1671
    %v1928 = vadd.f32 %v1208, %v1672
    %v1929 = vadd.f32 %v1209, %v1673
    %v1930 = vadd.f32 %v1210, %v1674
    %v1931 = vadd.f32 %v1211, %v1675
    %v1932 = vadd.f32 %v1212, %v1676
    %v1933 = vadd.f32 %v1213, %v1677
    %v1934 = vadd.f32 %v1214, %v1678
    %v1935 = vadd.f32 %v1215, %v1679
    %v1936 = vadd.f32 %v1216, %v1680
    %v1937 = vadd.f32 %v1217, %v1681
    %v1938 = vadd.f32 %v1218, %v1682
    %v1939 = vadd.f32 %v1219, %v1683
    %v1940 = vadd.f32 %v1220, %v1684
    %v1941 = vadd.f32 %v1221, %v1685
    %v1942 = vadd.f32 %v1222, %v1686
    %v1943 = vadd.f32 %v1223, %v1687
    %v1944 = vadd.f32 %v1224, %v1688
    %v1945 = vadd.f32 %v1225, %v1689
    %v1946 = vadd.f32 %v1226, %v1690
    %v1947 = vadd.f32 %v1227, %v1691
    %v1948 = vadd.f32 %v1228, %v1692
    %v1949 = vadd.f32 %v1229, %v1693
    %v1950 = vadd.f32 %v1230, %v1694
    %v1951 = vadd.f32 %v1231, %v1695
    %v1952 = vadd.f32 %v1232, %v1696
    %v1953 = vadd.f32 %v1233, %v1697
    %v1954 = vadd.f32 %v1234, %v1698
    %v1955 = vadd.f32 %v1235, %v1699
    %v1956 = vadd.f32 %v1236, %v1700
    %v1957 = vadd.f32 %v1237, %v1701
    %v1958 = vadd.f32 %v1238, %v1702
    %v1959 = vadd.f32 %v1239, %v1703
    %v1960 = vadd.f32 %v1240, %v1704
    %v1961 = vadd.f32 %v1241, %v1705
    %v1962 = vadd.f32 %v1242, %v1706
    %v1963 = vadd.f32 %v1243, %v1707
    %v1964 = vadd.f32 %v1244, %v1708
    %v1965 = vadd.f32 %v1245, %v1709
    %v1966 = vadd.f32 %v1246, %v1710
    %v1967 = vadd.f32 %v1247, %v1711
    %v1968 = vadd.f32 %v1248, %v1712
    %v1969 = vadd.f32 %v1249, %v1713
    %v1970 = vadd.f32 %v1250, %v1714
    %v1971 = vadd.f32 %v1251, %v1715
    %v1972 = vadd.f32 %v1252, %v1716
    %v1973 = vadd.f32 %v1253, %v1717
    %v1974 = vadd.f32 %v1254, %v1718
    %v1975 = vadd.f32 %v1255, %v1719
    %v1976 = vadd.f32 %v1256, %v1720
    %v1977 = vadd.f32 %v1257, %v1721
    %v1978 = vadd.f32 %v1258, %v1722
    %v1979 = vadd.f32 %v1259, %v1723
    %v1980 = vadd.f32 %v1260, %v1724
    %v1981 = vadd.f32 %v1261, %v1725
    %v1982 = vadd.f32 %v1262, %v1726
    %v1983 = vadd.f32 %v1263, %v1727
    %v1984 = vadd.f32 %v1264, %v1728
    %v1985 = vadd.f32 %v1265, %v1729
    %v1986 = vadd.f32 %v1266, %v1730
    %v1987 = vadd.f32 %v1267, %v1731
    %v1988 = vadd.f32 %v1268, %v1732
    %v1989 = vadd.f32 %v1269, %v1733
    %v1990 = vadd.f32 %v1270, %v1734
    %v1991 = vadd.f32 %v1271, %v1735
    %v1992 = vadd.f32 %v1272, %v1736
    %v1993 = vadd.f32 %v1273, %v1737
    %v1994 = vadd.f32 %v1274, %v1738
    %v1995 = vadd.f32 %v1275, %v1739
    %v1996 = vadd.f32 %v1276, %v1740
    %v1997 = vadd.f32 %v1277, %v1741
    %v1998 = vadd.f32 %v1278, %v1742
    %v1999 = vadd.f32 %v1279, %v1743
    %v2000 = vadd.f32 %v1280, %v1744
    %v2001 = vadd.f32 %v1281, %v1745
    %v2002 = vadd.f32 %v1282, %v1746
    %v2003 = vadd.f32 %v1283, %v1747
    %v2004 = vadd.f32 %v1284, %v1748
    %v2005 = vadd.f32 %v1285, %v1749
    %v2006 = vadd.f32 %v1286, %v1750
    %v2007 = vadd.f32 %v1287, %v1751
    %v2008 = vadd.f32 %v1288, %v1752
    %v2009 = vadd.f32 %v1289, %v1753
    %v2010 = vadd.f32 %v1290, %v1754
    %v2011 = vadd.f32 %v1291, %v1755
    %v2012 = vadd.f32 %v1292, %v1756
    %v2013 = vadd.f32 %v1293, %v1757
    %v2014 = vadd.f32 %v1294, %v1758
    %v2015 = vadd.f32 %v1295, %v1759
    %v2016 = vadd.f32 %v1296, %v1760
    %v2017 = vadd.f32 %v1297, %v1761
    %v2018 = vadd.f32 %v1298, %v1762
    %v2019 = vadd.f32 %v1299, %v1763
    %v2020 = vadd.f32 %v1300, %v1764
    %v2021 = vadd.f32 %v1301, %v1765
    %v2022 = vadd.f32 %v1302, %v1766
    %v2023 = vlaneseq
    %v2024 = vshrl.u32 %v2023, 7
    %v2025 = vsub.s32 3, %v2024
    %v2026 = vrot.slane %v71, %v2025
    %v2027 = vlaneseq
    %v2028 = vshrl.u32 %v2027, 7
    %v2029 = vsub.s32 7, %v2028
    %v2030 = vrot.slane %v71, %v2029
    %v2031 = vlaneseq
    %v2032 = vshrl.u32 %v2031, 7
    %v2033 = vsub.s32 3, %v2032
    %v2034 = vrot.slane %v72, %v2033
    %v2035 = vlaneseq
    %v2036 = vshrl.u32 %v2035, 7
    %v2037 = vsub.s32 7, %v2036
    %v2038 = vrot.slane %v72, %v2037
    %v2039 = vlaneseq
    %v2040 = vshrl.u32 %v2039, 7
    %v2041 = vsub.s32 3, %v2040
    %v2042 = vrot.slane %v73, %v2041
    %v2043 = vlaneseq
    %v2044 = vshrl.u32 %v2043, 7
    %v2045 = vsub.s32 7, %v2044
    %v2046 = vrot.slane %v73, %v2045
    %v2047 = vlaneseq
    %v2048 = vshrl.u32 %v2047, 7
    %v2049 = vsub.s32 3, %v2048
    %v2050 = vrot.slane %v74, %v2049
    %v2051 = vlaneseq
    %v2052 = vshrl.u32 %v2051, 7
    %v2053 = vsub.s32 7, %v2052
    %v2054 = vrot.slane %v74, %v2053
    %v2055 = vlaneseq
    %v2056 = vshrl.u32 %v2055, 7
    %v2057 = vsub.s32 3, %v2056
    %v2058 = vrot.slane %v75, %v2057
    %v2059 = vlaneseq
    %v2060 = vshrl.u32 %v2059, 7
    %v2061 = vsub.s32 7, %v2060
    %v2062 = vrot.slane %v75, %v2061
    %v2063 = vlaneseq
    %v2064 = vshrl.u32 %v2063, 7
    %v2065 = vsub.s32 3, %v2064
    %v2066 = vrot.slane %v76, %v2065
    %v2067 = vlaneseq
    %v2068 = vshrl.u32 %v2067, 7
    %v2069 = vsub.s32 7, %v2068
    %v2070 = vrot.slane %v76, %v2069
    %v2071 = vlaneseq
    %v2072 = vshrl.u32 %v2071, 7
    %v2073 = vsub.s32 3, %v2072
    %v2074 = vrot.slane %v77, %v2073
    %v2075 = vlaneseq
    %v2076 = vshrl.u32 %v2075, 7
    %v2077 = vsub.s32 7, %v2076
    %v2078 = vrot.slane %v77, %v2077
    %v2079 = vlaneseq
    %v2080 = vshrl.u32 %v2079, 7
    %v2081 = vsub.s32 3, %v2080
    %v2082 = vrot.slane %v78, %v2081
    %v2083 = vlaneseq
    %v2084 = vshrl.u32 %v2083, 7
    %v2085 = vsub.s32 7, %v2084
    %v2086 = vrot.slane %v78, %v2085
    %v2103 = vlaneseq
    %v2104 = vshrl.u32 %v2103, 7
    %v2105 = vsub.s32 3, %v2104
    %v2106 = vrot.slane %v2026, %v2105
    %v2107 = vlaneseq
    %v2108 = vshrl.u32 %v2107, 7
    %v2109 = vsub.s32 3, %v2108
    %v2110 = vrot.slane %v2030, %v2109
    %v2111 = vlaneseq
    %v2112 = vshrl.u32 %v2111, 7
    %v2113 = vsub.s32 3, %v2112
    %v2114 = vrot.slane %v2034, %v2113
    %v2115 = vlaneseq
    %v2116 = vshrl.u32 %v2115, 7
    %v2117 = vsub.s32 3, %v2116
    %v2118 = vrot.slane %v2038, %v2117
    %v2119 = vlaneseq
    %v2120 = vshrl.u32 %v2119, 7
    %v2121 = vsub.s32 3, %v2120
    %v2122 = vrot.slane %v2042, %v2121
    %v2123 = vlaneseq
    %v2124 = vshrl.u32 %v2123, 7
    %v2125 = vsub.s32 3, %v2124
    %v2126 = vrot.slane %v2046, %v2125
    %v2127 = vlaneseq
    %v2128 = vshrl.u32 %v2127, 7
    %v2129 = vsub.s32 3, %v2128
    %v2130 = vrot.slane %v2050, %v2129
    %v2131 = vlaneseq
    %v2132 = vshrl.u32 %v2131, 7
    %v2133 = vsub.s32 3, %v2132
    %v2134 = vrot.slane %v2054, %v2133
    %v2135 = vlaneseq
    %v2136 = vshrl.u32 %v2135, 7
    %v2137 = vsub.s32 3, %v2136
    %v2138 = vrot.slane %v2058, %v2137
    %v2139 = vlaneseq
    %v2140 = vshrl.u32 %v2139, 7
    %v2141 = vsub.s32 3, %v2140
    %v2142 = vrot.slane %v2062, %v2141
    %v2143 = vlaneseq
    %v2144 = vshrl.u32 %v2143, 7
    %v2145 = vsub.s32 3, %v2144
    %v2146 = vrot.slane %v2066, %v2145
    %v2147 = vlaneseq
    %v2148 = vshrl.u32 %v2147, 7
    %v2149 = vsub.s32 3, %v2148
    %v2150 = vrot.slane %v2070, %v2149
    %v2151 = vlaneseq
    %v2152 = vshrl.u32 %v2151, 7
    %v2153 = vsub.s32 3, %v2152
    %v2154 = vrot.slane %v2074, %v2153
    %v2155 = vlaneseq
    %v2156 = vshrl.u32 %v2155, 7
    %v2157 = vsub.s32 3, %v2156
    %v2158 = vrot.slane %v2078, %v2157
    %v2159 = vlaneseq
    %v2160 = vshrl.u32 %v2159, 7
    %v2161 = vsub.s32 3, %v2160
    %v2162 = vrot.slane %v2082, %v2161
    %v2163 = vlaneseq
    %v2164 = vshrl.u32 %v2163, 7
    %v2165 = vsub.s32 3, %v2164
    %v2166 = vrot.slane %v2086, %v2165
    %2167 = vset.pattern.permute.xlu0 3
    %2168 = vperm.xlu0 %2167, %v79
    %v2169 = vpop.permute.xlu0 %2168
    %2171 = vset.pattern.permute.xlu0 3
    %2172 = vperm.xlu0 %2171, %v80
    %v2173 = vpop.permute.xlu0 %2172
    %2175 = vset.pattern.permute.xlu0 3
    %2176 = vperm.xlu0 %2175, %v81
    %v2177 = vpop.permute.xlu0 %2176
    %2179 = vset.pattern.permute.xlu0 3
    %2180 = vperm.xlu0 %2179, %v82
    %v2181 = vpop.permute.xlu0 %2180
    %2183 = vset.pattern.permute.xlu0 3
    %2184 = vperm.xlu0 %2183, %v83
    %v2185 = vpop.permute.xlu0 %2184
    %2187 = vset.pattern.permute.xlu0 3
    %2188 = vperm.xlu0 %2187, %v84
    %v2189 = vpop.permute.xlu0 %2188
    %2191 = vset.pattern.permute.xlu0 3
    %2192 = vperm.xlu0 %2191, %v85
    %v2193 = vpop.permute.xlu0 %2192
    %2195 = vset.pattern.permute.xlu0 3
    %2196 = vperm.xlu0 %2195, %v86
    %v2197 = vpop.permute.xlu0 %2196
    %2199 = vset.pattern.permute.xlu0 3
    %2200 = vperm.xlu0 %2199, %v87
    %v2201 = vpop.permute.xlu0 %2200
    %2203 = vset.pattern.permute.xlu0 3
    %2204 = vperm.xlu0 %2203, %v88
    %v2205 = vpop.permute.xlu0 %2204
    %2207 = vset.pattern.permute.xlu0 3
    %2208 = vperm.xlu0 %2207, %v89
    %v2209 = vpop.permute.xlu0 %2208
    %2211 = vset.pattern.permute.xlu0 3
    %2212 = vperm.xlu0 %2211, %v90
    %v2213 = vpop.permute.xlu0 %2212
    %2215 = vset.pattern.permute.xlu0 3
    %2216 = vperm.xlu0 %2215, %v91
    %v2217 = vpop.permute.xlu0 %2216
    %2219 = vset.pattern.permute.xlu0 3
    %2220 = vperm.xlu0 %2219, %v92
    %v2221 = vpop.permute.xlu0 %2220
    %2223 = vset.pattern.permute.xlu0 3
    %2224 = vperm.xlu0 %2223, %v93
    %v2225 = vpop.permute.xlu0 %2224
    %2227 = vset.pattern.permute.xlu0 3
    %2228 = vperm.xlu0 %2227, %v94
    %v2229 = vpop.permute.xlu0 %2228
    %v2231 = vmul.f32 %v2106, %v2169
    %v2232 = vmul.f32 %v2110, %v2169
    %v2233 = vmul.f32 %v2106, %v2173
    %v2234 = vmul.f32 %v2110, %v2173
    %v2235 = vmul.f32 %v2106, %v2177
    %v2236 = vmul.f32 %v2110, %v2177
    %v2237 = vmul.f32 %v2106, %v2181
    %v2238 = vmul.f32 %v2110, %v2181
    %v2239 = vmul.f32 %v2106, %v2185
    %v2240 = vmul.f32 %v2110, %v2185
    %v2241 = vmul.f32 %v2106, %v2189
    %v2242 = vmul.f32 %v2110, %v2189
    %v2243 = vmul.f32 %v2106, %v2193
    %v2244 = vmul.f32 %v2110, %v2193
    %v2245 = vmul.f32 %v2106, %v2197
    %v2246 = vmul.f32 %v2110, %v2197
    %v2247 = vmul.f32 %v2106, %v2201
    %v2248 = vmul.f32 %v2110, %v2201
    %v2249 = vmul.f32 %v2106, %v2205
    %v2250 = vmul.f32 %v2110, %v2205
    %v2251 = vmul.f32 %v2106, %v2209
    %v2252 = vmul.f32 %v2110, %v2209
    %v2253 = vmul.f32 %v2106, %v2213
    %v2254 = vmul.f32 %v2110, %v2213
    %v2255 = vmul.f32 %v2106, %v2217
    %v2256 = vmul.f32 %v2110, %v2217
    %v2257 = vmul.f32 %v2106, %v2221
    %v2258 = vmul.f32 %v2110, %v2221
    %v2259 = vmul.f32 %v2106, %v2225
    %v2260 = vmul.f32 %v2110, %v2225
    %v2261 = vmul.f32 %v2106, %v2229
    %v2262 = vmul.f32 %v2110, %v2229
    %v2263 = vmul.f32 %v2114, %v2169
    %v2264 = vmul.f32 %v2118, %v2169
    %v2265 = vmul.f32 %v2114, %v2173
    %v2266 = vmul.f32 %v2118, %v2173
    %v2267 = vmul.f32 %v2114, %v2177
    %v2268 = vmul.f32 %v2118, %v2177
    %v2269 = vmul.f32 %v2114, %v2181
    %v2270 = vmul.f32 %v2118, %v2181
    %v2271 = vmul.f32 %v2114, %v2185
    %v2272 = vmul.f32 %v2118, %v2185
    %v2273 = vmul.f32 %v2114, %v2189
    %v2274 = vmul.f32 %v2118, %v2189
    %v2275 = vmul.f32 %v2114, %v2193
    %v2276 = vmul.f32 %v2118, %v2193
    %v2277 = vmul.f32 %v2114, %v2197
    %v2278 = vmul.f32 %v2118, %v2197
    %v2279 = vmul.f32 %v2114, %v2201
    %v2280 = vmul.f32 %v2118, %v2201
    %v2281 = vmul.f32 %v2114, %v2205
    %v2282 = vmul.f32 %v2118, %v2205
    %v2283 = vmul.f32 %v2114, %v2209
    %v2284 = vmul.f32 %v2118, %v2209
    %v2285 = vmul.f32 %v2114, %v2213
    %v2286 = vmul.f32 %v2118, %v2213
    %v2287 = vmul.f32 %v2114, %v2217
    %v2288 = vmul.f32 %v2118, %v2217
    %v2289 = vmul.f32 %v2114, %v2221
    %v2290 = vmul.f32 %v2118, %v2221
    %v2291 = vmul.f32 %v2114, %v2225
    %v2292 = vmul.f32 %v2118, %v2225
    %v2293 = vmul.f32 %v2114, %v2229
    %v2294 = vmul.f32 %v2118, %v2229
    %v2295 = vmul.f32 %v2122, %v2169
    %v2296 = vmul.f32 %v2126, %v2169
    %v2297 = vmul.f32 %v2122, %v2173
    %v2298 = vmul.f32 %v2126, %v2173
    %v2299 = vmul.f32 %v2122, %v2177
    %v2300 = vmul.f32 %v2126, %v2177
    %v2301 = vmul.f32 %v2122, %v2181
    %v2302 = vmul.f32 %v2126, %v2181
    %v2303 = vmul.f32 %v2122, %v2185
    %v2304 = vmul.f32 %v2126, %v2185
    %v2305 = vmul.f32 %v2122, %v2189
    %v2306 = vmul.f32 %v2126, %v2189
    %v2307 = vmul.f32 %v2122, %v2193
    %v2308 = vmul.f32 %v2126, %v2193
    %v2309 = vmul.f32 %v2122, %v2197
    %v2310 = vmul.f32 %v2126, %v2197
    %v2311 = vmul.f32 %v2122, %v2201
    %v2312 = vmul.f32 %v2126, %v2201
    %v2313 = vmul.f32 %v2122, %v2205
    %v2314 = vmul.f32 %v2126, %v2205
    %v2315 = vmul.f32 %v2122, %v2209
    %v2316 = vmul.f32 %v2126, %v2209
    %v2317 = vmul.f32 %v2122, %v2213
    %v2318 = vmul.f32 %v2126, %v2213
    %v2319 = vmul.f32 %v2122, %v2217
    %v2320 = vmul.f32 %v2126, %v2217
    %v2321 = vmul.f32 %v2122, %v2221
    %v2322 = vmul.f32 %v2126, %v2221
    %v2323 = vmul.f32 %v2122, %v2225
    %v2324 = vmul.f32 %v2126, %v2225
    %v2325 = vmul.f32 %v2122, %v2229
    %v2326 = vmul.f32 %v2126, %v2229
    %v2327 = vmul.f32 %v2130, %v2169
    %v2328 = vmul.f32 %v2134, %v2169
    %v2329 = vmul.f32 %v2130, %v2173
    %v2330 = vmul.f32 %v2134, %v2173
    %v2331 = vmul.f32 %v2130, %v2177
    %v2332 = vmul.f32 %v2134, %v2177
    %v2333 = vmul.f32 %v2130, %v2181
    %v2334 = vmul.f32 %v2134, %v2181
    %v2335 = vmul.f32 %v2130, %v2185
    %v2336 = vmul.f32 %v2134, %v2185
    %v2337 = vmul.f32 %v2130, %v2189
    %v2338 = vmul.f32 %v2134, %v2189
    %v2339 = vmul.f32 %v2130, %v2193
    %v2340 = vmul.f32 %v2134, %v2193
    %v2341 = vmul.f32 %v2130, %v2197
    %v2342 = vmul.f32 %v2134, %v2197
    %v2343 = vmul.f32 %v2130, %v2201
    %v2344 = vmul.f32 %v2134, %v2201
    %v2345 = vmul.f32 %v2130, %v2205
    %v2346 = vmul.f32 %v2134, %v2205
    %v2347 = vmul.f32 %v2130, %v2209
    %v2348 = vmul.f32 %v2134, %v2209
    %v2349 = vmul.f32 %v2130, %v2213
    %v2350 = vmul.f32 %v2134, %v2213
    %v2351 = vmul.f32 %v2130, %v2217
    %v2352 = vmul.f32 %v2134, %v2217
    %v2353 = vmul.f32 %v2130, %v2221
    %v2354 = vmul.f32 %v2134, %v2221
    %v2355 = vmul.f32 %v2130, %v2225
    %v2356 = vmul.f32 %v2134, %v2225
    %v2357 = vmul.f32 %v2130, %v2229
    %v2358 = vmul.f32 %v2134, %v2229
    %v2359 = vmul.f32 %v2138, %v2169
    %v2360 = vmul.f32 %v2142, %v2169
    %v2361 = vmul.f32 %v2138, %v2173
    %v2362 = vmul.f32 %v2142, %v2173
    %v2363 = vmul.f32 %v2138, %v2177
    %v2364 = vmul.f32 %v2142, %v2177
    %v2365 = vmul.f32 %v2138, %v2181
    %v2366 = vmul.f32 %v2142, %v2181
    %v2367 = vmul.f32 %v2138, %v2185
    %v2368 = vmul.f32 %v2142, %v2185
    %v2369 = vmul.f32 %v2138, %v2189
    %v2370 = vmul.f32 %v2142, %v2189
    %v2371 = vmul.f32 %v2138, %v2193
    %v2372 = vmul.f32 %v2142, %v2193
    %v2373 = vmul.f32 %v2138, %v2197
    %v2374 = vmul.f32 %v2142, %v2197
    %v2375 = vmul.f32 %v2138, %v2201
    %v2376 = vmul.f32 %v2142, %v2201
    %v2377 = vmul.f32 %v2138, %v2205
    %v2378 = vmul.f32 %v2142, %v2205
    %v2379 = vmul.f32 %v2138, %v2209
    %v2380 = vmul.f32 %v2142, %v2209
    %v2381 = vmul.f32 %v2138, %v2213
    %v2382 = vmul.f32 %v2142, %v2213
    %v2383 = vmul.f32 %v2138, %v2217
    %v2384 = vmul.f32 %v2142, %v2217
    %v2385 = vmul.f32 %v2138, %v2221
    %v2386 = vmul.f32 %v2142, %v2221
    %v2387 = vmul.f32 %v2138, %v2225
    %v2388 = vmul.f32 %v2142, %v2225
    %v2389 = vmul.f32 %v2138, %v2229
    %v2390 = vmul.f32 %v2142, %v2229
    %v2391 = vmul.f32 %v2146, %v2169
    %v2392 = vmul.f32 %v2150, %v2169
    %v2393 = vmul.f32 %v2146, %v2173
    %v2394 = vmul.f32 %v2150, %v2173
    %v2395 = vmul.f32 %v2146, %v2177
    %v2396 = vmul.f32 %v2150, %v2177
    %v2397 = vmul.f32 %v2146, %v2181
    %v2398 = vmul.f32 %v2150, %v2181
    %v2399 = vmul.f32 %v2146, %v2185
    %v2400 = vmul.f32 %v2150, %v2185
    %v2401 = vmul.f32 %v2146, %v2189
    %v2402 = vmul.f32 %v2150, %v2189
    %v2403 = vmul.f32 %v2146, %v2193
    %v2404 = vmul.f32 %v2150, %v2193
    %v2405 = vmul.f32 %v2146, %v2197
    %v2406 = vmul.f32 %v2150, %v2197
    %v2407 = vmul.f32 %v2146, %v2201
    %v2408 = vmul.f32 %v2150, %v2201
    %v2409 = vmul.f32 %v2146, %v2205
    %v2410 = vmul.f32 %v2150, %v2205
    %v2411 = vmul.f32 %v2146, %v2209
    %v2412 = vmul.f32 %v2150, %v2209
    %v2413 = vmul.f32 %v2146, %v2213
    %v2414 = vmul.f32 %v2150, %v2213
    %v2415 = vmul.f32 %v2146, %v2217
    %v2416 = vmul.f32 %v2150, %v2217
    %v2417 = vmul.f32 %v2146, %v2221
    %v2418 = vmul.f32 %v2150, %v2221
    %v2419 = vmul.f32 %v2146, %v2225
    %v2420 = vmul.f32 %v2150, %v2225
    %v2421 = vmul.f32 %v2146, %v2229
    %v2422 = vmul.f32 %v2150, %v2229
    %v2423 = vmul.f32 %v2154, %v2169
    %v2424 = vmul.f32 %v2158, %v2169
    %v2425 = vmul.f32 %v2154, %v2173
    %v2426 = vmul.f32 %v2158, %v2173
    %v2427 = vmul.f32 %v2154, %v2177
    %v2428 = vmul.f32 %v2158, %v2177
    %v2429 = vmul.f32 %v2154, %v2181
    %v2430 = vmul.f32 %v2158, %v2181
    %v2431 = vmul.f32 %v2154, %v2185
    %v2432 = vmul.f32 %v2158, %v2185
    %v2433 = vmul.f32 %v2154, %v2189
    %v2434 = vmul.f32 %v2158, %v2189
    %v2435 = vmul.f32 %v2154, %v2193
    %v2436 = vmul.f32 %v2158, %v2193
    %v2437 = vmul.f32 %v2154, %v2197
    %v2438 = vmul.f32 %v2158, %v2197
    %v2439 = vmul.f32 %v2154, %v2201
    %v2440 = vmul.f32 %v2158, %v2201
    %v2441 = vmul.f32 %v2154, %v2205
    %v2442 = vmul.f32 %v2158, %v2205
    %v2443 = vmul.f32 %v2154, %v2209
    %v2444 = vmul.f32 %v2158, %v2209
    %v2445 = vmul.f32 %v2154, %v2213
    %v2446 = vmul.f32 %v2158, %v2213
    %v2447 = vmul.f32 %v2154, %v2217
    %v2448 = vmul.f32 %v2158, %v2217
    %v2449 = vmul.f32 %v2154, %v2221
    %v2450 = vmul.f32 %v2158, %v2221
    %v2451 = vmul.f32 %v2154, %v2225
    %v2452 = vmul.f32 %v2158, %v2225
    %v2453 = vmul.f32 %v2154, %v2229
    %v2454 = vmul.f32 %v2158, %v2229
    %v2455 = vmul.f32 %v2162, %v2169
    %v2456 = vmul.f32 %v2166, %v2169
    %v2457 = vmul.f32 %v2162, %v2173
    %v2458 = vmul.f32 %v2166, %v2173
    %v2459 = vmul.f32 %v2162, %v2177
    %v2460 = vmul.f32 %v2166, %v2177
    %v2461 = vmul.f32 %v2162, %v2181
    %v2462 = vmul.f32 %v2166, %v2181
    %v2463 = vmul.f32 %v2162, %v2185
    %v2464 = vmul.f32 %v2166, %v2185
    %v2465 = vmul.f32 %v2162, %v2189
    %v2466 = vmul.f32 %v2166, %v2189
    %v2467 = vmul.f32 %v2162, %v2193
    %v2468 = vmul.f32 %v2166, %v2193
    %v2469 = vmul.f32 %v2162, %v2197
    %v2470 = vmul.f32 %v2166, %v2197
    %v2471 = vmul.f32 %v2162, %v2201
    %v2472 = vmul.f32 %v2166, %v2201
    %v2473 = vmul.f32 %v2162, %v2205
    %v2474 = vmul.f32 %v2166, %v2205
    %v2475 = vmul.f32 %v2162, %v2209
    %v2476 = vmul.f32 %v2166, %v2209
    %v2477 = vmul.f32 %v2162, %v2213
    %v2478 = vmul.f32 %v2166, %v2213
    %v2479 = vmul.f32 %v2162, %v2217
    %v2480 = vmul.f32 %v2166, %v2217
    %v2481 = vmul.f32 %v2162, %v2221
    %v2482 = vmul.f32 %v2166, %v2221
    %v2483 = vmul.f32 %v2162, %v2225
    %v2484 = vmul.f32 %v2166, %v2225
    %v2485 = vmul.f32 %v2162, %v2229
    %v2486 = vmul.f32 %v2166, %v2229
    %v2487 = vadd.f32 %v1767, %v2231
    %v2488 = vadd.f32 %v1768, %v2232
    %v2489 = vadd.f32 %v1769, %v2233
    %v2490 = vadd.f32 %v1770, %v2234
    %v2491 = vadd.f32 %v1771, %v2235
    %v2492 = vadd.f32 %v1772, %v2236
    %v2493 = vadd.f32 %v1773, %v2237
    %v2494 = vadd.f32 %v1774, %v2238
    %v2495 = vadd.f32 %v1775, %v2239
    %v2496 = vadd.f32 %v1776, %v2240
    %v2497 = vadd.f32 %v1777, %v2241
    %v2498 = vadd.f32 %v1778, %v2242
    %v2499 = vadd.f32 %v1779, %v2243
    %v2500 = vadd.f32 %v1780, %v2244
    %v2501 = vadd.f32 %v1781, %v2245
    %v2502 = vadd.f32 %v1782, %v2246
    %v2503 = vadd.f32 %v1783, %v2247
    %v2504 = vadd.f32 %v1784, %v2248
    %v2505 = vadd.f32 %v1785, %v2249
    %v2506 = vadd.f32 %v1786, %v2250
    %v2507 = vadd.f32 %v1787, %v2251
    %v2508 = vadd.f32 %v1788, %v2252
    %v2509 = vadd.f32 %v1789, %v2253
    %v2510 = vadd.f32 %v1790, %v2254
    %v2511 = vadd.f32 %v1791, %v2255
    %v2512 = vadd.f32 %v1792, %v2256
    %v2513 = vadd.f32 %v1793, %v2257
    %v2514 = vadd.f32 %v1794, %v2258
    %v2515 = vadd.f32 %v1795, %v2259
    %v2516 = vadd.f32 %v1796, %v2260
    %v2517 = vadd.f32 %v1797, %v2261
    %v2518 = vadd.f32 %v1798, %v2262
    %v2519 = vadd.f32 %v1799, %v2263
    %v2520 = vadd.f32 %v1800, %v2264
    %v2521 = vadd.f32 %v1801, %v2265
    %v2522 = vadd.f32 %v1802, %v2266
    %v2523 = vadd.f32 %v1803, %v2267
    %v2524 = vadd.f32 %v1804, %v2268
    %v2525 = vadd.f32 %v1805, %v2269
    %v2526 = vadd.f32 %v1806, %v2270
    %v2527 = vadd.f32 %v1807, %v2271
    %v2528 = vadd.f32 %v1808, %v2272
    %v2529 = vadd.f32 %v1809, %v2273
    %v2530 = vadd.f32 %v1810, %v2274
    %v2531 = vadd.f32 %v1811, %v2275
    %v2532 = vadd.f32 %v1812, %v2276
    %v2533 = vadd.f32 %v1813, %v2277
    %v2534 = vadd.f32 %v1814, %v2278
    %v2535 = vadd.f32 %v1815, %v2279
    %v2536 = vadd.f32 %v1816, %v2280
    %v2537 = vadd.f32 %v1817, %v2281
    %v2538 = vadd.f32 %v1818, %v2282
    %v2539 = vadd.f32 %v1819, %v2283
    %v2540 = vadd.f32 %v1820, %v2284
    %v2541 = vadd.f32 %v1821, %v2285
    %v2542 = vadd.f32 %v1822, %v2286
    %v2543 = vadd.f32 %v1823, %v2287
    %v2544 = vadd.f32 %v1824, %v2288
    %v2545 = vadd.f32 %v1825, %v2289
    %v2546 = vadd.f32 %v1826, %v2290
    %v2547 = vadd.f32 %v1827, %v2291
    %v2548 = vadd.f32 %v1828, %v2292
    %v2549 = vadd.f32 %v1829, %v2293
    %v2550 = vadd.f32 %v1830, %v2294
    %v2551 = vadd.f32 %v1831, %v2295
    %v2552 = vadd.f32 %v1832, %v2296
    %v2553 = vadd.f32 %v1833, %v2297
    %v2554 = vadd.f32 %v1834, %v2298
    %v2555 = vadd.f32 %v1835, %v2299
    %v2556 = vadd.f32 %v1836, %v2300
    %v2557 = vadd.f32 %v1837, %v2301
    %v2558 = vadd.f32 %v1838, %v2302
    %v2559 = vadd.f32 %v1839, %v2303
    %v2560 = vadd.f32 %v1840, %v2304
    %v2561 = vadd.f32 %v1841, %v2305
    %v2562 = vadd.f32 %v1842, %v2306
    %v2563 = vadd.f32 %v1843, %v2307
    %v2564 = vadd.f32 %v1844, %v2308
    %v2565 = vadd.f32 %v1845, %v2309
    %v2566 = vadd.f32 %v1846, %v2310
    %v2567 = vadd.f32 %v1847, %v2311
    %v2568 = vadd.f32 %v1848, %v2312
    %v2569 = vadd.f32 %v1849, %v2313
    %v2570 = vadd.f32 %v1850, %v2314
    %v2571 = vadd.f32 %v1851, %v2315
    %v2572 = vadd.f32 %v1852, %v2316
    %v2573 = vadd.f32 %v1853, %v2317
    %v2574 = vadd.f32 %v1854, %v2318
    %v2575 = vadd.f32 %v1855, %v2319
    %v2576 = vadd.f32 %v1856, %v2320
    %v2577 = vadd.f32 %v1857, %v2321
    %v2578 = vadd.f32 %v1858, %v2322
    %v2579 = vadd.f32 %v1859, %v2323
    %v2580 = vadd.f32 %v1860, %v2324
    %v2581 = vadd.f32 %v1861, %v2325
    %v2582 = vadd.f32 %v1862, %v2326
    %v2583 = vadd.f32 %v1863, %v2327
    %v2584 = vadd.f32 %v1864, %v2328
    %v2585 = vadd.f32 %v1865, %v2329
    %v2586 = vadd.f32 %v1866, %v2330
    %v2587 = vadd.f32 %v1867, %v2331
    %v2588 = vadd.f32 %v1868, %v2332
    %v2589 = vadd.f32 %v1869, %v2333
    %v2590 = vadd.f32 %v1870, %v2334
    %v2591 = vadd.f32 %v1871, %v2335
    %v2592 = vadd.f32 %v1872, %v2336
    %v2593 = vadd.f32 %v1873, %v2337
    %v2594 = vadd.f32 %v1874, %v2338
    %v2595 = vadd.f32 %v1875, %v2339
    %v2596 = vadd.f32 %v1876, %v2340
    %v2597 = vadd.f32 %v1877, %v2341
    %v2598 = vadd.f32 %v1878, %v2342
    %v2599 = vadd.f32 %v1879, %v2343
    %v2600 = vadd.f32 %v1880, %v2344
    %v2601 = vadd.f32 %v1881, %v2345
    %v2602 = vadd.f32 %v1882, %v2346
    %v2603 = vadd.f32 %v1883, %v2347
    %v2604 = vadd.f32 %v1884, %v2348
    %v2605 = vadd.f32 %v1885, %v2349
    %v2606 = vadd.f32 %v1886, %v2350
    %v2607 = vadd.f32 %v1887, %v2351
    %v2608 = vadd.f32 %v1888, %v2352
    %v2609 = vadd.f32 %v1889, %v2353
    %v2610 = vadd.f32 %v1890, %v2354
    %v2611 = vadd.f32 %v1891, %v2355
    %v2612 = vadd.f32 %v1892, %v2356
    %v2613 = vadd.f32 %v1893, %v2357
    %v2614 = vadd.f32 %v1894, %v2358
    %v2615 = vadd.f32 %v1895, %v2359
    %v2616 = vadd.f32 %v1896, %v2360
    %v2617 = vadd.f32 %v1897, %v2361
    %v2618 = vadd.f32 %v1898, %v2362
    %v2619 = vadd.f32 %v1899, %v2363
    %v2620 = vadd.f32 %v1900, %v2364
    %v2621 = vadd.f32 %v1901, %v2365
    %v2622 = vadd.f32 %v1902, %v2366
    %v2623 = vadd.f32 %v1903, %v2367
    %v2624 = vadd.f32 %v1904, %v2368
    %v2625 = vadd.f32 %v1905, %v2369
    %v2626 = vadd.f32 %v1906, %v2370
    %v2627 = vadd.f32 %v1907, %v2371
    %v2628 = vadd.f32 %v1908, %v2372
    %v2629 = vadd.f32 %v1909, %v2373
    %v2630 = vadd.f32 %v1910, %v2374
    %v2631 = vadd.f32 %v1911, %v2375
    %v2632 = vadd.f32 %v1912, %v2376
    %v2633 = vadd.f32 %v1913, %v2377
    %v2634 = vadd.f32 %v1914, %v2378
    %v2635 = vadd.f32 %v1915, %v2379
    %v2636 = vadd.f32 %v1916, %v2380
    %v2637 = vadd.f32 %v1917, %v2381
    %v2638 = vadd.f32 %v1918, %v2382
    %v2639 = vadd.f32 %v1919, %v2383
    %v2640 = vadd.f32 %v1920, %v2384
    %v2641 = vadd.f32 %v1921, %v2385
    %v2642 = vadd.f32 %v1922, %v2386
    %v2643 = vadd.f32 %v1923, %v2387
    %v2644 = vadd.f32 %v1924, %v2388
    %v2645 = vadd.f32 %v1925, %v2389
    %v2646 = vadd.f32 %v1926, %v2390
    %v2647 = vadd.f32 %v1927, %v2391
    %v2648 = vadd.f32 %v1928, %v2392
    %v2649 = vadd.f32 %v1929, %v2393
    %v2650 = vadd.f32 %v1930, %v2394
    %v2651 = vadd.f32 %v1931, %v2395
    %v2652 = vadd.f32 %v1932, %v2396
    %v2653 = vadd.f32 %v1933, %v2397
    %v2654 = vadd.f32 %v1934, %v2398
    %v2655 = vadd.f32 %v1935, %v2399
    %v2656 = vadd.f32 %v1936, %v2400
    %v2657 = vadd.f32 %v1937, %v2401
    %v2658 = vadd.f32 %v1938, %v2402
    %v2659 = vadd.f32 %v1939, %v2403
    %v2660 = vadd.f32 %v1940, %v2404
    %v2661 = vadd.f32 %v1941, %v2405
    %v2662 = vadd.f32 %v1942, %v2406
    %v2663 = vadd.f32 %v1943, %v2407
    %v2664 = vadd.f32 %v1944, %v2408
    %v2665 = vadd.f32 %v1945, %v2409
    %v2666 = vadd.f32 %v1946, %v2410
    %v2667 = vadd.f32 %v1947, %v2411
    %v2668 = vadd.f32 %v1948, %v2412
    %v2669 = vadd.f32 %v1949, %v2413
    %v2670 = vadd.f32 %v1950, %v2414
    %v2671 = vadd.f32 %v1951, %v2415
    %v2672 = vadd.f32 %v1952, %v2416
    %v2673 = vadd.f32 %v1953, %v2417
    %v2674 = vadd.f32 %v1954, %v2418
    %v2675 = vadd.f32 %v1955, %v2419
    %v2676 = vadd.f32 %v1956, %v2420
    %v2677 = vadd.f32 %v1957, %v2421
    %v2678 = vadd.f32 %v1958, %v2422
    %v2679 = vadd.f32 %v1959, %v2423
    %v2680 = vadd.f32 %v1960, %v2424
    %v2681 = vadd.f32 %v1961, %v2425
    %v2682 = vadd.f32 %v1962, %v2426
    %v2683 = vadd.f32 %v1963, %v2427
    %v2684 = vadd.f32 %v1964, %v2428
    %v2685 = vadd.f32 %v1965, %v2429
    %v2686 = vadd.f32 %v1966, %v2430
    %v2687 = vadd.f32 %v1967, %v2431
    %v2688 = vadd.f32 %v1968, %v2432
    %v2689 = vadd.f32 %v1969, %v2433
    %v2690 = vadd.f32 %v1970, %v2434
    %v2691 = vadd.f32 %v1971, %v2435
    %v2692 = vadd.f32 %v1972, %v2436
    %v2693 = vadd.f32 %v1973, %v2437
    %v2694 = vadd.f32 %v1974, %v2438
    %v2695 = vadd.f32 %v1975, %v2439
    %v2696 = vadd.f32 %v1976, %v2440
    %v2697 = vadd.f32 %v1977, %v2441
    %v2698 = vadd.f32 %v1978, %v2442
    %v2699 = vadd.f32 %v1979, %v2443
    %v2700 = vadd.f32 %v1980, %v2444
    %v2701 = vadd.f32 %v1981, %v2445
    %v2702 = vadd.f32 %v1982, %v2446
    %v2703 = vadd.f32 %v1983, %v2447
    %v2704 = vadd.f32 %v1984, %v2448
    %v2705 = vadd.f32 %v1985, %v2449
    %v2706 = vadd.f32 %v1986, %v2450
    %v2707 = vadd.f32 %v1987, %v2451
    %v2708 = vadd.f32 %v1988, %v2452
    %v2709 = vadd.f32 %v1989, %v2453
    %v2710 = vadd.f32 %v1990, %v2454
    %v2711 = vadd.f32 %v1991, %v2455
    %v2712 = vadd.f32 %v1992, %v2456
    %v2713 = vadd.f32 %v1993, %v2457
    %v2714 = vadd.f32 %v1994, %v2458
    %v2715 = vadd.f32 %v1995, %v2459
    %v2716 = vadd.f32 %v1996, %v2460
    %v2717 = vadd.f32 %v1997, %v2461
    %v2718 = vadd.f32 %v1998, %v2462
    %v2719 = vadd.f32 %v1999, %v2463
    %v2720 = vadd.f32 %v2000, %v2464
    %v2721 = vadd.f32 %v2001, %v2465
    %v2722 = vadd.f32 %v2002, %v2466
    %v2723 = vadd.f32 %v2003, %v2467
    %v2724 = vadd.f32 %v2004, %v2468
    %v2725 = vadd.f32 %v2005, %v2469
    %v2726 = vadd.f32 %v2006, %v2470
    %v2727 = vadd.f32 %v2007, %v2471
    %v2728 = vadd.f32 %v2008, %v2472
    %v2729 = vadd.f32 %v2009, %v2473
    %v2730 = vadd.f32 %v2010, %v2474
    %v2731 = vadd.f32 %v2011, %v2475
    %v2732 = vadd.f32 %v2012, %v2476
    %v2733 = vadd.f32 %v2013, %v2477
    %v2734 = vadd.f32 %v2014, %v2478
    %v2735 = vadd.f32 %v2015, %v2479
    %v2736 = vadd.f32 %v2016, %v2480
    %v2737 = vadd.f32 %v2017, %v2481
    %v2738 = vadd.f32 %v2018, %v2482
    %v2739 = vadd.f32 %v2019, %v2483
    %v2740 = vadd.f32 %v2020, %v2484
    %v2741 = vadd.f32 %v2021, %v2485
    %v2742 = vadd.f32 %v2022, %v2486
    %v2743 = vld [vmem:[%s3] sm:$0xff]
    %v2744 = vld [vmem:[%s3 + $0x8] sm:$0xff]
    %v2745 = vld [vmem:[%s3 + $0x10] sm:$0xff]
    %v2746 = vld [vmem:[%s3 + $0x18] sm:$0xff]
    %v2747 = vld [vmem:[%s3 + $0x20] sm:$0xff]
    %v2748 = vld [vmem:[%s3 + $0x28] sm:$0xff]
    %v2749 = vld [vmem:[%s3 + $0x30] sm:$0xff]
    %v2750 = vld [vmem:[%s3 + $0x38] sm:$0xff]
    %v2751 = vld [vmem:[%s3 + $0x40] sm:$0xff]
    %v2752 = vld [vmem:[%s3 + $0x48] sm:$0xff]
    %v2753 = vld [vmem:[%s3 + $0x50] sm:$0xff]
    %v2754 = vld [vmem:[%s3 + $0x58] sm:$0xff]
    %v2755 = vld [vmem:[%s3 + $0x60] sm:$0xff]
    %v2756 = vld [vmem:[%s3 + $0x68] sm:$0xff]
    %v2757 = vld [vmem:[%s3 + $0x70] sm:$0xff]
    %v2758 = vld [vmem:[%s3 + $0x78] sm:$0xff]
    %2760 = vset.pattern.permute.xlu0 0
    %2761 = vperm.xlu0 %2760, %v2743
    %v2762 = vpop.permute.xlu0 %2761
    %2765 = vset.pattern.permute.xlu0 0
    %2766 = vperm.xlu0 %2765, %v2744
    %v2767 = vpop.permute.xlu0 %2766
    %2770 = vset.pattern.permute.xlu0 0
    %2771 = vperm.xlu0 %2770, %v2745
    %v2772 = vpop.permute.xlu0 %2771
    %2775 = vset.pattern.permute.xlu0 0
    %2776 = vperm.xlu0 %2775, %v2746
    %v2777 = vpop.permute.xlu0 %2776
    %2780 = vset.pattern.permute.xlu0 0
    %2781 = vperm.xlu0 %2780, %v2747
    %v2782 = vpop.permute.xlu0 %2781
    %2785 = vset.pattern.permute.xlu0 0
    %2786 = vperm.xlu0 %2785, %v2748
    %v2787 = vpop.permute.xlu0 %2786
    %2790 = vset.pattern.permute.xlu0 0
    %2791 = vperm.xlu0 %2790, %v2749
    %v2792 = vpop.permute.xlu0 %2791
    %2795 = vset.pattern.permute.xlu0 0
    %2796 = vperm.xlu0 %2795, %v2750
    %v2797 = vpop.permute.xlu0 %2796
    %2800 = vset.pattern.permute.xlu0 0
    %2801 = vperm.xlu0 %2800, %v2751
    %v2802 = vpop.permute.xlu0 %2801
    %2805 = vset.pattern.permute.xlu0 0
    %2806 = vperm.xlu0 %2805, %v2752
    %v2807 = vpop.permute.xlu0 %2806
    %2810 = vset.pattern.permute.xlu0 0
    %2811 = vperm.xlu0 %2810, %v2753
    %v2812 = vpop.permute.xlu0 %2811
    %2815 = vset.pattern.permute.xlu0 0
    %2816 = vperm.xlu0 %2815, %v2754
    %v2817 = vpop.permute.xlu0 %2816
    %2820 = vset.pattern.permute.xlu0 0
    %2821 = vperm.xlu0 %2820, %v2755
    %v2822 = vpop.permute.xlu0 %2821
    %2825 = vset.pattern.permute.xlu0 0
    %2826 = vperm.xlu0 %2825, %v2756
    %v2827 = vpop.permute.xlu0 %2826
    %2830 = vset.pattern.permute.xlu0 0
    %2831 = vperm.xlu0 %2830, %v2757
    %v2832 = vpop.permute.xlu0 %2831
    %2835 = vset.pattern.permute.xlu0 0
    %2836 = vperm.xlu0 %2835, %v2758
    %v2837 = vpop.permute.xlu0 %2836
    %v2839 = vadd.f32 %v2487, %v2762
    %v2840 = vadd.f32 %v2488, %v2762
    %v2841 = vadd.f32 %v2489, %v2767
    %v2842 = vadd.f32 %v2490, %v2767
    %v2843 = vadd.f32 %v2491, %v2772
    %v2844 = vadd.f32 %v2492, %v2772
    %v2845 = vadd.f32 %v2493, %v2777
    %v2846 = vadd.f32 %v2494, %v2777
    %v2847 = vadd.f32 %v2495, %v2782
    %v2848 = vadd.f32 %v2496, %v2782
    %v2849 = vadd.f32 %v2497, %v2787
    %v2850 = vadd.f32 %v2498, %v2787
    %v2851 = vadd.f32 %v2499, %v2792
    %v2852 = vadd.f32 %v2500, %v2792
    %v2853 = vadd.f32 %v2501, %v2797
    %v2854 = vadd.f32 %v2502, %v2797
    %v2855 = vadd.f32 %v2503, %v2802
    %v2856 = vadd.f32 %v2504, %v2802
    %v2857 = vadd.f32 %v2505, %v2807
    %v2858 = vadd.f32 %v2506, %v2807
    %v2859 = vadd.f32 %v2507, %v2812
    %v2860 = vadd.f32 %v2508, %v2812
    %v2861 = vadd.f32 %v2509, %v2817
    %v2862 = vadd.f32 %v2510, %v2817
    %v2863 = vadd.f32 %v2511, %v2822
    %v2864 = vadd.f32 %v2512, %v2822
    %v2865 = vadd.f32 %v2513, %v2827
    %v2866 = vadd.f32 %v2514, %v2827
    %v2867 = vadd.f32 %v2515, %v2832
    %v2868 = vadd.f32 %v2516, %v2832
    %v2869 = vadd.f32 %v2517, %v2837
    %v2870 = vadd.f32 %v2518, %v2837
    %v2871 = vadd.f32 %v2519, %v2762
    %v2872 = vadd.f32 %v2520, %v2762
    %v2873 = vadd.f32 %v2521, %v2767
    %v2874 = vadd.f32 %v2522, %v2767
    %v2875 = vadd.f32 %v2523, %v2772
    %v2876 = vadd.f32 %v2524, %v2772
    %v2877 = vadd.f32 %v2525, %v2777
    %v2878 = vadd.f32 %v2526, %v2777
    %v2879 = vadd.f32 %v2527, %v2782
    %v2880 = vadd.f32 %v2528, %v2782
    %v2881 = vadd.f32 %v2529, %v2787
    %v2882 = vadd.f32 %v2530, %v2787
    %v2883 = vadd.f32 %v2531, %v2792
    %v2884 = vadd.f32 %v2532, %v2792
    %v2885 = vadd.f32 %v2533, %v2797
    %v2886 = vadd.f32 %v2534, %v2797
    %v2887 = vadd.f32 %v2535, %v2802
    %v2888 = vadd.f32 %v2536, %v2802
    %v2889 = vadd.f32 %v2537, %v2807
    %v2890 = vadd.f32 %v2538, %v2807
    %v2891 = vadd.f32 %v2539, %v2812
    %v2892 = vadd.f32 %v2540, %v2812
    %v2893 = vadd.f32 %v2541, %v2817
    %v2894 = vadd.f32 %v2542, %v2817
    %v2895 = vadd.f32 %v2543, %v2822
    %v2896 = vadd.f32 %v2544, %v2822
    %v2897 = vadd.f32 %v2545, %v2827
    %v2898 = vadd.f32 %v2546, %v2827
    %v2899 = vadd.f32 %v2547, %v2832
    %v2900 = vadd.f32 %v2548, %v2832
    %v2901 = vadd.f32 %v2549, %v2837
    %v2902 = vadd.f32 %v2550, %v2837
    %v2903 = vadd.f32 %v2551, %v2762
    %v2904 = vadd.f32 %v2552, %v2762
    %v2905 = vadd.f32 %v2553, %v2767
    %v2906 = vadd.f32 %v2554, %v2767
    %v2907 = vadd.f32 %v2555, %v2772
    %v2908 = vadd.f32 %v2556, %v2772
    %v2909 = vadd.f32 %v2557, %v2777
    %v2910 = vadd.f32 %v2558, %v2777
    %v2911 = vadd.f32 %v2559, %v2782
    %v2912 = vadd.f32 %v2560, %v2782
    %v2913 = vadd.f32 %v2561, %v2787
    %v2914 = vadd.f32 %v2562, %v2787
    %v2915 = vadd.f32 %v2563, %v2792
    %v2916 = vadd.f32 %v2564, %v2792
    %v2917 = vadd.f32 %v2565, %v2797
    %v2918 = vadd.f32 %v2566, %v2797
    %v2919 = vadd.f32 %v2567, %v2802
    %v2920 = vadd.f32 %v2568, %v2802
    %v2921 = vadd.f32 %v2569, %v2807
    %v2922 = vadd.f32 %v2570, %v2807
    %v2923 = vadd.f32 %v2571, %v2812
    %v2924 = vadd.f32 %v2572, %v2812
    %v2925 = vadd.f32 %v2573, %v2817
    %v2926 = vadd.f32 %v2574, %v2817
    %v2927 = vadd.f32 %v2575, %v2822
    %v2928 = vadd.f32 %v2576, %v2822
    %v2929 = vadd.f32 %v2577, %v2827
    %v2930 = vadd.f32 %v2578, %v2827
    %v2931 = vadd.f32 %v2579, %v2832
    %v2932 = vadd.f32 %v2580, %v2832
    %v2933 = vadd.f32 %v2581, %v2837
    %v2934 = vadd.f32 %v2582, %v2837
    %v2935 = vadd.f32 %v2583, %v2762
    %v2936 = vadd.f32 %v2584, %v2762
    %v2937 = vadd.f32 %v2585, %v2767
    %v2938 = vadd.f32 %v2586, %v2767
    %v2939 = vadd.f32 %v2587, %v2772
    %v2940 = vadd.f32 %v2588, %v2772
    %v2941 = vadd.f32 %v2589, %v2777
    %v2942 = vadd.f32 %v2590, %v2777
    %v2943 = vadd.f32 %v2591, %v2782
    %v2944 = vadd.f32 %v2592, %v2782
    %v2945 = vadd.f32 %v2593, %v2787
    %v2946 = vadd.f32 %v2594, %v2787
    %v2947 = vadd.f32 %v2595, %v2792
    %v2948 = vadd.f32 %v2596, %v2792
    %v2949 = vadd.f32 %v2597, %v2797
    %v2950 = vadd.f32 %v2598, %v2797
    %v2951 = vadd.f32 %v2599, %v2802
    %v2952 = vadd.f32 %v2600, %v2802
    %v2953 = vadd.f32 %v2601, %v2807
    %v2954 = vadd.f32 %v2602, %v2807
    %v2955 = vadd.f32 %v2603, %v2812
    %v2956 = vadd.f32 %v2604, %v2812
    %v2957 = vadd.f32 %v2605, %v2817
    %v2958 = vadd.f32 %v2606, %v2817
    %v2959 = vadd.f32 %v2607, %v2822
    %v2960 = vadd.f32 %v2608, %v2822
    %v2961 = vadd.f32 %v2609, %v2827
    %v2962 = vadd.f32 %v2610, %v2827
    %v2963 = vadd.f32 %v2611, %v2832
    %v2964 = vadd.f32 %v2612, %v2832
    %v2965 = vadd.f32 %v2613, %v2837
    %v2966 = vadd.f32 %v2614, %v2837
    %v2967 = vadd.f32 %v2615, %v2762
    %v2968 = vadd.f32 %v2616, %v2762
    %v2969 = vadd.f32 %v2617, %v2767
    %v2970 = vadd.f32 %v2618, %v2767
    %v2971 = vadd.f32 %v2619, %v2772
    %v2972 = vadd.f32 %v2620, %v2772
    %v2973 = vadd.f32 %v2621, %v2777
    %v2974 = vadd.f32 %v2622, %v2777
    %v2975 = vadd.f32 %v2623, %v2782
    %v2976 = vadd.f32 %v2624, %v2782
    %v2977 = vadd.f32 %v2625, %v2787
    %v2978 = vadd.f32 %v2626, %v2787
    %v2979 = vadd.f32 %v2627, %v2792
    %v2980 = vadd.f32 %v2628, %v2792
    %v2981 = vadd.f32 %v2629, %v2797
    %v2982 = vadd.f32 %v2630, %v2797
    %v2983 = vadd.f32 %v2631, %v2802
    %v2984 = vadd.f32 %v2632, %v2802
    %v2985 = vadd.f32 %v2633, %v2807
    %v2986 = vadd.f32 %v2634, %v2807
    %v2987 = vadd.f32 %v2635, %v2812
    %v2988 = vadd.f32 %v2636, %v2812
    %v2989 = vadd.f32 %v2637, %v2817
    %v2990 = vadd.f32 %v2638, %v2817
    %v2991 = vadd.f32 %v2639, %v2822
    %v2992 = vadd.f32 %v2640, %v2822
    %v2993 = vadd.f32 %v2641, %v2827
    %v2994 = vadd.f32 %v2642, %v2827
    %v2995 = vadd.f32 %v2643, %v2832
    %v2996 = vadd.f32 %v2644, %v2832
    %v2997 = vadd.f32 %v2645, %v2837
    %v2998 = vadd.f32 %v2646, %v2837
    %v2999 = vadd.f32 %v2647, %v2762
    %v3000 = vadd.f32 %v2648, %v2762
    %v3001 = vadd.f32 %v2649, %v2767
    %v3002 = vadd.f32 %v2650, %v2767
    %v3003 = vadd.f32 %v2651, %v2772
    %v3004 = vadd.f32 %v2652, %v2772
    %v3005 = vadd.f32 %v2653, %v2777
    %v3006 = vadd.f32 %v2654, %v2777
    %v3007 = vadd.f32 %v2655, %v2782
    %v3008 = vadd.f32 %v2656, %v2782
    %v3009 = vadd.f32 %v2657, %v2787
    %v3010 = vadd.f32 %v2658, %v2787
    %v3011 = vadd.f32 %v2659, %v2792
    %v3012 = vadd.f32 %v2660, %v2792
    %v3013 = vadd.f32 %v2661, %v2797
    %v3014 = vadd.f32 %v2662, %v2797
    %v3015 = vadd.f32 %v2663, %v2802
    %v3016 = vadd.f32 %v2664, %v2802
    %v3017 = vadd.f32 %v2665, %v2807
    %v3018 = vadd.f32 %v2666, %v2807
    %v3019 = vadd.f32 %v2667, %v2812
    %v3020 = vadd.f32 %v2668, %v2812
    %v3021 = vadd.f32 %v2669, %v2817
    %v3022 = vadd.f32 %v2670, %v2817
    %v3023 = vadd.f32 %v2671, %v2822
    %v3024 = vadd.f32 %v2672, %v2822
    %v3025 = vadd.f32 %v2673, %v2827
    %v3026 = vadd.f32 %v2674, %v2827
    %v3027 = vadd.f32 %v2675, %v2832
    %v3028 = vadd.f32 %v2676, %v2832
    %v3029 = vadd.f32 %v2677, %v2837
    %v3030 = vadd.f32 %v2678, %v2837
    %v3031 = vadd.f32 %v2679, %v2762
    %v3032 = vadd.f32 %v2680, %v2762
    %v3033 = vadd.f32 %v2681, %v2767
    %v3034 = vadd.f32 %v2682, %v2767
    %v3035 = vadd.f32 %v2683, %v2772
    %v3036 = vadd.f32 %v2684, %v2772
    %v3037 = vadd.f32 %v2685, %v2777
    %v3038 = vadd.f32 %v2686, %v2777
    %v3039 = vadd.f32 %v2687, %v2782
    %v3040 = vadd.f32 %v2688, %v2782
    %v3041 = vadd.f32 %v2689, %v2787
    %v3042 = vadd.f32 %v2690, %v2787
    %v3043 = vadd.f32 %v2691, %v2792
    %v3044 = vadd.f32 %v2692, %v2792
    %v3045 = vadd.f32 %v2693, %v2797
    %v3046 = vadd.f32 %v2694, %v2797
    %v3047 = vadd.f32 %v2695, %v2802
    %v3048 = vadd.f32 %v2696, %v2802
    %v3049 = vadd.f32 %v2697, %v2807
    %v3050 = vadd.f32 %v2698, %v2807
    %v3051 = vadd.f32 %v2699, %v2812
    %v3052 = vadd.f32 %v2700, %v2812
    %v3053 = vadd.f32 %v2701, %v2817
    %v3054 = vadd.f32 %v2702, %v2817
    %v3055 = vadd.f32 %v2703, %v2822
    %v3056 = vadd.f32 %v2704, %v2822
    %v3057 = vadd.f32 %v2705, %v2827
    %v3058 = vadd.f32 %v2706, %v2827
    %v3059 = vadd.f32 %v2707, %v2832
    %v3060 = vadd.f32 %v2708, %v2832
    %v3061 = vadd.f32 %v2709, %v2837
    %v3062 = vadd.f32 %v2710, %v2837
    %v3063 = vadd.f32 %v2711, %v2762
    %v3064 = vadd.f32 %v2712, %v2762
    %v3065 = vadd.f32 %v2713, %v2767
    %v3066 = vadd.f32 %v2714, %v2767
    %v3067 = vadd.f32 %v2715, %v2772
    %v3068 = vadd.f32 %v2716, %v2772
    %v3069 = vadd.f32 %v2717, %v2777
    %v3070 = vadd.f32 %v2718, %v2777
    %v3071 = vadd.f32 %v2719, %v2782
    %v3072 = vadd.f32 %v2720, %v2782
    %v3073 = vadd.f32 %v2721, %v2787
    %v3074 = vadd.f32 %v2722, %v2787
    %v3075 = vadd.f32 %v2723, %v2792
    %v3076 = vadd.f32 %v2724, %v2792
    %v3077 = vadd.f32 %v2725, %v2797
    %v3078 = vadd.f32 %v2726, %v2797
    %v3079 = vadd.f32 %v2727, %v2802
    %v3080 = vadd.f32 %v2728, %v2802
    %v3081 = vadd.f32 %v2729, %v2807
    %v3082 = vadd.f32 %v2730, %v2807
    %v3083 = vadd.f32 %v2731, %v2812
    %v3084 = vadd.f32 %v2732, %v2812
    %v3085 = vadd.f32 %v2733, %v2817
    %v3086 = vadd.f32 %v2734, %v2817
    %v3087 = vadd.f32 %v2735, %v2822
    %v3088 = vadd.f32 %v2736, %v2822
    %v3089 = vadd.f32 %v2737, %v2827
    %v3090 = vadd.f32 %v2738, %v2827
    %v3091 = vadd.f32 %v2739, %v2832
    %v3092 = vadd.f32 %v2740, %v2832
    %v3093 = vadd.f32 %v2741, %v2837
    %v3094 = vadd.f32 %v2742, %v2837
    %v3095 = vxor.u32 %v2839, 2147483648
    %v3096 = vxor.u32 %v2840, 2147483648
    %v3097 = vxor.u32 %v2841, 2147483648
    %v3098 = vxor.u32 %v2842, 2147483648
    %v3099 = vxor.u32 %v2843, 2147483648
    %v3100 = vxor.u32 %v2844, 2147483648
    %v3101 = vxor.u32 %v2845, 2147483648
    %v3102 = vxor.u32 %v2846, 2147483648
    %v3103 = vxor.u32 %v2847, 2147483648
    %v3104 = vxor.u32 %v2848, 2147483648
    %v3105 = vxor.u32 %v2849, 2147483648
    %v3106 = vxor.u32 %v2850, 2147483648
    %v3107 = vxor.u32 %v2851, 2147483648
    %v3108 = vxor.u32 %v2852, 2147483648
    %v3109 = vxor.u32 %v2853, 2147483648
    %v3110 = vxor.u32 %v2854, 2147483648
    %v3111 = vxor.u32 %v2855, 2147483648
    %v3112 = vxor.u32 %v2856, 2147483648
    %v3113 = vxor.u32 %v2857, 2147483648
    %v3114 = vxor.u32 %v2858, 2147483648
    %v3115 = vxor.u32 %v2859, 2147483648
    %v3116 = vxor.u32 %v2860, 2147483648
    %v3117 = vxor.u32 %v2861, 2147483648
    %v3118 = vxor.u32 %v2862, 2147483648
    %v3119 = vxor.u32 %v2863, 2147483648
    %v3120 = vxor.u32 %v2864, 2147483648
    %v3121 = vxor.u32 %v2865, 2147483648
    %v3122 = vxor.u32 %v2866, 2147483648
    %v3123 = vxor.u32 %v2867, 2147483648
    %v3124 = vxor.u32 %v2868, 2147483648
    %v3125 = vxor.u32 %v2869, 2147483648
    %v3126 = vxor.u32 %v2870, 2147483648
    %v3127 = vxor.u32 %v2871, 2147483648
    %v3128 = vxor.u32 %v2872, 2147483648
    %v3129 = vxor.u32 %v2873, 2147483648
    %v3130 = vxor.u32 %v2874, 2147483648
    %v3131 = vxor.u32 %v2875, 2147483648
    %v3132 = vxor.u32 %v2876, 2147483648
    %v3133 = vxor.u32 %v2877, 2147483648
    %v3134 = vxor.u32 %v2878, 2147483648
    %v3135 = vxor.u32 %v2879, 2147483648
    %v3136 = vxor.u32 %v2880, 2147483648
    %v3137 = vxor.u32 %v2881, 2147483648
    %v3138 = vxor.u32 %v2882, 2147483648
    %v3139 = vxor.u32 %v2883, 2147483648
    %v3140 = vxor.u32 %v2884, 2147483648
    %v3141 = vxor.u32 %v2885, 2147483648
    %v3142 = vxor.u32 %v2886, 2147483648
    %v3143 = vxor.u32 %v2887, 2147483648
    %v3144 = vxor.u32 %v2888, 2147483648
    %v3145 = vxor.u32 %v2889, 2147483648
    %v3146 = vxor.u32 %v2890, 2147483648
    %v3147 = vxor.u32 %v2891, 2147483648
    %v3148 = vxor.u32 %v2892, 2147483648
    %v3149 = vxor.u32 %v2893, 2147483648
    %v3150 = vxor.u32 %v2894, 2147483648
    %v3151 = vxor.u32 %v2895, 2147483648
    %v3152 = vxor.u32 %v2896, 2147483648
    %v3153 = vxor.u32 %v2897, 2147483648
    %v3154 = vxor.u32 %v2898, 2147483648
    %v3155 = vxor.u32 %v2899, 2147483648
    %v3156 = vxor.u32 %v2900, 2147483648
    %v3157 = vxor.u32 %v2901, 2147483648
    %v3158 = vxor.u32 %v2902, 2147483648
    %v3159 = vxor.u32 %v2903, 2147483648
    %v3160 = vxor.u32 %v2904, 2147483648
    %v3161 = vxor.u32 %v2905, 2147483648
    %v3162 = vxor.u32 %v2906, 2147483648
    %v3163 = vxor.u32 %v2907, 2147483648
    %v3164 = vxor.u32 %v2908, 2147483648
    %v3165 = vxor.u32 %v2909, 2147483648
    %v3166 = vxor.u32 %v2910, 2147483648
    %v3167 = vxor.u32 %v2911, 2147483648
    %v3168 = vxor.u32 %v2912, 2147483648
    %v3169 = vxor.u32 %v2913, 2147483648
    %v3170 = vxor.u32 %v2914, 2147483648
    %v3171 = vxor.u32 %v2915, 2147483648
    %v3172 = vxor.u32 %v2916, 2147483648
    %v3173 = vxor.u32 %v2917, 2147483648
    %v3174 = vxor.u32 %v2918, 2147483648
    %v3175 = vxor.u32 %v2919, 2147483648
    %v3176 = vxor.u32 %v2920, 2147483648
    %v3177 = vxor.u32 %v2921, 2147483648
    %v3178 = vxor.u32 %v2922, 2147483648
    %v3179 = vxor.u32 %v2923, 2147483648
    %v3180 = vxor.u32 %v2924, 2147483648
    %v3181 = vxor.u32 %v2925, 2147483648
    %v3182 = vxor.u32 %v2926, 2147483648
    %v3183 = vxor.u32 %v2927, 2147483648
    %v3184 = vxor.u32 %v2928, 2147483648
    %v3185 = vxor.u32 %v2929, 2147483648
    %v3186 = vxor.u32 %v2930, 2147483648
    %v3187 = vxor.u32 %v2931, 2147483648
    %v3188 = vxor.u32 %v2932, 2147483648
    %v3189 = vxor.u32 %v2933, 2147483648
    %v3190 = vxor.u32 %v2934, 2147483648
    %v3191 = vxor.u32 %v2935, 2147483648
    %v3192 = vxor.u32 %v2936, 2147483648
    %v3193 = vxor.u32 %v2937, 2147483648
    %v3194 = vxor.u32 %v2938, 2147483648
    %v3195 = vxor.u32 %v2939, 2147483648
    %v3196 = vxor.u32 %v2940, 2147483648
    %v3197 = vxor.u32 %v2941, 2147483648
    %v3198 = vxor.u32 %v2942, 2147483648
    %v3199 = vxor.u32 %v2943, 2147483648
    %v3200 = vxor.u32 %v2944, 2147483648
    %v3201 = vxor.u32 %v2945, 2147483648
    %v3202 = vxor.u32 %v2946, 2147483648
    %v3203 = vxor.u32 %v2947, 2147483648
    %v3204 = vxor.u32 %v2948, 2147483648
    %v3205 = vxor.u32 %v2949, 2147483648
    %v3206 = vxor.u32 %v2950, 2147483648
    %v3207 = vxor.u32 %v2951, 2147483648
    %v3208 = vxor.u32 %v2952, 2147483648
    %v3209 = vxor.u32 %v2953, 2147483648
    %v3210 = vxor.u32 %v2954, 2147483648
    %v3211 = vxor.u32 %v2955, 2147483648
    %v3212 = vxor.u32 %v2956, 2147483648
    %v3213 = vxor.u32 %v2957, 2147483648
    %v3214 = vxor.u32 %v2958, 2147483648
    %v3215 = vxor.u32 %v2959, 2147483648
    %v3216 = vxor.u32 %v2960, 2147483648
    %v3217 = vxor.u32 %v2961, 2147483648
    %v3218 = vxor.u32 %v2962, 2147483648
    %v3219 = vxor.u32 %v2963, 2147483648
    %v3220 = vxor.u32 %v2964, 2147483648
    %v3221 = vxor.u32 %v2965, 2147483648
    %v3222 = vxor.u32 %v2966, 2147483648
    %v3223 = vxor.u32 %v2967, 2147483648
    %v3224 = vxor.u32 %v2968, 2147483648
    %v3225 = vxor.u32 %v2969, 2147483648
    %v3226 = vxor.u32 %v2970, 2147483648
    %v3227 = vxor.u32 %v2971, 2147483648
    %v3228 = vxor.u32 %v2972, 2147483648
    %v3229 = vxor.u32 %v2973, 2147483648
    %v3230 = vxor.u32 %v2974, 2147483648
    %v3231 = vxor.u32 %v2975, 2147483648
    %v3232 = vxor.u32 %v2976, 2147483648
    %v3233 = vxor.u32 %v2977, 2147483648
    %v3234 = vxor.u32 %v2978, 2147483648
    %v3235 = vxor.u32 %v2979, 2147483648
    %v3236 = vxor.u32 %v2980, 2147483648
    %v3237 = vxor.u32 %v2981, 2147483648
    %v3238 = vxor.u32 %v2982, 2147483648
    %v3239 = vxor.u32 %v2983, 2147483648
    %v3240 = vxor.u32 %v2984, 2147483648
    %v3241 = vxor.u32 %v2985, 2147483648
    %v3242 = vxor.u32 %v2986, 2147483648
    %v3243 = vxor.u32 %v2987, 2147483648
    %v3244 = vxor.u32 %v2988, 2147483648
    %v3245 = vxor.u32 %v2989, 2147483648
    %v3246 = vxor.u32 %v2990, 2147483648
    %v3247 = vxor.u32 %v2991, 2147483648
    %v3248 = vxor.u32 %v2992, 2147483648
    %v3249 = vxor.u32 %v2993, 2147483648
    %v3250 = vxor.u32 %v2994, 2147483648
    %v3251 = vxor.u32 %v2995, 2147483648
    %v3252 = vxor.u32 %v2996, 2147483648
    %v3253 = vxor.u32 %v2997, 2147483648
    %v3254 = vxor.u32 %v2998, 2147483648
    %v3255 = vxor.u32 %v2999, 2147483648
    %v3256 = vxor.u32 %v3000, 2147483648
    %v3257 = vxor.u32 %v3001, 2147483648
    %v3258 = vxor.u32 %v3002, 2147483648
    %v3259 = vxor.u32 %v3003, 2147483648
    %v3260 = vxor.u32 %v3004, 2147483648
    %v3261 = vxor.u32 %v3005, 2147483648
    %v3262 = vxor.u32 %v3006, 2147483648
    %v3263 = vxor.u32 %v3007, 2147483648
    %v3264 = vxor.u32 %v3008, 2147483648
    %v3265 = vxor.u32 %v3009, 2147483648
    %v3266 = vxor.u32 %v3010, 2147483648
    %v3267 = vxor.u32 %v3011, 2147483648
    %v3268 = vxor.u32 %v3012, 2147483648
    %v3269 = vxor.u32 %v3013, 2147483648
    %v3270 = vxor.u32 %v3014, 2147483648
    %v3271 = vxor.u32 %v3015, 2147483648
    %v3272 = vxor.u32 %v3016, 2147483648
    %v3273 = vxor.u32 %v3017, 2147483648
    %v3274 = vxor.u32 %v3018, 2147483648
    %v3275 = vxor.u32 %v3019, 2147483648
    %v3276 = vxor.u32 %v3020, 2147483648
    %v3277 = vxor.u32 %v3021, 2147483648
    %v3278 = vxor.u32 %v3022, 2147483648
    %v3279 = vxor.u32 %v3023, 2147483648
    %v3280 = vxor.u32 %v3024, 2147483648
    %v3281 = vxor.u32 %v3025, 2147483648
    %v3282 = vxor.u32 %v3026, 2147483648
    %v3283 = vxor.u32 %v3027, 2147483648
    %v3284 = vxor.u32 %v3028, 2147483648
    %v3285 = vxor.u32 %v3029, 2147483648
    %v3286 = vxor.u32 %v3030, 2147483648
    %v3287 = vxor.u32 %v3031, 2147483648
    %v3288 = vxor.u32 %v3032, 2147483648
    %v3289 = vxor.u32 %v3033, 2147483648
    %v3290 = vxor.u32 %v3034, 2147483648
    %v3291 = vxor.u32 %v3035, 2147483648
    %v3292 = vxor.u32 %v3036, 2147483648
    %v3293 = vxor.u32 %v3037, 2147483648
    %v3294 = vxor.u32 %v3038, 2147483648
    %v3295 = vxor.u32 %v3039, 2147483648
    %v3296 = vxor.u32 %v3040, 2147483648
    %v3297 = vxor.u32 %v3041, 2147483648
    %v3298 = vxor.u32 %v3042, 2147483648
    %v3299 = vxor.u32 %v3043, 2147483648
    %v3300 = vxor.u32 %v3044, 2147483648
    %v3301 = vxor.u32 %v3045, 2147483648
    %v3302 = vxor.u32 %v3046, 2147483648
    %v3303 = vxor.u32 %v3047, 2147483648
    %v3304 = vxor.u32 %v3048, 2147483648
    %v3305 = vxor.u32 %v3049, 2147483648
    %v3306 = vxor.u32 %v3050, 2147483648
    %v3307 = vxor.u32 %v3051, 2147483648
    %v3308 = vxor.u32 %v3052, 2147483648
    %v3309 = vxor.u32 %v3053, 2147483648
    %v3310 = vxor.u32 %v3054, 2147483648
    %v3311 = vxor.u32 %v3055, 2147483648
    %v3312 = vxor.u32 %v3056, 2147483648
    %v3313 = vxor.u32 %v3057, 2147483648
    %v3314 = vxor.u32 %v3058, 2147483648
    %v3315 = vxor.u32 %v3059, 2147483648
    %v3316 = vxor.u32 %v3060, 2147483648
    %v3317 = vxor.u32 %v3061, 2147483648
    %v3318 = vxor.u32 %v3062, 2147483648
    %v3319 = vxor.u32 %v3063, 2147483648
    %v3320 = vxor.u32 %v3064, 2147483648
    %v3321 = vxor.u32 %v3065, 2147483648
    %v3322 = vxor.u32 %v3066, 2147483648
    %v3323 = vxor.u32 %v3067, 2147483648
    %v3324 = vxor.u32 %v3068, 2147483648
    %v3325 = vxor.u32 %v3069, 2147483648
    %v3326 = vxor.u32 %v3070, 2147483648
    %v3327 = vxor.u32 %v3071, 2147483648
    %v3328 = vxor.u32 %v3072, 2147483648
    %v3329 = vxor.u32 %v3073, 2147483648
    %v3330 = vxor.u32 %v3074, 2147483648
    %v3331 = vxor.u32 %v3075, 2147483648
    %v3332 = vxor.u32 %v3076, 2147483648
    %v3333 = vxor.u32 %v3077, 2147483648
    %v3334 = vxor.u32 %v3078, 2147483648
    %v3335 = vxor.u32 %v3079, 2147483648
    %v3336 = vxor.u32 %v3080, 2147483648
    %v3337 = vxor.u32 %v3081, 2147483648
    %v3338 = vxor.u32 %v3082, 2147483648
    %v3339 = vxor.u32 %v3083, 2147483648
    %v3340 = vxor.u32 %v3084, 2147483648
    %v3341 = vxor.u32 %v3085, 2147483648
    %v3342 = vxor.u32 %v3086, 2147483648
    %v3343 = vxor.u32 %v3087, 2147483648
    %v3344 = vxor.u32 %v3088, 2147483648
    %v3345 = vxor.u32 %v3089, 2147483648
    %v3346 = vxor.u32 %v3090, 2147483648
    %v3347 = vxor.u32 %v3091, 2147483648
    %v3348 = vxor.u32 %v3092, 2147483648
    %v3349 = vxor.u32 %v3093, 2147483648
    %v3350 = vxor.u32 %v3094, 2147483648
    %v3351 = vmul.f32 %v3095, 1.442695
    %v3352 = vpow.pop %v3351
    %v3353 = vmul.f32 %v3096, 1.442695
    %v3354 = vpow.pop %v3353
    %v3355 = vmul.f32 %v3097, 1.442695
    %v3356 = vpow.pop %v3355
    %v3357 = vmul.f32 %v3098, 1.442695
    %v3358 = vpow.pop %v3357
    %v3359 = vmul.f32 %v3099, 1.442695
    %v3360 = vpow.pop %v3359
    %v3361 = vmul.f32 %v3100, 1.442695
    %v3362 = vpow.pop %v3361
    %v3363 = vmul.f32 %v3101, 1.442695
    %v3364 = vpow.pop %v3363
    %v3365 = vmul.f32 %v3102, 1.442695
    %v3366 = vpow.pop %v3365
    %v3367 = vmul.f32 %v3103, 1.442695
    %v3368 = vpow.pop %v3367
    %v3369 = vmul.f32 %v3104, 1.442695
    %v3370 = vpow.pop %v3369
    %v3371 = vmul.f32 %v3105, 1.442695
    %v3372 = vpow.pop %v3371
    %v3373 = vmul.f32 %v3106, 1.442695
    %v3374 = vpow.pop %v3373
    %v3375 = vmul.f32 %v3107, 1.442695
    %v3376 = vpow.pop %v3375
    %v3377 = vmul.f32 %v3108, 1.442695
    %v3378 = vpow.pop %v3377
    %v3379 = vmul.f32 %v3109, 1.442695
    %v3380 = vpow.pop %v3379
    %v3381 = vmul.f32 %v3110, 1.442695
    %v3382 = vpow.pop %v3381
    %v3383 = vmul.f32 %v3111, 1.442695
    %v3384 = vpow.pop %v3383
    %v3385 = vmul.f32 %v3112, 1.442695
    %v3386 = vpow.pop %v3385
    %v3387 = vmul.f32 %v3113, 1.442695
    %v3388 = vpow.pop %v3387
    %v3389 = vmul.f32 %v3114, 1.442695
    %v3390 = vpow.pop %v3389
    %v3391 = vmul.f32 %v3115, 1.442695
    %v3392 = vpow.pop %v3391
    %v3393 = vmul.f32 %v3116, 1.442695
    %v3394 = vpow.pop %v3393
    %v3395 = vmul.f32 %v3117, 1.442695
    %v3396 = vpow.pop %v3395
    %v3397 = vmul.f32 %v3118, 1.442695
    %v3398 = vpow.pop %v3397
    %v3399 = vmul.f32 %v3119, 1.442695
    %v3400 = vpow.pop %v3399
    %v3401 = vmul.f32 %v3120, 1.442695
    %v3402 = vpow.pop %v3401
    %v3403 = vmul.f32 %v3121, 1.442695
    %v3404 = vpow.pop %v3403
    %v3405 = vmul.f32 %v3122, 1.442695
    %v3406 = vpow.pop %v3405
    %v3407 = vmul.f32 %v3123, 1.442695
    %v3408 = vpow.pop %v3407
    %v3409 = vmul.f32 %v3124, 1.442695
    %v3410 = vpow.pop %v3409
    %v3411 = vmul.f32 %v3125, 1.442695
    %v3412 = vpow.pop %v3411
    %v3413 = vmul.f32 %v3126, 1.442695
    %v3414 = vpow.pop %v3413
    %v3415 = vmul.f32 %v3127, 1.442695
    %v3416 = vpow.pop %v3415
    %v3417 = vmul.f32 %v3128, 1.442695
    %v3418 = vpow.pop %v3417
    %v3419 = vmul.f32 %v3129, 1.442695
    %v3420 = vpow.pop %v3419
    %v3421 = vmul.f32 %v3130, 1.442695
    %v3422 = vpow.pop %v3421
    %v3423 = vmul.f32 %v3131, 1.442695
    %v3424 = vpow.pop %v3423
    %v3425 = vmul.f32 %v3132, 1.442695
    %v3426 = vpow.pop %v3425
    %v3427 = vmul.f32 %v3133, 1.442695
    %v3428 = vpow.pop %v3427
    %v3429 = vmul.f32 %v3134, 1.442695
    %v3430 = vpow.pop %v3429
    %v3431 = vmul.f32 %v3135, 1.442695
    %v3432 = vpow.pop %v3431
    %v3433 = vmul.f32 %v3136, 1.442695
    %v3434 = vpow.pop %v3433
    %v3435 = vmul.f32 %v3137, 1.442695
    %v3436 = vpow.pop %v3435
    %v3437 = vmul.f32 %v3138, 1.442695
    %v3438 = vpow.pop %v3437
    %v3439 = vmul.f32 %v3139, 1.442695
    %v3440 = vpow.pop %v3439
    %v3441 = vmul.f32 %v3140, 1.442695
    %v3442 = vpow.pop %v3441
    %v3443 = vmul.f32 %v3141, 1.442695
    %v3444 = vpow.pop %v3443
    %v3445 = vmul.f32 %v3142, 1.442695
    %v3446 = vpow.pop %v3445
    %v3447 = vmul.f32 %v3143, 1.442695
    %v3448 = vpow.pop %v3447
    %v3449 = vmul.f32 %v3144, 1.442695
    %v3450 = vpow.pop %v3449
    %v3451 = vmul.f32 %v3145, 1.442695
    %v3452 = vpow.pop %v3451
    %v3453 = vmul.f32 %v3146, 1.442695
    %v3454 = vpow.pop %v3453
    %v3455 = vmul.f32 %v3147, 1.442695
    %v3456 = vpow.pop %v3455
    %v3457 = vmul.f32 %v3148, 1.442695
    %v3458 = vpow.pop %v3457
    %v3459 = vmul.f32 %v3149, 1.442695
    %v3460 = vpow.pop %v3459
    %v3461 = vmul.f32 %v3150, 1.442695
    %v3462 = vpow.pop %v3461
    %v3463 = vmul.f32 %v3151, 1.442695
    %v3464 = vpow.pop %v3463
    %v3465 = vmul.f32 %v3152, 1.442695
    %v3466 = vpow.pop %v3465
    %v3467 = vmul.f32 %v3153, 1.442695
    %v3468 = vpow.pop %v3467
    %v3469 = vmul.f32 %v3154, 1.442695
    %v3470 = vpow.pop %v3469
    %v3471 = vmul.f32 %v3155, 1.442695
    %v3472 = vpow.pop %v3471
    %v3473 = vmul.f32 %v3156, 1.442695
    %v3474 = vpow.pop %v3473
    %v3475 = vmul.f32 %v3157, 1.442695
    %v3476 = vpow.pop %v3475
    %v3477 = vmul.f32 %v3158, 1.442695
    %v3478 = vpow.pop %v3477
    %v3479 = vmul.f32 %v3159, 1.442695
    %v3480 = vpow.pop %v3479
    %v3481 = vmul.f32 %v3160, 1.442695
    %v3482 = vpow.pop %v3481
    %v3483 = vmul.f32 %v3161, 1.442695
    %v3484 = vpow.pop %v3483
    %v3485 = vmul.f32 %v3162, 1.442695
    %v3486 = vpow.pop %v3485
    %v3487 = vmul.f32 %v3163, 1.442695
    %v3488 = vpow.pop %v3487
    %v3489 = vmul.f32 %v3164, 1.442695
    %v3490 = vpow.pop %v3489
    %v3491 = vmul.f32 %v3165, 1.442695
    %v3492 = vpow.pop %v3491
    %v3493 = vmul.f32 %v3166, 1.442695
    %v3494 = vpow.pop %v3493
    %v3495 = vmul.f32 %v3167, 1.442695
    %v3496 = vpow.pop %v3495
    %v3497 = vmul.f32 %v3168, 1.442695
    %v3498 = vpow.pop %v3497
    %v3499 = vmul.f32 %v3169, 1.442695
    %v3500 = vpow.pop %v3499
    %v3501 = vmul.f32 %v3170, 1.442695
    %v3502 = vpow.pop %v3501
    %v3503 = vmul.f32 %v3171, 1.442695
    %v3504 = vpow.pop %v3503
    %v3505 = vmul.f32 %v3172, 1.442695
    %v3506 = vpow.pop %v3505
    %v3507 = vmul.f32 %v3173, 1.442695
    %v3508 = vpow.pop %v3507
    %v3509 = vmul.f32 %v3174, 1.442695
    %v3510 = vpow.pop %v3509
    %v3511 = vmul.f32 %v3175, 1.442695
    %v3512 = vpow.pop %v3511
    %v3513 = vmul.f32 %v3176, 1.442695
    %v3514 = vpow.pop %v3513
    %v3515 = vmul.f32 %v3177, 1.442695
    %v3516 = vpow.pop %v3515
    %v3517 = vmul.f32 %v3178, 1.442695
    %v3518 = vpow.pop %v3517
    %v3519 = vmul.f32 %v3179, 1.442695
    %v3520 = vpow.pop %v3519
    %v3521 = vmul.f32 %v3180, 1.442695
    %v3522 = vpow.pop %v3521
    %v3523 = vmul.f32 %v3181, 1.442695
    %v3524 = vpow.pop %v3523
    %v3525 = vmul.f32 %v3182, 1.442695
    %v3526 = vpow.pop %v3525
    %v3527 = vmul.f32 %v3183, 1.442695
    %v3528 = vpow.pop %v3527
    %v3529 = vmul.f32 %v3184, 1.442695
    %v3530 = vpow.pop %v3529
    %v3531 = vmul.f32 %v3185, 1.442695
    %v3532 = vpow.pop %v3531
    %v3533 = vmul.f32 %v3186, 1.442695
    %v3534 = vpow.pop %v3533
    %v3535 = vmul.f32 %v3187, 1.442695
    %v3536 = vpow.pop %v3535
    %v3537 = vmul.f32 %v3188, 1.442695
    %v3538 = vpow.pop %v3537
    %v3539 = vmul.f32 %v3189, 1.442695
    %v3540 = vpow.pop %v3539
    %v3541 = vmul.f32 %v3190, 1.442695
    %v3542 = vpow.pop %v3541
    %v3543 = vmul.f32 %v3191, 1.442695
    %v3544 = vpow.pop %v3543
    %v3545 = vmul.f32 %v3192, 1.442695
    %v3546 = vpow.pop %v3545
    %v3547 = vmul.f32 %v3193, 1.442695
    %v3548 = vpow.pop %v3547
    %v3549 = vmul.f32 %v3194, 1.442695
    %v3550 = vpow.pop %v3549
    %v3551 = vmul.f32 %v3195, 1.442695
    %v3552 = vpow.pop %v3551
    %v3553 = vmul.f32 %v3196, 1.442695
    %v3554 = vpow.pop %v3553
    %v3555 = vmul.f32 %v3197, 1.442695
    %v3556 = vpow.pop %v3555
    %v3557 = vmul.f32 %v3198, 1.442695
    %v3558 = vpow.pop %v3557
    %v3559 = vmul.f32 %v3199, 1.442695
    %v3560 = vpow.pop %v3559
    %v3561 = vmul.f32 %v3200, 1.442695
    %v3562 = vpow.pop %v3561
    %v3563 = vmul.f32 %v3201, 1.442695
    %v3564 = vpow.pop %v3563
    %v3565 = vmul.f32 %v3202, 1.442695
    %v3566 = vpow.pop %v3565
    %v3567 = vmul.f32 %v3203, 1.442695
    %v3568 = vpow.pop %v3567
    %v3569 = vmul.f32 %v3204, 1.442695
    %v3570 = vpow.pop %v3569
    %v3571 = vmul.f32 %v3205, 1.442695
    %v3572 = vpow.pop %v3571
    %v3573 = vmul.f32 %v3206, 1.442695
    %v3574 = vpow.pop %v3573
    %v3575 = vmul.f32 %v3207, 1.442695
    %v3576 = vpow.pop %v3575
    %v3577 = vmul.f32 %v3208, 1.442695
    %v3578 = vpow.pop %v3577
    %v3579 = vmul.f32 %v3209, 1.442695
    %v3580 = vpow.pop %v3579
    %v3581 = vmul.f32 %v3210, 1.442695
    %v3582 = vpow.pop %v3581
    %v3583 = vmul.f32 %v3211, 1.442695
    %v3584 = vpow.pop %v3583
    %v3585 = vmul.f32 %v3212, 1.442695
    %v3586 = vpow.pop %v3585
    %v3587 = vmul.f32 %v3213, 1.442695
    %v3588 = vpow.pop %v3587
    %v3589 = vmul.f32 %v3214, 1.442695
    %v3590 = vpow.pop %v3589
    %v3591 = vmul.f32 %v3215, 1.442695
    %v3592 = vpow.pop %v3591
    %v3593 = vmul.f32 %v3216, 1.442695
    %v3594 = vpow.pop %v3593
    %v3595 = vmul.f32 %v3217, 1.442695
    %v3596 = vpow.pop %v3595
    %v3597 = vmul.f32 %v3218, 1.442695
    %v3598 = vpow.pop %v3597
    %v3599 = vmul.f32 %v3219, 1.442695
    %v3600 = vpow.pop %v3599
    %v3601 = vmul.f32 %v3220, 1.442695
    %v3602 = vpow.pop %v3601
    %v3603 = vmul.f32 %v3221, 1.442695
    %v3604 = vpow.pop %v3603
    %v3605 = vmul.f32 %v3222, 1.442695
    %v3606 = vpow.pop %v3605
    %v3607 = vmul.f32 %v3223, 1.442695
    %v3608 = vpow.pop %v3607
    %v3609 = vmul.f32 %v3224, 1.442695
    %v3610 = vpow.pop %v3609
    %v3611 = vmul.f32 %v3225, 1.442695
    %v3612 = vpow.pop %v3611
    %v3613 = vmul.f32 %v3226, 1.442695
    %v3614 = vpow.pop %v3613
    %v3615 = vmul.f32 %v3227, 1.442695
    %v3616 = vpow.pop %v3615
    %v3617 = vmul.f32 %v3228, 1.442695
    %v3618 = vpow.pop %v3617
    %v3619 = vmul.f32 %v3229, 1.442695
    %v3620 = vpow.pop %v3619
    %v3621 = vmul.f32 %v3230, 1.442695
    %v3622 = vpow.pop %v3621
    %v3623 = vmul.f32 %v3231, 1.442695
    %v3624 = vpow.pop %v3623
    %v3625 = vmul.f32 %v3232, 1.442695
    %v3626 = vpow.pop %v3625
    %v3627 = vmul.f32 %v3233, 1.442695
    %v3628 = vpow.pop %v3627
    %v3629 = vmul.f32 %v3234, 1.442695
    %v3630 = vpow.pop %v3629
    %v3631 = vmul.f32 %v3235, 1.442695
    %v3632 = vpow.pop %v3631
    %v3633 = vmul.f32 %v3236, 1.442695
    %v3634 = vpow.pop %v3633
    %v3635 = vmul.f32 %v3237, 1.442695
    %v3636 = vpow.pop %v3635
    %v3637 = vmul.f32 %v3238, 1.442695
    %v3638 = vpow.pop %v3637
    %v3639 = vmul.f32 %v3239, 1.442695
    %v3640 = vpow.pop %v3639
    %v3641 = vmul.f32 %v3240, 1.442695
    %v3642 = vpow.pop %v3641
    %v3643 = vmul.f32 %v3241, 1.442695
    %v3644 = vpow.pop %v3643
    %v3645 = vmul.f32 %v3242, 1.442695
    %v3646 = vpow.pop %v3645
    %v3647 = vmul.f32 %v3243, 1.442695
    %v3648 = vpow.pop %v3647
    %v3649 = vmul.f32 %v3244, 1.442695
    %v3650 = vpow.pop %v3649
    %v3651 = vmul.f32 %v3245, 1.442695
    %v3652 = vpow.pop %v3651
    %v3653 = vmul.f32 %v3246, 1.442695
    %v3654 = vpow.pop %v3653
    %v3655 = vmul.f32 %v3247, 1.442695
    %v3656 = vpow.pop %v3655
    %v3657 = vmul.f32 %v3248, 1.442695
    %v3658 = vpow.pop %v3657
    %v3659 = vmul.f32 %v3249, 1.442695
    %v3660 = vpow.pop %v3659
    %v3661 = vmul.f32 %v3250, 1.442695
    %v3662 = vpow.pop %v3661
    %v3663 = vmul.f32 %v3251, 1.442695
    %v3664 = vpow.pop %v3663
    %v3665 = vmul.f32 %v3252, 1.442695
    %v3666 = vpow.pop %v3665
    %v3667 = vmul.f32 %v3253, 1.442695
    %v3668 = vpow.pop %v3667
    %v3669 = vmul.f32 %v3254, 1.442695
    %v3670 = vpow.pop %v3669
    %v3671 = vmul.f32 %v3255, 1.442695
    %v3672 = vpow.pop %v3671
    %v3673 = vmul.f32 %v3256, 1.442695
    %v3674 = vpow.pop %v3673
    %v3675 = vmul.f32 %v3257, 1.442695
    %v3676 = vpow.pop %v3675
    %v3677 = vmul.f32 %v3258, 1.442695
    %v3678 = vpow.pop %v3677
    %v3679 = vmul.f32 %v3259, 1.442695
    %v3680 = vpow.pop %v3679
    %v3681 = vmul.f32 %v3260, 1.442695
    %v3682 = vpow.pop %v3681
    %v3683 = vmul.f32 %v3261, 1.442695
    %v3684 = vpow.pop %v3683
    %v3685 = vmul.f32 %v3262, 1.442695
    %v3686 = vpow.pop %v3685
    %v3687 = vmul.f32 %v3263, 1.442695
    %v3688 = vpow.pop %v3687
    %v3689 = vmul.f32 %v3264, 1.442695
    %v3690 = vpow.pop %v3689
    %v3691 = vmul.f32 %v3265, 1.442695
    %v3692 = vpow.pop %v3691
    %v3693 = vmul.f32 %v3266, 1.442695
    %v3694 = vpow.pop %v3693
    %v3695 = vmul.f32 %v3267, 1.442695
    %v3696 = vpow.pop %v3695
    %v3697 = vmul.f32 %v3268, 1.442695
    %v3698 = vpow.pop %v3697
    %v3699 = vmul.f32 %v3269, 1.442695
    %v3700 = vpow.pop %v3699
    %v3701 = vmul.f32 %v3270, 1.442695
    %v3702 = vpow.pop %v3701
    %v3703 = vmul.f32 %v3271, 1.442695
    %v3704 = vpow.pop %v3703
    %v3705 = vmul.f32 %v3272, 1.442695
    %v3706 = vpow.pop %v3705
    %v3707 = vmul.f32 %v3273, 1.442695
    %v3708 = vpow.pop %v3707
    %v3709 = vmul.f32 %v3274, 1.442695
    %v3710 = vpow.pop %v3709
    %v3711 = vmul.f32 %v3275, 1.442695
    %v3712 = vpow.pop %v3711
    %v3713 = vmul.f32 %v3276, 1.442695
    %v3714 = vpow.pop %v3713
    %v3715 = vmul.f32 %v3277, 1.442695
    %v3716 = vpow.pop %v3715
    %v3717 = vmul.f32 %v3278, 1.442695
    %v3718 = vpow.pop %v3717
    %v3719 = vmul.f32 %v3279, 1.442695
    %v3720 = vpow.pop %v3719
    %v3721 = vmul.f32 %v3280, 1.442695
    %v3722 = vpow.pop %v3721
    %v3723 = vmul.f32 %v3281, 1.442695
    %v3724 = vpow.pop %v3723
    %v3725 = vmul.f32 %v3282, 1.442695
    %v3726 = vpow.pop %v3725
    %v3727 = vmul.f32 %v3283, 1.442695
    %v3728 = vpow.pop %v3727
    %v3729 = vmul.f32 %v3284, 1.442695
    %v3730 = vpow.pop %v3729
    %v3731 = vmul.f32 %v3285, 1.442695
    %v3732 = vpow.pop %v3731
    %v3733 = vmul.f32 %v3286, 1.442695
    %v3734 = vpow.pop %v3733
    %v3735 = vmul.f32 %v3287, 1.442695
    %v3736 = vpow.pop %v3735
    %v3737 = vmul.f32 %v3288, 1.442695
    %v3738 = vpow.pop %v3737
    %v3739 = vmul.f32 %v3289, 1.442695
    %v3740 = vpow.pop %v3739
    %v3741 = vmul.f32 %v3290, 1.442695
    %v3742 = vpow.pop %v3741
    %v3743 = vmul.f32 %v3291, 1.442695
    %v3744 = vpow.pop %v3743
    %v3745 = vmul.f32 %v3292, 1.442695
    %v3746 = vpow.pop %v3745
    %v3747 = vmul.f32 %v3293, 1.442695
    %v3748 = vpow.pop %v3747
    %v3749 = vmul.f32 %v3294, 1.442695
    %v3750 = vpow.pop %v3749
    %v3751 = vmul.f32 %v3295, 1.442695
    %v3752 = vpow.pop %v3751
    %v3753 = vmul.f32 %v3296, 1.442695
    %v3754 = vpow.pop %v3753
    %v3755 = vmul.f32 %v3297, 1.442695
    %v3756 = vpow.pop %v3755
    %v3757 = vmul.f32 %v3298, 1.442695
    %v3758 = vpow.pop %v3757
    %v3759 = vmul.f32 %v3299, 1.442695
    %v3760 = vpow.pop %v3759
    %v3761 = vmul.f32 %v3300, 1.442695
    %v3762 = vpow.pop %v3761
    %v3763 = vmul.f32 %v3301, 1.442695
    %v3764 = vpow.pop %v3763
    %v3765 = vmul.f32 %v3302, 1.442695
    %v3766 = vpow.pop %v3765
    %v3767 = vmul.f32 %v3303, 1.442695
    %v3768 = vpow.pop %v3767
    %v3769 = vmul.f32 %v3304, 1.442695
    %v3770 = vpow.pop %v3769
    %v3771 = vmul.f32 %v3305, 1.442695
    %v3772 = vpow.pop %v3771
    %v3773 = vmul.f32 %v3306, 1.442695
    %v3774 = vpow.pop %v3773
    %v3775 = vmul.f32 %v3307, 1.442695
    %v3776 = vpow.pop %v3775
    %v3777 = vmul.f32 %v3308, 1.442695
    %v3778 = vpow.pop %v3777
    %v3779 = vmul.f32 %v3309, 1.442695
    %v3780 = vpow.pop %v3779
    %v3781 = vmul.f32 %v3310, 1.442695
    %v3782 = vpow.pop %v3781
    %v3783 = vmul.f32 %v3311, 1.442695
    %v3784 = vpow.pop %v3783
    %v3785 = vmul.f32 %v3312, 1.442695
    %v3786 = vpow.pop %v3785
    %v3787 = vmul.f32 %v3313, 1.442695
    %v3788 = vpow.pop %v3787
    %v3789 = vmul.f32 %v3314, 1.442695
    %v3790 = vpow.pop %v3789
    %v3791 = vmul.f32 %v3315, 1.442695
    %v3792 = vpow.pop %v3791
    %v3793 = vmul.f32 %v3316, 1.442695
    %v3794 = vpow.pop %v3793
    %v3795 = vmul.f32 %v3317, 1.442695
    %v3796 = vpow.pop %v3795
    %v3797 = vmul.f32 %v3318, 1.442695
    %v3798 = vpow.pop %v3797
    %v3799 = vmul.f32 %v3319, 1.442695
    %v3800 = vpow.pop %v3799
    %v3801 = vmul.f32 %v3320, 1.442695
    %v3802 = vpow.pop %v3801
    %v3803 = vmul.f32 %v3321, 1.442695
    %v3804 = vpow.pop %v3803
    %v3805 = vmul.f32 %v3322, 1.442695
    %v3806 = vpow.pop %v3805
    %v3807 = vmul.f32 %v3323, 1.442695
    %v3808 = vpow.pop %v3807
    %v3809 = vmul.f32 %v3324, 1.442695
    %v3810 = vpow.pop %v3809
    %v3811 = vmul.f32 %v3325, 1.442695
    %v3812 = vpow.pop %v3811
    %v3813 = vmul.f32 %v3326, 1.442695
    %v3814 = vpow.pop %v3813
    %v3815 = vmul.f32 %v3327, 1.442695
    %v3816 = vpow.pop %v3815
    %v3817 = vmul.f32 %v3328, 1.442695
    %v3818 = vpow.pop %v3817
    %v3819 = vmul.f32 %v3329, 1.442695
    %v3820 = vpow.pop %v3819
    %v3821 = vmul.f32 %v3330, 1.442695
    %v3822 = vpow.pop %v3821
    %v3823 = vmul.f32 %v3331, 1.442695
    %v3824 = vpow.pop %v3823
    %v3825 = vmul.f32 %v3332, 1.442695
    %v3826 = vpow.pop %v3825
    %v3827 = vmul.f32 %v3333, 1.442695
    %v3828 = vpow.pop %v3827
    %v3829 = vmul.f32 %v3334, 1.442695
    %v3830 = vpow.pop %v3829
    %v3831 = vmul.f32 %v3335, 1.442695
    %v3832 = vpow.pop %v3831
    %v3833 = vmul.f32 %v3336, 1.442695
    %v3834 = vpow.pop %v3833
    %v3835 = vmul.f32 %v3337, 1.442695
    %v3836 = vpow.pop %v3835
    %v3837 = vmul.f32 %v3338, 1.442695
    %v3838 = vpow.pop %v3837
    %v3839 = vmul.f32 %v3339, 1.442695
    %v3840 = vpow.pop %v3839
    %v3841 = vmul.f32 %v3340, 1.442695
    %v3842 = vpow.pop %v3841
    %v3843 = vmul.f32 %v3341, 1.442695
    %v3844 = vpow.pop %v3843
    %v3845 = vmul.f32 %v3342, 1.442695
    %v3846 = vpow.pop %v3845
    %v3847 = vmul.f32 %v3343, 1.442695
    %v3848 = vpow.pop %v3847
    %v3849 = vmul.f32 %v3344, 1.442695
    %v3850 = vpow.pop %v3849
    %v3851 = vmul.f32 %v3345, 1.442695
    %v3852 = vpow.pop %v3851
    %v3853 = vmul.f32 %v3346, 1.442695
    %v3854 = vpow.pop %v3853
    %v3855 = vmul.f32 %v3347, 1.442695
    %v3856 = vpow.pop %v3855
    %v3857 = vmul.f32 %v3348, 1.442695
    %v3858 = vpow.pop %v3857
    %v3859 = vmul.f32 %v3349, 1.442695
    %v3860 = vpow.pop %v3859
    %v3861 = vmul.f32 %v3350, 1.442695
    %v3862 = vpow.pop %v3861
    %v3863 = vadd.f32 %v3352, 1.0
    %v3864 = vadd.f32 %v3354, 1.0
    %v3865 = vadd.f32 %v3356, 1.0
    %v3866 = vadd.f32 %v3358, 1.0
    %v3867 = vadd.f32 %v3360, 1.0
    %v3868 = vadd.f32 %v3362, 1.0
    %v3869 = vadd.f32 %v3364, 1.0
    %v3870 = vadd.f32 %v3366, 1.0
    %v3871 = vadd.f32 %v3368, 1.0
    %v3872 = vadd.f32 %v3370, 1.0
    %v3873 = vadd.f32 %v3372, 1.0
    %v3874 = vadd.f32 %v3374, 1.0
    %v3875 = vadd.f32 %v3376, 1.0
    %v3876 = vadd.f32 %v3378, 1.0
    %v3877 = vadd.f32 %v3380, 1.0
    %v3878 = vadd.f32 %v3382, 1.0
    %v3879 = vadd.f32 %v3384, 1.0
    %v3880 = vadd.f32 %v3386, 1.0
    %v3881 = vadd.f32 %v3388, 1.0
    %v3882 = vadd.f32 %v3390, 1.0
    %v3883 = vadd.f32 %v3392, 1.0
    %v3884 = vadd.f32 %v3394, 1.0
    %v3885 = vadd.f32 %v3396, 1.0
    %v3886 = vadd.f32 %v3398, 1.0
    %v3887 = vadd.f32 %v3400, 1.0
    %v3888 = vadd.f32 %v3402, 1.0
    %v3889 = vadd.f32 %v3404, 1.0
    %v3890 = vadd.f32 %v3406, 1.0
    %v3891 = vadd.f32 %v3408, 1.0
    %v3892 = vadd.f32 %v3410, 1.0
    %v3893 = vadd.f32 %v3412, 1.0
    %v3894 = vadd.f32 %v3414, 1.0
    %v3895 = vadd.f32 %v3416, 1.0
    %v3896 = vadd.f32 %v3418, 1.0
    %v3897 = vadd.f32 %v3420, 1.0
    %v3898 = vadd.f32 %v3422, 1.0
    %v3899 = vadd.f32 %v3424, 1.0
    %v3900 = vadd.f32 %v3426, 1.0
    %v3901 = vadd.f32 %v3428, 1.0
    %v3902 = vadd.f32 %v3430, 1.0
    %v3903 = vadd.f32 %v3432, 1.0
    %v3904 = vadd.f32 %v3434, 1.0
    %v3905 = vadd.f32 %v3436, 1.0
    %v3906 = vadd.f32 %v3438, 1.0
    %v3907 = vadd.f32 %v3440, 1.0
    %v3908 = vadd.f32 %v3442, 1.0
    %v3909 = vadd.f32 %v3444, 1.0
    %v3910 = vadd.f32 %v3446, 1.0
    %v3911 = vadd.f32 %v3448, 1.0
    %v3912 = vadd.f32 %v3450, 1.0
    %v3913 = vadd.f32 %v3452, 1.0
    %v3914 = vadd.f32 %v3454, 1.0
    %v3915 = vadd.f32 %v3456, 1.0
    %v3916 = vadd.f32 %v3458, 1.0
    %v3917 = vadd.f32 %v3460, 1.0
    %v3918 = vadd.f32 %v3462, 1.0
    %v3919 = vadd.f32 %v3464, 1.0
    %v3920 = vadd.f32 %v3466, 1.0
    %v3921 = vadd.f32 %v3468, 1.0
    %v3922 = vadd.f32 %v3470, 1.0
    %v3923 = vadd.f32 %v3472, 1.0
    %v3924 = vadd.f32 %v3474, 1.0
    %v3925 = vadd.f32 %v3476, 1.0
    %v3926 = vadd.f32 %v3478, 1.0
    %v3927 = vadd.f32 %v3480, 1.0
    %v3928 = vadd.f32 %v3482, 1.0
    %v3929 = vadd.f32 %v3484, 1.0
    %v3930 = vadd.f32 %v3486, 1.0
    %v3931 = vadd.f32 %v3488, 1.0
    %v3932 = vadd.f32 %v3490, 1.0
    %v3933 = vadd.f32 %v3492, 1.0
    %v3934 = vadd.f32 %v3494, 1.0
    %v3935 = vadd.f32 %v3496, 1.0
    %v3936 = vadd.f32 %v3498, 1.0
    %v3937 = vadd.f32 %v3500, 1.0
    %v3938 = vadd.f32 %v3502, 1.0
    %v3939 = vadd.f32 %v3504, 1.0
    %v3940 = vadd.f32 %v3506, 1.0
    %v3941 = vadd.f32 %v3508, 1.0
    %v3942 = vadd.f32 %v3510, 1.0
    %v3943 = vadd.f32 %v3512, 1.0
    %v3944 = vadd.f32 %v3514, 1.0
    %v3945 = vadd.f32 %v3516, 1.0
    %v3946 = vadd.f32 %v3518, 1.0
    %v3947 = vadd.f32 %v3520, 1.0
    %v3948 = vadd.f32 %v3522, 1.0
    %v3949 = vadd.f32 %v3524, 1.0
    %v3950 = vadd.f32 %v3526, 1.0
    %v3951 = vadd.f32 %v3528, 1.0
    %v3952 = vadd.f32 %v3530, 1.0
    %v3953 = vadd.f32 %v3532, 1.0
    %v3954 = vadd.f32 %v3534, 1.0
    %v3955 = vadd.f32 %v3536, 1.0
    %v3956 = vadd.f32 %v3538, 1.0
    %v3957 = vadd.f32 %v3540, 1.0
    %v3958 = vadd.f32 %v3542, 1.0
    %v3959 = vadd.f32 %v3544, 1.0
    %v3960 = vadd.f32 %v3546, 1.0
    %v3961 = vadd.f32 %v3548, 1.0
    %v3962 = vadd.f32 %v3550, 1.0
    %v3963 = vadd.f32 %v3552, 1.0
    %v3964 = vadd.f32 %v3554, 1.0
    %v3965 = vadd.f32 %v3556, 1.0
    %v3966 = vadd.f32 %v3558, 1.0
    %v3967 = vadd.f32 %v3560, 1.0
    %v3968 = vadd.f32 %v3562, 1.0
    %v3969 = vadd.f32 %v3564, 1.0
    %v3970 = vadd.f32 %v3566, 1.0
    %v3971 = vadd.f32 %v3568, 1.0
    %v3972 = vadd.f32 %v3570, 1.0
    %v3973 = vadd.f32 %v3572, 1.0
    %v3974 = vadd.f32 %v3574, 1.0
    %v3975 = vadd.f32 %v3576, 1.0
    %v3976 = vadd.f32 %v3578, 1.0
    %v3977 = vadd.f32 %v3580, 1.0
    %v3978 = vadd.f32 %v3582, 1.0
    %v3979 = vadd.f32 %v3584, 1.0
    %v3980 = vadd.f32 %v3586, 1.0
    %v3981 = vadd.f32 %v3588, 1.0
    %v3982 = vadd.f32 %v3590, 1.0
    %v3983 = vadd.f32 %v3592, 1.0
    %v3984 = vadd.f32 %v3594, 1.0
    %v3985 = vadd.f32 %v3596, 1.0
    %v3986 = vadd.f32 %v3598, 1.0
    %v3987 = vadd.f32 %v3600, 1.0
    %v3988 = vadd.f32 %v3602, 1.0
    %v3989 = vadd.f32 %v3604, 1.0
    %v3990 = vadd.f32 %v3606, 1.0
    %v3991 = vadd.f32 %v3608, 1.0
    %v3992 = vadd.f32 %v3610, 1.0
    %v3993 = vadd.f32 %v3612, 1.0
    %v3994 = vadd.f32 %v3614, 1.0
    %v3995 = vadd.f32 %v3616, 1.0
    %v3996 = vadd.f32 %v3618, 1.0
    %v3997 = vadd.f32 %v3620, 1.0
    %v3998 = vadd.f32 %v3622, 1.0
    %v3999 = vadd.f32 %v3624, 1.0
    %v4000 = vadd.f32 %v3626, 1.0
    %v4001 = vadd.f32 %v3628, 1.0
    %v4002 = vadd.f32 %v3630, 1.0
    %v4003 = vadd.f32 %v3632, 1.0
    %v4004 = vadd.f32 %v3634, 1.0
    %v4005 = vadd.f32 %v3636, 1.0
    %v4006 = vadd.f32 %v3638, 1.0
    %v4007 = vadd.f32 %v3640, 1.0
    %v4008 = vadd.f32 %v3642, 1.0
    %v4009 = vadd.f32 %v3644, 1.0
    %v4010 = vadd.f32 %v3646, 1.0
    %v4011 = vadd.f32 %v3648, 1.0
    %v4012 = vadd.f32 %v3650, 1.0
    %v4013 = vadd.f32 %v3652, 1.0
    %v4014 = vadd.f32 %v3654, 1.0
    %v4015 = vadd.f32 %v3656, 1.0
    %v4016 = vadd.f32 %v3658, 1.0
    %v4017 = vadd.f32 %v3660, 1.0
    %v4018 = vadd.f32 %v3662, 1.0
    %v4019 = vadd.f32 %v3664, 1.0
    %v4020 = vadd.f32 %v3666, 1.0
    %v4021 = vadd.f32 %v3668, 1.0
    %v4022 = vadd.f32 %v3670, 1.0
    %v4023 = vadd.f32 %v3672, 1.0
    %v4024 = vadd.f32 %v3674, 1.0
    %v4025 = vadd.f32 %v3676, 1.0
    %v4026 = vadd.f32 %v3678, 1.0
    %v4027 = vadd.f32 %v3680, 1.0
    %v4028 = vadd.f32 %v3682, 1.0
    %v4029 = vadd.f32 %v3684, 1.0
    %v4030 = vadd.f32 %v3686, 1.0
    %v4031 = vadd.f32 %v3688, 1.0
    %v4032 = vadd.f32 %v3690, 1.0
    %v4033 = vadd.f32 %v3692, 1.0
    %v4034 = vadd.f32 %v3694, 1.0
    %v4035 = vadd.f32 %v3696, 1.0
    %v4036 = vadd.f32 %v3698, 1.0
    %v4037 = vadd.f32 %v3700, 1.0
    %v4038 = vadd.f32 %v3702, 1.0
    %v4039 = vadd.f32 %v3704, 1.0
    %v4040 = vadd.f32 %v3706, 1.0
    %v4041 = vadd.f32 %v3708, 1.0
    %v4042 = vadd.f32 %v3710, 1.0
    %v4043 = vadd.f32 %v3712, 1.0
    %v4044 = vadd.f32 %v3714, 1.0
    %v4045 = vadd.f32 %v3716, 1.0
    %v4046 = vadd.f32 %v3718, 1.0
    %v4047 = vadd.f32 %v3720, 1.0
    %v4048 = vadd.f32 %v3722, 1.0
    %v4049 = vadd.f32 %v3724, 1.0
    %v4050 = vadd.f32 %v3726, 1.0
    %v4051 = vadd.f32 %v3728, 1.0
    %v4052 = vadd.f32 %v3730, 1.0
    %v4053 = vadd.f32 %v3732, 1.0
    %v4054 = vadd.f32 %v3734, 1.0
    %v4055 = vadd.f32 %v3736, 1.0
    %v4056 = vadd.f32 %v3738, 1.0
    %v4057 = vadd.f32 %v3740, 1.0
    %v4058 = vadd.f32 %v3742, 1.0
    %v4059 = vadd.f32 %v3744, 1.0
    %v4060 = vadd.f32 %v3746, 1.0
    %v4061 = vadd.f32 %v3748, 1.0
    %v4062 = vadd.f32 %v3750, 1.0
    %v4063 = vadd.f32 %v3752, 1.0
    %v4064 = vadd.f32 %v3754, 1.0
    %v4065 = vadd.f32 %v3756, 1.0
    %v4066 = vadd.f32 %v3758, 1.0
    %v4067 = vadd.f32 %v3760, 1.0
    %v4068 = vadd.f32 %v3762, 1.0
    %v4069 = vadd.f32 %v3764, 1.0
    %v4070 = vadd.f32 %v3766, 1.0
    %v4071 = vadd.f32 %v3768, 1.0
    %v4072 = vadd.f32 %v3770, 1.0
    %v4073 = vadd.f32 %v3772, 1.0
    %v4074 = vadd.f32 %v3774, 1.0
    %v4075 = vadd.f32 %v3776, 1.0
    %v4076 = vadd.f32 %v3778, 1.0
    %v4077 = vadd.f32 %v3780, 1.0
    %v4078 = vadd.f32 %v3782, 1.0
    %v4079 = vadd.f32 %v3784, 1.0
    %v4080 = vadd.f32 %v3786, 1.0
    %v4081 = vadd.f32 %v3788, 1.0
    %v4082 = vadd.f32 %v3790, 1.0
    %v4083 = vadd.f32 %v3792, 1.0
    %v4084 = vadd.f32 %v3794, 1.0
    %v4085 = vadd.f32 %v3796, 1.0
    %v4086 = vadd.f32 %v3798, 1.0
    %v4087 = vadd.f32 %v3800, 1.0
    %v4088 = vadd.f32 %v3802, 1.0
    %v4089 = vadd.f32 %v3804, 1.0
    %v4090 = vadd.f32 %v3806, 1.0
    %v4091 = vadd.f32 %v3808, 1.0
    %v4092 = vadd.f32 %v3810, 1.0
    %v4093 = vadd.f32 %v3812, 1.0
    %v4094 = vadd.f32 %v3814, 1.0
    %v4095 = vadd.f32 %v3816, 1.0
    %v4096 = vadd.f32 %v3818, 1.0
    %v4097 = vadd.f32 %v3820, 1.0
    %v4098 = vadd.f32 %v3822, 1.0
    %v4099 = vadd.f32 %v3824, 1.0
    %v4100 = vadd.f32 %v3826, 1.0
    %v4101 = vadd.f32 %v3828, 1.0
    %v4102 = vadd.f32 %v3830, 1.0
    %v4103 = vadd.f32 %v3832, 1.0
    %v4104 = vadd.f32 %v3834, 1.0
    %v4105 = vadd.f32 %v3836, 1.0
    %v4106 = vadd.f32 %v3838, 1.0
    %v4107 = vadd.f32 %v3840, 1.0
    %v4108 = vadd.f32 %v3842, 1.0
    %v4109 = vadd.f32 %v3844, 1.0
    %v4110 = vadd.f32 %v3846, 1.0
    %v4111 = vadd.f32 %v3848, 1.0
    %v4112 = vadd.f32 %v3850, 1.0
    %v4113 = vadd.f32 %v3852, 1.0
    %v4114 = vadd.f32 %v3854, 1.0
    %v4115 = vadd.f32 %v3856, 1.0
    %v4116 = vadd.f32 %v3858, 1.0
    %v4117 = vadd.f32 %v3860, 1.0
    %v4118 = vadd.f32 %v3862, 1.0
    %v4119 = vrcp.pop %v3863
    %v4120 = vmul.f32 1.0, %v4119
    %v4121 = vrcp.pop %v3864
    %v4122 = vmul.f32 1.0, %v4121
    %v4123 = vrcp.pop %v3865
    %v4124 = vmul.f32 1.0, %v4123
    %v4125 = vrcp.pop %v3866
    %v4126 = vmul.f32 1.0, %v4125
    %v4127 = vrcp.pop %v3867
    %v4128 = vmul.f32 1.0, %v4127
    %v4129 = vrcp.pop %v3868
    %v4130 = vmul.f32 1.0, %v4129
    %v4131 = vrcp.pop %v3869
    %v4132 = vmul.f32 1.0, %v4131
    %v4133 = vrcp.pop %v3870
    %v4134 = vmul.f32 1.0, %v4133
    %v4135 = vrcp.pop %v3871
    %v4136 = vmul.f32 1.0, %v4135
    %v4137 = vrcp.pop %v3872
    %v4138 = vmul.f32 1.0, %v4137
    %v4139 = vrcp.pop %v3873
    %v4140 = vmul.f32 1.0, %v4139
    %v4141 = vrcp.pop %v3874
    %v4142 = vmul.f32 1.0, %v4141
    %v4143 = vrcp.pop %v3875
    %v4144 = vmul.f32 1.0, %v4143
    %v4145 = vrcp.pop %v3876
    %v4146 = vmul.f32 1.0, %v4145
    %v4147 = vrcp.pop %v3877
    %v4148 = vmul.f32 1.0, %v4147
    %v4149 = vrcp.pop %v3878
    %v4150 = vmul.f32 1.0, %v4149
    %v4151 = vrcp.pop %v3879
    %v4152 = vmul.f32 1.0, %v4151
    %v4153 = vrcp.pop %v3880
    %v4154 = vmul.f32 1.0, %v4153
    %v4155 = vrcp.pop %v3881
    %v4156 = vmul.f32 1.0, %v4155
    %v4157 = vrcp.pop %v3882
    %v4158 = vmul.f32 1.0, %v4157
    %v4159 = vrcp.pop %v3883
    %v4160 = vmul.f32 1.0, %v4159
    %v4161 = vrcp.pop %v3884
    %v4162 = vmul.f32 1.0, %v4161
    %v4163 = vrcp.pop %v3885
    %v4164 = vmul.f32 1.0, %v4163
    %v4165 = vrcp.pop %v3886
    %v4166 = vmul.f32 1.0, %v4165
    %v4167 = vrcp.pop %v3887
    %v4168 = vmul.f32 1.0, %v4167
    %v4169 = vrcp.pop %v3888
    %v4170 = vmul.f32 1.0, %v4169
    %v4171 = vrcp.pop %v3889
    %v4172 = vmul.f32 1.0, %v4171
    %v4173 = vrcp.pop %v3890
    %v4174 = vmul.f32 1.0, %v4173
    %v4175 = vrcp.pop %v3891
    %v4176 = vmul.f32 1.0, %v4175
    %v4177 = vrcp.pop %v3892
    %v4178 = vmul.f32 1.0, %v4177
    %v4179 = vrcp.pop %v3893
    %v4180 = vmul.f32 1.0, %v4179
    %v4181 = vrcp.pop %v3894
    %v4182 = vmul.f32 1.0, %v4181
    %v4183 = vrcp.pop %v3895
    %v4184 = vmul.f32 1.0, %v4183
    %v4185 = vrcp.pop %v3896
    %v4186 = vmul.f32 1.0, %v4185
    %v4187 = vrcp.pop %v3897
    %v4188 = vmul.f32 1.0, %v4187
    %v4189 = vrcp.pop %v3898
    %v4190 = vmul.f32 1.0, %v4189
    %v4191 = vrcp.pop %v3899
    %v4192 = vmul.f32 1.0, %v4191
    %v4193 = vrcp.pop %v3900
    %v4194 = vmul.f32 1.0, %v4193
    %v4195 = vrcp.pop %v3901
    %v4196 = vmul.f32 1.0, %v4195
    %v4197 = vrcp.pop %v3902
    %v4198 = vmul.f32 1.0, %v4197
    %v4199 = vrcp.pop %v3903
    %v4200 = vmul.f32 1.0, %v4199
    %v4201 = vrcp.pop %v3904
    %v4202 = vmul.f32 1.0, %v4201
    %v4203 = vrcp.pop %v3905
    %v4204 = vmul.f32 1.0, %v4203
    %v4205 = vrcp.pop %v3906
    %v4206 = vmul.f32 1.0, %v4205
    %v4207 = vrcp.pop %v3907
    %v4208 = vmul.f32 1.0, %v4207
    %v4209 = vrcp.pop %v3908
    %v4210 = vmul.f32 1.0, %v4209
    %v4211 = vrcp.pop %v3909
    %v4212 = vmul.f32 1.0, %v4211
    %v4213 = vrcp.pop %v3910
    %v4214 = vmul.f32 1.0, %v4213
    %v4215 = vrcp.pop %v3911
    %v4216 = vmul.f32 1.0, %v4215
    %v4217 = vrcp.pop %v3912
    %v4218 = vmul.f32 1.0, %v4217
    %v4219 = vrcp.pop %v3913
    %v4220 = vmul.f32 1.0, %v4219
    %v4221 = vrcp.pop %v3914
    %v4222 = vmul.f32 1.0, %v4221
    %v4223 = vrcp.pop %v3915
    %v4224 = vmul.f32 1.0, %v4223
    %v4225 = vrcp.pop %v3916
    %v4226 = vmul.f32 1.0, %v4225
    %v4227 = vrcp.pop %v3917
    %v4228 = vmul.f32 1.0, %v4227
    %v4229 = vrcp.pop %v3918
    %v4230 = vmul.f32 1.0, %v4229
    %v4231 = vrcp.pop %v3919
    %v4232 = vmul.f32 1.0, %v4231
    %v4233 = vrcp.pop %v3920
    %v4234 = vmul.f32 1.0, %v4233
    %v4235 = vrcp.pop %v3921
    %v4236 = vmul.f32 1.0, %v4235
    %v4237 = vrcp.pop %v3922
    %v4238 = vmul.f32 1.0, %v4237
    %v4239 = vrcp.pop %v3923
    %v4240 = vmul.f32 1.0, %v4239
    %v4241 = vrcp.pop %v3924
    %v4242 = vmul.f32 1.0, %v4241
    %v4243 = vrcp.pop %v3925
    %v4244 = vmul.f32 1.0, %v4243
    %v4245 = vrcp.pop %v3926
    %v4246 = vmul.f32 1.0, %v4245
    %v4247 = vrcp.pop %v3927
    %v4248 = vmul.f32 1.0, %v4247
    %v4249 = vrcp.pop %v3928
    %v4250 = vmul.f32 1.0, %v4249
    %v4251 = vrcp.pop %v3929
    %v4252 = vmul.f32 1.0, %v4251
    %v4253 = vrcp.pop %v3930
    %v4254 = vmul.f32 1.0, %v4253
    %v4255 = vrcp.pop %v3931
    %v4256 = vmul.f32 1.0, %v4255
    %v4257 = vrcp.pop %v3932
    %v4258 = vmul.f32 1.0, %v4257
    %v4259 = vrcp.pop %v3933
    %v4260 = vmul.f32 1.0, %v4259
    %v4261 = vrcp.pop %v3934
    %v4262 = vmul.f32 1.0, %v4261
    %v4263 = vrcp.pop %v3935
    %v4264 = vmul.f32 1.0, %v4263
    %v4265 = vrcp.pop %v3936
    %v4266 = vmul.f32 1.0, %v4265
    %v4267 = vrcp.pop %v3937
    %v4268 = vmul.f32 1.0, %v4267
    %v4269 = vrcp.pop %v3938
    %v4270 = vmul.f32 1.0, %v4269
    %v4271 = vrcp.pop %v3939
    %v4272 = vmul.f32 1.0, %v4271
    %v4273 = vrcp.pop %v3940
    %v4274 = vmul.f32 1.0, %v4273
    %v4275 = vrcp.pop %v3941
    %v4276 = vmul.f32 1.0, %v4275
    %v4277 = vrcp.pop %v3942
    %v4278 = vmul.f32 1.0, %v4277
    %v4279 = vrcp.pop %v3943
    %v4280 = vmul.f32 1.0, %v4279
    %v4281 = vrcp.pop %v3944
    %v4282 = vmul.f32 1.0, %v4281
    %v4283 = vrcp.pop %v3945
    %v4284 = vmul.f32 1.0, %v4283
    %v4285 = vrcp.pop %v3946
    %v4286 = vmul.f32 1.0, %v4285
    %v4287 = vrcp.pop %v3947
    %v4288 = vmul.f32 1.0, %v4287
    %v4289 = vrcp.pop %v3948
    %v4290 = vmul.f32 1.0, %v4289
    %v4291 = vrcp.pop %v3949
    %v4292 = vmul.f32 1.0, %v4291
    %v4293 = vrcp.pop %v3950
    %v4294 = vmul.f32 1.0, %v4293
    %v4295 = vrcp.pop %v3951
    %v4296 = vmul.f32 1.0, %v4295
    %v4297 = vrcp.pop %v3952
    %v4298 = vmul.f32 1.0, %v4297
    %v4299 = vrcp.pop %v3953
    %v4300 = vmul.f32 1.0, %v4299
    %v4301 = vrcp.pop %v3954
    %v4302 = vmul.f32 1.0, %v4301
    %v4303 = vrcp.pop %v3955
    %v4304 = vmul.f32 1.0, %v4303
    %v4305 = vrcp.pop %v3956
    %v4306 = vmul.f32 1.0, %v4305
    %v4307 = vrcp.pop %v3957
    %v4308 = vmul.f32 1.0, %v4307
    %v4309 = vrcp.pop %v3958
    %v4310 = vmul.f32 1.0, %v4309
    %v4311 = vrcp.pop %v3959
    %v4312 = vmul.f32 1.0, %v4311
    %v4313 = vrcp.pop %v3960
    %v4314 = vmul.f32 1.0, %v4313
    %v4315 = vrcp.pop %v3961
    %v4316 = vmul.f32 1.0, %v4315
    %v4317 = vrcp.pop %v3962
    %v4318 = vmul.f32 1.0, %v4317
    %v4319 = vrcp.pop %v3963
    %v4320 = vmul.f32 1.0, %v4319
    %v4321 = vrcp.pop %v3964
    %v4322 = vmul.f32 1.0, %v4321
    %v4323 = vrcp.pop %v3965
    %v4324 = vmul.f32 1.0, %v4323
    %v4325 = vrcp.pop %v3966
    %v4326 = vmul.f32 1.0, %v4325
    %v4327 = vrcp.pop %v3967
    %v4328 = vmul.f32 1.0, %v4327
    %v4329 = vrcp.pop %v3968
    %v4330 = vmul.f32 1.0, %v4329
    %v4331 = vrcp.pop %v3969
    %v4332 = vmul.f32 1.0, %v4331
    %v4333 = vrcp.pop %v3970
    %v4334 = vmul.f32 1.0, %v4333
    %v4335 = vrcp.pop %v3971
    %v4336 = vmul.f32 1.0, %v4335
    %v4337 = vrcp.pop %v3972
    %v4338 = vmul.f32 1.0, %v4337
    %v4339 = vrcp.pop %v3973
    %v4340 = vmul.f32 1.0, %v4339
    %v4341 = vrcp.pop %v3974
    %v4342 = vmul.f32 1.0, %v4341
    %v4343 = vrcp.pop %v3975
    %v4344 = vmul.f32 1.0, %v4343
    %v4345 = vrcp.pop %v3976
    %v4346 = vmul.f32 1.0, %v4345
    %v4347 = vrcp.pop %v3977
    %v4348 = vmul.f32 1.0, %v4347
    %v4349 = vrcp.pop %v3978
    %v4350 = vmul.f32 1.0, %v4349
    %v4351 = vrcp.pop %v3979
    %v4352 = vmul.f32 1.0, %v4351
    %v4353 = vrcp.pop %v3980
    %v4354 = vmul.f32 1.0, %v4353
    %v4355 = vrcp.pop %v3981
    %v4356 = vmul.f32 1.0, %v4355
    %v4357 = vrcp.pop %v3982
    %v4358 = vmul.f32 1.0, %v4357
    %v4359 = vrcp.pop %v3983
    %v4360 = vmul.f32 1.0, %v4359
    %v4361 = vrcp.pop %v3984
    %v4362 = vmul.f32 1.0, %v4361
    %v4363 = vrcp.pop %v3985
    %v4364 = vmul.f32 1.0, %v4363
    %v4365 = vrcp.pop %v3986
    %v4366 = vmul.f32 1.0, %v4365
    %v4367 = vrcp.pop %v3987
    %v4368 = vmul.f32 1.0, %v4367
    %v4369 = vrcp.pop %v3988
    %v4370 = vmul.f32 1.0, %v4369
    %v4371 = vrcp.pop %v3989
    %v4372 = vmul.f32 1.0, %v4371
    %v4373 = vrcp.pop %v3990
    %v4374 = vmul.f32 1.0, %v4373
    %v4375 = vrcp.pop %v3991
    %v4376 = vmul.f32 1.0, %v4375
    %v4377 = vrcp.pop %v3992
    %v4378 = vmul.f32 1.0, %v4377
    %v4379 = vrcp.pop %v3993
    %v4380 = vmul.f32 1.0, %v4379
    %v4381 = vrcp.pop %v3994
    %v4382 = vmul.f32 1.0, %v4381
    %v4383 = vrcp.pop %v3995
    %v4384 = vmul.f32 1.0, %v4383
    %v4385 = vrcp.pop %v3996
    %v4386 = vmul.f32 1.0, %v4385
    %v4387 = vrcp.pop %v3997
    %v4388 = vmul.f32 1.0, %v4387
    %v4389 = vrcp.pop %v3998
    %v4390 = vmul.f32 1.0, %v4389
    %v4391 = vrcp.pop %v3999
    %v4392 = vmul.f32 1.0, %v4391
    %v4393 = vrcp.pop %v4000
    %v4394 = vmul.f32 1.0, %v4393
    %v4395 = vrcp.pop %v4001
    %v4396 = vmul.f32 1.0, %v4395
    %v4397 = vrcp.pop %v4002
    %v4398 = vmul.f32 1.0, %v4397
    %v4399 = vrcp.pop %v4003
    %v4400 = vmul.f32 1.0, %v4399
    %v4401 = vrcp.pop %v4004
    %v4402 = vmul.f32 1.0, %v4401
    %v4403 = vrcp.pop %v4005
    %v4404 = vmul.f32 1.0, %v4403
    %v4405 = vrcp.pop %v4006
    %v4406 = vmul.f32 1.0, %v4405
    %v4407 = vrcp.pop %v4007
    %v4408 = vmul.f32 1.0, %v4407
    %v4409 = vrcp.pop %v4008
    %v4410 = vmul.f32 1.0, %v4409
    %v4411 = vrcp.pop %v4009
    %v4412 = vmul.f32 1.0, %v4411
    %v4413 = vrcp.pop %v4010
    %v4414 = vmul.f32 1.0, %v4413
    %v4415 = vrcp.pop %v4011
    %v4416 = vmul.f32 1.0, %v4415
    %v4417 = vrcp.pop %v4012
    %v4418 = vmul.f32 1.0, %v4417
    %v4419 = vrcp.pop %v4013
    %v4420 = vmul.f32 1.0, %v4419
    %v4421 = vrcp.pop %v4014
    %v4422 = vmul.f32 1.0, %v4421
    %v4423 = vrcp.pop %v4015
    %v4424 = vmul.f32 1.0, %v4423
    %v4425 = vrcp.pop %v4016
    %v4426 = vmul.f32 1.0, %v4425
    %v4427 = vrcp.pop %v4017
    %v4428 = vmul.f32 1.0, %v4427
    %v4429 = vrcp.pop %v4018
    %v4430 = vmul.f32 1.0, %v4429
    %v4431 = vrcp.pop %v4019
    %v4432 = vmul.f32 1.0, %v4431
    %v4433 = vrcp.pop %v4020
    %v4434 = vmul.f32 1.0, %v4433
    %v4435 = vrcp.pop %v4021
    %v4436 = vmul.f32 1.0, %v4435
    %v4437 = vrcp.pop %v4022
    %v4438 = vmul.f32 1.0, %v4437
    %v4439 = vrcp.pop %v4023
    %v4440 = vmul.f32 1.0, %v4439
    %v4441 = vrcp.pop %v4024
    %v4442 = vmul.f32 1.0, %v4441
    %v4443 = vrcp.pop %v4025
    %v4444 = vmul.f32 1.0, %v4443
    %v4445 = vrcp.pop %v4026
    %v4446 = vmul.f32 1.0, %v4445
    %v4447 = vrcp.pop %v4027
    %v4448 = vmul.f32 1.0, %v4447
    %v4449 = vrcp.pop %v4028
    %v4450 = vmul.f32 1.0, %v4449
    %v4451 = vrcp.pop %v4029
    %v4452 = vmul.f32 1.0, %v4451
    %v4453 = vrcp.pop %v4030
    %v4454 = vmul.f32 1.0, %v4453
    %v4455 = vrcp.pop %v4031
    %v4456 = vmul.f32 1.0, %v4455
    %v4457 = vrcp.pop %v4032
    %v4458 = vmul.f32 1.0, %v4457
    %v4459 = vrcp.pop %v4033
    %v4460 = vmul.f32 1.0, %v4459
    %v4461 = vrcp.pop %v4034
    %v4462 = vmul.f32 1.0, %v4461
    %v4463 = vrcp.pop %v4035
    %v4464 = vmul.f32 1.0, %v4463
    %v4465 = vrcp.pop %v4036
    %v4466 = vmul.f32 1.0, %v4465
    %v4467 = vrcp.pop %v4037
    %v4468 = vmul.f32 1.0, %v4467
    %v4469 = vrcp.pop %v4038
    %v4470 = vmul.f32 1.0, %v4469
    %v4471 = vrcp.pop %v4039
    %v4472 = vmul.f32 1.0, %v4471
    %v4473 = vrcp.pop %v4040
    %v4474 = vmul.f32 1.0, %v4473
    %v4475 = vrcp.pop %v4041
    %v4476 = vmul.f32 1.0, %v4475
    %v4477 = vrcp.pop %v4042
    %v4478 = vmul.f32 1.0, %v4477
    %v4479 = vrcp.pop %v4043
    %v4480 = vmul.f32 1.0, %v4479
    %v4481 = vrcp.pop %v4044
    %v4482 = vmul.f32 1.0, %v4481
    %v4483 = vrcp.pop %v4045
    %v4484 = vmul.f32 1.0, %v4483
    %v4485 = vrcp.pop %v4046
    %v4486 = vmul.f32 1.0, %v4485
    %v4487 = vrcp.pop %v4047
    %v4488 = vmul.f32 1.0, %v4487
    %v4489 = vrcp.pop %v4048
    %v4490 = vmul.f32 1.0, %v4489
    %v4491 = vrcp.pop %v4049
    %v4492 = vmul.f32 1.0, %v4491
    %v4493 = vrcp.pop %v4050
    %v4494 = vmul.f32 1.0, %v4493
    %v4495 = vrcp.pop %v4051
    %v4496 = vmul.f32 1.0, %v4495
    %v4497 = vrcp.pop %v4052
    %v4498 = vmul.f32 1.0, %v4497
    %v4499 = vrcp.pop %v4053
    %v4500 = vmul.f32 1.0, %v4499
    %v4501 = vrcp.pop %v4054
    %v4502 = vmul.f32 1.0, %v4501
    %v4503 = vrcp.pop %v4055
    %v4504 = vmul.f32 1.0, %v4503
    %v4505 = vrcp.pop %v4056
    %v4506 = vmul.f32 1.0, %v4505
    %v4507 = vrcp.pop %v4057
    %v4508 = vmul.f32 1.0, %v4507
    %v4509 = vrcp.pop %v4058
    %v4510 = vmul.f32 1.0, %v4509
    %v4511 = vrcp.pop %v4059
    %v4512 = vmul.f32 1.0, %v4511
    %v4513 = vrcp.pop %v4060
    %v4514 = vmul.f32 1.0, %v4513
    %v4515 = vrcp.pop %v4061
    %v4516 = vmul.f32 1.0, %v4515
    %v4517 = vrcp.pop %v4062
    %v4518 = vmul.f32 1.0, %v4517
    %v4519 = vrcp.pop %v4063
    %v4520 = vmul.f32 1.0, %v4519
    %v4521 = vrcp.pop %v4064
    %v4522 = vmul.f32 1.0, %v4521
    %v4523 = vrcp.pop %v4065
    %v4524 = vmul.f32 1.0, %v4523
    %v4525 = vrcp.pop %v4066
    %v4526 = vmul.f32 1.0, %v4525
    %v4527 = vrcp.pop %v4067
    %v4528 = vmul.f32 1.0, %v4527
    %v4529 = vrcp.pop %v4068
    %v4530 = vmul.f32 1.0, %v4529
    %v4531 = vrcp.pop %v4069
    %v4532 = vmul.f32 1.0, %v4531
    %v4533 = vrcp.pop %v4070
    %v4534 = vmul.f32 1.0, %v4533
    %v4535 = vrcp.pop %v4071
    %v4536 = vmul.f32 1.0, %v4535
    %v4537 = vrcp.pop %v4072
    %v4538 = vmul.f32 1.0, %v4537
    %v4539 = vrcp.pop %v4073
    %v4540 = vmul.f32 1.0, %v4539
    %v4541 = vrcp.pop %v4074
    %v4542 = vmul.f32 1.0, %v4541
    %v4543 = vrcp.pop %v4075
    %v4544 = vmul.f32 1.0, %v4543
    %v4545 = vrcp.pop %v4076
    %v4546 = vmul.f32 1.0, %v4545
    %v4547 = vrcp.pop %v4077
    %v4548 = vmul.f32 1.0, %v4547
    %v4549 = vrcp.pop %v4078
    %v4550 = vmul.f32 1.0, %v4549
    %v4551 = vrcp.pop %v4079
    %v4552 = vmul.f32 1.0, %v4551
    %v4553 = vrcp.pop %v4080
    %v4554 = vmul.f32 1.0, %v4553
    %v4555 = vrcp.pop %v4081
    %v4556 = vmul.f32 1.0, %v4555
    %v4557 = vrcp.pop %v4082
    %v4558 = vmul.f32 1.0, %v4557
    %v4559 = vrcp.pop %v4083
    %v4560 = vmul.f32 1.0, %v4559
    %v4561 = vrcp.pop %v4084
    %v4562 = vmul.f32 1.0, %v4561
    %v4563 = vrcp.pop %v4085
    %v4564 = vmul.f32 1.0, %v4563
    %v4565 = vrcp.pop %v4086
    %v4566 = vmul.f32 1.0, %v4565
    %v4567 = vrcp.pop %v4087
    %v4568 = vmul.f32 1.0, %v4567
    %v4569 = vrcp.pop %v4088
    %v4570 = vmul.f32 1.0, %v4569
    %v4571 = vrcp.pop %v4089
    %v4572 = vmul.f32 1.0, %v4571
    %v4573 = vrcp.pop %v4090
    %v4574 = vmul.f32 1.0, %v4573
    %v4575 = vrcp.pop %v4091
    %v4576 = vmul.f32 1.0, %v4575
    %v4577 = vrcp.pop %v4092
    %v4578 = vmul.f32 1.0, %v4577
    %v4579 = vrcp.pop %v4093
    %v4580 = vmul.f32 1.0, %v4579
    %v4581 = vrcp.pop %v4094
    %v4582 = vmul.f32 1.0, %v4581
    %v4583 = vrcp.pop %v4095
    %v4584 = vmul.f32 1.0, %v4583
    %v4585 = vrcp.pop %v4096
    %v4586 = vmul.f32 1.0, %v4585
    %v4587 = vrcp.pop %v4097
    %v4588 = vmul.f32 1.0, %v4587
    %v4589 = vrcp.pop %v4098
    %v4590 = vmul.f32 1.0, %v4589
    %v4591 = vrcp.pop %v4099
    %v4592 = vmul.f32 1.0, %v4591
    %v4593 = vrcp.pop %v4100
    %v4594 = vmul.f32 1.0, %v4593
    %v4595 = vrcp.pop %v4101
    %v4596 = vmul.f32 1.0, %v4595
    %v4597 = vrcp.pop %v4102
    %v4598 = vmul.f32 1.0, %v4597
    %v4599 = vrcp.pop %v4103
    %v4600 = vmul.f32 1.0, %v4599
    %v4601 = vrcp.pop %v4104
    %v4602 = vmul.f32 1.0, %v4601
    %v4603 = vrcp.pop %v4105
    %v4604 = vmul.f32 1.0, %v4603
    %v4605 = vrcp.pop %v4106
    %v4606 = vmul.f32 1.0, %v4605
    %v4607 = vrcp.pop %v4107
    %v4608 = vmul.f32 1.0, %v4607
    %v4609 = vrcp.pop %v4108
    %v4610 = vmul.f32 1.0, %v4609
    %v4611 = vrcp.pop %v4109
    %v4612 = vmul.f32 1.0, %v4611
    %v4613 = vrcp.pop %v4110
    %v4614 = vmul.f32 1.0, %v4613
    %v4615 = vrcp.pop %v4111
    %v4616 = vmul.f32 1.0, %v4615
    %v4617 = vrcp.pop %v4112
    %v4618 = vmul.f32 1.0, %v4617
    %v4619 = vrcp.pop %v4113
    %v4620 = vmul.f32 1.0, %v4619
    %v4621 = vrcp.pop %v4114
    %v4622 = vmul.f32 1.0, %v4621
    %v4623 = vrcp.pop %v4115
    %v4624 = vmul.f32 1.0, %v4623
    %v4625 = vrcp.pop %v4116
    %v4626 = vmul.f32 1.0, %v4625
    %v4627 = vrcp.pop %v4117
    %v4628 = vmul.f32 1.0, %v4627
    %v4629 = vrcp.pop %v4118
    %v4630 = vmul.f32 1.0, %v4629
    %v4631 = vmul.f32 %v2839, %v4120
    %v4632 = vmul.f32 %v2840, %v4122
    %v4633 = vmul.f32 %v2841, %v4124
    %v4634 = vmul.f32 %v2842, %v4126
    %v4635 = vmul.f32 %v2843, %v4128
    %v4636 = vmul.f32 %v2844, %v4130
    %v4637 = vmul.f32 %v2845, %v4132
    %v4638 = vmul.f32 %v2846, %v4134
    %v4639 = vmul.f32 %v2847, %v4136
    %v4640 = vmul.f32 %v2848, %v4138
    %v4641 = vmul.f32 %v2849, %v4140
    %v4642 = vmul.f32 %v2850, %v4142
    %v4643 = vmul.f32 %v2851, %v4144
    %v4644 = vmul.f32 %v2852, %v4146
    %v4645 = vmul.f32 %v2853, %v4148
    %v4646 = vmul.f32 %v2854, %v4150
    %v4647 = vmul.f32 %v2855, %v4152
    %v4648 = vmul.f32 %v2856, %v4154
    %v4649 = vmul.f32 %v2857, %v4156
    %v4650 = vmul.f32 %v2858, %v4158
    %v4651 = vmul.f32 %v2859, %v4160
    %v4652 = vmul.f32 %v2860, %v4162
    %v4653 = vmul.f32 %v2861, %v4164
    %v4654 = vmul.f32 %v2862, %v4166
    %v4655 = vmul.f32 %v2863, %v4168
    %v4656 = vmul.f32 %v2864, %v4170
    %v4657 = vmul.f32 %v2865, %v4172
    %v4658 = vmul.f32 %v2866, %v4174
    %v4659 = vmul.f32 %v2867, %v4176
    %v4660 = vmul.f32 %v2868, %v4178
    %v4661 = vmul.f32 %v2869, %v4180
    %v4662 = vmul.f32 %v2870, %v4182
    %v4663 = vmul.f32 %v2871, %v4184
    %v4664 = vmul.f32 %v2872, %v4186
    %v4665 = vmul.f32 %v2873, %v4188
    %v4666 = vmul.f32 %v2874, %v4190
    %v4667 = vmul.f32 %v2875, %v4192
    %v4668 = vmul.f32 %v2876, %v4194
    %v4669 = vmul.f32 %v2877, %v4196
    %v4670 = vmul.f32 %v2878, %v4198
    %v4671 = vmul.f32 %v2879, %v4200
    %v4672 = vmul.f32 %v2880, %v4202
    %v4673 = vmul.f32 %v2881, %v4204
    %v4674 = vmul.f32 %v2882, %v4206
    %v4675 = vmul.f32 %v2883, %v4208
    %v4676 = vmul.f32 %v2884, %v4210
    %v4677 = vmul.f32 %v2885, %v4212
    %v4678 = vmul.f32 %v2886, %v4214
    %v4679 = vmul.f32 %v2887, %v4216
    %v4680 = vmul.f32 %v2888, %v4218
    %v4681 = vmul.f32 %v2889, %v4220
    %v4682 = vmul.f32 %v2890, %v4222
    %v4683 = vmul.f32 %v2891, %v4224
    %v4684 = vmul.f32 %v2892, %v4226
    %v4685 = vmul.f32 %v2893, %v4228
    %v4686 = vmul.f32 %v2894, %v4230
    %v4687 = vmul.f32 %v2895, %v4232
    %v4688 = vmul.f32 %v2896, %v4234
    %v4689 = vmul.f32 %v2897, %v4236
    %v4690 = vmul.f32 %v2898, %v4238
    %v4691 = vmul.f32 %v2899, %v4240
    %v4692 = vmul.f32 %v2900, %v4242
    %v4693 = vmul.f32 %v2901, %v4244
    %v4694 = vmul.f32 %v2902, %v4246
    %v4695 = vmul.f32 %v2903, %v4248
    %v4696 = vmul.f32 %v2904, %v4250
    %v4697 = vmul.f32 %v2905, %v4252
    %v4698 = vmul.f32 %v2906, %v4254
    %v4699 = vmul.f32 %v2907, %v4256
    %v4700 = vmul.f32 %v2908, %v4258
    %v4701 = vmul.f32 %v2909, %v4260
    %v4702 = vmul.f32 %v2910, %v4262
    %v4703 = vmul.f32 %v2911, %v4264
    %v4704 = vmul.f32 %v2912, %v4266
    %v4705 = vmul.f32 %v2913, %v4268
    %v4706 = vmul.f32 %v2914, %v4270
    %v4707 = vmul.f32 %v2915, %v4272
    %v4708 = vmul.f32 %v2916, %v4274
    %v4709 = vmul.f32 %v2917, %v4276
    %v4710 = vmul.f32 %v2918, %v4278
    %v4711 = vmul.f32 %v2919, %v4280
    %v4712 = vmul.f32 %v2920, %v4282
    %v4713 = vmul.f32 %v2921, %v4284
    %v4714 = vmul.f32 %v2922, %v4286
    %v4715 = vmul.f32 %v2923, %v4288
    %v4716 = vmul.f32 %v2924, %v4290
    %v4717 = vmul.f32 %v2925, %v4292
    %v4718 = vmul.f32 %v2926, %v4294
    %v4719 = vmul.f32 %v2927, %v4296
    %v4720 = vmul.f32 %v2928, %v4298
    %v4721 = vmul.f32 %v2929, %v4300
    %v4722 = vmul.f32 %v2930, %v4302
    %v4723 = vmul.f32 %v2931, %v4304
    %v4724 = vmul.f32 %v2932, %v4306
    %v4725 = vmul.f32 %v2933, %v4308
    %v4726 = vmul.f32 %v2934, %v4310
    %v4727 = vmul.f32 %v2935, %v4312
    %v4728 = vmul.f32 %v2936, %v4314
    %v4729 = vmul.f32 %v2937, %v4316
    %v4730 = vmul.f32 %v2938, %v4318
    %v4731 = vmul.f32 %v2939, %v4320
    %v4732 = vmul.f32 %v2940, %v4322
    %v4733 = vmul.f32 %v2941, %v4324
    %v4734 = vmul.f32 %v2942, %v4326
    %v4735 = vmul.f32 %v2943, %v4328
    %v4736 = vmul.f32 %v2944, %v4330
    %v4737 = vmul.f32 %v2945, %v4332
    %v4738 = vmul.f32 %v2946, %v4334
    %v4739 = vmul.f32 %v2947, %v4336
    %v4740 = vmul.f32 %v2948, %v4338
    %v4741 = vmul.f32 %v2949, %v4340
    %v4742 = vmul.f32 %v2950, %v4342
    %v4743 = vmul.f32 %v2951, %v4344
    %v4744 = vmul.f32 %v2952, %v4346
    %v4745 = vmul.f32 %v2953, %v4348
    %v4746 = vmul.f32 %v2954, %v4350
    %v4747 = vmul.f32 %v2955, %v4352
    %v4748 = vmul.f32 %v2956, %v4354
    %v4749 = vmul.f32 %v2957, %v4356
    %v4750 = vmul.f32 %v2958, %v4358
    %v4751 = vmul.f32 %v2959, %v4360
    %v4752 = vmul.f32 %v2960, %v4362
    %v4753 = vmul.f32 %v2961, %v4364
    %v4754 = vmul.f32 %v2962, %v4366
    %v4755 = vmul.f32 %v2963, %v4368
    %v4756 = vmul.f32 %v2964, %v4370
    %v4757 = vmul.f32 %v2965, %v4372
    %v4758 = vmul.f32 %v2966, %v4374
    %v4759 = vmul.f32 %v2967, %v4376
    %v4760 = vmul.f32 %v2968, %v4378
    %v4761 = vmul.f32 %v2969, %v4380
    %v4762 = vmul.f32 %v2970, %v4382
    %v4763 = vmul.f32 %v2971, %v4384
    %v4764 = vmul.f32 %v2972, %v4386
    %v4765 = vmul.f32 %v2973, %v4388
    %v4766 = vmul.f32 %v2974, %v4390
    %v4767 = vmul.f32 %v2975, %v4392
    %v4768 = vmul.f32 %v2976, %v4394
    %v4769 = vmul.f32 %v2977, %v4396
    %v4770 = vmul.f32 %v2978, %v4398
    %v4771 = vmul.f32 %v2979, %v4400
    %v4772 = vmul.f32 %v2980, %v4402
    %v4773 = vmul.f32 %v2981, %v4404
    %v4774 = vmul.f32 %v2982, %v4406
    %v4775 = vmul.f32 %v2983, %v4408
    %v4776 = vmul.f32 %v2984, %v4410
    %v4777 = vmul.f32 %v2985, %v4412
    %v4778 = vmul.f32 %v2986, %v4414
    %v4779 = vmul.f32 %v2987, %v4416
    %v4780 = vmul.f32 %v2988, %v4418
    %v4781 = vmul.f32 %v2989, %v4420
    %v4782 = vmul.f32 %v2990, %v4422
    %v4783 = vmul.f32 %v2991, %v4424
    %v4784 = vmul.f32 %v2992, %v4426
    %v4785 = vmul.f32 %v2993, %v4428
    %v4786 = vmul.f32 %v2994, %v4430
    %v4787 = vmul.f32 %v2995, %v4432
    %v4788 = vmul.f32 %v2996, %v4434
    %v4789 = vmul.f32 %v2997, %v4436
    %v4790 = vmul.f32 %v2998, %v4438
    %v4791 = vmul.f32 %v2999, %v4440
    %v4792 = vmul.f32 %v3000, %v4442
    %v4793 = vmul.f32 %v3001, %v4444
    %v4794 = vmul.f32 %v3002, %v4446
    %v4795 = vmul.f32 %v3003, %v4448
    %v4796 = vmul.f32 %v3004, %v4450
    %v4797 = vmul.f32 %v3005, %v4452
    %v4798 = vmul.f32 %v3006, %v4454
    %v4799 = vmul.f32 %v3007, %v4456
    %v4800 = vmul.f32 %v3008, %v4458
    %v4801 = vmul.f32 %v3009, %v4460
    %v4802 = vmul.f32 %v3010, %v4462
    %v4803 = vmul.f32 %v3011, %v4464
    %v4804 = vmul.f32 %v3012, %v4466
    %v4805 = vmul.f32 %v3013, %v4468
    %v4806 = vmul.f32 %v3014, %v4470
    %v4807 = vmul.f32 %v3015, %v4472
    %v4808 = vmul.f32 %v3016, %v4474
    %v4809 = vmul.f32 %v3017, %v4476
    %v4810 = vmul.f32 %v3018, %v4478
    %v4811 = vmul.f32 %v3019, %v4480
    %v4812 = vmul.f32 %v3020, %v4482
    %v4813 = vmul.f32 %v3021, %v4484
    %v4814 = vmul.f32 %v3022, %v4486
    %v4815 = vmul.f32 %v3023, %v4488
    %v4816 = vmul.f32 %v3024, %v4490
    %v4817 = vmul.f32 %v3025, %v4492
    %v4818 = vmul.f32 %v3026, %v4494
    %v4819 = vmul.f32 %v3027, %v4496
    %v4820 = vmul.f32 %v3028, %v4498
    %v4821 = vmul.f32 %v3029, %v4500
    %v4822 = vmul.f32 %v3030, %v4502
    %v4823 = vmul.f32 %v3031, %v4504
    %v4824 = vmul.f32 %v3032, %v4506
    %v4825 = vmul.f32 %v3033, %v4508
    %v4826 = vmul.f32 %v3034, %v4510
    %v4827 = vmul.f32 %v3035, %v4512
    %v4828 = vmul.f32 %v3036, %v4514
    %v4829 = vmul.f32 %v3037, %v4516
    %v4830 = vmul.f32 %v3038, %v4518
    %v4831 = vmul.f32 %v3039, %v4520
    %v4832 = vmul.f32 %v3040, %v4522
    %v4833 = vmul.f32 %v3041, %v4524
    %v4834 = vmul.f32 %v3042, %v4526
    %v4835 = vmul.f32 %v3043, %v4528
    %v4836 = vmul.f32 %v3044, %v4530
    %v4837 = vmul.f32 %v3045, %v4532
    %v4838 = vmul.f32 %v3046, %v4534
    %v4839 = vmul.f32 %v3047, %v4536
    %v4840 = vmul.f32 %v3048, %v4538
    %v4841 = vmul.f32 %v3049, %v4540
    %v4842 = vmul.f32 %v3050, %v4542
    %v4843 = vmul.f32 %v3051, %v4544
    %v4844 = vmul.f32 %v3052, %v4546
    %v4845 = vmul.f32 %v3053, %v4548
    %v4846 = vmul.f32 %v3054, %v4550
    %v4847 = vmul.f32 %v3055, %v4552
    %v4848 = vmul.f32 %v3056, %v4554
    %v4849 = vmul.f32 %v3057, %v4556
    %v4850 = vmul.f32 %v3058, %v4558
    %v4851 = vmul.f32 %v3059, %v4560
    %v4852 = vmul.f32 %v3060, %v4562
    %v4853 = vmul.f32 %v3061, %v4564
    %v4854 = vmul.f32 %v3062, %v4566
    %v4855 = vmul.f32 %v3063, %v4568
    %v4856 = vmul.f32 %v3064, %v4570
    %v4857 = vmul.f32 %v3065, %v4572
    %v4858 = vmul.f32 %v3066, %v4574
    %v4859 = vmul.f32 %v3067, %v4576
    %v4860 = vmul.f32 %v3068, %v4578
    %v4861 = vmul.f32 %v3069, %v4580
    %v4862 = vmul.f32 %v3070, %v4582
    %v4863 = vmul.f32 %v3071, %v4584
    %v4864 = vmul.f32 %v3072, %v4586
    %v4865 = vmul.f32 %v3073, %v4588
    %v4866 = vmul.f32 %v3074, %v4590
    %v4867 = vmul.f32 %v3075, %v4592
    %v4868 = vmul.f32 %v3076, %v4594
    %v4869 = vmul.f32 %v3077, %v4596
    %v4870 = vmul.f32 %v3078, %v4598
    %v4871 = vmul.f32 %v3079, %v4600
    %v4872 = vmul.f32 %v3080, %v4602
    %v4873 = vmul.f32 %v3081, %v4604
    %v4874 = vmul.f32 %v3082, %v4606
    %v4875 = vmul.f32 %v3083, %v4608
    %v4876 = vmul.f32 %v3084, %v4610
    %v4877 = vmul.f32 %v3085, %v4612
    %v4878 = vmul.f32 %v3086, %v4614
    %v4879 = vmul.f32 %v3087, %v4616
    %v4880 = vmul.f32 %v3088, %v4618
    %v4881 = vmul.f32 %v3089, %v4620
    %v4882 = vmul.f32 %v3090, %v4622
    %v4883 = vmul.f32 %v3091, %v4624
    %v4884 = vmul.f32 %v3092, %v4626
    %v4885 = vmul.f32 %v3093, %v4628
    %v4886 = vmul.f32 %v3094, %v4630
    %v4887 = vadd.f32 %v4631, %v4632
    %4888 = vadd.xlane.f32.xlu0 %v4887
    %v4889 = vpop.xlane.xlu0 %4888
    %v4890 = vadd.f32 %v4633, %v4634
    %4891 = vadd.xlane.f32.xlu0 %v4890
    %v4892 = vpop.xlane.xlu0 %4891
    %v4893 = vadd.f32 %v4635, %v4636
    %4894 = vadd.xlane.f32.xlu0 %v4893
    %v4895 = vpop.xlane.xlu0 %4894
    %v4896 = vadd.f32 %v4637, %v4638
    %4897 = vadd.xlane.f32.xlu0 %v4896
    %v4898 = vpop.xlane.xlu0 %4897
    %v4899 = vadd.f32 %v4639, %v4640
    %4900 = vadd.xlane.f32.xlu0 %v4899
    %v4901 = vpop.xlane.xlu0 %4900
    %v4902 = vadd.f32 %v4641, %v4642
    %4903 = vadd.xlane.f32.xlu0 %v4902
    %v4904 = vpop.xlane.xlu0 %4903
    %v4905 = vadd.f32 %v4643, %v4644
    %4906 = vadd.xlane.f32.xlu0 %v4905
    %v4907 = vpop.xlane.xlu0 %4906
    %v4908 = vadd.f32 %v4645, %v4646
    %4909 = vadd.xlane.f32.xlu0 %v4908
    %v4910 = vpop.xlane.xlu0 %4909
    %v4911 = vadd.f32 %v4647, %v4648
    %4912 = vadd.xlane.f32.xlu0 %v4911
    %v4913 = vpop.xlane.xlu0 %4912
    %v4914 = vadd.f32 %v4649, %v4650
    %4915 = vadd.xlane.f32.xlu0 %v4914
    %v4916 = vpop.xlane.xlu0 %4915
    %v4917 = vadd.f32 %v4651, %v4652
    %4918 = vadd.xlane.f32.xlu0 %v4917
    %v4919 = vpop.xlane.xlu0 %4918
    %v4920 = vadd.f32 %v4653, %v4654
    %4921 = vadd.xlane.f32.xlu0 %v4920
    %v4922 = vpop.xlane.xlu0 %4921
    %v4923 = vadd.f32 %v4655, %v4656
    %4924 = vadd.xlane.f32.xlu0 %v4923
    %v4925 = vpop.xlane.xlu0 %4924
    %v4926 = vadd.f32 %v4657, %v4658
    %4927 = vadd.xlane.f32.xlu0 %v4926
    %v4928 = vpop.xlane.xlu0 %4927
    %v4929 = vadd.f32 %v4659, %v4660
    %4930 = vadd.xlane.f32.xlu0 %v4929
    %v4931 = vpop.xlane.xlu0 %4930
    %v4932 = vadd.f32 %v4661, %v4662
    %4933 = vadd.xlane.f32.xlu0 %v4932
    %v4934 = vpop.xlane.xlu0 %4933
    %v4935 = vadd.f32 %v4663, %v4664
    %4936 = vadd.xlane.f32.xlu0 %v4935
    %v4937 = vpop.xlane.xlu0 %4936
    %v4938 = vadd.f32 %v4665, %v4666
    %4939 = vadd.xlane.f32.xlu0 %v4938
    %v4940 = vpop.xlane.xlu0 %4939
    %v4941 = vadd.f32 %v4667, %v4668
    %4942 = vadd.xlane.f32.xlu0 %v4941
    %v4943 = vpop.xlane.xlu0 %4942
    %v4944 = vadd.f32 %v4669, %v4670
    %4945 = vadd.xlane.f32.xlu0 %v4944
    %v4946 = vpop.xlane.xlu0 %4945
    %v4947 = vadd.f32 %v4671, %v4672
    %4948 = vadd.xlane.f32.xlu0 %v4947
    %v4949 = vpop.xlane.xlu0 %4948
    %v4950 = vadd.f32 %v4673, %v4674
    %4951 = vadd.xlane.f32.xlu0 %v4950
    %v4952 = vpop.xlane.xlu0 %4951
    %v4953 = vadd.f32 %v4675, %v4676
    %4954 = vadd.xlane.f32.xlu0 %v4953
    %v4955 = vpop.xlane.xlu0 %4954
    %v4956 = vadd.f32 %v4677, %v4678
    %4957 = vadd.xlane.f32.xlu0 %v4956
    %v4958 = vpop.xlane.xlu0 %4957
    %v4959 = vadd.f32 %v4679, %v4680
    %4960 = vadd.xlane.f32.xlu0 %v4959
    %v4961 = vpop.xlane.xlu0 %4960
    %v4962 = vadd.f32 %v4681, %v4682
    %4963 = vadd.xlane.f32.xlu0 %v4962
    %v4964 = vpop.xlane.xlu0 %4963
    %v4965 = vadd.f32 %v4683, %v4684
    %4966 = vadd.xlane.f32.xlu0 %v4965
    %v4967 = vpop.xlane.xlu0 %4966
    %v4968 = vadd.f32 %v4685, %v4686
    %4969 = vadd.xlane.f32.xlu0 %v4968
    %v4970 = vpop.xlane.xlu0 %4969
    %v4971 = vadd.f32 %v4687, %v4688
    %4972 = vadd.xlane.f32.xlu0 %v4971
    %v4973 = vpop.xlane.xlu0 %4972
    %v4974 = vadd.f32 %v4689, %v4690
    %4975 = vadd.xlane.f32.xlu0 %v4974
    %v4976 = vpop.xlane.xlu0 %4975
    %v4977 = vadd.f32 %v4691, %v4692
    %4978 = vadd.xlane.f32.xlu0 %v4977
    %v4979 = vpop.xlane.xlu0 %4978
    %v4980 = vadd.f32 %v4693, %v4694
    %4981 = vadd.xlane.f32.xlu0 %v4980
    %v4982 = vpop.xlane.xlu0 %4981
    %v4983 = vadd.f32 %v4695, %v4696
    %4984 = vadd.xlane.f32.xlu0 %v4983
    %v4985 = vpop.xlane.xlu0 %4984
    %v4986 = vadd.f32 %v4697, %v4698
    %4987 = vadd.xlane.f32.xlu0 %v4986
    %v4988 = vpop.xlane.xlu0 %4987
    %v4989 = vadd.f32 %v4699, %v4700
    %4990 = vadd.xlane.f32.xlu0 %v4989
    %v4991 = vpop.xlane.xlu0 %4990
    %v4992 = vadd.f32 %v4701, %v4702
    %4993 = vadd.xlane.f32.xlu0 %v4992
    %v4994 = vpop.xlane.xlu0 %4993
    %v4995 = vadd.f32 %v4703, %v4704
    %4996 = vadd.xlane.f32.xlu0 %v4995
    %v4997 = vpop.xlane.xlu0 %4996
    %v4998 = vadd.f32 %v4705, %v4706
    %4999 = vadd.xlane.f32.xlu0 %v4998
    %v5000 = vpop.xlane.xlu0 %4999
    %v5001 = vadd.f32 %v4707, %v4708
    %5002 = vadd.xlane.f32.xlu0 %v5001
    %v5003 = vpop.xlane.xlu0 %5002
    %v5004 = vadd.f32 %v4709, %v4710
    %5005 = vadd.xlane.f32.xlu0 %v5004
    %v5006 = vpop.xlane.xlu0 %5005
    %v5007 = vadd.f32 %v4711, %v4712
    %5008 = vadd.xlane.f32.xlu0 %v5007
    %v5009 = vpop.xlane.xlu0 %5008
    %v5010 = vadd.f32 %v4713, %v4714
    %5011 = vadd.xlane.f32.xlu0 %v5010
    %v5012 = vpop.xlane.xlu0 %5011
    %v5013 = vadd.f32 %v4715, %v4716
    %5014 = vadd.xlane.f32.xlu0 %v5013
    %v5015 = vpop.xlane.xlu0 %5014
    %v5016 = vadd.f32 %v4717, %v4718
    %5017 = vadd.xlane.f32.xlu0 %v5016
    %v5018 = vpop.xlane.xlu0 %5017
    %v5019 = vadd.f32 %v4719, %v4720
    %5020 = vadd.xlane.f32.xlu0 %v5019
    %v5021 = vpop.xlane.xlu0 %5020
    %v5022 = vadd.f32 %v4721, %v4722
    %5023 = vadd.xlane.f32.xlu0 %v5022
    %v5024 = vpop.xlane.xlu0 %5023
    %v5025 = vadd.f32 %v4723, %v4724
    %5026 = vadd.xlane.f32.xlu0 %v5025
    %v5027 = vpop.xlane.xlu0 %5026
    %v5028 = vadd.f32 %v4725, %v4726
    %5029 = vadd.xlane.f32.xlu0 %v5028
    %v5030 = vpop.xlane.xlu0 %5029
    %v5031 = vadd.f32 %v4727, %v4728
    %5032 = vadd.xlane.f32.xlu0 %v5031
    %v5033 = vpop.xlane.xlu0 %5032
    %v5034 = vadd.f32 %v4729, %v4730
    %5035 = vadd.xlane.f32.xlu0 %v5034
    %v5036 = vpop.xlane.xlu0 %5035
    %v5037 = vadd.f32 %v4731, %v4732
    %5038 = vadd.xlane.f32.xlu0 %v5037
    %v5039 = vpop.xlane.xlu0 %5038
    %v5040 = vadd.f32 %v4733, %v4734
    %5041 = vadd.xlane.f32.xlu0 %v5040
    %v5042 = vpop.xlane.xlu0 %5041
    %v5043 = vadd.f32 %v4735, %v4736
    %5044 = vadd.xlane.f32.xlu0 %v5043
    %v5045 = vpop.xlane.xlu0 %5044
    %v5046 = vadd.f32 %v4737, %v4738
    %5047 = vadd.xlane.f32.xlu0 %v5046
    %v5048 = vpop.xlane.xlu0 %5047
    %v5049 = vadd.f32 %v4739, %v4740
    %5050 = vadd.xlane.f32.xlu0 %v5049
    %v5051 = vpop.xlane.xlu0 %5050
    %v5052 = vadd.f32 %v4741, %v4742
    %5053 = vadd.xlane.f32.xlu0 %v5052
    %v5054 = vpop.xlane.xlu0 %5053
    %v5055 = vadd.f32 %v4743, %v4744
    %5056 = vadd.xlane.f32.xlu0 %v5055
    %v5057 = vpop.xlane.xlu0 %5056
    %v5058 = vadd.f32 %v4745, %v4746
    %5059 = vadd.xlane.f32.xlu0 %v5058
    %v5060 = vpop.xlane.xlu0 %5059
    %v5061 = vadd.f32 %v4747, %v4748
    %5062 = vadd.xlane.f32.xlu0 %v5061
    %v5063 = vpop.xlane.xlu0 %5062
    %v5064 = vadd.f32 %v4749, %v4750
    %5065 = vadd.xlane.f32.xlu0 %v5064
    %v5066 = vpop.xlane.xlu0 %5065
    %v5067 = vadd.f32 %v4751, %v4752
    %5068 = vadd.xlane.f32.xlu0 %v5067
    %v5069 = vpop.xlane.xlu0 %5068
    %v5070 = vadd.f32 %v4753, %v4754
    %5071 = vadd.xlane.f32.xlu0 %v5070
    %v5072 = vpop.xlane.xlu0 %5071
    %v5073 = vadd.f32 %v4755, %v4756
    %5074 = vadd.xlane.f32.xlu0 %v5073
    %v5075 = vpop.xlane.xlu0 %5074
    %v5076 = vadd.f32 %v4757, %v4758
    %5077 = vadd.xlane.f32.xlu0 %v5076
    %v5078 = vpop.xlane.xlu0 %5077
    %v5079 = vadd.f32 %v4759, %v4760
    %5080 = vadd.xlane.f32.xlu0 %v5079
    %v5081 = vpop.xlane.xlu0 %5080
    %v5082 = vadd.f32 %v4761, %v4762
    %5083 = vadd.xlane.f32.xlu0 %v5082
    %v5084 = vpop.xlane.xlu0 %5083
    %v5085 = vadd.f32 %v4763, %v4764
    %5086 = vadd.xlane.f32.xlu0 %v5085
    %v5087 = vpop.xlane.xlu0 %5086
    %v5088 = vadd.f32 %v4765, %v4766
    %5089 = vadd.xlane.f32.xlu0 %v5088
    %v5090 = vpop.xlane.xlu0 %5089
    %v5091 = vadd.f32 %v4767, %v4768
    %5092 = vadd.xlane.f32.xlu0 %v5091
    %v5093 = vpop.xlane.xlu0 %5092
    %v5094 = vadd.f32 %v4769, %v4770
    %5095 = vadd.xlane.f32.xlu0 %v5094
    %v5096 = vpop.xlane.xlu0 %5095
    %v5097 = vadd.f32 %v4771, %v4772
    %5098 = vadd.xlane.f32.xlu0 %v5097
    %v5099 = vpop.xlane.xlu0 %5098
    %v5100 = vadd.f32 %v4773, %v4774
    %5101 = vadd.xlane.f32.xlu0 %v5100
    %v5102 = vpop.xlane.xlu0 %5101
    %v5103 = vadd.f32 %v4775, %v4776
    %5104 = vadd.xlane.f32.xlu0 %v5103
    %v5105 = vpop.xlane.xlu0 %5104
    %v5106 = vadd.f32 %v4777, %v4778
    %5107 = vadd.xlane.f32.xlu0 %v5106
    %v5108 = vpop.xlane.xlu0 %5107
    %v5109 = vadd.f32 %v4779, %v4780
    %5110 = vadd.xlane.f32.xlu0 %v5109
    %v5111 = vpop.xlane.xlu0 %5110
    %v5112 = vadd.f32 %v4781, %v4782
    %5113 = vadd.xlane.f32.xlu0 %v5112
    %v5114 = vpop.xlane.xlu0 %5113
    %v5115 = vadd.f32 %v4783, %v4784
    %5116 = vadd.xlane.f32.xlu0 %v5115
    %v5117 = vpop.xlane.xlu0 %5116
    %v5118 = vadd.f32 %v4785, %v4786
    %5119 = vadd.xlane.f32.xlu0 %v5118
    %v5120 = vpop.xlane.xlu0 %5119
    %v5121 = vadd.f32 %v4787, %v4788
    %5122 = vadd.xlane.f32.xlu0 %v5121
    %v5123 = vpop.xlane.xlu0 %5122
    %v5124 = vadd.f32 %v4789, %v4790
    %5125 = vadd.xlane.f32.xlu0 %v5124
    %v5126 = vpop.xlane.xlu0 %5125
    %v5127 = vadd.f32 %v4791, %v4792
    %5128 = vadd.xlane.f32.xlu0 %v5127
    %v5129 = vpop.xlane.xlu0 %5128
    %v5130 = vadd.f32 %v4793, %v4794
    %5131 = vadd.xlane.f32.xlu0 %v5130
    %v5132 = vpop.xlane.xlu0 %5131
    %v5133 = vadd.f32 %v4795, %v4796
    %5134 = vadd.xlane.f32.xlu0 %v5133
    %v5135 = vpop.xlane.xlu0 %5134
    %v5136 = vadd.f32 %v4797, %v4798
    %5137 = vadd.xlane.f32.xlu0 %v5136
    %v5138 = vpop.xlane.xlu0 %5137
    %v5139 = vadd.f32 %v4799, %v4800
    %5140 = vadd.xlane.f32.xlu0 %v5139
    %v5141 = vpop.xlane.xlu0 %5140
    %v5142 = vadd.f32 %v4801, %v4802
    %5143 = vadd.xlane.f32.xlu0 %v5142
    %v5144 = vpop.xlane.xlu0 %5143
    %v5145 = vadd.f32 %v4803, %v4804
    %5146 = vadd.xlane.f32.xlu0 %v5145
    %v5147 = vpop.xlane.xlu0 %5146
    %v5148 = vadd.f32 %v4805, %v4806
    %5149 = vadd.xlane.f32.xlu0 %v5148
    %v5150 = vpop.xlane.xlu0 %5149
    %v5151 = vadd.f32 %v4807, %v4808
    %5152 = vadd.xlane.f32.xlu0 %v5151
    %v5153 = vpop.xlane.xlu0 %5152
    %v5154 = vadd.f32 %v4809, %v4810
    %5155 = vadd.xlane.f32.xlu0 %v5154
    %v5156 = vpop.xlane.xlu0 %5155
    %v5157 = vadd.f32 %v4811, %v4812
    %5158 = vadd.xlane.f32.xlu0 %v5157
    %v5159 = vpop.xlane.xlu0 %5158
    %v5160 = vadd.f32 %v4813, %v4814
    %5161 = vadd.xlane.f32.xlu0 %v5160
    %v5162 = vpop.xlane.xlu0 %5161
    %v5163 = vadd.f32 %v4815, %v4816
    %5164 = vadd.xlane.f32.xlu0 %v5163
    %v5165 = vpop.xlane.xlu0 %5164
    %v5166 = vadd.f32 %v4817, %v4818
    %5167 = vadd.xlane.f32.xlu0 %v5166
    %v5168 = vpop.xlane.xlu0 %5167
    %v5169 = vadd.f32 %v4819, %v4820
    %5170 = vadd.xlane.f32.xlu0 %v5169
    %v5171 = vpop.xlane.xlu0 %5170
    %v5172 = vadd.f32 %v4821, %v4822
    %5173 = vadd.xlane.f32.xlu0 %v5172
    %v5174 = vpop.xlane.xlu0 %5173
    %v5175 = vadd.f32 %v4823, %v4824
    %5176 = vadd.xlane.f32.xlu0 %v5175
    %v5177 = vpop.xlane.xlu0 %5176
    %v5178 = vadd.f32 %v4825, %v4826
    %5179 = vadd.xlane.f32.xlu0 %v5178
    %v5180 = vpop.xlane.xlu0 %5179
    %v5181 = vadd.f32 %v4827, %v4828
    %5182 = vadd.xlane.f32.xlu0 %v5181
    %v5183 = vpop.xlane.xlu0 %5182
    %v5184 = vadd.f32 %v4829, %v4830
    %5185 = vadd.xlane.f32.xlu0 %v5184
    %v5186 = vpop.xlane.xlu0 %5185
    %v5187 = vadd.f32 %v4831, %v4832
    %5188 = vadd.xlane.f32.xlu0 %v5187
    %v5189 = vpop.xlane.xlu0 %5188
    %v5190 = vadd.f32 %v4833, %v4834
    %5191 = vadd.xlane.f32.xlu0 %v5190
    %v5192 = vpop.xlane.xlu0 %5191
    %v5193 = vadd.f32 %v4835, %v4836
    %5194 = vadd.xlane.f32.xlu0 %v5193
    %v5195 = vpop.xlane.xlu0 %5194
    %v5196 = vadd.f32 %v4837, %v4838
    %5197 = vadd.xlane.f32.xlu0 %v5196
    %v5198 = vpop.xlane.xlu0 %5197
    %v5199 = vadd.f32 %v4839, %v4840
    %5200 = vadd.xlane.f32.xlu0 %v5199
    %v5201 = vpop.xlane.xlu0 %5200
    %v5202 = vadd.f32 %v4841, %v4842
    %5203 = vadd.xlane.f32.xlu0 %v5202
    %v5204 = vpop.xlane.xlu0 %5203
    %v5205 = vadd.f32 %v4843, %v4844
    %5206 = vadd.xlane.f32.xlu0 %v5205
    %v5207 = vpop.xlane.xlu0 %5206
    %v5208 = vadd.f32 %v4845, %v4846
    %5209 = vadd.xlane.f32.xlu0 %v5208
    %v5210 = vpop.xlane.xlu0 %5209
    %v5211 = vadd.f32 %v4847, %v4848
    %5212 = vadd.xlane.f32.xlu0 %v5211
    %v5213 = vpop.xlane.xlu0 %5212
    %v5214 = vadd.f32 %v4849, %v4850
    %5215 = vadd.xlane.f32.xlu0 %v5214
    %v5216 = vpop.xlane.xlu0 %5215
    %v5217 = vadd.f32 %v4851, %v4852
    %5218 = vadd.xlane.f32.xlu0 %v5217
    %v5219 = vpop.xlane.xlu0 %5218
    %v5220 = vadd.f32 %v4853, %v4854
    %5221 = vadd.xlane.f32.xlu0 %v5220
    %v5222 = vpop.xlane.xlu0 %5221
    %v5223 = vadd.f32 %v4855, %v4856
    %5224 = vadd.xlane.f32.xlu0 %v5223
    %v5225 = vpop.xlane.xlu0 %5224
    %v5226 = vadd.f32 %v4857, %v4858
    %5227 = vadd.xlane.f32.xlu0 %v5226
    %v5228 = vpop.xlane.xlu0 %5227
    %v5229 = vadd.f32 %v4859, %v4860
    %5230 = vadd.xlane.f32.xlu0 %v5229
    %v5231 = vpop.xlane.xlu0 %5230
    %v5232 = vadd.f32 %v4861, %v4862
    %5233 = vadd.xlane.f32.xlu0 %v5232
    %v5234 = vpop.xlane.xlu0 %5233
    %v5235 = vadd.f32 %v4863, %v4864
    %5236 = vadd.xlane.f32.xlu0 %v5235
    %v5237 = vpop.xlane.xlu0 %5236
    %v5238 = vadd.f32 %v4865, %v4866
    %5239 = vadd.xlane.f32.xlu0 %v5238
    %v5240 = vpop.xlane.xlu0 %5239
    %v5241 = vadd.f32 %v4867, %v4868
    %5242 = vadd.xlane.f32.xlu0 %v5241
    %v5243 = vpop.xlane.xlu0 %5242
    %v5244 = vadd.f32 %v4869, %v4870
    %5245 = vadd.xlane.f32.xlu0 %v5244
    %v5246 = vpop.xlane.xlu0 %5245
    %v5247 = vadd.f32 %v4871, %v4872
    %5248 = vadd.xlane.f32.xlu0 %v5247
    %v5249 = vpop.xlane.xlu0 %5248
    %v5250 = vadd.f32 %v4873, %v4874
    %5251 = vadd.xlane.f32.xlu0 %v5250
    %v5252 = vpop.xlane.xlu0 %5251
    %v5253 = vadd.f32 %v4875, %v4876
    %5254 = vadd.xlane.f32.xlu0 %v5253
    %v5255 = vpop.xlane.xlu0 %5254
    %v5256 = vadd.f32 %v4877, %v4878
    %5257 = vadd.xlane.f32.xlu0 %v5256
    %v5258 = vpop.xlane.xlu0 %5257
    %v5259 = vadd.f32 %v4879, %v4880
    %5260 = vadd.xlane.f32.xlu0 %v5259
    %v5261 = vpop.xlane.xlu0 %5260
    %v5262 = vadd.f32 %v4881, %v4882
    %5263 = vadd.xlane.f32.xlu0 %v5262
    %v5264 = vpop.xlane.xlu0 %5263
    %v5265 = vadd.f32 %v4883, %v4884
    %5266 = vadd.xlane.f32.xlu0 %v5265
    %v5267 = vpop.xlane.xlu0 %5266
    %v5268 = vadd.f32 %v4885, %v4886
    %5269 = vadd.xlane.f32.xlu0 %v5268
    %v5270 = vpop.xlane.xlu0 %5269
    %v5271 = vmul.f32 %v4889, 0.00390625
    %v5272 = vmul.f32 %v4892, 0.00390625
    %v5273 = vmul.f32 %v4895, 0.00390625
    %v5274 = vmul.f32 %v4898, 0.00390625
    %v5275 = vmul.f32 %v4901, 0.00390625
    %v5276 = vmul.f32 %v4904, 0.00390625
    %v5277 = vmul.f32 %v4907, 0.00390625
    %v5278 = vmul.f32 %v4910, 0.00390625
    %v5279 = vmul.f32 %v4913, 0.00390625
    %v5280 = vmul.f32 %v4916, 0.00390625
    %v5281 = vmul.f32 %v4919, 0.00390625
    %v5282 = vmul.f32 %v4922, 0.00390625
    %v5283 = vmul.f32 %v4925, 0.00390625
    %v5284 = vmul.f32 %v4928, 0.00390625
    %v5285 = vmul.f32 %v4931, 0.00390625
    %v5286 = vmul.f32 %v4934, 0.00390625
    %v5287 = vmul.f32 %v4937, 0.00390625
    %v5288 = vmul.f32 %v4940, 0.00390625
    %v5289 = vmul.f32 %v4943, 0.00390625
    %v5290 = vmul.f32 %v4946, 0.00390625
    %v5291 = vmul.f32 %v4949, 0.00390625
    %v5292 = vmul.f32 %v4952, 0.00390625
    %v5293 = vmul.f32 %v4955, 0.00390625
    %v5294 = vmul.f32 %v4958, 0.00390625
    %v5295 = vmul.f32 %v4961, 0.00390625
    %v5296 = vmul.f32 %v4964, 0.00390625
    %v5297 = vmul.f32 %v4967, 0.00390625
    %v5298 = vmul.f32 %v4970, 0.00390625
    %v5299 = vmul.f32 %v4973, 0.00390625
    %v5300 = vmul.f32 %v4976, 0.00390625
    %v5301 = vmul.f32 %v4979, 0.00390625
    %v5302 = vmul.f32 %v4982, 0.00390625
    %v5303 = vmul.f32 %v4985, 0.00390625
    %v5304 = vmul.f32 %v4988, 0.00390625
    %v5305 = vmul.f32 %v4991, 0.00390625
    %v5306 = vmul.f32 %v4994, 0.00390625
    %v5307 = vmul.f32 %v4997, 0.00390625
    %v5308 = vmul.f32 %v5000, 0.00390625
    %v5309 = vmul.f32 %v5003, 0.00390625
    %v5310 = vmul.f32 %v5006, 0.00390625
    %v5311 = vmul.f32 %v5009, 0.00390625
    %v5312 = vmul.f32 %v5012, 0.00390625
    %v5313 = vmul.f32 %v5015, 0.00390625
    %v5314 = vmul.f32 %v5018, 0.00390625
    %v5315 = vmul.f32 %v5021, 0.00390625
    %v5316 = vmul.f32 %v5024, 0.00390625
    %v5317 = vmul.f32 %v5027, 0.00390625
    %v5318 = vmul.f32 %v5030, 0.00390625
    %v5319 = vmul.f32 %v5033, 0.00390625
    %v5320 = vmul.f32 %v5036, 0.00390625
    %v5321 = vmul.f32 %v5039, 0.00390625
    %v5322 = vmul.f32 %v5042, 0.00390625
    %v5323 = vmul.f32 %v5045, 0.00390625
    %v5324 = vmul.f32 %v5048, 0.00390625
    %v5325 = vmul.f32 %v5051, 0.00390625
    %v5326 = vmul.f32 %v5054, 0.00390625
    %v5327 = vmul.f32 %v5057, 0.00390625
    %v5328 = vmul.f32 %v5060, 0.00390625
    %v5329 = vmul.f32 %v5063, 0.00390625
    %v5330 = vmul.f32 %v5066, 0.00390625
    %v5331 = vmul.f32 %v5069, 0.00390625
    %v5332 = vmul.f32 %v5072, 0.00390625
    %v5333 = vmul.f32 %v5075, 0.00390625
    %v5334 = vmul.f32 %v5078, 0.00390625
    %v5335 = vmul.f32 %v5081, 0.00390625
    %v5336 = vmul.f32 %v5084, 0.00390625
    %v5337 = vmul.f32 %v5087, 0.00390625
    %v5338 = vmul.f32 %v5090, 0.00390625
    %v5339 = vmul.f32 %v5093, 0.00390625
    %v5340 = vmul.f32 %v5096, 0.00390625
    %v5341 = vmul.f32 %v5099, 0.00390625
    %v5342 = vmul.f32 %v5102, 0.00390625
    %v5343 = vmul.f32 %v5105, 0.00390625
    %v5344 = vmul.f32 %v5108, 0.00390625
    %v5345 = vmul.f32 %v5111, 0.00390625
    %v5346 = vmul.f32 %v5114, 0.00390625
    %v5347 = vmul.f32 %v5117, 0.00390625
    %v5348 = vmul.f32 %v5120, 0.00390625
    %v5349 = vmul.f32 %v5123, 0.00390625
    %v5350 = vmul.f32 %v5126, 0.00390625
    %v5351 = vmul.f32 %v5129, 0.00390625
    %v5352 = vmul.f32 %v5132, 0.00390625
    %v5353 = vmul.f32 %v5135, 0.00390625
    %v5354 = vmul.f32 %v5138, 0.00390625
    %v5355 = vmul.f32 %v5141, 0.00390625
    %v5356 = vmul.f32 %v5144, 0.00390625
    %v5357 = vmul.f32 %v5147, 0.00390625
    %v5358 = vmul.f32 %v5150, 0.00390625
    %v5359 = vmul.f32 %v5153, 0.00390625
    %v5360 = vmul.f32 %v5156, 0.00390625
    %v5361 = vmul.f32 %v5159, 0.00390625
    %v5362 = vmul.f32 %v5162, 0.00390625
    %v5363 = vmul.f32 %v5165, 0.00390625
    %v5364 = vmul.f32 %v5168, 0.00390625
    %v5365 = vmul.f32 %v5171, 0.00390625
    %v5366 = vmul.f32 %v5174, 0.00390625
    %v5367 = vmul.f32 %v5177, 0.00390625
    %v5368 = vmul.f32 %v5180, 0.00390625
    %v5369 = vmul.f32 %v5183, 0.00390625
    %v5370 = vmul.f32 %v5186, 0.00390625
    %v5371 = vmul.f32 %v5189, 0.00390625
    %v5372 = vmul.f32 %v5192, 0.00390625
    %v5373 = vmul.f32 %v5195, 0.00390625
    %v5374 = vmul.f32 %v5198, 0.00390625
    %v5375 = vmul.f32 %v5201, 0.00390625
    %v5376 = vmul.f32 %v5204, 0.00390625
    %v5377 = vmul.f32 %v5207, 0.00390625
    %v5378 = vmul.f32 %v5210, 0.00390625
    %v5379 = vmul.f32 %v5213, 0.00390625
    %v5380 = vmul.f32 %v5216, 0.00390625
    %v5381 = vmul.f32 %v5219, 0.00390625
    %v5382 = vmul.f32 %v5222, 0.00390625
    %v5383 = vmul.f32 %v5225, 0.00390625
    %v5384 = vmul.f32 %v5228, 0.00390625
    %v5385 = vmul.f32 %v5231, 0.00390625
    %v5386 = vmul.f32 %v5234, 0.00390625
    %v5387 = vmul.f32 %v5237, 0.00390625
    %v5388 = vmul.f32 %v5240, 0.00390625
    %v5389 = vmul.f32 %v5243, 0.00390625
    %v5390 = vmul.f32 %v5246, 0.00390625
    %v5391 = vmul.f32 %v5249, 0.00390625
    %v5392 = vmul.f32 %v5252, 0.00390625
    %v5393 = vmul.f32 %v5255, 0.00390625
    %v5394 = vmul.f32 %v5258, 0.00390625
    %v5395 = vmul.f32 %v5261, 0.00390625
    %v5396 = vmul.f32 %v5264, 0.00390625
    %v5397 = vmul.f32 %v5267, 0.00390625
    %v5398 = vmul.f32 %v5270, 0.00390625
    %v5399 = vld [vmem:[%s1] sm:$0xff]
    %v5401 = vlaneseq
    %v5402 = vshrl.u32 %v5401, 7
    %v5403 = vsub.s32 0, %v5402
    %v5404 = vrot.slane %v5399, %v5403
    %5406 = vbcast.lane.b32.xlu0 %v5404, 256
    %v5407 = vpop.permute.xlu0 %5406
    %s5409 = sor.u32 256, 8
    %5410 = vbcast.lane.b32.xlu0 %v5404, %s5409
    %v5411 = vpop.permute.xlu0 %5410
    %s5413 = sor.u32 256, 16
    %5414 = vbcast.lane.b32.xlu0 %v5404, %s5413
    %v5415 = vpop.permute.xlu0 %5414
    %s5417 = sor.u32 256, 24
    %5418 = vbcast.lane.b32.xlu0 %v5404, %s5417
    %v5419 = vpop.permute.xlu0 %5418
    %s5421 = sor.u32 256, 32
    %5422 = vbcast.lane.b32.xlu0 %v5404, %s5421
    %v5423 = vpop.permute.xlu0 %5422
    %s5425 = sor.u32 256, 40
    %5426 = vbcast.lane.b32.xlu0 %v5404, %s5425
    %v5427 = vpop.permute.xlu0 %5426
    %s5429 = sor.u32 256, 48
    %5430 = vbcast.lane.b32.xlu0 %v5404, %s5429
    %v5431 = vpop.permute.xlu0 %5430
    %s5433 = sor.u32 256, 56
    %5434 = vbcast.lane.b32.xlu0 %v5404, %s5433
    %v5435 = vpop.permute.xlu0 %5434
    %s5437 = sor.u32 256, 64
    %5438 = vbcast.lane.b32.xlu0 %v5404, %s5437
    %v5439 = vpop.permute.xlu0 %5438
    %s5441 = sor.u32 256, 72
    %5442 = vbcast.lane.b32.xlu0 %v5404, %s5441
    %v5443 = vpop.permute.xlu0 %5442
    %s5445 = sor.u32 256, 80
    %5446 = vbcast.lane.b32.xlu0 %v5404, %s5445
    %v5447 = vpop.permute.xlu0 %5446
    %s5449 = sor.u32 256, 88
    %5450 = vbcast.lane.b32.xlu0 %v5404, %s5449
    %v5451 = vpop.permute.xlu0 %5450
    %s5453 = sor.u32 256, 96
    %5454 = vbcast.lane.b32.xlu0 %v5404, %s5453
    %v5455 = vpop.permute.xlu0 %5454
    %s5457 = sor.u32 256, 104
    %5458 = vbcast.lane.b32.xlu0 %v5404, %s5457
    %v5459 = vpop.permute.xlu0 %5458
    %s5461 = sor.u32 256, 112
    %5462 = vbcast.lane.b32.xlu0 %v5404, %s5461
    %v5463 = vpop.permute.xlu0 %5462
    %s5465 = sor.u32 256, 120
    %5466 = vbcast.lane.b32.xlu0 %v5404, %s5465
    %v5467 = vpop.permute.xlu0 %5466
    %v5468 = vlaneseq
    %v5469 = vshrl.u32 %v5468, 7
    %v5470 = vsub.s32 1, %v5469
    %v5471 = vrot.slane %v5399, %v5470
    %5473 = vbcast.lane.b32.xlu0 %v5471, 256
    %v5474 = vpop.permute.xlu0 %5473
    %s5476 = sor.u32 256, 8
    %5477 = vbcast.lane.b32.xlu0 %v5471, %s5476
    %v5478 = vpop.permute.xlu0 %5477
    %s5480 = sor.u32 256, 16
    %5481 = vbcast.lane.b32.xlu0 %v5471, %s5480
    %v5482 = vpop.permute.xlu0 %5481
    %s5484 = sor.u32 256, 24
    %5485 = vbcast.lane.b32.xlu0 %v5471, %s5484
    %v5486 = vpop.permute.xlu0 %5485
    %s5488 = sor.u32 256, 32
    %5489 = vbcast.lane.b32.xlu0 %v5471, %s5488
    %v5490 = vpop.permute.xlu0 %5489
    %s5492 = sor.u32 256, 40
    %5493 = vbcast.lane.b32.xlu0 %v5471, %s5492
    %v5494 = vpop.permute.xlu0 %5493
    %s5496 = sor.u32 256, 48
    %5497 = vbcast.lane.b32.xlu0 %v5471, %s5496
    %v5498 = vpop.permute.xlu0 %5497
    %s5500 = sor.u32 256, 56
    %5501 = vbcast.lane.b32.xlu0 %v5471, %s5500
    %v5502 = vpop.permute.xlu0 %5501
    %s5504 = sor.u32 256, 64
    %5505 = vbcast.lane.b32.xlu0 %v5471, %s5504
    %v5506 = vpop.permute.xlu0 %5505
    %s5508 = sor.u32 256, 72
    %5509 = vbcast.lane.b32.xlu0 %v5471, %s5508
    %v5510 = vpop.permute.xlu0 %5509
    %s5512 = sor.u32 256, 80
    %5513 = vbcast.lane.b32.xlu0 %v5471, %s5512
    %v5514 = vpop.permute.xlu0 %5513
    %s5516 = sor.u32 256, 88
    %5517 = vbcast.lane.b32.xlu0 %v5471, %s5516
    %v5518 = vpop.permute.xlu0 %5517
    %s5520 = sor.u32 256, 96
    %5521 = vbcast.lane.b32.xlu0 %v5471, %s5520
    %v5522 = vpop.permute.xlu0 %5521
    %s5524 = sor.u32 256, 104
    %5525 = vbcast.lane.b32.xlu0 %v5471, %s5524
    %v5526 = vpop.permute.xlu0 %5525
    %s5528 = sor.u32 256, 112
    %5529 = vbcast.lane.b32.xlu0 %v5471, %s5528
    %v5530 = vpop.permute.xlu0 %5529
    %s5532 = sor.u32 256, 120
    %5533 = vbcast.lane.b32.xlu0 %v5471, %s5532
    %v5534 = vpop.permute.xlu0 %5533
    %v5535 = vlaneseq
    %v5536 = vshrl.u32 %v5535, 7
    %v5537 = vsub.s32 2, %v5536
    %v5538 = vrot.slane %v5399, %v5537
    %5540 = vbcast.lane.b32.xlu0 %v5538, 256
    %v5541 = vpop.permute.xlu0 %5540
    %s5543 = sor.u32 256, 8
    %5544 = vbcast.lane.b32.xlu0 %v5538, %s5543
    %v5545 = vpop.permute.xlu0 %5544
    %s5547 = sor.u32 256, 16
    %5548 = vbcast.lane.b32.xlu0 %v5538, %s5547
    %v5549 = vpop.permute.xlu0 %5548
    %s5551 = sor.u32 256, 24
    %5552 = vbcast.lane.b32.xlu0 %v5538, %s5551
    %v5553 = vpop.permute.xlu0 %5552
    %s5555 = sor.u32 256, 32
    %5556 = vbcast.lane.b32.xlu0 %v5538, %s5555
    %v5557 = vpop.permute.xlu0 %5556
    %s5559 = sor.u32 256, 40
    %5560 = vbcast.lane.b32.xlu0 %v5538, %s5559
    %v5561 = vpop.permute.xlu0 %5560
    %s5563 = sor.u32 256, 48
    %5564 = vbcast.lane.b32.xlu0 %v5538, %s5563
    %v5565 = vpop.permute.xlu0 %5564
    %s5567 = sor.u32 256, 56
    %5568 = vbcast.lane.b32.xlu0 %v5538, %s5567
    %v5569 = vpop.permute.xlu0 %5568
    %s5571 = sor.u32 256, 64
    %5572 = vbcast.lane.b32.xlu0 %v5538, %s5571
    %v5573 = vpop.permute.xlu0 %5572
    %s5575 = sor.u32 256, 72
    %5576 = vbcast.lane.b32.xlu0 %v5538, %s5575
    %v5577 = vpop.permute.xlu0 %5576
    %s5579 = sor.u32 256, 80
    %5580 = vbcast.lane.b32.xlu0 %v5538, %s5579
    %v5581 = vpop.permute.xlu0 %5580
    %s5583 = sor.u32 256, 88
    %5584 = vbcast.lane.b32.xlu0 %v5538, %s5583
    %v5585 = vpop.permute.xlu0 %5584
    %s5587 = sor.u32 256, 96
    %5588 = vbcast.lane.b32.xlu0 %v5538, %s5587
    %v5589 = vpop.permute.xlu0 %5588
    %s5591 = sor.u32 256, 104
    %5592 = vbcast.lane.b32.xlu0 %v5538, %s5591
    %v5593 = vpop.permute.xlu0 %5592
    %s5595 = sor.u32 256, 112
    %5596 = vbcast.lane.b32.xlu0 %v5538, %s5595
    %v5597 = vpop.permute.xlu0 %5596
    %s5599 = sor.u32 256, 120
    %5600 = vbcast.lane.b32.xlu0 %v5538, %s5599
    %v5601 = vpop.permute.xlu0 %5600
    %v5602 = vlaneseq
    %v5603 = vshrl.u32 %v5602, 7
    %v5604 = vsub.s32 3, %v5603
    %v5605 = vrot.slane %v5399, %v5604
    %5607 = vbcast.lane.b32.xlu0 %v5605, 256
    %v5608 = vpop.permute.xlu0 %5607
    %s5610 = sor.u32 256, 8
    %5611 = vbcast.lane.b32.xlu0 %v5605, %s5610
    %v5612 = vpop.permute.xlu0 %5611
    %s5614 = sor.u32 256, 16
    %5615 = vbcast.lane.b32.xlu0 %v5605, %s5614
    %v5616 = vpop.permute.xlu0 %5615
    %s5618 = sor.u32 256, 24
    %5619 = vbcast.lane.b32.xlu0 %v5605, %s5618
    %v5620 = vpop.permute.xlu0 %5619
    %s5622 = sor.u32 256, 32
    %5623 = vbcast.lane.b32.xlu0 %v5605, %s5622
    %v5624 = vpop.permute.xlu0 %5623
    %s5626 = sor.u32 256, 40
    %5627 = vbcast.lane.b32.xlu0 %v5605, %s5626
    %v5628 = vpop.permute.xlu0 %5627
    %s5630 = sor.u32 256, 48
    %5631 = vbcast.lane.b32.xlu0 %v5605, %s5630
    %v5632 = vpop.permute.xlu0 %5631
    %s5634 = sor.u32 256, 56
    %5635 = vbcast.lane.b32.xlu0 %v5605, %s5634
    %v5636 = vpop.permute.xlu0 %5635
    %s5638 = sor.u32 256, 64
    %5639 = vbcast.lane.b32.xlu0 %v5605, %s5638
    %v5640 = vpop.permute.xlu0 %5639
    %s5642 = sor.u32 256, 72
    %5643 = vbcast.lane.b32.xlu0 %v5605, %s5642
    %v5644 = vpop.permute.xlu0 %5643
    %s5646 = sor.u32 256, 80
    %5647 = vbcast.lane.b32.xlu0 %v5605, %s5646
    %v5648 = vpop.permute.xlu0 %5647
    %s5650 = sor.u32 256, 88
    %5651 = vbcast.lane.b32.xlu0 %v5605, %s5650
    %v5652 = vpop.permute.xlu0 %5651
    %s5654 = sor.u32 256, 96
    %5655 = vbcast.lane.b32.xlu0 %v5605, %s5654
    %v5656 = vpop.permute.xlu0 %5655
    %s5658 = sor.u32 256, 104
    %5659 = vbcast.lane.b32.xlu0 %v5605, %s5658
    %v5660 = vpop.permute.xlu0 %5659
    %s5662 = sor.u32 256, 112
    %5663 = vbcast.lane.b32.xlu0 %v5605, %s5662
    %v5664 = vpop.permute.xlu0 %5663
    %s5666 = sor.u32 256, 120
    %5667 = vbcast.lane.b32.xlu0 %v5605, %s5666
    %v5668 = vpop.permute.xlu0 %5667
    %v5669 = vlaneseq
    %v5670 = vshrl.u32 %v5669, 7
    %v5671 = vsub.s32 4, %v5670
    %v5672 = vrot.slane %v5399, %v5671
    %5674 = vbcast.lane.b32.xlu0 %v5672, 256
    %v5675 = vpop.permute.xlu0 %5674
    %s5677 = sor.u32 256, 8
    %5678 = vbcast.lane.b32.xlu0 %v5672, %s5677
    %v5679 = vpop.permute.xlu0 %5678
    %s5681 = sor.u32 256, 16
    %5682 = vbcast.lane.b32.xlu0 %v5672, %s5681
    %v5683 = vpop.permute.xlu0 %5682
    %s5685 = sor.u32 256, 24
    %5686 = vbcast.lane.b32.xlu0 %v5672, %s5685
    %v5687 = vpop.permute.xlu0 %5686
    %s5689 = sor.u32 256, 32
    %5690 = vbcast.lane.b32.xlu0 %v5672, %s5689
    %v5691 = vpop.permute.xlu0 %5690
    %s5693 = sor.u32 256, 40
    %5694 = vbcast.lane.b32.xlu0 %v5672, %s5693
    %v5695 = vpop.permute.xlu0 %5694
    %s5697 = sor.u32 256, 48
    %5698 = vbcast.lane.b32.xlu0 %v5672, %s5697
    %v5699 = vpop.permute.xlu0 %5698
    %s5701 = sor.u32 256, 56
    %5702 = vbcast.lane.b32.xlu0 %v5672, %s5701
    %v5703 = vpop.permute.xlu0 %5702
    %s5705 = sor.u32 256, 64
    %5706 = vbcast.lane.b32.xlu0 %v5672, %s5705
    %v5707 = vpop.permute.xlu0 %5706
    %s5709 = sor.u32 256, 72
    %5710 = vbcast.lane.b32.xlu0 %v5672, %s5709
    %v5711 = vpop.permute.xlu0 %5710
    %s5713 = sor.u32 256, 80
    %5714 = vbcast.lane.b32.xlu0 %v5672, %s5713
    %v5715 = vpop.permute.xlu0 %5714
    %s5717 = sor.u32 256, 88
    %5718 = vbcast.lane.b32.xlu0 %v5672, %s5717
    %v5719 = vpop.permute.xlu0 %5718
    %s5721 = sor.u32 256, 96
    %5722 = vbcast.lane.b32.xlu0 %v5672, %s5721
    %v5723 = vpop.permute.xlu0 %5722
    %s5725 = sor.u32 256, 104
    %5726 = vbcast.lane.b32.xlu0 %v5672, %s5725
    %v5727 = vpop.permute.xlu0 %5726
    %s5729 = sor.u32 256, 112
    %5730 = vbcast.lane.b32.xlu0 %v5672, %s5729
    %v5731 = vpop.permute.xlu0 %5730
    %s5733 = sor.u32 256, 120
    %5734 = vbcast.lane.b32.xlu0 %v5672, %s5733
    %v5735 = vpop.permute.xlu0 %5734
    %v5736 = vlaneseq
    %v5737 = vshrl.u32 %v5736, 7
    %v5738 = vsub.s32 5, %v5737
    %v5739 = vrot.slane %v5399, %v5738
    %5741 = vbcast.lane.b32.xlu0 %v5739, 256
    %v5742 = vpop.permute.xlu0 %5741
    %s5744 = sor.u32 256, 8
    %5745 = vbcast.lane.b32.xlu0 %v5739, %s5744
    %v5746 = vpop.permute.xlu0 %5745
    %s5748 = sor.u32 256, 16
    %5749 = vbcast.lane.b32.xlu0 %v5739, %s5748
    %v5750 = vpop.permute.xlu0 %5749
    %s5752 = sor.u32 256, 24
    %5753 = vbcast.lane.b32.xlu0 %v5739, %s5752
    %v5754 = vpop.permute.xlu0 %5753
    %s5756 = sor.u32 256, 32
    %5757 = vbcast.lane.b32.xlu0 %v5739, %s5756
    %v5758 = vpop.permute.xlu0 %5757
    %s5760 = sor.u32 256, 40
    %5761 = vbcast.lane.b32.xlu0 %v5739, %s5760
    %v5762 = vpop.permute.xlu0 %5761
    %s5764 = sor.u32 256, 48
    %5765 = vbcast.lane.b32.xlu0 %v5739, %s5764
    %v5766 = vpop.permute.xlu0 %5765
    %s5768 = sor.u32 256, 56
    %5769 = vbcast.lane.b32.xlu0 %v5739, %s5768
    %v5770 = vpop.permute.xlu0 %5769
    %s5772 = sor.u32 256, 64
    %5773 = vbcast.lane.b32.xlu0 %v5739, %s5772
    %v5774 = vpop.permute.xlu0 %5773
    %s5776 = sor.u32 256, 72
    %5777 = vbcast.lane.b32.xlu0 %v5739, %s5776
    %v5778 = vpop.permute.xlu0 %5777
    %s5780 = sor.u32 256, 80
    %5781 = vbcast.lane.b32.xlu0 %v5739, %s5780
    %v5782 = vpop.permute.xlu0 %5781
    %s5784 = sor.u32 256, 88
    %5785 = vbcast.lane.b32.xlu0 %v5739, %s5784
    %v5786 = vpop.permute.xlu0 %5785
    %s5788 = sor.u32 256, 96
    %5789 = vbcast.lane.b32.xlu0 %v5739, %s5788
    %v5790 = vpop.permute.xlu0 %5789
    %s5792 = sor.u32 256, 104
    %5793 = vbcast.lane.b32.xlu0 %v5739, %s5792
    %v5794 = vpop.permute.xlu0 %5793
    %s5796 = sor.u32 256, 112
    %5797 = vbcast.lane.b32.xlu0 %v5739, %s5796
    %v5798 = vpop.permute.xlu0 %5797
    %s5800 = sor.u32 256, 120
    %5801 = vbcast.lane.b32.xlu0 %v5739, %s5800
    %v5802 = vpop.permute.xlu0 %5801
    %v5803 = vlaneseq
    %v5804 = vshrl.u32 %v5803, 7
    %v5805 = vsub.s32 6, %v5804
    %v5806 = vrot.slane %v5399, %v5805
    %5808 = vbcast.lane.b32.xlu0 %v5806, 256
    %v5809 = vpop.permute.xlu0 %5808
    %s5811 = sor.u32 256, 8
    %5812 = vbcast.lane.b32.xlu0 %v5806, %s5811
    %v5813 = vpop.permute.xlu0 %5812
    %s5815 = sor.u32 256, 16
    %5816 = vbcast.lane.b32.xlu0 %v5806, %s5815
    %v5817 = vpop.permute.xlu0 %5816
    %s5819 = sor.u32 256, 24
    %5820 = vbcast.lane.b32.xlu0 %v5806, %s5819
    %v5821 = vpop.permute.xlu0 %5820
    %s5823 = sor.u32 256, 32
    %5824 = vbcast.lane.b32.xlu0 %v5806, %s5823
    %v5825 = vpop.permute.xlu0 %5824
    %s5827 = sor.u32 256, 40
    %5828 = vbcast.lane.b32.xlu0 %v5806, %s5827
    %v5829 = vpop.permute.xlu0 %5828
    %s5831 = sor.u32 256, 48
    %5832 = vbcast.lane.b32.xlu0 %v5806, %s5831
    %v5833 = vpop.permute.xlu0 %5832
    %s5835 = sor.u32 256, 56
    %5836 = vbcast.lane.b32.xlu0 %v5806, %s5835
    %v5837 = vpop.permute.xlu0 %5836
    %s5839 = sor.u32 256, 64
    %5840 = vbcast.lane.b32.xlu0 %v5806, %s5839
    %v5841 = vpop.permute.xlu0 %5840
    %s5843 = sor.u32 256, 72
    %5844 = vbcast.lane.b32.xlu0 %v5806, %s5843
    %v5845 = vpop.permute.xlu0 %5844
    %s5847 = sor.u32 256, 80
    %5848 = vbcast.lane.b32.xlu0 %v5806, %s5847
    %v5849 = vpop.permute.xlu0 %5848
    %s5851 = sor.u32 256, 88
    %5852 = vbcast.lane.b32.xlu0 %v5806, %s5851
    %v5853 = vpop.permute.xlu0 %5852
    %s5855 = sor.u32 256, 96
    %5856 = vbcast.lane.b32.xlu0 %v5806, %s5855
    %v5857 = vpop.permute.xlu0 %5856
    %s5859 = sor.u32 256, 104
    %5860 = vbcast.lane.b32.xlu0 %v5806, %s5859
    %v5861 = vpop.permute.xlu0 %5860
    %s5863 = sor.u32 256, 112
    %5864 = vbcast.lane.b32.xlu0 %v5806, %s5863
    %v5865 = vpop.permute.xlu0 %5864
    %s5867 = sor.u32 256, 120
    %5868 = vbcast.lane.b32.xlu0 %v5806, %s5867
    %v5869 = vpop.permute.xlu0 %5868
    %v5870 = vlaneseq
    %v5871 = vshrl.u32 %v5870, 7
    %v5872 = vsub.s32 7, %v5871
    %v5873 = vrot.slane %v5399, %v5872
    %5875 = vbcast.lane.b32.xlu0 %v5873, 256
    %v5876 = vpop.permute.xlu0 %5875
    %s5878 = sor.u32 256, 8
    %5879 = vbcast.lane.b32.xlu0 %v5873, %s5878
    %v5880 = vpop.permute.xlu0 %5879
    %s5882 = sor.u32 256, 16
    %5883 = vbcast.lane.b32.xlu0 %v5873, %s5882
    %v5884 = vpop.permute.xlu0 %5883
    %s5886 = sor.u32 256, 24
    %5887 = vbcast.lane.b32.xlu0 %v5873, %s5886
    %v5888 = vpop.permute.xlu0 %5887
    %s5890 = sor.u32 256, 32
    %5891 = vbcast.lane.b32.xlu0 %v5873, %s5890
    %v5892 = vpop.permute.xlu0 %5891
    %s5894 = sor.u32 256, 40
    %5895 = vbcast.lane.b32.xlu0 %v5873, %s5894
    %v5896 = vpop.permute.xlu0 %5895
    %s5898 = sor.u32 256, 48
    %5899 = vbcast.lane.b32.xlu0 %v5873, %s5898
    %v5900 = vpop.permute.xlu0 %5899
    %s5902 = sor.u32 256, 56
    %5903 = vbcast.lane.b32.xlu0 %v5873, %s5902
    %v5904 = vpop.permute.xlu0 %5903
    %s5906 = sor.u32 256, 64
    %5907 = vbcast.lane.b32.xlu0 %v5873, %s5906
    %v5908 = vpop.permute.xlu0 %5907
    %s5910 = sor.u32 256, 72
    %5911 = vbcast.lane.b32.xlu0 %v5873, %s5910
    %v5912 = vpop.permute.xlu0 %5911
    %s5914 = sor.u32 256, 80
    %5915 = vbcast.lane.b32.xlu0 %v5873, %s5914
    %v5916 = vpop.permute.xlu0 %5915
    %s5918 = sor.u32 256, 88
    %5919 = vbcast.lane.b32.xlu0 %v5873, %s5918
    %v5920 = vpop.permute.xlu0 %5919
    %s5922 = sor.u32 256, 96
    %5923 = vbcast.lane.b32.xlu0 %v5873, %s5922
    %v5924 = vpop.permute.xlu0 %5923
    %s5926 = sor.u32 256, 104
    %5927 = vbcast.lane.b32.xlu0 %v5873, %s5926
    %v5928 = vpop.permute.xlu0 %5927
    %s5930 = sor.u32 256, 112
    %5931 = vbcast.lane.b32.xlu0 %v5873, %s5930
    %v5932 = vpop.permute.xlu0 %5931
    %s5934 = sor.u32 256, 120
    %5935 = vbcast.lane.b32.xlu0 %v5873, %s5934
    %v5936 = vpop.permute.xlu0 %5935
    %v6065 = vadd.f32 %v5271, %v5407
    %v6066 = vadd.f32 %v5272, %v5411
    %v6067 = vadd.f32 %v5273, %v5415
    %v6068 = vadd.f32 %v5274, %v5419
    %v6069 = vadd.f32 %v5275, %v5423
    %v6070 = vadd.f32 %v5276, %v5427
    %v6071 = vadd.f32 %v5277, %v5431
    %v6072 = vadd.f32 %v5278, %v5435
    %v6073 = vadd.f32 %v5279, %v5439
    %v6074 = vadd.f32 %v5280, %v5443
    %v6075 = vadd.f32 %v5281, %v5447
    %v6076 = vadd.f32 %v5282, %v5451
    %v6077 = vadd.f32 %v5283, %v5455
    %v6078 = vadd.f32 %v5284, %v5459
    %v6079 = vadd.f32 %v5285, %v5463
    %v6080 = vadd.f32 %v5286, %v5467
    %v6081 = vadd.f32 %v5287, %v5474
    %v6082 = vadd.f32 %v5288, %v5478
    %v6083 = vadd.f32 %v5289, %v5482
    %v6084 = vadd.f32 %v5290, %v5486
    %v6085 = vadd.f32 %v5291, %v5490
    %v6086 = vadd.f32 %v5292, %v5494
    %v6087 = vadd.f32 %v5293, %v5498
    %v6088 = vadd.f32 %v5294, %v5502
    %v6089 = vadd.f32 %v5295, %v5506
    %v6090 = vadd.f32 %v5296, %v5510
    %v6091 = vadd.f32 %v5297, %v5514
    %v6092 = vadd.f32 %v5298, %v5518
    %v6093 = vadd.f32 %v5299, %v5522
    %v6094 = vadd.f32 %v5300, %v5526
    %v6095 = vadd.f32 %v5301, %v5530
    %v6096 = vadd.f32 %v5302, %v5534
    %v6097 = vadd.f32 %v5303, %v5541
    %v6098 = vadd.f32 %v5304, %v5545
    %v6099 = vadd.f32 %v5305, %v5549
    %v6100 = vadd.f32 %v5306, %v5553
    %v6101 = vadd.f32 %v5307, %v5557
    %v6102 = vadd.f32 %v5308, %v5561
    %v6103 = vadd.f32 %v5309, %v5565
    %v6104 = vadd.f32 %v5310, %v5569
    %v6105 = vadd.f32 %v5311, %v5573
    %v6106 = vadd.f32 %v5312, %v5577
    %v6107 = vadd.f32 %v5313, %v5581
    %v6108 = vadd.f32 %v5314, %v5585
    %v6109 = vadd.f32 %v5315, %v5589
    %v6110 = vadd.f32 %v5316, %v5593
    %v6111 = vadd.f32 %v5317, %v5597
    %v6112 = vadd.f32 %v5318, %v5601
    %v6113 = vadd.f32 %v5319, %v5608
    %v6114 = vadd.f32 %v5320, %v5612
    %v6115 = vadd.f32 %v5321, %v5616
    %v6116 = vadd.f32 %v5322, %v5620
    %v6117 = vadd.f32 %v5323, %v5624
    %v6118 = vadd.f32 %v5324, %v5628
    %v6119 = vadd.f32 %v5325, %v5632
    %v6120 = vadd.f32 %v5326, %v5636
    %v6121 = vadd.f32 %v5327, %v5640
    %v6122 = vadd.f32 %v5328, %v5644
    %v6123 = vadd.f32 %v5329, %v5648
    %v6124 = vadd.f32 %v5330, %v5652
    %v6125 = vadd.f32 %v5331, %v5656
    %v6126 = vadd.f32 %v5332, %v5660
    %v6127 = vadd.f32 %v5333, %v5664
    %v6128 = vadd.f32 %v5334, %v5668
    %v6129 = vadd.f32 %v5335, %v5675
    %v6130 = vadd.f32 %v5336, %v5679
    %v6131 = vadd.f32 %v5337, %v5683
    %v6132 = vadd.f32 %v5338, %v5687
    %v6133 = vadd.f32 %v5339, %v5691
    %v6134 = vadd.f32 %v5340, %v5695
    %v6135 = vadd.f32 %v5341, %v5699
    %v6136 = vadd.f32 %v5342, %v5703
    %v6137 = vadd.f32 %v5343, %v5707
    %v6138 = vadd.f32 %v5344, %v5711
    %v6139 = vadd.f32 %v5345, %v5715
    %v6140 = vadd.f32 %v5346, %v5719
    %v6141 = vadd.f32 %v5347, %v5723
    %v6142 = vadd.f32 %v5348, %v5727
    %v6143 = vadd.f32 %v5349, %v5731
    %v6144 = vadd.f32 %v5350, %v5735
    %v6145 = vadd.f32 %v5351, %v5742
    %v6146 = vadd.f32 %v5352, %v5746
    %v6147 = vadd.f32 %v5353, %v5750
    %v6148 = vadd.f32 %v5354, %v5754
    %v6149 = vadd.f32 %v5355, %v5758
    %v6150 = vadd.f32 %v5356, %v5762
    %v6151 = vadd.f32 %v5357, %v5766
    %v6152 = vadd.f32 %v5358, %v5770
    %v6153 = vadd.f32 %v5359, %v5774
    %v6154 = vadd.f32 %v5360, %v5778
    %v6155 = vadd.f32 %v5361, %v5782
    %v6156 = vadd.f32 %v5362, %v5786
    %v6157 = vadd.f32 %v5363, %v5790
    %v6158 = vadd.f32 %v5364, %v5794
    %v6159 = vadd.f32 %v5365, %v5798
    %v6160 = vadd.f32 %v5366, %v5802
    %v6161 = vadd.f32 %v5367, %v5809
    %v6162 = vadd.f32 %v5368, %v5813
    %v6163 = vadd.f32 %v5369, %v5817
    %v6164 = vadd.f32 %v5370, %v5821
    %v6165 = vadd.f32 %v5371, %v5825
    %v6166 = vadd.f32 %v5372, %v5829
    %v6167 = vadd.f32 %v5373, %v5833
    %v6168 = vadd.f32 %v5374, %v5837
    %v6169 = vadd.f32 %v5375, %v5841
    %v6170 = vadd.f32 %v5376, %v5845
    %v6171 = vadd.f32 %v5377, %v5849
    %v6172 = vadd.f32 %v5378, %v5853
    %v6173 = vadd.f32 %v5379, %v5857
    %v6174 = vadd.f32 %v5380, %v5861
    %v6175 = vadd.f32 %v5381, %v5865
    %v6176 = vadd.f32 %v5382, %v5869
    %v6177 = vadd.f32 %v5383, %v5876
    %v6178 = vadd.f32 %v5384, %v5880
    %v6179 = vadd.f32 %v5385, %v5884
    %v6180 = vadd.f32 %v5386, %v5888
    %v6181 = vadd.f32 %v5387, %v5892
    %v6182 = vadd.f32 %v5388, %v5896
    %v6183 = vadd.f32 %v5389, %v5900
    %v6184 = vadd.f32 %v5390, %v5904
    %v6185 = vadd.f32 %v5391, %v5908
    %v6186 = vadd.f32 %v5392, %v5912
    %v6187 = vadd.f32 %v5393, %v5916
    %v6188 = vadd.f32 %v5394, %v5920
    %v6189 = vadd.f32 %v5395, %v5924
    %v6190 = vadd.f32 %v5396, %v5928
    %v6191 = vadd.f32 %v5397, %v5932
    %v6192 = vadd.f32 %v5398, %v5936
    %v6193 = vpack.c.bf16 %v6066, %v6065
    %v6194 = vpack.c.bf16 %v6068, %v6067
    %v6195 = vpack.c.bf16 %v6070, %v6069
    %v6196 = vpack.c.bf16 %v6072, %v6071
    %v6197 = vpack.c.bf16 %v6074, %v6073
    %v6198 = vpack.c.bf16 %v6076, %v6075
    %v6199 = vpack.c.bf16 %v6078, %v6077
    %v6200 = vpack.c.bf16 %v6080, %v6079
    %v6201 = vpack.c.bf16 %v6082, %v6081
    %v6202 = vpack.c.bf16 %v6084, %v6083
    %v6203 = vpack.c.bf16 %v6086, %v6085
    %v6204 = vpack.c.bf16 %v6088, %v6087
    %v6205 = vpack.c.bf16 %v6090, %v6089
    %v6206 = vpack.c.bf16 %v6092, %v6091
    %v6207 = vpack.c.bf16 %v6094, %v6093
    %v6208 = vpack.c.bf16 %v6096, %v6095
    %v6209 = vpack.c.bf16 %v6098, %v6097
    %v6210 = vpack.c.bf16 %v6100, %v6099
    %v6211 = vpack.c.bf16 %v6102, %v6101
    %v6212 = vpack.c.bf16 %v6104, %v6103
    %v6213 = vpack.c.bf16 %v6106, %v6105
    %v6214 = vpack.c.bf16 %v6108, %v6107
    %v6215 = vpack.c.bf16 %v6110, %v6109
    %v6216 = vpack.c.bf16 %v6112, %v6111
    %v6217 = vpack.c.bf16 %v6114, %v6113
    %v6218 = vpack.c.bf16 %v6116, %v6115
    %v6219 = vpack.c.bf16 %v6118, %v6117
    %v6220 = vpack.c.bf16 %v6120, %v6119
    %v6221 = vpack.c.bf16 %v6122, %v6121
    %v6222 = vpack.c.bf16 %v6124, %v6123
    %v6223 = vpack.c.bf16 %v6126, %v6125
    %v6224 = vpack.c.bf16 %v6128, %v6127
    %v6225 = vpack.c.bf16 %v6130, %v6129
    %v6226 = vpack.c.bf16 %v6132, %v6131
    %v6227 = vpack.c.bf16 %v6134, %v6133
    %v6228 = vpack.c.bf16 %v6136, %v6135
    %v6229 = vpack.c.bf16 %v6138, %v6137
    %v6230 = vpack.c.bf16 %v6140, %v6139
    %v6231 = vpack.c.bf16 %v6142, %v6141
    %v6232 = vpack.c.bf16 %v6144, %v6143
    %v6233 = vpack.c.bf16 %v6146, %v6145
    %v6234 = vpack.c.bf16 %v6148, %v6147
    %v6235 = vpack.c.bf16 %v6150, %v6149
    %v6236 = vpack.c.bf16 %v6152, %v6151
    %v6237 = vpack.c.bf16 %v6154, %v6153
    %v6238 = vpack.c.bf16 %v6156, %v6155
    %v6239 = vpack.c.bf16 %v6158, %v6157
    %v6240 = vpack.c.bf16 %v6160, %v6159
    %v6241 = vpack.c.bf16 %v6162, %v6161
    %v6242 = vpack.c.bf16 %v6164, %v6163
    %v6243 = vpack.c.bf16 %v6166, %v6165
    %v6244 = vpack.c.bf16 %v6168, %v6167
    %v6245 = vpack.c.bf16 %v6170, %v6169
    %v6246 = vpack.c.bf16 %v6172, %v6171
    %v6247 = vpack.c.bf16 %v6174, %v6173
    %v6248 = vpack.c.bf16 %v6176, %v6175
    %v6249 = vpack.c.bf16 %v6178, %v6177
    %v6250 = vpack.c.bf16 %v6180, %v6179
    %v6251 = vpack.c.bf16 %v6182, %v6181
    %v6252 = vpack.c.bf16 %v6184, %v6183
    %v6253 = vpack.c.bf16 %v6186, %v6185
    %v6254 = vpack.c.bf16 %v6188, %v6187
    %v6255 = vpack.c.bf16 %v6190, %v6189
    %v6256 = vpack.c.bf16 %v6192, %v6191
    %v6257 = vld [vmem:[%s4] sm:$0xff]
    %v6258 = vld [vmem:[%s4 + $0x8] sm:$0xff]
    %v6259 = vld [vmem:[%s4 + $0x10] sm:$0xff]
    %v6260 = vld [vmem:[%s4 + $0x18] sm:$0xff]
    %v6261 = vld [vmem:[%s4 + $0x20] sm:$0xff]
    %v6262 = vld [vmem:[%s4 + $0x28] sm:$0xff]
    %v6263 = vld [vmem:[%s4 + $0x30] sm:$0xff]
    %v6264 = vld [vmem:[%s4 + $0x38] sm:$0xff]
    %v6265 = vld [vmem:[%s4 + $0x40] sm:$0xff]
    %v6266 = vld [vmem:[%s4 + $0x48] sm:$0xff]
    %v6267 = vld [vmem:[%s4 + $0x50] sm:$0xff]
    %v6268 = vld [vmem:[%s4 + $0x58] sm:$0xff]
    %v6269 = vld [vmem:[%s4 + $0x60] sm:$0xff]
    %v6270 = vld [vmem:[%s4 + $0x68] sm:$0xff]
    %v6271 = vld [vmem:[%s4 + $0x70] sm:$0xff]
    %v6272 = vld [vmem:[%s4 + $0x78] sm:$0xff]
    %v6273 = vld [vmem:[%s5] sm:$0x3]
    %v6275 = vlaneseq
    %v6276 = vshrl.u32 %v6275, 7
    %v6277 = vsub.s32 0, %v6276
    %v6278 = vrot.slane %v6273, %v6277
    %v6279 = vlaneseq
    %v6280 = vshrl.u32 %v6279, 7
    %v6281 = vsub.s32 1, %v6280
    %v6282 = vrot.slane %v6273, %v6281
    %v6349 = vunpack.c.l.b16 %v6193
    %v6350 = vunpack.c.h.b16 %v6193
    %v6351 = vunpack.c.l.b16 %v6194
    %v6352 = vunpack.c.h.b16 %v6194
    %v6353 = vunpack.c.l.b16 %v6195
    %v6354 = vunpack.c.h.b16 %v6195
    %v6355 = vunpack.c.l.b16 %v6196
    %v6356 = vunpack.c.h.b16 %v6196
    %v6357 = vunpack.c.l.b16 %v6197
    %v6358 = vunpack.c.h.b16 %v6197
    %v6359 = vunpack.c.l.b16 %v6198
    %v6360 = vunpack.c.h.b16 %v6198
    %v6361 = vunpack.c.l.b16 %v6199
    %v6362 = vunpack.c.h.b16 %v6199
    %v6363 = vunpack.c.l.b16 %v6200
    %v6364 = vunpack.c.h.b16 %v6200
    %v6365 = vunpack.c.l.b16 %v6201
    %v6366 = vunpack.c.h.b16 %v6201
    %v6367 = vunpack.c.l.b16 %v6202
    %v6368 = vunpack.c.h.b16 %v6202
    %v6369 = vunpack.c.l.b16 %v6203
    %v6370 = vunpack.c.h.b16 %v6203
    %v6371 = vunpack.c.l.b16 %v6204
    %v6372 = vunpack.c.h.b16 %v6204
    %v6373 = vunpack.c.l.b16 %v6205
    %v6374 = vunpack.c.h.b16 %v6205
    %v6375 = vunpack.c.l.b16 %v6206
    %v6376 = vunpack.c.h.b16 %v6206
    %v6377 = vunpack.c.l.b16 %v6207
    %v6378 = vunpack.c.h.b16 %v6207
    %v6379 = vunpack.c.l.b16 %v6208
    %v6380 = vunpack.c.h.b16 %v6208
    %v6381 = vunpack.c.l.b16 %v6209
    %v6382 = vunpack.c.h.b16 %v6209
    %v6383 = vunpack.c.l.b16 %v6210
    %v6384 = vunpack.c.h.b16 %v6210
    %v6385 = vunpack.c.l.b16 %v6211
    %v6386 = vunpack.c.h.b16 %v6211
    %v6387 = vunpack.c.l.b16 %v6212
    %v6388 = vunpack.c.h.b16 %v6212
    %v6389 = vunpack.c.l.b16 %v6213
    %v6390 = vunpack.c.h.b16 %v6213
    %v6391 = vunpack.c.l.b16 %v6214
    %v6392 = vunpack.c.h.b16 %v6214
    %v6393 = vunpack.c.l.b16 %v6215
    %v6394 = vunpack.c.h.b16 %v6215
    %v6395 = vunpack.c.l.b16 %v6216
    %v6396 = vunpack.c.h.b16 %v6216
    %v6397 = vunpack.c.l.b16 %v6217
    %v6398 = vunpack.c.h.b16 %v6217
    %v6399 = vunpack.c.l.b16 %v6218
    %v6400 = vunpack.c.h.b16 %v6218
    %v6401 = vunpack.c.l.b16 %v6219
    %v6402 = vunpack.c.h.b16 %v6219
    %v6403 = vunpack.c.l.b16 %v6220
    %v6404 = vunpack.c.h.b16 %v6220
    %v6405 = vunpack.c.l.b16 %v6221
    %v6406 = vunpack.c.h.b16 %v6221
    %v6407 = vunpack.c.l.b16 %v6222
    %v6408 = vunpack.c.h.b16 %v6222
    %v6409 = vunpack.c.l.b16 %v6223
    %v6410 = vunpack.c.h.b16 %v6223
    %v6411 = vunpack.c.l.b16 %v6224
    %v6412 = vunpack.c.h.b16 %v6224
    %v6413 = vunpack.c.l.b16 %v6225
    %v6414 = vunpack.c.h.b16 %v6225
    %v6415 = vunpack.c.l.b16 %v6226
    %v6416 = vunpack.c.h.b16 %v6226
    %v6417 = vunpack.c.l.b16 %v6227
    %v6418 = vunpack.c.h.b16 %v6227
    %v6419 = vunpack.c.l.b16 %v6228
    %v6420 = vunpack.c.h.b16 %v6228
    %v6421 = vunpack.c.l.b16 %v6229
    %v6422 = vunpack.c.h.b16 %v6229
    %v6423 = vunpack.c.l.b16 %v6230
    %v6424 = vunpack.c.h.b16 %v6230
    %v6425 = vunpack.c.l.b16 %v6231
    %v6426 = vunpack.c.h.b16 %v6231
    %v6427 = vunpack.c.l.b16 %v6232
    %v6428 = vunpack.c.h.b16 %v6232
    %v6429 = vunpack.c.l.b16 %v6233
    %v6430 = vunpack.c.h.b16 %v6233
    %v6431 = vunpack.c.l.b16 %v6234
    %v6432 = vunpack.c.h.b16 %v6234
    %v6433 = vunpack.c.l.b16 %v6235
    %v6434 = vunpack.c.h.b16 %v6235
    %v6435 = vunpack.c.l.b16 %v6236
    %v6436 = vunpack.c.h.b16 %v6236
    %v6437 = vunpack.c.l.b16 %v6237
    %v6438 = vunpack.c.h.b16 %v6237
    %v6439 = vunpack.c.l.b16 %v6238
    %v6440 = vunpack.c.h.b16 %v6238
    %v6441 = vunpack.c.l.b16 %v6239
    %v6442 = vunpack.c.h.b16 %v6239
    %v6443 = vunpack.c.l.b16 %v6240
    %v6444 = vunpack.c.h.b16 %v6240
    %v6445 = vunpack.c.l.b16 %v6241
    %v6446 = vunpack.c.h.b16 %v6241
    %v6447 = vunpack.c.l.b16 %v6242
    %v6448 = vunpack.c.h.b16 %v6242
    %v6449 = vunpack.c.l.b16 %v6243
    %v6450 = vunpack.c.h.b16 %v6243
    %v6451 = vunpack.c.l.b16 %v6244
    %v6452 = vunpack.c.h.b16 %v6244
    %v6453 = vunpack.c.l.b16 %v6245
    %v6454 = vunpack.c.h.b16 %v6245
    %v6455 = vunpack.c.l.b16 %v6246
    %v6456 = vunpack.c.h.b16 %v6246
    %v6457 = vunpack.c.l.b16 %v6247
    %v6458 = vunpack.c.h.b16 %v6247
    %v6459 = vunpack.c.l.b16 %v6248
    %v6460 = vunpack.c.h.b16 %v6248
    %v6461 = vunpack.c.l.b16 %v6249
    %v6462 = vunpack.c.h.b16 %v6249
    %v6463 = vunpack.c.l.b16 %v6250
    %v6464 = vunpack.c.h.b16 %v6250
    %v6465 = vunpack.c.l.b16 %v6251
    %v6466 = vunpack.c.h.b16 %v6251
    %v6467 = vunpack.c.l.b16 %v6252
    %v6468 = vunpack.c.h.b16 %v6252
    %v6469 = vunpack.c.l.b16 %v6253
    %v6470 = vunpack.c.h.b16 %v6253
    %v6471 = vunpack.c.l.b16 %v6254
    %v6472 = vunpack.c.h.b16 %v6254
    %v6473 = vunpack.c.l.b16 %v6255
    %v6474 = vunpack.c.h.b16 %v6255
    %v6475 = vunpack.c.l.b16 %v6256
    %v6476 = vunpack.c.h.b16 %v6256
    %6477 = vset.pattern.permute.xlu0 0
    %6478 = vperm.xlu0 %6477, %v6349
    %v6479 = vpop.permute.xlu0 %6478
    %6480 = vset.pattern.permute.xlu0 0
    %6481 = vperm.xlu0 %6480, %v6350
    %v6482 = vpop.permute.xlu0 %6481
    %6483 = vset.pattern.permute.xlu0 0
    %6484 = vperm.xlu0 %6483, %v6351
    %v6485 = vpop.permute.xlu0 %6484
    %6486 = vset.pattern.permute.xlu0 0
    %6487 = vperm.xlu0 %6486, %v6352
    %v6488 = vpop.permute.xlu0 %6487
    %6489 = vset.pattern.permute.xlu0 0
    %6490 = vperm.xlu0 %6489, %v6353
    %v6491 = vpop.permute.xlu0 %6490
    %6492 = vset.pattern.permute.xlu0 0
    %6493 = vperm.xlu0 %6492, %v6354
    %v6494 = vpop.permute.xlu0 %6493
    %6495 = vset.pattern.permute.xlu0 0
    %6496 = vperm.xlu0 %6495, %v6355
    %v6497 = vpop.permute.xlu0 %6496
    %6498 = vset.pattern.permute.xlu0 0
    %6499 = vperm.xlu0 %6498, %v6356
    %v6500 = vpop.permute.xlu0 %6499
    %6501 = vset.pattern.permute.xlu0 0
    %6502 = vperm.xlu0 %6501, %v6357
    %v6503 = vpop.permute.xlu0 %6502
    %6504 = vset.pattern.permute.xlu0 0
    %6505 = vperm.xlu0 %6504, %v6358
    %v6506 = vpop.permute.xlu0 %6505
    %6507 = vset.pattern.permute.xlu0 0
    %6508 = vperm.xlu0 %6507, %v6359
    %v6509 = vpop.permute.xlu0 %6508
    %6510 = vset.pattern.permute.xlu0 0
    %6511 = vperm.xlu0 %6510, %v6360
    %v6512 = vpop.permute.xlu0 %6511
    %6513 = vset.pattern.permute.xlu0 0
    %6514 = vperm.xlu0 %6513, %v6361
    %v6515 = vpop.permute.xlu0 %6514
    %6516 = vset.pattern.permute.xlu0 0
    %6517 = vperm.xlu0 %6516, %v6362
    %v6518 = vpop.permute.xlu0 %6517
    %6519 = vset.pattern.permute.xlu0 0
    %6520 = vperm.xlu0 %6519, %v6363
    %v6521 = vpop.permute.xlu0 %6520
    %6522 = vset.pattern.permute.xlu0 0
    %6523 = vperm.xlu0 %6522, %v6364
    %v6524 = vpop.permute.xlu0 %6523
    %6525 = vset.pattern.permute.xlu0 0
    %6526 = vperm.xlu0 %6525, %v6365
    %v6527 = vpop.permute.xlu0 %6526
    %6528 = vset.pattern.permute.xlu0 0
    %6529 = vperm.xlu0 %6528, %v6366
    %v6530 = vpop.permute.xlu0 %6529
    %6531 = vset.pattern.permute.xlu0 0
    %6532 = vperm.xlu0 %6531, %v6367
    %v6533 = vpop.permute.xlu0 %6532
    %6534 = vset.pattern.permute.xlu0 0
    %6535 = vperm.xlu0 %6534, %v6368
    %v6536 = vpop.permute.xlu0 %6535
    %6537 = vset.pattern.permute.xlu0 0
    %6538 = vperm.xlu0 %6537, %v6369
    %v6539 = vpop.permute.xlu0 %6538
    %6540 = vset.pattern.permute.xlu0 0
    %6541 = vperm.xlu0 %6540, %v6370
    %v6542 = vpop.permute.xlu0 %6541
    %6543 = vset.pattern.permute.xlu0 0
    %6544 = vperm.xlu0 %6543, %v6371
    %v6545 = vpop.permute.xlu0 %6544
    %6546 = vset.pattern.permute.xlu0 0
    %6547 = vperm.xlu0 %6546, %v6372
    %v6548 = vpop.permute.xlu0 %6547
    %6549 = vset.pattern.permute.xlu0 0
    %6550 = vperm.xlu0 %6549, %v6373
    %v6551 = vpop.permute.xlu0 %6550
    %6552 = vset.pattern.permute.xlu0 0
    %6553 = vperm.xlu0 %6552, %v6374
    %v6554 = vpop.permute.xlu0 %6553
    %6555 = vset.pattern.permute.xlu0 0
    %6556 = vperm.xlu0 %6555, %v6375
    %v6557 = vpop.permute.xlu0 %6556
    %6558 = vset.pattern.permute.xlu0 0
    %6559 = vperm.xlu0 %6558, %v6376
    %v6560 = vpop.permute.xlu0 %6559
    %6561 = vset.pattern.permute.xlu0 0
    %6562 = vperm.xlu0 %6561, %v6377
    %v6563 = vpop.permute.xlu0 %6562
    %6564 = vset.pattern.permute.xlu0 0
    %6565 = vperm.xlu0 %6564, %v6378
    %v6566 = vpop.permute.xlu0 %6565
    %6567 = vset.pattern.permute.xlu0 0
    %6568 = vperm.xlu0 %6567, %v6379
    %v6569 = vpop.permute.xlu0 %6568
    %6570 = vset.pattern.permute.xlu0 0
    %6571 = vperm.xlu0 %6570, %v6380
    %v6572 = vpop.permute.xlu0 %6571
    %6573 = vset.pattern.permute.xlu0 0
    %6574 = vperm.xlu0 %6573, %v6381
    %v6575 = vpop.permute.xlu0 %6574
    %6576 = vset.pattern.permute.xlu0 0
    %6577 = vperm.xlu0 %6576, %v6382
    %v6578 = vpop.permute.xlu0 %6577
    %6579 = vset.pattern.permute.xlu0 0
    %6580 = vperm.xlu0 %6579, %v6383
    %v6581 = vpop.permute.xlu0 %6580
    %6582 = vset.pattern.permute.xlu0 0
    %6583 = vperm.xlu0 %6582, %v6384
    %v6584 = vpop.permute.xlu0 %6583
    %6585 = vset.pattern.permute.xlu0 0
    %6586 = vperm.xlu0 %6585, %v6385
    %v6587 = vpop.permute.xlu0 %6586
    %6588 = vset.pattern.permute.xlu0 0
    %6589 = vperm.xlu0 %6588, %v6386
    %v6590 = vpop.permute.xlu0 %6589
    %6591 = vset.pattern.permute.xlu0 0
    %6592 = vperm.xlu0 %6591, %v6387
    %v6593 = vpop.permute.xlu0 %6592
    %6594 = vset.pattern.permute.xlu0 0
    %6595 = vperm.xlu0 %6594, %v6388
    %v6596 = vpop.permute.xlu0 %6595
    %6597 = vset.pattern.permute.xlu0 0
    %6598 = vperm.xlu0 %6597, %v6389
    %v6599 = vpop.permute.xlu0 %6598
    %6600 = vset.pattern.permute.xlu0 0
    %6601 = vperm.xlu0 %6600, %v6390
    %v6602 = vpop.permute.xlu0 %6601
    %6603 = vset.pattern.permute.xlu0 0
    %6604 = vperm.xlu0 %6603, %v6391
    %v6605 = vpop.permute.xlu0 %6604
    %6606 = vset.pattern.permute.xlu0 0
    %6607 = vperm.xlu0 %6606, %v6392
    %v6608 = vpop.permute.xlu0 %6607
    %6609 = vset.pattern.permute.xlu0 0
    %6610 = vperm.xlu0 %6609, %v6393
    %v6611 = vpop.permute.xlu0 %6610
    %6612 = vset.pattern.permute.xlu0 0
    %6613 = vperm.xlu0 %6612, %v6394
    %v6614 = vpop.permute.xlu0 %6613
    %6615 = vset.pattern.permute.xlu0 0
    %6616 = vperm.xlu0 %6615, %v6395
    %v6617 = vpop.permute.xlu0 %6616
    %6618 = vset.pattern.permute.xlu0 0
    %6619 = vperm.xlu0 %6618, %v6396
    %v6620 = vpop.permute.xlu0 %6619
    %6621 = vset.pattern.permute.xlu0 0
    %6622 = vperm.xlu0 %6621, %v6397
    %v6623 = vpop.permute.xlu0 %6622
    %6624 = vset.pattern.permute.xlu0 0
    %6625 = vperm.xlu0 %6624, %v6398
    %v6626 = vpop.permute.xlu0 %6625
    %6627 = vset.pattern.permute.xlu0 0
    %6628 = vperm.xlu0 %6627, %v6399
    %v6629 = vpop.permute.xlu0 %6628
    %6630 = vset.pattern.permute.xlu0 0
    %6631 = vperm.xlu0 %6630, %v6400
    %v6632 = vpop.permute.xlu0 %6631
    %6633 = vset.pattern.permute.xlu0 0
    %6634 = vperm.xlu0 %6633, %v6401
    %v6635 = vpop.permute.xlu0 %6634
    %6636 = vset.pattern.permute.xlu0 0
    %6637 = vperm.xlu0 %6636, %v6402
    %v6638 = vpop.permute.xlu0 %6637
    %6639 = vset.pattern.permute.xlu0 0
    %6640 = vperm.xlu0 %6639, %v6403
    %v6641 = vpop.permute.xlu0 %6640
    %6642 = vset.pattern.permute.xlu0 0
    %6643 = vperm.xlu0 %6642, %v6404
    %v6644 = vpop.permute.xlu0 %6643
    %6645 = vset.pattern.permute.xlu0 0
    %6646 = vperm.xlu0 %6645, %v6405
    %v6647 = vpop.permute.xlu0 %6646
    %6648 = vset.pattern.permute.xlu0 0
    %6649 = vperm.xlu0 %6648, %v6406
    %v6650 = vpop.permute.xlu0 %6649
    %6651 = vset.pattern.permute.xlu0 0
    %6652 = vperm.xlu0 %6651, %v6407
    %v6653 = vpop.permute.xlu0 %6652
    %6654 = vset.pattern.permute.xlu0 0
    %6655 = vperm.xlu0 %6654, %v6408
    %v6656 = vpop.permute.xlu0 %6655
    %6657 = vset.pattern.permute.xlu0 0
    %6658 = vperm.xlu0 %6657, %v6409
    %v6659 = vpop.permute.xlu0 %6658
    %6660 = vset.pattern.permute.xlu0 0
    %6661 = vperm.xlu0 %6660, %v6410
    %v6662 = vpop.permute.xlu0 %6661
    %6663 = vset.pattern.permute.xlu0 0
    %6664 = vperm.xlu0 %6663, %v6411
    %v6665 = vpop.permute.xlu0 %6664
    %6666 = vset.pattern.permute.xlu0 0
    %6667 = vperm.xlu0 %6666, %v6412
    %v6668 = vpop.permute.xlu0 %6667
    %6669 = vset.pattern.permute.xlu0 0
    %6670 = vperm.xlu0 %6669, %v6413
    %v6671 = vpop.permute.xlu0 %6670
    %6672 = vset.pattern.permute.xlu0 0
    %6673 = vperm.xlu0 %6672, %v6414
    %v6674 = vpop.permute.xlu0 %6673
    %6675 = vset.pattern.permute.xlu0 0
    %6676 = vperm.xlu0 %6675, %v6415
    %v6677 = vpop.permute.xlu0 %6676
    %6678 = vset.pattern.permute.xlu0 0
    %6679 = vperm.xlu0 %6678, %v6416
    %v6680 = vpop.permute.xlu0 %6679
    %6681 = vset.pattern.permute.xlu0 0
    %6682 = vperm.xlu0 %6681, %v6417
    %v6683 = vpop.permute.xlu0 %6682
    %6684 = vset.pattern.permute.xlu0 0
    %6685 = vperm.xlu0 %6684, %v6418
    %v6686 = vpop.permute.xlu0 %6685
    %6687 = vset.pattern.permute.xlu0 0
    %6688 = vperm.xlu0 %6687, %v6419
    %v6689 = vpop.permute.xlu0 %6688
    %6690 = vset.pattern.permute.xlu0 0
    %6691 = vperm.xlu0 %6690, %v6420
    %v6692 = vpop.permute.xlu0 %6691
    %6693 = vset.pattern.permute.xlu0 0
    %6694 = vperm.xlu0 %6693, %v6421
    %v6695 = vpop.permute.xlu0 %6694
    %6696 = vset.pattern.permute.xlu0 0
    %6697 = vperm.xlu0 %6696, %v6422
    %v6698 = vpop.permute.xlu0 %6697
    %6699 = vset.pattern.permute.xlu0 0
    %6700 = vperm.xlu0 %6699, %v6423
    %v6701 = vpop.permute.xlu0 %6700
    %6702 = vset.pattern.permute.xlu0 0
    %6703 = vperm.xlu0 %6702, %v6424
    %v6704 = vpop.permute.xlu0 %6703
    %6705 = vset.pattern.permute.xlu0 0
    %6706 = vperm.xlu0 %6705, %v6425
    %v6707 = vpop.permute.xlu0 %6706
    %6708 = vset.pattern.permute.xlu0 0
    %6709 = vperm.xlu0 %6708, %v6426
    %v6710 = vpop.permute.xlu0 %6709
    %6711 = vset.pattern.permute.xlu0 0
    %6712 = vperm.xlu0 %6711, %v6427
    %v6713 = vpop.permute.xlu0 %6712
    %6714 = vset.pattern.permute.xlu0 0
    %6715 = vperm.xlu0 %6714, %v6428
    %v6716 = vpop.permute.xlu0 %6715
    %6717 = vset.pattern.permute.xlu0 0
    %6718 = vperm.xlu0 %6717, %v6429
    %v6719 = vpop.permute.xlu0 %6718
    %6720 = vset.pattern.permute.xlu0 0
    %6721 = vperm.xlu0 %6720, %v6430
    %v6722 = vpop.permute.xlu0 %6721
    %6723 = vset.pattern.permute.xlu0 0
    %6724 = vperm.xlu0 %6723, %v6431
    %v6725 = vpop.permute.xlu0 %6724
    %6726 = vset.pattern.permute.xlu0 0
    %6727 = vperm.xlu0 %6726, %v6432
    %v6728 = vpop.permute.xlu0 %6727
    %6729 = vset.pattern.permute.xlu0 0
    %6730 = vperm.xlu0 %6729, %v6433
    %v6731 = vpop.permute.xlu0 %6730
    %6732 = vset.pattern.permute.xlu0 0
    %6733 = vperm.xlu0 %6732, %v6434
    %v6734 = vpop.permute.xlu0 %6733
    %6735 = vset.pattern.permute.xlu0 0
    %6736 = vperm.xlu0 %6735, %v6435
    %v6737 = vpop.permute.xlu0 %6736
    %6738 = vset.pattern.permute.xlu0 0
    %6739 = vperm.xlu0 %6738, %v6436
    %v6740 = vpop.permute.xlu0 %6739
    %6741 = vset.pattern.permute.xlu0 0
    %6742 = vperm.xlu0 %6741, %v6437
    %v6743 = vpop.permute.xlu0 %6742
    %6744 = vset.pattern.permute.xlu0 0
    %6745 = vperm.xlu0 %6744, %v6438
    %v6746 = vpop.permute.xlu0 %6745
    %6747 = vset.pattern.permute.xlu0 0
    %6748 = vperm.xlu0 %6747, %v6439
    %v6749 = vpop.permute.xlu0 %6748
    %6750 = vset.pattern.permute.xlu0 0
    %6751 = vperm.xlu0 %6750, %v6440
    %v6752 = vpop.permute.xlu0 %6751
    %6753 = vset.pattern.permute.xlu0 0
    %6754 = vperm.xlu0 %6753, %v6441
    %v6755 = vpop.permute.xlu0 %6754
    %6756 = vset.pattern.permute.xlu0 0
    %6757 = vperm.xlu0 %6756, %v6442
    %v6758 = vpop.permute.xlu0 %6757
    %6759 = vset.pattern.permute.xlu0 0
    %6760 = vperm.xlu0 %6759, %v6443
    %v6761 = vpop.permute.xlu0 %6760
    %6762 = vset.pattern.permute.xlu0 0
    %6763 = vperm.xlu0 %6762, %v6444
    %v6764 = vpop.permute.xlu0 %6763
    %6765 = vset.pattern.permute.xlu0 0
    %6766 = vperm.xlu0 %6765, %v6445
    %v6767 = vpop.permute.xlu0 %6766
    %6768 = vset.pattern.permute.xlu0 0
    %6769 = vperm.xlu0 %6768, %v6446
    %v6770 = vpop.permute.xlu0 %6769
    %6771 = vset.pattern.permute.xlu0 0
    %6772 = vperm.xlu0 %6771, %v6447
    %v6773 = vpop.permute.xlu0 %6772
    %6774 = vset.pattern.permute.xlu0 0
    %6775 = vperm.xlu0 %6774, %v6448
    %v6776 = vpop.permute.xlu0 %6775
    %6777 = vset.pattern.permute.xlu0 0
    %6778 = vperm.xlu0 %6777, %v6449
    %v6779 = vpop.permute.xlu0 %6778
    %6780 = vset.pattern.permute.xlu0 0
    %6781 = vperm.xlu0 %6780, %v6450
    %v6782 = vpop.permute.xlu0 %6781
    %6783 = vset.pattern.permute.xlu0 0
    %6784 = vperm.xlu0 %6783, %v6451
    %v6785 = vpop.permute.xlu0 %6784
    %6786 = vset.pattern.permute.xlu0 0
    %6787 = vperm.xlu0 %6786, %v6452
    %v6788 = vpop.permute.xlu0 %6787
    %6789 = vset.pattern.permute.xlu0 0
    %6790 = vperm.xlu0 %6789, %v6453
    %v6791 = vpop.permute.xlu0 %6790
    %6792 = vset.pattern.permute.xlu0 0
    %6793 = vperm.xlu0 %6792, %v6454
    %v6794 = vpop.permute.xlu0 %6793
    %6795 = vset.pattern.permute.xlu0 0
    %6796 = vperm.xlu0 %6795, %v6455
    %v6797 = vpop.permute.xlu0 %6796
    %6798 = vset.pattern.permute.xlu0 0
    %6799 = vperm.xlu0 %6798, %v6456
    %v6800 = vpop.permute.xlu0 %6799
    %6801 = vset.pattern.permute.xlu0 0
    %6802 = vperm.xlu0 %6801, %v6457
    %v6803 = vpop.permute.xlu0 %6802
    %6804 = vset.pattern.permute.xlu0 0
    %6805 = vperm.xlu0 %6804, %v6458
    %v6806 = vpop.permute.xlu0 %6805
    %6807 = vset.pattern.permute.xlu0 0
    %6808 = vperm.xlu0 %6807, %v6459
    %v6809 = vpop.permute.xlu0 %6808
    %6810 = vset.pattern.permute.xlu0 0
    %6811 = vperm.xlu0 %6810, %v6460
    %v6812 = vpop.permute.xlu0 %6811
    %6813 = vset.pattern.permute.xlu0 0
    %6814 = vperm.xlu0 %6813, %v6461
    %v6815 = vpop.permute.xlu0 %6814
    %6816 = vset.pattern.permute.xlu0 0
    %6817 = vperm.xlu0 %6816, %v6462
    %v6818 = vpop.permute.xlu0 %6817
    %6819 = vset.pattern.permute.xlu0 0
    %6820 = vperm.xlu0 %6819, %v6463
    %v6821 = vpop.permute.xlu0 %6820
    %6822 = vset.pattern.permute.xlu0 0
    %6823 = vperm.xlu0 %6822, %v6464
    %v6824 = vpop.permute.xlu0 %6823
    %6825 = vset.pattern.permute.xlu0 0
    %6826 = vperm.xlu0 %6825, %v6465
    %v6827 = vpop.permute.xlu0 %6826
    %6828 = vset.pattern.permute.xlu0 0
    %6829 = vperm.xlu0 %6828, %v6466
    %v6830 = vpop.permute.xlu0 %6829
    %6831 = vset.pattern.permute.xlu0 0
    %6832 = vperm.xlu0 %6831, %v6467
    %v6833 = vpop.permute.xlu0 %6832
    %6834 = vset.pattern.permute.xlu0 0
    %6835 = vperm.xlu0 %6834, %v6468
    %v6836 = vpop.permute.xlu0 %6835
    %6837 = vset.pattern.permute.xlu0 0
    %6838 = vperm.xlu0 %6837, %v6469
    %v6839 = vpop.permute.xlu0 %6838
    %6840 = vset.pattern.permute.xlu0 0
    %6841 = vperm.xlu0 %6840, %v6470
    %v6842 = vpop.permute.xlu0 %6841
    %6843 = vset.pattern.permute.xlu0 0
    %6844 = vperm.xlu0 %6843, %v6471
    %v6845 = vpop.permute.xlu0 %6844
    %6846 = vset.pattern.permute.xlu0 0
    %6847 = vperm.xlu0 %6846, %v6472
    %v6848 = vpop.permute.xlu0 %6847
    %6849 = vset.pattern.permute.xlu0 0
    %6850 = vperm.xlu0 %6849, %v6473
    %v6851 = vpop.permute.xlu0 %6850
    %6852 = vset.pattern.permute.xlu0 0
    %6853 = vperm.xlu0 %6852, %v6474
    %v6854 = vpop.permute.xlu0 %6853
    %6855 = vset.pattern.permute.xlu0 0
    %6856 = vperm.xlu0 %6855, %v6475
    %v6857 = vpop.permute.xlu0 %6856
    %6858 = vset.pattern.permute.xlu0 0
    %6859 = vperm.xlu0 %6858, %v6476
    %v6860 = vpop.permute.xlu0 %6859
    %v6861 = vlaneseq
    %v6862 = vand.u32 %v6861, 127
    %v6863 = vlaneseq
    %v6864 = vshrl.u32 %v6863, 7
    %v6865 = vsub.s32 %v6862, %v6864
    %v6866 = vrot.slane %v6479, %v6865
    %v6867 = vadd.s32 %v6862, 4294967288
    %v6868 = vlaneseq
    %v6869 = vshrl.u32 %v6868, 7
    %v6870 = vsub.s32 %v6867, %v6869
    %v6871 = vrot.slane %v6482, %v6870
    %vm6872 = vcmask 130112
    %v6873 = vsel %vm6872, %v6871, %v6866
    %v6874 = vadd.s32 %v6862, 4294967280
    %v6875 = vlaneseq
    %v6876 = vshrl.u32 %v6875, 7
    %v6877 = vsub.s32 %v6874, %v6876
    %v6878 = vrot.slane %v6485, %v6877
    %vm6879 = vcmask 195712
    %v6880 = vsel %vm6879, %v6878, %v6873
    %v6881 = vadd.s32 %v6862, 4294967272
    %v6882 = vlaneseq
    %v6883 = vshrl.u32 %v6882, 7
    %v6884 = vsub.s32 %v6881, %v6883
    %v6885 = vrot.slane %v6488, %v6884
    %vm6886 = vcmask 261312
    %v6887 = vsel %vm6886, %v6885, %v6880
    %v6888 = vadd.s32 %v6862, 4294967264
    %v6889 = vlaneseq
    %v6890 = vshrl.u32 %v6889, 7
    %v6891 = vsub.s32 %v6888, %v6890
    %v6892 = vrot.slane %v6491, %v6891
    %vm6893 = vcmask 326912
    %v6894 = vsel %vm6893, %v6892, %v6887
    %v6895 = vadd.s32 %v6862, 4294967256
    %v6896 = vlaneseq
    %v6897 = vshrl.u32 %v6896, 7
    %v6898 = vsub.s32 %v6895, %v6897
    %v6899 = vrot.slane %v6494, %v6898
    %vm6900 = vcmask 392512
    %v6901 = vsel %vm6900, %v6899, %v6894
    %v6902 = vadd.s32 %v6862, 4294967248
    %v6903 = vlaneseq
    %v6904 = vshrl.u32 %v6903, 7
    %v6905 = vsub.s32 %v6902, %v6904
    %v6906 = vrot.slane %v6497, %v6905
    %vm6907 = vcmask 458112
    %v6908 = vsel %vm6907, %v6906, %v6901
    %v6909 = vadd.s32 %v6862, 4294967240
    %v6910 = vlaneseq
    %v6911 = vshrl.u32 %v6910, 7
    %v6912 = vsub.s32 %v6909, %v6911
    %v6913 = vrot.slane %v6500, %v6912
    %vm6914 = vcmask 523712
    %v6915 = vsel %vm6914, %v6913, %v6908
    %v6916 = vadd.s32 %v6862, 4294967232
    %v6917 = vlaneseq
    %v6918 = vshrl.u32 %v6917, 7
    %v6919 = vsub.s32 %v6916, %v6918
    %v6920 = vrot.slane %v6503, %v6919
    %vm6921 = vcmask 589312
    %v6922 = vsel %vm6921, %v6920, %v6915
    %v6923 = vadd.s32 %v6862, 4294967224
    %v6924 = vlaneseq
    %v6925 = vshrl.u32 %v6924, 7
    %v6926 = vsub.s32 %v6923, %v6925
    %v6927 = vrot.slane %v6506, %v6926
    %vm6928 = vcmask 654912
    %v6929 = vsel %vm6928, %v6927, %v6922
    %v6930 = vadd.s32 %v6862, 4294967216
    %v6931 = vlaneseq
    %v6932 = vshrl.u32 %v6931, 7
    %v6933 = vsub.s32 %v6930, %v6932
    %v6934 = vrot.slane %v6509, %v6933
    %vm6935 = vcmask 720512
    %v6936 = vsel %vm6935, %v6934, %v6929
    %v6937 = vadd.s32 %v6862, 4294967208
    %v6938 = vlaneseq
    %v6939 = vshrl.u32 %v6938, 7
    %v6940 = vsub.s32 %v6937, %v6939
    %v6941 = vrot.slane %v6512, %v6940
    %vm6942 = vcmask 786112
    %v6943 = vsel %vm6942, %v6941, %v6936
    %v6944 = vadd.s32 %v6862, 4294967200
    %v6945 = vlaneseq
    %v6946 = vshrl.u32 %v6945, 7
    %v6947 = vsub.s32 %v6944, %v6946
    %v6948 = vrot.slane %v6515, %v6947
    %vm6949 = vcmask 851712
    %v6950 = vsel %vm6949, %v6948, %v6943
    %v6951 = vadd.s32 %v6862, 4294967192
    %v6952 = vlaneseq
    %v6953 = vshrl.u32 %v6952, 7
    %v6954 = vsub.s32 %v6951, %v6953
    %v6955 = vrot.slane %v6518, %v6954
    %vm6956 = vcmask 917312
    %v6957 = vsel %vm6956, %v6955, %v6950
    %v6958 = vadd.s32 %v6862, 4294967184
    %v6959 = vlaneseq
    %v6960 = vshrl.u32 %v6959, 7
    %v6961 = vsub.s32 %v6958, %v6960
    %v6962 = vrot.slane %v6521, %v6961
    %vm6963 = vcmask 982912
    %v6964 = vsel %vm6963, %v6962, %v6957
    %v6965 = vadd.s32 %v6862, 4294967176
    %v6966 = vlaneseq
    %v6967 = vshrl.u32 %v6966, 7
    %v6968 = vsub.s32 %v6965, %v6967
    %v6969 = vrot.slane %v6524, %v6968
    %vm6970 = vcmask 1048512
    %v6971 = vsel %vm6970, %v6969, %v6964
    %v6972 = vlaneseq
    %v6973 = vshrl.u32 %v6972, 7
    %v6974 = vsub.s32 %v6862, %v6973
    %v6975 = vrot.slane %v6527, %v6974
    %v6976 = vlaneseq
    %v6977 = vshrl.u32 %v6976, 7
    %v6978 = vsub.s32 %v6867, %v6977
    %v6979 = vrot.slane %v6530, %v6978
    %v6980 = vsel %vm6872, %v6979, %v6975
    %v6981 = vlaneseq
    %v6982 = vshrl.u32 %v6981, 7
    %v6983 = vsub.s32 %v6874, %v6982
    %v6984 = vrot.slane %v6533, %v6983
    %v6985 = vsel %vm6879, %v6984, %v6980
    %v6986 = vlaneseq
    %v6987 = vshrl.u32 %v6986, 7
    %v6988 = vsub.s32 %v6881, %v6987
    %v6989 = vrot.slane %v6536, %v6988
    %v6990 = vsel %vm6886, %v6989, %v6985
    %v6991 = vlaneseq
    %v6992 = vshrl.u32 %v6991, 7
    %v6993 = vsub.s32 %v6888, %v6992
    %v6994 = vrot.slane %v6539, %v6993
    %v6995 = vsel %vm6893, %v6994, %v6990
    %v6996 = vlaneseq
    %v6997 = vshrl.u32 %v6996, 7
    %v6998 = vsub.s32 %v6895, %v6997
    %v6999 = vrot.slane %v6542, %v6998
    %v7000 = vsel %vm6900, %v6999, %v6995
    %v7001 = vlaneseq
    %v7002 = vshrl.u32 %v7001, 7
    %v7003 = vsub.s32 %v6902, %v7002
    %v7004 = vrot.slane %v6545, %v7003
    %v7005 = vsel %vm6907, %v7004, %v7000
    %v7006 = vlaneseq
    %v7007 = vshrl.u32 %v7006, 7
    %v7008 = vsub.s32 %v6909, %v7007
    %v7009 = vrot.slane %v6548, %v7008
    %v7010 = vsel %vm6914, %v7009, %v7005
    %v7011 = vlaneseq
    %v7012 = vshrl.u32 %v7011, 7
    %v7013 = vsub.s32 %v6916, %v7012
    %v7014 = vrot.slane %v6551, %v7013
    %v7015 = vsel %vm6921, %v7014, %v7010
    %v7016 = vlaneseq
    %v7017 = vshrl.u32 %v7016, 7
    %v7018 = vsub.s32 %v6923, %v7017
    %v7019 = vrot.slane %v6554, %v7018
    %v7020 = vsel %vm6928, %v7019, %v7015
    %v7021 = vlaneseq
    %v7022 = vshrl.u32 %v7021, 7
    %v7023 = vsub.s32 %v6930, %v7022
    %v7024 = vrot.slane %v6557, %v7023
    %v7025 = vsel %vm6935, %v7024, %v7020
    %v7026 = vlaneseq
    %v7027 = vshrl.u32 %v7026, 7
    %v7028 = vsub.s32 %v6937, %v7027
    %v7029 = vrot.slane %v6560, %v7028
    %v7030 = vsel %vm6942, %v7029, %v7025
    %v7031 = vlaneseq
    %v7032 = vshrl.u32 %v7031, 7
    %v7033 = vsub.s32 %v6944, %v7032
    %v7034 = vrot.slane %v6563, %v7033
    %v7035 = vsel %vm6949, %v7034, %v7030
    %v7036 = vlaneseq
    %v7037 = vshrl.u32 %v7036, 7
    %v7038 = vsub.s32 %v6951, %v7037
    %v7039 = vrot.slane %v6566, %v7038
    %v7040 = vsel %vm6956, %v7039, %v7035
    %v7041 = vlaneseq
    %v7042 = vshrl.u32 %v7041, 7
    %v7043 = vsub.s32 %v6958, %v7042
    %v7044 = vrot.slane %v6569, %v7043
    %v7045 = vsel %vm6963, %v7044, %v7040
    %v7046 = vlaneseq
    %v7047 = vshrl.u32 %v7046, 7
    %v7048 = vsub.s32 %v6965, %v7047
    %v7049 = vrot.slane %v6572, %v7048
    %v7050 = vsel %vm6970, %v7049, %v7045
    %v7051 = vlaneseq
    %v7052 = vshrl.u32 %v7051, 7
    %v7053 = vsub.s32 %v6862, %v7052
    %v7054 = vrot.slane %v6575, %v7053
    %v7055 = vlaneseq
    %v7056 = vshrl.u32 %v7055, 7
    %v7057 = vsub.s32 %v6867, %v7056
    %v7058 = vrot.slane %v6578, %v7057
    %v7059 = vsel %vm6872, %v7058, %v7054
    %v7060 = vlaneseq
    %v7061 = vshrl.u32 %v7060, 7
    %v7062 = vsub.s32 %v6874, %v7061
    %v7063 = vrot.slane %v6581, %v7062
    %v7064 = vsel %vm6879, %v7063, %v7059
    %v7065 = vlaneseq
    %v7066 = vshrl.u32 %v7065, 7
    %v7067 = vsub.s32 %v6881, %v7066
    %v7068 = vrot.slane %v6584, %v7067
    %v7069 = vsel %vm6886, %v7068, %v7064
    %v7070 = vlaneseq
    %v7071 = vshrl.u32 %v7070, 7
    %v7072 = vsub.s32 %v6888, %v7071
    %v7073 = vrot.slane %v6587, %v7072
    %v7074 = vsel %vm6893, %v7073, %v7069
    %v7075 = vlaneseq
    %v7076 = vshrl.u32 %v7075, 7
    %v7077 = vsub.s32 %v6895, %v7076
    %v7078 = vrot.slane %v6590, %v7077
    %v7079 = vsel %vm6900, %v7078, %v7074
    %v7080 = vlaneseq
    %v7081 = vshrl.u32 %v7080, 7
    %v7082 = vsub.s32 %v6902, %v7081
    %v7083 = vrot.slane %v6593, %v7082
    %v7084 = vsel %vm6907, %v7083, %v7079
    %v7085 = vlaneseq
    %v7086 = vshrl.u32 %v7085, 7
    %v7087 = vsub.s32 %v6909, %v7086
    %v7088 = vrot.slane %v6596, %v7087
    %v7089 = vsel %vm6914, %v7088, %v7084
    %v7090 = vlaneseq
    %v7091 = vshrl.u32 %v7090, 7
    %v7092 = vsub.s32 %v6916, %v7091
    %v7093 = vrot.slane %v6599, %v7092
    %v7094 = vsel %vm6921, %v7093, %v7089
    %v7095 = vlaneseq
    %v7096 = vshrl.u32 %v7095, 7
    %v7097 = vsub.s32 %v6923, %v7096
    %v7098 = vrot.slane %v6602, %v7097
    %v7099 = vsel %vm6928, %v7098, %v7094
    %v7100 = vlaneseq
    %v7101 = vshrl.u32 %v7100, 7
    %v7102 = vsub.s32 %v6930, %v7101
    %v7103 = vrot.slane %v6605, %v7102
    %v7104 = vsel %vm6935, %v7103, %v7099
    %v7105 = vlaneseq
    %v7106 = vshrl.u32 %v7105, 7
    %v7107 = vsub.s32 %v6937, %v7106
    %v7108 = vrot.slane %v6608, %v7107
    %v7109 = vsel %vm6942, %v7108, %v7104
    %v7110 = vlaneseq
    %v7111 = vshrl.u32 %v7110, 7
    %v7112 = vsub.s32 %v6944, %v7111
    %v7113 = vrot.slane %v6611, %v7112
    %v7114 = vsel %vm6949, %v7113, %v7109
    %v7115 = vlaneseq
    %v7116 = vshrl.u32 %v7115, 7
    %v7117 = vsub.s32 %v6951, %v7116
    %v7118 = vrot.slane %v6614, %v7117
    %v7119 = vsel %vm6956, %v7118, %v7114
    %v7120 = vlaneseq
    %v7121 = vshrl.u32 %v7120, 7
    %v7122 = vsub.s32 %v6958, %v7121
    %v7123 = vrot.slane %v6617, %v7122
    %v7124 = vsel %vm6963, %v7123, %v7119
    %v7125 = vlaneseq
    %v7126 = vshrl.u32 %v7125, 7
    %v7127 = vsub.s32 %v6965, %v7126
    %v7128 = vrot.slane %v6620, %v7127
    %v7129 = vsel %vm6970, %v7128, %v7124
    %v7130 = vlaneseq
    %v7131 = vshrl.u32 %v7130, 7
    %v7132 = vsub.s32 %v6862, %v7131
    %v7133 = vrot.slane %v6623, %v7132
    %v7134 = vlaneseq
    %v7135 = vshrl.u32 %v7134, 7
    %v7136 = vsub.s32 %v6867, %v7135
    %v7137 = vrot.slane %v6626, %v7136
    %v7138 = vsel %vm6872, %v7137, %v7133
    %v7139 = vlaneseq
    %v7140 = vshrl.u32 %v7139, 7
    %v7141 = vsub.s32 %v6874, %v7140
    %v7142 = vrot.slane %v6629, %v7141
    %v7143 = vsel %vm6879, %v7142, %v7138
    %v7144 = vlaneseq
    %v7145 = vshrl.u32 %v7144, 7
    %v7146 = vsub.s32 %v6881, %v7145
    %v7147 = vrot.slane %v6632, %v7146
    %v7148 = vsel %vm6886, %v7147, %v7143
    %v7149 = vlaneseq
    %v7150 = vshrl.u32 %v7149, 7
    %v7151 = vsub.s32 %v6888, %v7150
    %v7152 = vrot.slane %v6635, %v7151
    %v7153 = vsel %vm6893, %v7152, %v7148
    %v7154 = vlaneseq
    %v7155 = vshrl.u32 %v7154, 7
    %v7156 = vsub.s32 %v6895, %v7155
    %v7157 = vrot.slane %v6638, %v7156
    %v7158 = vsel %vm6900, %v7157, %v7153
    %v7159 = vlaneseq
    %v7160 = vshrl.u32 %v7159, 7
    %v7161 = vsub.s32 %v6902, %v7160
    %v7162 = vrot.slane %v6641, %v7161
    %v7163 = vsel %vm6907, %v7162, %v7158
    %v7164 = vlaneseq
    %v7165 = vshrl.u32 %v7164, 7
    %v7166 = vsub.s32 %v6909, %v7165
    %v7167 = vrot.slane %v6644, %v7166
    %v7168 = vsel %vm6914, %v7167, %v7163
    %v7169 = vlaneseq
    %v7170 = vshrl.u32 %v7169, 7
    %v7171 = vsub.s32 %v6916, %v7170
    %v7172 = vrot.slane %v6647, %v7171
    %v7173 = vsel %vm6921, %v7172, %v7168
    %v7174 = vlaneseq
    %v7175 = vshrl.u32 %v7174, 7
    %v7176 = vsub.s32 %v6923, %v7175
    %v7177 = vrot.slane %v6650, %v7176
    %v7178 = vsel %vm6928, %v7177, %v7173
    %v7179 = vlaneseq
    %v7180 = vshrl.u32 %v7179, 7
    %v7181 = vsub.s32 %v6930, %v7180
    %v7182 = vrot.slane %v6653, %v7181
    %v7183 = vsel %vm6935, %v7182, %v7178
    %v7184 = vlaneseq
    %v7185 = vshrl.u32 %v7184, 7
    %v7186 = vsub.s32 %v6937, %v7185
    %v7187 = vrot.slane %v6656, %v7186
    %v7188 = vsel %vm6942, %v7187, %v7183
    %v7189 = vlaneseq
    %v7190 = vshrl.u32 %v7189, 7
    %v7191 = vsub.s32 %v6944, %v7190
    %v7192 = vrot.slane %v6659, %v7191
    %v7193 = vsel %vm6949, %v7192, %v7188
    %v7194 = vlaneseq
    %v7195 = vshrl.u32 %v7194, 7
    %v7196 = vsub.s32 %v6951, %v7195
    %v7197 = vrot.slane %v6662, %v7196
    %v7198 = vsel %vm6956, %v7197, %v7193
    %v7199 = vlaneseq
    %v7200 = vshrl.u32 %v7199, 7
    %v7201 = vsub.s32 %v6958, %v7200
    %v7202 = vrot.slane %v6665, %v7201
    %v7203 = vsel %vm6963, %v7202, %v7198
    %v7204 = vlaneseq
    %v7205 = vshrl.u32 %v7204, 7
    %v7206 = vsub.s32 %v6965, %v7205
    %v7207 = vrot.slane %v6668, %v7206
    %v7208 = vsel %vm6970, %v7207, %v7203
    %v7209 = vlaneseq
    %v7210 = vshrl.u32 %v7209, 7
    %v7211 = vsub.s32 %v6862, %v7210
    %v7212 = vrot.slane %v6671, %v7211
    %v7213 = vlaneseq
    %v7214 = vshrl.u32 %v7213, 7
    %v7215 = vsub.s32 %v6867, %v7214
    %v7216 = vrot.slane %v6674, %v7215
    %v7217 = vsel %vm6872, %v7216, %v7212
    %v7218 = vlaneseq
    %v7219 = vshrl.u32 %v7218, 7
    %v7220 = vsub.s32 %v6874, %v7219
    %v7221 = vrot.slane %v6677, %v7220
    %v7222 = vsel %vm6879, %v7221, %v7217
    %v7223 = vlaneseq
    %v7224 = vshrl.u32 %v7223, 7
    %v7225 = vsub.s32 %v6881, %v7224
    %v7226 = vrot.slane %v6680, %v7225
    %v7227 = vsel %vm6886, %v7226, %v7222
    %v7228 = vlaneseq
    %v7229 = vshrl.u32 %v7228, 7
    %v7230 = vsub.s32 %v6888, %v7229
    %v7231 = vrot.slane %v6683, %v7230
    %v7232 = vsel %vm6893, %v7231, %v7227
    %v7233 = vlaneseq
    %v7234 = vshrl.u32 %v7233, 7
    %v7235 = vsub.s32 %v6895, %v7234
    %v7236 = vrot.slane %v6686, %v7235
    %v7237 = vsel %vm6900, %v7236, %v7232
    %v7238 = vlaneseq
    %v7239 = vshrl.u32 %v7238, 7
    %v7240 = vsub.s32 %v6902, %v7239
    %v7241 = vrot.slane %v6689, %v7240
    %v7242 = vsel %vm6907, %v7241, %v7237
    %v7243 = vlaneseq
    %v7244 = vshrl.u32 %v7243, 7
    %v7245 = vsub.s32 %v6909, %v7244
    %v7246 = vrot.slane %v6692, %v7245
    %v7247 = vsel %vm6914, %v7246, %v7242
    %v7248 = vlaneseq
    %v7249 = vshrl.u32 %v7248, 7
    %v7250 = vsub.s32 %v6916, %v7249
    %v7251 = vrot.slane %v6695, %v7250
    %v7252 = vsel %vm6921, %v7251, %v7247
    %v7253 = vlaneseq
    %v7254 = vshrl.u32 %v7253, 7
    %v7255 = vsub.s32 %v6923, %v7254
    %v7256 = vrot.slane %v6698, %v7255
    %v7257 = vsel %vm6928, %v7256, %v7252
    %v7258 = vlaneseq
    %v7259 = vshrl.u32 %v7258, 7
    %v7260 = vsub.s32 %v6930, %v7259
    %v7261 = vrot.slane %v6701, %v7260
    %v7262 = vsel %vm6935, %v7261, %v7257
    %v7263 = vlaneseq
    %v7264 = vshrl.u32 %v7263, 7
    %v7265 = vsub.s32 %v6937, %v7264
    %v7266 = vrot.slane %v6704, %v7265
    %v7267 = vsel %vm6942, %v7266, %v7262
    %v7268 = vlaneseq
    %v7269 = vshrl.u32 %v7268, 7
    %v7270 = vsub.s32 %v6944, %v7269
    %v7271 = vrot.slane %v6707, %v7270
    %v7272 = vsel %vm6949, %v7271, %v7267
    %v7273 = vlaneseq
    %v7274 = vshrl.u32 %v7273, 7
    %v7275 = vsub.s32 %v6951, %v7274
    %v7276 = vrot.slane %v6710, %v7275
    %v7277 = vsel %vm6956, %v7276, %v7272
    %v7278 = vlaneseq
    %v7279 = vshrl.u32 %v7278, 7
    %v7280 = vsub.s32 %v6958, %v7279
    %v7281 = vrot.slane %v6713, %v7280
    %v7282 = vsel %vm6963, %v7281, %v7277
    %v7283 = vlaneseq
    %v7284 = vshrl.u32 %v7283, 7
    %v7285 = vsub.s32 %v6965, %v7284
    %v7286 = vrot.slane %v6716, %v7285
    %v7287 = vsel %vm6970, %v7286, %v7282
    %v7288 = vlaneseq
    %v7289 = vshrl.u32 %v7288, 7
    %v7290 = vsub.s32 %v6862, %v7289
    %v7291 = vrot.slane %v6719, %v7290
    %v7292 = vlaneseq
    %v7293 = vshrl.u32 %v7292, 7
    %v7294 = vsub.s32 %v6867, %v7293
    %v7295 = vrot.slane %v6722, %v7294
    %v7296 = vsel %vm6872, %v7295, %v7291
    %v7297 = vlaneseq
    %v7298 = vshrl.u32 %v7297, 7
    %v7299 = vsub.s32 %v6874, %v7298
    %v7300 = vrot.slane %v6725, %v7299
    %v7301 = vsel %vm6879, %v7300, %v7296
    %v7302 = vlaneseq
    %v7303 = vshrl.u32 %v7302, 7
    %v7304 = vsub.s32 %v6881, %v7303
    %v7305 = vrot.slane %v6728, %v7304
    %v7306 = vsel %vm6886, %v7305, %v7301
    %v7307 = vlaneseq
    %v7308 = vshrl.u32 %v7307, 7
    %v7309 = vsub.s32 %v6888, %v7308
    %v7310 = vrot.slane %v6731, %v7309
    %v7311 = vsel %vm6893, %v7310, %v7306
    %v7312 = vlaneseq
    %v7313 = vshrl.u32 %v7312, 7
    %v7314 = vsub.s32 %v6895, %v7313
    %v7315 = vrot.slane %v6734, %v7314
    %v7316 = vsel %vm6900, %v7315, %v7311
    %v7317 = vlaneseq
    %v7318 = vshrl.u32 %v7317, 7
    %v7319 = vsub.s32 %v6902, %v7318
    %v7320 = vrot.slane %v6737, %v7319
    %v7321 = vsel %vm6907, %v7320, %v7316
    %v7322 = vlaneseq
    %v7323 = vshrl.u32 %v7322, 7
    %v7324 = vsub.s32 %v6909, %v7323
    %v7325 = vrot.slane %v6740, %v7324
    %v7326 = vsel %vm6914, %v7325, %v7321
    %v7327 = vlaneseq
    %v7328 = vshrl.u32 %v7327, 7
    %v7329 = vsub.s32 %v6916, %v7328
    %v7330 = vrot.slane %v6743, %v7329
    %v7331 = vsel %vm6921, %v7330, %v7326
    %v7332 = vlaneseq
    %v7333 = vshrl.u32 %v7332, 7
    %v7334 = vsub.s32 %v6923, %v7333
    %v7335 = vrot.slane %v6746, %v7334
    %v7336 = vsel %vm6928, %v7335, %v7331
    %v7337 = vlaneseq
    %v7338 = vshrl.u32 %v7337, 7
    %v7339 = vsub.s32 %v6930, %v7338
    %v7340 = vrot.slane %v6749, %v7339
    %v7341 = vsel %vm6935, %v7340, %v7336
    %v7342 = vlaneseq
    %v7343 = vshrl.u32 %v7342, 7
    %v7344 = vsub.s32 %v6937, %v7343
    %v7345 = vrot.slane %v6752, %v7344
    %v7346 = vsel %vm6942, %v7345, %v7341
    %v7347 = vlaneseq
    %v7348 = vshrl.u32 %v7347, 7
    %v7349 = vsub.s32 %v6944, %v7348
    %v7350 = vrot.slane %v6755, %v7349
    %v7351 = vsel %vm6949, %v7350, %v7346
    %v7352 = vlaneseq
    %v7353 = vshrl.u32 %v7352, 7
    %v7354 = vsub.s32 %v6951, %v7353
    %v7355 = vrot.slane %v6758, %v7354
    %v7356 = vsel %vm6956, %v7355, %v7351
    %v7357 = vlaneseq
    %v7358 = vshrl.u32 %v7357, 7
    %v7359 = vsub.s32 %v6958, %v7358
    %v7360 = vrot.slane %v6761, %v7359
    %v7361 = vsel %vm6963, %v7360, %v7356
    %v7362 = vlaneseq
    %v7363 = vshrl.u32 %v7362, 7
    %v7364 = vsub.s32 %v6965, %v7363
    %v7365 = vrot.slane %v6764, %v7364
    %v7366 = vsel %vm6970, %v7365, %v7361
    %v7367 = vlaneseq
    %v7368 = vshrl.u32 %v7367, 7
    %v7369 = vsub.s32 %v6862, %v7368
    %v7370 = vrot.slane %v6767, %v7369
    %v7371 = vlaneseq
    %v7372 = vshrl.u32 %v7371, 7
    %v7373 = vsub.s32 %v6867, %v7372
    %v7374 = vrot.slane %v6770, %v7373
    %v7375 = vsel %vm6872, %v7374, %v7370
    %v7376 = vlaneseq
    %v7377 = vshrl.u32 %v7376, 7
    %v7378 = vsub.s32 %v6874, %v7377
    %v7379 = vrot.slane %v6773, %v7378
    %v7380 = vsel %vm6879, %v7379, %v7375
    %v7381 = vlaneseq
    %v7382 = vshrl.u32 %v7381, 7
    %v7383 = vsub.s32 %v6881, %v7382
    %v7384 = vrot.slane %v6776, %v7383
    %v7385 = vsel %vm6886, %v7384, %v7380
    %v7386 = vlaneseq
    %v7387 = vshrl.u32 %v7386, 7
    %v7388 = vsub.s32 %v6888, %v7387
    %v7389 = vrot.slane %v6779, %v7388
    %v7390 = vsel %vm6893, %v7389, %v7385
    %v7391 = vlaneseq
    %v7392 = vshrl.u32 %v7391, 7
    %v7393 = vsub.s32 %v6895, %v7392
    %v7394 = vrot.slane %v6782, %v7393
    %v7395 = vsel %vm6900, %v7394, %v7390
    %v7396 = vlaneseq
    %v7397 = vshrl.u32 %v7396, 7
    %v7398 = vsub.s32 %v6902, %v7397
    %v7399 = vrot.slane %v6785, %v7398
    %v7400 = vsel %vm6907, %v7399, %v7395
    %v7401 = vlaneseq
    %v7402 = vshrl.u32 %v7401, 7
    %v7403 = vsub.s32 %v6909, %v7402
    %v7404 = vrot.slane %v6788, %v7403
    %v7405 = vsel %vm6914, %v7404, %v7400
    %v7406 = vlaneseq
    %v7407 = vshrl.u32 %v7406, 7
    %v7408 = vsub.s32 %v6916, %v7407
    %v7409 = vrot.slane %v6791, %v7408
    %v7410 = vsel %vm6921, %v7409, %v7405
    %v7411 = vlaneseq
    %v7412 = vshrl.u32 %v7411, 7
    %v7413 = vsub.s32 %v6923, %v7412
    %v7414 = vrot.slane %v6794, %v7413
    %v7415 = vsel %vm6928, %v7414, %v7410
    %v7416 = vlaneseq
    %v7417 = vshrl.u32 %v7416, 7
    %v7418 = vsub.s32 %v6930, %v7417
    %v7419 = vrot.slane %v6797, %v7418
    %v7420 = vsel %vm6935, %v7419, %v7415
    %v7421 = vlaneseq
    %v7422 = vshrl.u32 %v7421, 7
    %v7423 = vsub.s32 %v6937, %v7422
    %v7424 = vrot.slane %v6800, %v7423
    %v7425 = vsel %vm6942, %v7424, %v7420
    %v7426 = vlaneseq
    %v7427 = vshrl.u32 %v7426, 7
    %v7428 = vsub.s32 %v6944, %v7427
    %v7429 = vrot.slane %v6803, %v7428
    %v7430 = vsel %vm6949, %v7429, %v7425
    %v7431 = vlaneseq
    %v7432 = vshrl.u32 %v7431, 7
    %v7433 = vsub.s32 %v6951, %v7432
    %v7434 = vrot.slane %v6806, %v7433
    %v7435 = vsel %vm6956, %v7434, %v7430
    %v7436 = vlaneseq
    %v7437 = vshrl.u32 %v7436, 7
    %v7438 = vsub.s32 %v6958, %v7437
    %v7439 = vrot.slane %v6809, %v7438
    %v7440 = vsel %vm6963, %v7439, %v7435
    %v7441 = vlaneseq
    %v7442 = vshrl.u32 %v7441, 7
    %v7443 = vsub.s32 %v6965, %v7442
    %v7444 = vrot.slane %v6812, %v7443
    %v7445 = vsel %vm6970, %v7444, %v7440
    %v7446 = vlaneseq
    %v7447 = vshrl.u32 %v7446, 7
    %v7448 = vsub.s32 %v6862, %v7447
    %v7449 = vrot.slane %v6815, %v7448
    %v7450 = vlaneseq
    %v7451 = vshrl.u32 %v7450, 7
    %v7452 = vsub.s32 %v6867, %v7451
    %v7453 = vrot.slane %v6818, %v7452
    %v7454 = vsel %vm6872, %v7453, %v7449
    %v7455 = vlaneseq
    %v7456 = vshrl.u32 %v7455, 7
    %v7457 = vsub.s32 %v6874, %v7456
    %v7458 = vrot.slane %v6821, %v7457
    %v7459 = vsel %vm6879, %v7458, %v7454
    %v7460 = vlaneseq
    %v7461 = vshrl.u32 %v7460, 7
    %v7462 = vsub.s32 %v6881, %v7461
    %v7463 = vrot.slane %v6824, %v7462
    %v7464 = vsel %vm6886, %v7463, %v7459
    %v7465 = vlaneseq
    %v7466 = vshrl.u32 %v7465, 7
    %v7467 = vsub.s32 %v6888, %v7466
    %v7468 = vrot.slane %v6827, %v7467
    %v7469 = vsel %vm6893, %v7468, %v7464
    %v7470 = vlaneseq
    %v7471 = vshrl.u32 %v7470, 7
    %v7472 = vsub.s32 %v6895, %v7471
    %v7473 = vrot.slane %v6830, %v7472
    %v7474 = vsel %vm6900, %v7473, %v7469
    %v7475 = vlaneseq
    %v7476 = vshrl.u32 %v7475, 7
    %v7477 = vsub.s32 %v6902, %v7476
    %v7478 = vrot.slane %v6833, %v7477
    %v7479 = vsel %vm6907, %v7478, %v7474
    %v7480 = vlaneseq
    %v7481 = vshrl.u32 %v7480, 7
    %v7482 = vsub.s32 %v6909, %v7481
    %v7483 = vrot.slane %v6836, %v7482
    %v7484 = vsel %vm6914, %v7483, %v7479
    %v7485 = vlaneseq
    %v7486 = vshrl.u32 %v7485, 7
    %v7487 = vsub.s32 %v6916, %v7486
    %v7488 = vrot.slane %v6839, %v7487
    %v7489 = vsel %vm6921, %v7488, %v7484
    %v7490 = vlaneseq
    %v7491 = vshrl.u32 %v7490, 7
    %v7492 = vsub.s32 %v6923, %v7491
    %v7493 = vrot.slane %v6842, %v7492
    %v7494 = vsel %vm6928, %v7493, %v7489
    %v7495 = vlaneseq
    %v7496 = vshrl.u32 %v7495, 7
    %v7497 = vsub.s32 %v6930, %v7496
    %v7498 = vrot.slane %v6845, %v7497
    %v7499 = vsel %vm6935, %v7498, %v7494
    %v7500 = vlaneseq
    %v7501 = vshrl.u32 %v7500, 7
    %v7502 = vsub.s32 %v6937, %v7501
    %v7503 = vrot.slane %v6848, %v7502
    %v7504 = vsel %vm6942, %v7503, %v7499
    %v7505 = vlaneseq
    %v7506 = vshrl.u32 %v7505, 7
    %v7507 = vsub.s32 %v6944, %v7506
    %v7508 = vrot.slane %v6851, %v7507
    %v7509 = vsel %vm6949, %v7508, %v7504
    %v7510 = vlaneseq
    %v7511 = vshrl.u32 %v7510, 7
    %v7512 = vsub.s32 %v6951, %v7511
    %v7513 = vrot.slane %v6854, %v7512
    %v7514 = vsel %vm6956, %v7513, %v7509
    %v7515 = vlaneseq
    %v7516 = vshrl.u32 %v7515, 7
    %v7517 = vsub.s32 %v6958, %v7516
    %v7518 = vrot.slane %v6857, %v7517
    %v7519 = vsel %vm6963, %v7518, %v7514
    %v7520 = vlaneseq
    %v7521 = vshrl.u32 %v7520, 7
    %v7522 = vsub.s32 %v6965, %v7521
    %v7523 = vrot.slane %v6860, %v7522
    %v7524 = vsel %vm6970, %v7523, %v7519
    %vm7525 = vcmask 1041409
    %v7526 = vsel %vm7525, %v7050, %v6971
    %vm7527 = vcmask 1042434
    %v7528 = vsel %vm7527, %v7129, %v7526
    %vm7529 = vcmask 1043459
    %v7530 = vsel %vm7529, %v7208, %v7528
    %vm7531 = vcmask 1044484
    %v7532 = vsel %vm7531, %v7287, %v7530
    %vm7533 = vcmask 1045509
    %v7534 = vsel %vm7533, %v7366, %v7532
    %vm7535 = vcmask 1046534
    %v7536 = vsel %vm7535, %v7445, %v7534
    %vm7537 = vcmask 1047559
    %v7538 = vsel %vm7537, %v7524, %v7536
    %v7539 = vpack.c.b16 %v7538, %v7538
    %v7557 = vunpack.c.l.b16 %v6257
    %v7558 = vunpack.c.h.b16 %v6257
    %v7559 = vunpack.c.l.b16 %v6258
    %v7560 = vunpack.c.h.b16 %v6258
    %v7561 = vunpack.c.l.b16 %v6259
    %v7562 = vunpack.c.h.b16 %v6259
    %v7563 = vunpack.c.l.b16 %v6260
    %v7564 = vunpack.c.h.b16 %v6260
    %v7565 = vunpack.c.l.b16 %v6261
    %v7566 = vunpack.c.h.b16 %v6261
    %v7567 = vunpack.c.l.b16 %v6262
    %v7568 = vunpack.c.h.b16 %v6262
    %v7569 = vunpack.c.l.b16 %v6263
    %v7570 = vunpack.c.h.b16 %v6263
    %v7571 = vunpack.c.l.b16 %v6264
    %v7572 = vunpack.c.h.b16 %v6264
    %v7573 = vunpack.c.l.b16 %v6265
    %v7574 = vunpack.c.h.b16 %v6265
    %v7575 = vunpack.c.l.b16 %v6266
    %v7576 = vunpack.c.h.b16 %v6266
    %v7577 = vunpack.c.l.b16 %v6267
    %v7578 = vunpack.c.h.b16 %v6267
    %v7579 = vunpack.c.l.b16 %v6268
    %v7580 = vunpack.c.h.b16 %v6268
    %v7581 = vunpack.c.l.b16 %v6269
    %v7582 = vunpack.c.h.b16 %v6269
    %v7583 = vunpack.c.l.b16 %v6270
    %v7584 = vunpack.c.h.b16 %v6270
    %v7585 = vunpack.c.l.b16 %v6271
    %v7586 = vunpack.c.h.b16 %v6271
    %v7587 = vunpack.c.l.b16 %v6272
    %v7588 = vunpack.c.h.b16 %v6272
    %v7589 = vpack.c.b16 %v7559, %v7557
    %v7590 = vpack.c.b16 %v7560, %v7558
    %v7591 = vpack.c.b16 %v7563, %v7561
    %v7592 = vpack.c.b16 %v7564, %v7562
    %v7593 = vpack.c.b16 %v7567, %v7565
    %v7594 = vpack.c.b16 %v7568, %v7566
    %v7595 = vpack.c.b16 %v7571, %v7569
    %v7596 = vpack.c.b16 %v7572, %v7570
    %v7597 = vpack.c.b16 %v7575, %v7573
    %v7598 = vpack.c.b16 %v7576, %v7574
    %v7599 = vpack.c.b16 %v7579, %v7577
    %v7600 = vpack.c.b16 %v7580, %v7578
    %v7601 = vpack.c.b16 %v7583, %v7581
    %v7602 = vpack.c.b16 %v7584, %v7582
    %v7603 = vpack.c.b16 %v7587, %v7585
    %v7604 = vpack.c.b16 %v7588, %v7586
    %7621 = vmatprep.subr.bf16.mxu0 %v7590
    %7622 = vmatpush1.bf16.msra.mxu0 %v7589
    %7623 = vmatprep.subr.bf16.mxu0 %v7592
    %7624 = vmatpush1.bf16.msra.mxu0 %v7591
    %7625 = vmatprep.subr.bf16.mxu0 %v7594
    %7626 = vmatpush1.bf16.msra.mxu0 %v7593
    %7627 = vmatprep.subr.bf16.mxu0 %v7596
    %7628 = vmatpush1.bf16.msra.mxu0 %v7595
    %7629 = vmatprep.subr.bf16.mxu0 %v7598
    %7630 = vmatpush1.bf16.msra.mxu0 %v7597
    %7631 = vmatprep.subr.bf16.mxu0 %v7600
    %7632 = vmatpush1.bf16.msra.mxu0 %v7599
    %7633 = vmatprep.subr.bf16.mxu0 %v7602
    %7634 = vmatpush1.bf16.msra.mxu0 %v7601
    %7635 = vmatprep.subr.bf16.mxu0 %v7604
    %7636 = vmatpush1.bf16.msra.mxu0 %v7603
    %7637 = vmatprep.subr.bf16.mxu0 0
    %7638 = vmatpush1.bf16.msra.mxu0 0
    %7639 = vmatprep.subr.bf16.mxu0 0
    %7640 = vmatpush1.bf16.msra.mxu0 0
    %7641 = vmatprep.subr.bf16.mxu0 0
    %7642 = vmatpush1.bf16.msra.mxu0 0
    %7643 = vmatprep.subr.bf16.mxu0 0
    %7644 = vmatpush1.bf16.msra.mxu0 0
    %7645 = vmatprep.subr.bf16.mxu0 0
    %7646 = vmatpush1.bf16.msra.mxu0 0
    %7647 = vmatprep.subr.bf16.mxu0 0
    %7648 = vmatpush1.bf16.msra.mxu0 0
    %7649 = vmatprep.subr.bf16.mxu0 0
    %7650 = vmatpush1.bf16.msra.mxu0 0
    %7651 = vmatprep.subr.bf16.mxu0 0
    %7652 = vmatpush1.bf16.msra.mxu0 0
    %7653 = vmatprep.mubr.bf16.mxu0 0
    %7654 = vmatmul.mubr.bf16.gmra.mrb[0].mxu0 %v7539
    %v7655 = vpop.f32.mrb[0].mxu0
    %v7656 = vadd.f32 %v6278, %v7655
    %v7657 = vpop.f32.mrb[0].mxu0
    %v7658 = vadd.f32 %v6282, %v7657
    %v7659 = vpop.f32.mrb[0].mxu0
    %v7660 = vpop.f32.mrb[0].mxu0
    %7661 = vdwg.mxu0
    %v7662 = vmax.f32 %v7656, 0.0
    %v7663 = vmax.f32 %v7658, 0.0
    %v7664 = vpack.c.bf16 %v7662, %v7662
    %v7665 = vpack.c.bf16 %v7663, %v7663
    %v7666 = vld [vmem:[%s6] sm:$0xff]
    %v7667 = vld [vmem:[%s6 + $0x8] sm:$0xff]
    %v7668 = vld [vmem:[%s6 + $0x10] sm:$0xff]
    %v7669 = vld [vmem:[%s6 + $0x18] sm:$0xff]
    %v7670 = vld [vmem:[%s6 + $0x20] sm:$0xff]
    %v7671 = vld [vmem:[%s6 + $0x28] sm:$0xff]
    %v7672 = vld [vmem:[%s6 + $0x30] sm:$0xff]
    %v7673 = vld [vmem:[%s6 + $0x38] sm:$0xff]
    %v7674 = vld [vmem:[%s6 + $0x40] sm:$0xff]
    %v7675 = vld [vmem:[%s6 + $0x48] sm:$0xff]
    %v7676 = vld [vmem:[%s6 + $0x50] sm:$0xff]
    %v7677 = vld [vmem:[%s6 + $0x58] sm:$0xff]
    %v7678 = vld [vmem:[%s6 + $0x60] sm:$0xff]
    %v7679 = vld [vmem:[%s6 + $0x68] sm:$0xff]
    %v7680 = vld [vmem:[%s6 + $0x70] sm:$0xff]
    %v7681 = vld [vmem:[%s6 + $0x78] sm:$0xff]
    %v7682 = vld [vmem:[%s6 + $0x80] sm:$0xff]
    %v7683 = vld [vmem:[%s6 + $0x88] sm:$0xff]
    %v7684 = vld [vmem:[%s6 + $0x90] sm:$0xff]
    %v7685 = vld [vmem:[%s6 + $0x98] sm:$0xff]
    %v7686 = vld [vmem:[%s6 + $0xa0] sm:$0xff]
    %v7687 = vld [vmem:[%s6 + $0xa8] sm:$0xff]
    %v7688 = vld [vmem:[%s6 + $0xb0] sm:$0xff]
    %v7689 = vld [vmem:[%s6 + $0xb8] sm:$0xff]
    %v7690 = vld [vmem:[%s6 + $0xc0] sm:$0xff]
    %v7691 = vld [vmem:[%s6 + $0xc8] sm:$0xff]
    %v7692 = vld [vmem:[%s6 + $0xd0] sm:$0xff]
    %v7693 = vld [vmem:[%s6 + $0xd8] sm:$0xff]
    %v7694 = vld [vmem:[%s6 + $0xe0] sm:$0xff]
    %v7695 = vld [vmem:[%s6 + $0xe8] sm:$0xff]
    %v7696 = vld [vmem:[%s6 + $0xf0] sm:$0xff]
    %v7697 = vld [vmem:[%s6 + $0xf8] sm:$0xff]
    %v7698 = vld [vmem:[%s6 + $0x100] sm:$0xff]
    %v7699 = vld [vmem:[%s6 + $0x108] sm:$0xff]
    %v7700 = vld [vmem:[%s6 + $0x110] sm:$0xff]
    %v7701 = vld [vmem:[%s6 + $0x118] sm:$0xff]
    %v7702 = vld [vmem:[%s6 + $0x120] sm:$0xff]
    %v7703 = vld [vmem:[%s6 + $0x128] sm:$0xff]
    %v7704 = vld [vmem:[%s6 + $0x130] sm:$0xff]
    %v7705 = vld [vmem:[%s6 + $0x138] sm:$0xff]
    %v7706 = vld [vmem:[%s6 + $0x140] sm:$0xff]
    %v7707 = vld [vmem:[%s6 + $0x148] sm:$0xff]
    %v7708 = vld [vmem:[%s6 + $0x150] sm:$0xff]
    %v7709 = vld [vmem:[%s6 + $0x158] sm:$0xff]
    %v7710 = vld [vmem:[%s6 + $0x160] sm:$0xff]
    %v7711 = vld [vmem:[%s6 + $0x168] sm:$0xff]
    %v7712 = vld [vmem:[%s6 + $0x170] sm:$0xff]
    %v7713 = vld [vmem:[%s6 + $0x178] sm:$0xff]
    %v7714 = vld [vmem:[%s6 + $0x180] sm:$0xff]
    %v7715 = vld [vmem:[%s6 + $0x188] sm:$0xff]
    %v7716 = vld [vmem:[%s6 + $0x190] sm:$0xff]
    %v7717 = vld [vmem:[%s6 + $0x198] sm:$0xff]
    %v7718 = vld [vmem:[%s6 + $0x1a0] sm:$0xff]
    %v7719 = vld [vmem:[%s6 + $0x1a8] sm:$0xff]
    %v7720 = vld [vmem:[%s6 + $0x1b0] sm:$0xff]
    %v7721 = vld [vmem:[%s6 + $0x1b8] sm:$0xff]
    %v7722 = vld [vmem:[%s6 + $0x1c0] sm:$0xff]
    %v7723 = vld [vmem:[%s6 + $0x1c8] sm:$0xff]
    %v7724 = vld [vmem:[%s6 + $0x1d0] sm:$0xff]
    %v7725 = vld [vmem:[%s6 + $0x1d8] sm:$0xff]
    %v7726 = vld [vmem:[%s6 + $0x1e0] sm:$0xff]
    %v7727 = vld [vmem:[%s6 + $0x1e8] sm:$0xff]
    %v7728 = vld [vmem:[%s6 + $0x1f0] sm:$0xff]
    %v7729 = vld [vmem:[%s6 + $0x1f8] sm:$0xff]
    %v7730 = vld [vmem:[%s6 + $0x200] sm:$0xff]
    %v7731 = vld [vmem:[%s6 + $0x208] sm:$0xff]
    %v7732 = vld [vmem:[%s6 + $0x210] sm:$0xff]
    %v7733 = vld [vmem:[%s6 + $0x218] sm:$0xff]
    %v7734 = vld [vmem:[%s6 + $0x220] sm:$0xff]
    %v7735 = vld [vmem:[%s6 + $0x228] sm:$0xff]
    %v7736 = vld [vmem:[%s6 + $0x230] sm:$0xff]
    %v7737 = vld [vmem:[%s6 + $0x238] sm:$0xff]
    %v7738 = vld [vmem:[%s6 + $0x240] sm:$0xff]
    %v7739 = vld [vmem:[%s6 + $0x248] sm:$0xff]
    %v7740 = vld [vmem:[%s6 + $0x250] sm:$0xff]
    %v7741 = vld [vmem:[%s6 + $0x258] sm:$0xff]
    %v7742 = vld [vmem:[%s6 + $0x260] sm:$0xff]
    %v7743 = vld [vmem:[%s6 + $0x268] sm:$0xff]
    %v7744 = vld [vmem:[%s6 + $0x270] sm:$0xff]
    %v7745 = vld [vmem:[%s6 + $0x278] sm:$0xff]
    %v7746 = vld [vmem:[%s6 + $0x280] sm:$0xff]
    %v7747 = vld [vmem:[%s6 + $0x288] sm:$0xff]
    %v7748 = vld [vmem:[%s6 + $0x290] sm:$0xff]
    %v7749 = vld [vmem:[%s6 + $0x298] sm:$0xff]
    %v7750 = vld [vmem:[%s6 + $0x2a0] sm:$0xff]
    %v7751 = vld [vmem:[%s6 + $0x2a8] sm:$0xff]
    %v7752 = vld [vmem:[%s6 + $0x2b0] sm:$0xff]
    %v7753 = vld [vmem:[%s6 + $0x2b8] sm:$0xff]
    %v7754 = vld [vmem:[%s6 + $0x2c0] sm:$0xff]
    %v7755 = vld [vmem:[%s6 + $0x2c8] sm:$0xff]
    %v7756 = vld [vmem:[%s6 + $0x2d0] sm:$0xff]
    %v7757 = vld [vmem:[%s6 + $0x2d8] sm:$0xff]
    %v7758 = vld [vmem:[%s6 + $0x2e0] sm:$0xff]
    %v7759 = vld [vmem:[%s6 + $0x2e8] sm:$0xff]
    %v7760 = vld [vmem:[%s6 + $0x2f0] sm:$0xff]
    %v7761 = vld [vmem:[%s6 + $0x2f8] sm:$0xff]
    %v7762 = vld [vmem:[%s6 + $0x300] sm:$0xff]
    %v7763 = vld [vmem:[%s6 + $0x308] sm:$0xff]
    %v7764 = vld [vmem:[%s6 + $0x310] sm:$0xff]
    %v7765 = vld [vmem:[%s6 + $0x318] sm:$0xff]
    %v7766 = vld [vmem:[%s6 + $0x320] sm:$0xff]
    %v7767 = vld [vmem:[%s6 + $0x328] sm:$0xff]
    %v7768 = vld [vmem:[%s6 + $0x330] sm:$0xff]
    %v7769 = vld [vmem:[%s6 + $0x338] sm:$0xff]
    %v7770 = vld [vmem:[%s6 + $0x340] sm:$0xff]
    %v7771 = vld [vmem:[%s6 + $0x348] sm:$0xff]
    %v7772 = vld [vmem:[%s6 + $0x350] sm:$0xff]
    %v7773 = vld [vmem:[%s6 + $0x358] sm:$0xff]
    %v7774 = vld [vmem:[%s6 + $0x360] sm:$0xff]
    %v7775 = vld [vmem:[%s6 + $0x368] sm:$0xff]
    %v7776 = vld [vmem:[%s6 + $0x370] sm:$0xff]
    %v7777 = vld [vmem:[%s6 + $0x378] sm:$0xff]
    %v7778 = vld [vmem:[%s6 + $0x380] sm:$0xff]
    %v7779 = vld [vmem:[%s6 + $0x388] sm:$0xff]
    %v7780 = vld [vmem:[%s6 + $0x390] sm:$0xff]
    %v7781 = vld [vmem:[%s6 + $0x398] sm:$0xff]
    %v7782 = vld [vmem:[%s6 + $0x3a0] sm:$0xff]
    %v7783 = vld [vmem:[%s6 + $0x3a8] sm:$0xff]
    %v7784 = vld [vmem:[%s6 + $0x3b0] sm:$0xff]
    %v7785 = vld [vmem:[%s6 + $0x3b8] sm:$0xff]
    %v7786 = vld [vmem:[%s6 + $0x3c0] sm:$0xff]
    %v7787 = vld [vmem:[%s6 + $0x3c8] sm:$0xff]
    %v7788 = vld [vmem:[%s6 + $0x3d0] sm:$0xff]
    %v7789 = vld [vmem:[%s6 + $0x3d8] sm:$0xff]
    %v7790 = vld [vmem:[%s6 + $0x3e0] sm:$0xff]
    %v7791 = vld [vmem:[%s6 + $0x3e8] sm:$0xff]
    %v7792 = vld [vmem:[%s6 + $0x3f0] sm:$0xff]
    %v7793 = vld [vmem:[%s6 + $0x3f8] sm:$0xff]
    %v7794 = vld [vmem:[%s7] sm:$0xff]
    %v7796 = vlaneseq
    %v7797 = vshrl.u32 %v7796, 7
    %v7798 = vsub.s32 0, %v7797
    %v7799 = vrot.slane %v7794, %v7798
    %v7800 = vlaneseq
    %v7801 = vshrl.u32 %v7800, 7
    %v7802 = vsub.s32 1, %v7801
    %v7803 = vrot.slane %v7794, %v7802
    %v7804 = vlaneseq
    %v7805 = vshrl.u32 %v7804, 7
    %v7806 = vsub.s32 2, %v7805
    %v7807 = vrot.slane %v7794, %v7806
    %v7808 = vlaneseq
    %v7809 = vshrl.u32 %v7808, 7
    %v7810 = vsub.s32 3, %v7809
    %v7811 = vrot.slane %v7794, %v7810
    %v7812 = vlaneseq
    %v7813 = vshrl.u32 %v7812, 7
    %v7814 = vsub.s32 4, %v7813
    %v7815 = vrot.slane %v7794, %v7814
    %v7816 = vlaneseq
    %v7817 = vshrl.u32 %v7816, 7
    %v7818 = vsub.s32 5, %v7817
    %v7819 = vrot.slane %v7794, %v7818
    %v7820 = vlaneseq
    %v7821 = vshrl.u32 %v7820, 7
    %v7822 = vsub.s32 6, %v7821
    %v7823 = vrot.slane %v7794, %v7822
    %v7824 = vlaneseq
    %v7825 = vshrl.u32 %v7824, 7
    %v7826 = vsub.s32 7, %v7825
    %v7827 = vrot.slane %v7794, %v7826
    %v7964 = vunpack.c.l.b16 %v7666
    %v7965 = vunpack.c.h.b16 %v7666
    %v7966 = vunpack.c.l.b16 %v7667
    %v7967 = vunpack.c.h.b16 %v7667
    %v7968 = vunpack.c.l.b16 %v7668
    %v7969 = vunpack.c.h.b16 %v7668
    %v7970 = vunpack.c.l.b16 %v7669
    %v7971 = vunpack.c.h.b16 %v7669
    %v7972 = vunpack.c.l.b16 %v7670
    %v7973 = vunpack.c.h.b16 %v7670
    %v7974 = vunpack.c.l.b16 %v7671
    %v7975 = vunpack.c.h.b16 %v7671
    %v7976 = vunpack.c.l.b16 %v7672
    %v7977 = vunpack.c.h.b16 %v7672
    %v7978 = vunpack.c.l.b16 %v7673
    %v7979 = vunpack.c.h.b16 %v7673
    %v7980 = vunpack.c.l.b16 %v7674
    %v7981 = vunpack.c.h.b16 %v7674
    %v7982 = vunpack.c.l.b16 %v7675
    %v7983 = vunpack.c.h.b16 %v7675
    %v7984 = vunpack.c.l.b16 %v7676
    %v7985 = vunpack.c.h.b16 %v7676
    %v7986 = vunpack.c.l.b16 %v7677
    %v7987 = vunpack.c.h.b16 %v7677
    %v7988 = vunpack.c.l.b16 %v7678
    %v7989 = vunpack.c.h.b16 %v7678
    %v7990 = vunpack.c.l.b16 %v7679
    %v7991 = vunpack.c.h.b16 %v7679
    %v7992 = vunpack.c.l.b16 %v7680
    %v7993 = vunpack.c.h.b16 %v7680
    %v7994 = vunpack.c.l.b16 %v7681
    %v7995 = vunpack.c.h.b16 %v7681
    %v7996 = vunpack.c.l.b16 %v7682
    %v7997 = vunpack.c.h.b16 %v7682
    %v7998 = vunpack.c.l.b16 %v7683
    %v7999 = vunpack.c.h.b16 %v7683
    %v8000 = vunpack.c.l.b16 %v7684
    %v8001 = vunpack.c.h.b16 %v7684
    %v8002 = vunpack.c.l.b16 %v7685
    %v8003 = vunpack.c.h.b16 %v7685
    %v8004 = vunpack.c.l.b16 %v7686
    %v8005 = vunpack.c.h.b16 %v7686
    %v8006 = vunpack.c.l.b16 %v7687
    %v8007 = vunpack.c.h.b16 %v7687
    %v8008 = vunpack.c.l.b16 %v7688
    %v8009 = vunpack.c.h.b16 %v7688
    %v8010 = vunpack.c.l.b16 %v7689
    %v8011 = vunpack.c.h.b16 %v7689
    %v8012 = vunpack.c.l.b16 %v7690
    %v8013 = vunpack.c.h.b16 %v7690
    %v8014 = vunpack.c.l.b16 %v7691
    %v8015 = vunpack.c.h.b16 %v7691
    %v8016 = vunpack.c.l.b16 %v7692
    %v8017 = vunpack.c.h.b16 %v7692
    %v8018 = vunpack.c.l.b16 %v7693
    %v8019 = vunpack.c.h.b16 %v7693
    %v8020 = vunpack.c.l.b16 %v7694
    %v8021 = vunpack.c.h.b16 %v7694
    %v8022 = vunpack.c.l.b16 %v7695
    %v8023 = vunpack.c.h.b16 %v7695
    %v8024 = vunpack.c.l.b16 %v7696
    %v8025 = vunpack.c.h.b16 %v7696
    %v8026 = vunpack.c.l.b16 %v7697
    %v8027 = vunpack.c.h.b16 %v7697
    %v8028 = vunpack.c.l.b16 %v7698
    %v8029 = vunpack.c.h.b16 %v7698
    %v8030 = vunpack.c.l.b16 %v7699
    %v8031 = vunpack.c.h.b16 %v7699
    %v8032 = vunpack.c.l.b16 %v7700
    %v8033 = vunpack.c.h.b16 %v7700
    %v8034 = vunpack.c.l.b16 %v7701
    %v8035 = vunpack.c.h.b16 %v7701
    %v8036 = vunpack.c.l.b16 %v7702
    %v8037 = vunpack.c.h.b16 %v7702
    %v8038 = vunpack.c.l.b16 %v7703
    %v8039 = vunpack.c.h.b16 %v7703
    %v8040 = vunpack.c.l.b16 %v7704
    %v8041 = vunpack.c.h.b16 %v7704
    %v8042 = vunpack.c.l.b16 %v7705
    %v8043 = vunpack.c.h.b16 %v7705
    %v8044 = vunpack.c.l.b16 %v7706
    %v8045 = vunpack.c.h.b16 %v7706
    %v8046 = vunpack.c.l.b16 %v7707
    %v8047 = vunpack.c.h.b16 %v7707
    %v8048 = vunpack.c.l.b16 %v7708
    %v8049 = vunpack.c.h.b16 %v7708
    %v8050 = vunpack.c.l.b16 %v7709
    %v8051 = vunpack.c.h.b16 %v7709
    %v8052 = vunpack.c.l.b16 %v7710
    %v8053 = vunpack.c.h.b16 %v7710
    %v8054 = vunpack.c.l.b16 %v7711
    %v8055 = vunpack.c.h.b16 %v7711
    %v8056 = vunpack.c.l.b16 %v7712
    %v8057 = vunpack.c.h.b16 %v7712
    %v8058 = vunpack.c.l.b16 %v7713
    %v8059 = vunpack.c.h.b16 %v7713
    %v8060 = vunpack.c.l.b16 %v7714
    %v8061 = vunpack.c.h.b16 %v7714
    %v8062 = vunpack.c.l.b16 %v7715
    %v8063 = vunpack.c.h.b16 %v7715
    %v8064 = vunpack.c.l.b16 %v7716
    %v8065 = vunpack.c.h.b16 %v7716
    %v8066 = vunpack.c.l.b16 %v7717
    %v8067 = vunpack.c.h.b16 %v7717
    %v8068 = vunpack.c.l.b16 %v7718
    %v8069 = vunpack.c.h.b16 %v7718
    %v8070 = vunpack.c.l.b16 %v7719
    %v8071 = vunpack.c.h.b16 %v7719
    %v8072 = vunpack.c.l.b16 %v7720
    %v8073 = vunpack.c.h.b16 %v7720
    %v8074 = vunpack.c.l.b16 %v7721
    %v8075 = vunpack.c.h.b16 %v7721
    %v8076 = vunpack.c.l.b16 %v7722
    %v8077 = vunpack.c.h.b16 %v7722
    %v8078 = vunpack.c.l.b16 %v7723
    %v8079 = vunpack.c.h.b16 %v7723
    %v8080 = vunpack.c.l.b16 %v7724
    %v8081 = vunpack.c.h.b16 %v7724
    %v8082 = vunpack.c.l.b16 %v7725
    %v8083 = vunpack.c.h.b16 %v7725
    %v8084 = vunpack.c.l.b16 %v7726
    %v8085 = vunpack.c.h.b16 %v7726
    %v8086 = vunpack.c.l.b16 %v7727
    %v8087 = vunpack.c.h.b16 %v7727
    %v8088 = vunpack.c.l.b16 %v7728
    %v8089 = vunpack.c.h.b16 %v7728
    %v8090 = vunpack.c.l.b16 %v7729
    %v8091 = vunpack.c.h.b16 %v7729
    %v8092 = vunpack.c.l.b16 %v7730
    %v8093 = vunpack.c.h.b16 %v7730
    %v8094 = vunpack.c.l.b16 %v7731
    %v8095 = vunpack.c.h.b16 %v7731
    %v8096 = vunpack.c.l.b16 %v7732
    %v8097 = vunpack.c.h.b16 %v7732
    %v8098 = vunpack.c.l.b16 %v7733
    %v8099 = vunpack.c.h.b16 %v7733
    %v8100 = vunpack.c.l.b16 %v7734
    %v8101 = vunpack.c.h.b16 %v7734
    %v8102 = vunpack.c.l.b16 %v7735
    %v8103 = vunpack.c.h.b16 %v7735
    %v8104 = vunpack.c.l.b16 %v7736
    %v8105 = vunpack.c.h.b16 %v7736
    %v8106 = vunpack.c.l.b16 %v7737
    %v8107 = vunpack.c.h.b16 %v7737
    %v8108 = vunpack.c.l.b16 %v7738
    %v8109 = vunpack.c.h.b16 %v7738
    %v8110 = vunpack.c.l.b16 %v7739
    %v8111 = vunpack.c.h.b16 %v7739
    %v8112 = vunpack.c.l.b16 %v7740
    %v8113 = vunpack.c.h.b16 %v7740
    %v8114 = vunpack.c.l.b16 %v7741
    %v8115 = vunpack.c.h.b16 %v7741
    %v8116 = vunpack.c.l.b16 %v7742
    %v8117 = vunpack.c.h.b16 %v7742
    %v8118 = vunpack.c.l.b16 %v7743
    %v8119 = vunpack.c.h.b16 %v7743
    %v8120 = vunpack.c.l.b16 %v7744
    %v8121 = vunpack.c.h.b16 %v7744
    %v8122 = vunpack.c.l.b16 %v7745
    %v8123 = vunpack.c.h.b16 %v7745
    %v8124 = vunpack.c.l.b16 %v7746
    %v8125 = vunpack.c.h.b16 %v7746
    %v8126 = vunpack.c.l.b16 %v7747
    %v8127 = vunpack.c.h.b16 %v7747
    %v8128 = vunpack.c.l.b16 %v7748
    %v8129 = vunpack.c.h.b16 %v7748
    %v8130 = vunpack.c.l.b16 %v7749
    %v8131 = vunpack.c.h.b16 %v7749
    %v8132 = vunpack.c.l.b16 %v7750
    %v8133 = vunpack.c.h.b16 %v7750
    %v8134 = vunpack.c.l.b16 %v7751
    %v8135 = vunpack.c.h.b16 %v7751
    %v8136 = vunpack.c.l.b16 %v7752
    %v8137 = vunpack.c.h.b16 %v7752
    %v8138 = vunpack.c.l.b16 %v7753
    %v8139 = vunpack.c.h.b16 %v7753
    %v8140 = vunpack.c.l.b16 %v7754
    %v8141 = vunpack.c.h.b16 %v7754
    %v8142 = vunpack.c.l.b16 %v7755
    %v8143 = vunpack.c.h.b16 %v7755
    %v8144 = vunpack.c.l.b16 %v7756
    %v8145 = vunpack.c.h.b16 %v7756
    %v8146 = vunpack.c.l.b16 %v7757
    %v8147 = vunpack.c.h.b16 %v7757
    %v8148 = vunpack.c.l.b16 %v7758
    %v8149 = vunpack.c.h.b16 %v7758
    %v8150 = vunpack.c.l.b16 %v7759
    %v8151 = vunpack.c.h.b16 %v7759
    %v8152 = vunpack.c.l.b16 %v7760
    %v8153 = vunpack.c.h.b16 %v7760
    %v8154 = vunpack.c.l.b16 %v7761
    %v8155 = vunpack.c.h.b16 %v7761
    %v8156 = vunpack.c.l.b16 %v7762
    %v8157 = vunpack.c.h.b16 %v7762
    %v8158 = vunpack.c.l.b16 %v7763
    %v8159 = vunpack.c.h.b16 %v7763
    %v8160 = vunpack.c.l.b16 %v7764
    %v8161 = vunpack.c.h.b16 %v7764
    %v8162 = vunpack.c.l.b16 %v7765
    %v8163 = vunpack.c.h.b16 %v7765
    %v8164 = vunpack.c.l.b16 %v7766
    %v8165 = vunpack.c.h.b16 %v7766
    %v8166 = vunpack.c.l.b16 %v7767
    %v8167 = vunpack.c.h.b16 %v7767
    %v8168 = vunpack.c.l.b16 %v7768
    %v8169 = vunpack.c.h.b16 %v7768
    %v8170 = vunpack.c.l.b16 %v7769
    %v8171 = vunpack.c.h.b16 %v7769
    %v8172 = vunpack.c.l.b16 %v7770
    %v8173 = vunpack.c.h.b16 %v7770
    %v8174 = vunpack.c.l.b16 %v7771
    %v8175 = vunpack.c.h.b16 %v7771
    %v8176 = vunpack.c.l.b16 %v7772
    %v8177 = vunpack.c.h.b16 %v7772
    %v8178 = vunpack.c.l.b16 %v7773
    %v8179 = vunpack.c.h.b16 %v7773
    %v8180 = vunpack.c.l.b16 %v7774
    %v8181 = vunpack.c.h.b16 %v7774
    %v8182 = vunpack.c.l.b16 %v7775
    %v8183 = vunpack.c.h.b16 %v7775
    %v8184 = vunpack.c.l.b16 %v7776
    %v8185 = vunpack.c.h.b16 %v7776
    %v8186 = vunpack.c.l.b16 %v7777
    %v8187 = vunpack.c.h.b16 %v7777
    %v8188 = vunpack.c.l.b16 %v7778
    %v8189 = vunpack.c.h.b16 %v7778
    %v8190 = vunpack.c.l.b16 %v7779
    %v8191 = vunpack.c.h.b16 %v7779
    %v8192 = vunpack.c.l.b16 %v7780
    %v8193 = vunpack.c.h.b16 %v7780
    %v8194 = vunpack.c.l.b16 %v7781
    %v8195 = vunpack.c.h.b16 %v7781
    %v8196 = vunpack.c.l.b16 %v7782
    %v8197 = vunpack.c.h.b16 %v7782
    %v8198 = vunpack.c.l.b16 %v7783
    %v8199 = vunpack.c.h.b16 %v7783
    %v8200 = vunpack.c.l.b16 %v7784
    %v8201 = vunpack.c.h.b16 %v7784
    %v8202 = vunpack.c.l.b16 %v7785
    %v8203 = vunpack.c.h.b16 %v7785
    %v8204 = vunpack.c.l.b16 %v7786
    %v8205 = vunpack.c.h.b16 %v7786
    %v8206 = vunpack.c.l.b16 %v7787
    %v8207 = vunpack.c.h.b16 %v7787
    %v8208 = vunpack.c.l.b16 %v7788
    %v8209 = vunpack.c.h.b16 %v7788
    %v8210 = vunpack.c.l.b16 %v7789
    %v8211 = vunpack.c.h.b16 %v7789
    %v8212 = vunpack.c.l.b16 %v7790
    %v8213 = vunpack.c.h.b16 %v7790
    %v8214 = vunpack.c.l.b16 %v7791
    %v8215 = vunpack.c.h.b16 %v7791
    %v8216 = vunpack.c.l.b16 %v7792
    %v8217 = vunpack.c.h.b16 %v7792
    %v8218 = vunpack.c.l.b16 %v7793
    %v8219 = vunpack.c.h.b16 %v7793
    %v8220 = vpack.c.b16 %v7972, %v7964
    %v8221 = vpack.c.b16 %v7973, %v7965
    %v8222 = vpack.c.b16 %v7974, %v7966
    %v8223 = vpack.c.b16 %v7975, %v7967
    %v8224 = vpack.c.b16 %v7976, %v7968
    %v8225 = vpack.c.b16 %v7977, %v7969
    %v8226 = vpack.c.b16 %v7978, %v7970
    %v8227 = vpack.c.b16 %v7979, %v7971
    %v8228 = vpack.c.b16 %v7988, %v7980
    %v8229 = vpack.c.b16 %v7989, %v7981
    %v8230 = vpack.c.b16 %v7990, %v7982
    %v8231 = vpack.c.b16 %v7991, %v7983
    %v8232 = vpack.c.b16 %v7992, %v7984
    %v8233 = vpack.c.b16 %v7993, %v7985
    %v8234 = vpack.c.b16 %v7994, %v7986
    %v8235 = vpack.c.b16 %v7995, %v7987
    %v8236 = vpack.c.b16 %v8004, %v7996
    %v8237 = vpack.c.b16 %v8005, %v7997
    %v8238 = vpack.c.b16 %v8006, %v7998
    %v8239 = vpack.c.b16 %v8007, %v7999
    %v8240 = vpack.c.b16 %v8008, %v8000
    %v8241 = vpack.c.b16 %v8009, %v8001
    %v8242 = vpack.c.b16 %v8010, %v8002
    %v8243 = vpack.c.b16 %v8011, %v8003
    %v8244 = vpack.c.b16 %v8020, %v8012
    %v8245 = vpack.c.b16 %v8021, %v8013
    %v8246 = vpack.c.b16 %v8022, %v8014
    %v8247 = vpack.c.b16 %v8023, %v8015
    %v8248 = vpack.c.b16 %v8024, %v8016
    %v8249 = vpack.c.b16 %v8025, %v8017
    %v8250 = vpack.c.b16 %v8026, %v8018
    %v8251 = vpack.c.b16 %v8027, %v8019
    %v8252 = vpack.c.b16 %v8036, %v8028
    %v8253 = vpack.c.b16 %v8037, %v8029
    %v8254 = vpack.c.b16 %v8038, %v8030
    %v8255 = vpack.c.b16 %v8039, %v8031
    %v8256 = vpack.c.b16 %v8040, %v8032
    %v8257 = vpack.c.b16 %v8041, %v8033
    %v8258 = vpack.c.b16 %v8042, %v8034
    %v8259 = vpack.c.b16 %v8043, %v8035
    %v8260 = vpack.c.b16 %v8052, %v8044
    %v8261 = vpack.c.b16 %v8053, %v8045
    %v8262 = vpack.c.b16 %v8054, %v8046
    %v8263 = vpack.c.b16 %v8055, %v8047
    %v8264 = vpack.c.b16 %v8056, %v8048
    %v8265 = vpack.c.b16 %v8057, %v8049
    %v8266 = vpack.c.b16 %v8058, %v8050
    %v8267 = vpack.c.b16 %v8059, %v8051
    %v8268 = vpack.c.b16 %v8068, %v8060
    %v8269 = vpack.c.b16 %v8069, %v8061
    %v8270 = vpack.c.b16 %v8070, %v8062
    %v8271 = vpack.c.b16 %v8071, %v8063
    %v8272 = vpack.c.b16 %v8072, %v8064
    %v8273 = vpack.c.b16 %v8073, %v8065
    %v8274 = vpack.c.b16 %v8074, %v8066
    %v8275 = vpack.c.b16 %v8075, %v8067
    %v8276 = vpack.c.b16 %v8084, %v8076
    %v8277 = vpack.c.b16 %v8085, %v8077
    %v8278 = vpack.c.b16 %v8086, %v8078
    %v8279 = vpack.c.b16 %v8087, %v8079
    %v8280 = vpack.c.b16 %v8088, %v8080
    %v8281 = vpack.c.b16 %v8089, %v8081
    %v8282 = vpack.c.b16 %v8090, %v8082
    %v8283 = vpack.c.b16 %v8091, %v8083
    %v8284 = vpack.c.b16 %v8100, %v8092
    %v8285 = vpack.c.b16 %v8101, %v8093
    %v8286 = vpack.c.b16 %v8102, %v8094
    %v8287 = vpack.c.b16 %v8103, %v8095
    %v8288 = vpack.c.b16 %v8104, %v8096
    %v8289 = vpack.c.b16 %v8105, %v8097
    %v8290 = vpack.c.b16 %v8106, %v8098
    %v8291 = vpack.c.b16 %v8107, %v8099
    %v8292 = vpack.c.b16 %v8116, %v8108
    %v8293 = vpack.c.b16 %v8117, %v8109
    %v8294 = vpack.c.b16 %v8118, %v8110
    %v8295 = vpack.c.b16 %v8119, %v8111
    %v8296 = vpack.c.b16 %v8120, %v8112
    %v8297 = vpack.c.b16 %v8121, %v8113
    %v8298 = vpack.c.b16 %v8122, %v8114
    %v8299 = vpack.c.b16 %v8123, %v8115
    %v8300 = vpack.c.b16 %v8132, %v8124
    %v8301 = vpack.c.b16 %v8133, %v8125
    %v8302 = vpack.c.b16 %v8134, %v8126
    %v8303 = vpack.c.b16 %v8135, %v8127
    %v8304 = vpack.c.b16 %v8136, %v8128
    %v8305 = vpack.c.b16 %v8137, %v8129
    %v8306 = vpack.c.b16 %v8138, %v8130
    %v8307 = vpack.c.b16 %v8139, %v8131
    %v8308 = vpack.c.b16 %v8148, %v8140
    %v8309 = vpack.c.b16 %v8149, %v8141
    %v8310 = vpack.c.b16 %v8150, %v8142
    %v8311 = vpack.c.b16 %v8151, %v8143
    %v8312 = vpack.c.b16 %v8152, %v8144
    %v8313 = vpack.c.b16 %v8153, %v8145
    %v8314 = vpack.c.b16 %v8154, %v8146
    %v8315 = vpack.c.b16 %v8155, %v8147
    %v8316 = vpack.c.b16 %v8164, %v8156
    %v8317 = vpack.c.b16 %v8165, %v8157
    %v8318 = vpack.c.b16 %v8166, %v8158
    %v8319 = vpack.c.b16 %v8167, %v8159
    %v8320 = vpack.c.b16 %v8168, %v8160
    %v8321 = vpack.c.b16 %v8169, %v8161
    %v8322 = vpack.c.b16 %v8170, %v8162
    %v8323 = vpack.c.b16 %v8171, %v8163
    %v8324 = vpack.c.b16 %v8180, %v8172
    %v8325 = vpack.c.b16 %v8181, %v8173
    %v8326 = vpack.c.b16 %v8182, %v8174
    %v8327 = vpack.c.b16 %v8183, %v8175
    %v8328 = vpack.c.b16 %v8184, %v8176
    %v8329 = vpack.c.b16 %v8185, %v8177
    %v8330 = vpack.c.b16 %v8186, %v8178
    %v8331 = vpack.c.b16 %v8187, %v8179
    %v8332 = vpack.c.b16 %v8196, %v8188
    %v8333 = vpack.c.b16 %v8197, %v8189
    %v8334 = vpack.c.b16 %v8198, %v8190
    %v8335 = vpack.c.b16 %v8199, %v8191
    %v8336 = vpack.c.b16 %v8200, %v8192
    %v8337 = vpack.c.b16 %v8201, %v8193
    %v8338 = vpack.c.b16 %v8202, %v8194
    %v8339 = vpack.c.b16 %v8203, %v8195
    %v8340 = vpack.c.b16 %v8212, %v8204
    %v8341 = vpack.c.b16 %v8213, %v8205
    %v8342 = vpack.c.b16 %v8214, %v8206
    %v8343 = vpack.c.b16 %v8215, %v8207
    %v8344 = vpack.c.b16 %v8216, %v8208
    %v8345 = vpack.c.b16 %v8217, %v8209
    %v8346 = vpack.c.b16 %v8218, %v8210
    %v8347 = vpack.c.b16 %v8219, %v8211
    %8476 = vmatprep.subr.bf16.mxu0 %v8221
    %8477 = vmatpush1.bf16.msra.mxu0 %v8220
    %8478 = vmatprep.subr.bf16.mxu0 %v8229
    %8479 = vmatpush1.bf16.msra.mxu0 %v8228
    %8480 = vmatprep.subr.bf16.mxu0 %v8237
    %8481 = vmatpush1.bf16.msra.mxu0 %v8236
    %8482 = vmatprep.subr.bf16.mxu0 %v8245
    %8483 = vmatpush1.bf16.msra.mxu0 %v8244
    %8484 = vmatprep.subr.bf16.mxu0 %v8253
    %8485 = vmatpush1.bf16.msra.mxu0 %v8252
    %8486 = vmatprep.subr.bf16.mxu0 %v8261
    %8487 = vmatpush1.bf16.msra.mxu0 %v8260
    %8488 = vmatprep.subr.bf16.mxu0 %v8269
    %8489 = vmatpush1.bf16.msra.mxu0 %v8268
    %8490 = vmatprep.subr.bf16.mxu0 %v8277
    %8491 = vmatpush1.bf16.msra.mxu0 %v8276
    %8492 = vmatprep.subr.bf16.mxu0 %v8285
    %8493 = vmatpush1.bf16.msra.mxu0 %v8284
    %8494 = vmatprep.subr.bf16.mxu0 %v8293
    %8495 = vmatpush1.bf16.msra.mxu0 %v8292
    %8496 = vmatprep.subr.bf16.mxu0 %v8301
    %8497 = vmatpush1.bf16.msra.mxu0 %v8300
    %8498 = vmatprep.subr.bf16.mxu0 %v8309
    %8499 = vmatpush1.bf16.msra.mxu0 %v8308
    %8500 = vmatprep.subr.bf16.mxu0 %v8317
    %8501 = vmatpush1.bf16.msra.mxu0 %v8316
    %8502 = vmatprep.subr.bf16.mxu0 %v8325
    %8503 = vmatpush1.bf16.msra.mxu0 %v8324
    %8504 = vmatprep.subr.bf16.mxu0 %v8333
    %8505 = vmatpush1.bf16.msra.mxu0 %v8332
    %8506 = vmatprep.subr.bf16.mxu0 %v8341
    %8507 = vmatpush1.bf16.msra.mxu0 %v8340
    %8508 = vmatprep.mubr.bf16.mxu0 %v7665
    %8509 = vmatmul.mubr.bf16.gmra.mrb[0].mxu0 %v7664
    %v8510 = vpop.f32.mrb[0].mxu0
    %v8511 = vadd.f32 %v7799, %v8510
    %v8512 = vpop.f32.mrb[0].mxu0
    %v8513 = vadd.f32 %v7803, %v8512
    %v8514 = vpop.f32.mrb[0].mxu0
    %v8515 = vpop.f32.mrb[0].mxu0
    %8516 = vdwg.mxu0
    %8517 = vmatprep.subr.bf16.mxu0 %v8223
    %8518 = vmatpush1.bf16.msra.mxu0 %v8222
    %8519 = vmatprep.subr.bf16.mxu0 %v8231
    %8520 = vmatpush1.bf16.msra.mxu0 %v8230
    %8521 = vmatprep.subr.bf16.mxu0 %v8239
    %8522 = vmatpush1.bf16.msra.mxu0 %v8238
    %8523 = vmatprep.subr.bf16.mxu0 %v8247
    %8524 = vmatpush1.bf16.msra.mxu0 %v8246
    %8525 = vmatprep.subr.bf16.mxu0 %v8255
    %8526 = vmatpush1.bf16.msra.mxu0 %v8254
    %8527 = vmatprep.subr.bf16.mxu0 %v8263
    %8528 = vmatpush1.bf16.msra.mxu0 %v8262
    %8529 = vmatprep.subr.bf16.mxu0 %v8271
    %8530 = vmatpush1.bf16.msra.mxu0 %v8270
    %8531 = vmatprep.subr.bf16.mxu0 %v8279
    %8532 = vmatpush1.bf16.msra.mxu0 %v8278
    %8533 = vmatprep.subr.bf16.mxu0 %v8287
    %8534 = vmatpush1.bf16.msra.mxu0 %v8286
    %8535 = vmatprep.subr.bf16.mxu0 %v8295
    %8536 = vmatpush1.bf16.msra.mxu0 %v8294
    %8537 = vmatprep.subr.bf16.mxu0 %v8303
    %8538 = vmatpush1.bf16.msra.mxu0 %v8302
    %8539 = vmatprep.subr.bf16.mxu0 %v8311
    %8540 = vmatpush1.bf16.msra.mxu0 %v8310
    %8541 = vmatprep.subr.bf16.mxu0 %v8319
    %8542 = vmatpush1.bf16.msra.mxu0 %v8318
    %8543 = vmatprep.subr.bf16.mxu0 %v8327
    %8544 = vmatpush1.bf16.msra.mxu0 %v8326
    %8545 = vmatprep.subr.bf16.mxu0 %v8335
    %8546 = vmatpush1.bf16.msra.mxu0 %v8334
    %8547 = vmatprep.subr.bf16.mxu0 %v8343
    %8548 = vmatpush1.bf16.msra.mxu0 %v8342
    %8549 = vmatprep.mubr.bf16.mxu0 %v7665
    %8550 = vmatmul.mubr.bf16.gmra.mrb[0].mxu0 %v7664
    %v8551 = vpop.f32.mrb[0].mxu0
    %v8552 = vadd.f32 %v7807, %v8551
    %v8553 = vpop.f32.mrb[0].mxu0
    %v8554 = vadd.f32 %v7811, %v8553
    %v8555 = vpop.f32.mrb[0].mxu0
    %v8556 = vpop.f32.mrb[0].mxu0
    %8557 = vdwg.mxu0
    %8558 = vmatprep.subr.bf16.mxu0 %v8225
    %8559 = vmatpush1.bf16.msra.mxu0 %v8224
    %8560 = vmatprep.subr.bf16.mxu0 %v8233
    %8561 = vmatpush1.bf16.msra.mxu0 %v8232
    %8562 = vmatprep.subr.bf16.mxu0 %v8241
    %8563 = vmatpush1.bf16.msra.mxu0 %v8240
    %8564 = vmatprep.subr.bf16.mxu0 %v8249
    %8565 = vmatpush1.bf16.msra.mxu0 %v8248
    %8566 = vmatprep.subr.bf16.mxu0 %v8257
    %8567 = vmatpush1.bf16.msra.mxu0 %v8256
    %8568 = vmatprep.subr.bf16.mxu0 %v8265
    %8569 = vmatpush1.bf16.msra.mxu0 %v8264
    %8570 = vmatprep.subr.bf16.mxu0 %v8273
    %8571 = vmatpush1.bf16.msra.mxu0 %v8272
    %8572 = vmatprep.subr.bf16.mxu0 %v8281
    %8573 = vmatpush1.bf16.msra.mxu0 %v8280
    %8574 = vmatprep.subr.bf16.mxu0 %v8289
    %8575 = vmatpush1.bf16.msra.mxu0 %v8288
    %8576 = vmatprep.subr.bf16.mxu0 %v8297
    %8577 = vmatpush1.bf16.msra.mxu0 %v8296
    %8578 = vmatprep.subr.bf16.mxu0 %v8305
    %8579 = vmatpush1.bf16.msra.mxu0 %v8304
    %8580 = vmatprep.subr.bf16.mxu0 %v8313
    %8581 = vmatpush1.bf16.msra.mxu0 %v8312
    %8582 = vmatprep.subr.bf16.mxu0 %v8321
    %8583 = vmatpush1.bf16.msra.mxu0 %v8320
    %8584 = vmatprep.subr.bf16.mxu0 %v8329
    %8585 = vmatpush1.bf16.msra.mxu0 %v8328
    %8586 = vmatprep.subr.bf16.mxu0 %v8337
    %8587 = vmatpush1.bf16.msra.mxu0 %v8336
    %8588 = vmatprep.subr.bf16.mxu0 %v8345
    %8589 = vmatpush1.bf16.msra.mxu0 %v8344
    %8590 = vmatprep.mubr.bf16.mxu0 %v7665
    %8591 = vmatmul.mubr.bf16.gmra.mrb[0].mxu0 %v7664
    %v8592 = vpop.f32.mrb[0].mxu0
    %v8593 = vadd.f32 %v7815, %v8592
    %v8594 = vpop.f32.mrb[0].mxu0
    %v8595 = vadd.f32 %v7819, %v8594
    %v8596 = vpop.f32.mrb[0].mxu0
    %v8597 = vpop.f32.mrb[0].mxu0
    %8598 = vdwg.mxu0
    %8599 = vmatprep.subr.bf16.mxu0 %v8227
    %8600 = vmatpush1.bf16.msra.mxu0 %v8226
    %8601 = vmatprep.subr.bf16.mxu0 %v8235
    %8602 = vmatpush1.bf16.msra.mxu0 %v8234
    %8603 = vmatprep.subr.bf16.mxu0 %v8243
    %8604 = vmatpush1.bf16.msra.mxu0 %v8242
    %8605 = vmatprep.subr.bf16.mxu0 %v8251
    %8606 = vmatpush1.bf16.msra.mxu0 %v8250
    %8607 = vmatprep.subr.bf16.mxu0 %v8259
    %8608 = vmatpush1.bf16.msra.mxu0 %v8258
    %8609 = vmatprep.subr.bf16.mxu0 %v8267
    %8610 = vmatpush1.bf16.msra.mxu0 %v8266
    %8611 = vmatprep.subr.bf16.mxu0 %v8275
    %8612 = vmatpush1.bf16.msra.mxu0 %v8274
    %8613 = vmatprep.subr.bf16.mxu0 %v8283
    %8614 = vmatpush1.bf16.msra.mxu0 %v8282
    %8615 = vmatprep.subr.bf16.mxu0 %v8291
    %8616 = vmatpush1.bf16.msra.mxu0 %v8290
    %8617 = vmatprep.subr.bf16.mxu0 %v8299
    %8618 = vmatpush1.bf16.msra.mxu0 %v8298
    %8619 = vmatprep.subr.bf16.mxu0 %v8307
    %8620 = vmatpush1.bf16.msra.mxu0 %v8306
    %8621 = vmatprep.subr.bf16.mxu0 %v8315
    %8622 = vmatpush1.bf16.msra.mxu0 %v8314
    %8623 = vmatprep.subr.bf16.mxu0 %v8323
    %8624 = vmatpush1.bf16.msra.mxu0 %v8322
    %8625 = vmatprep.subr.bf16.mxu0 %v8331
    %8626 = vmatpush1.bf16.msra.mxu0 %v8330
    %8627 = vmatprep.subr.bf16.mxu0 %v8339
    %8628 = vmatpush1.bf16.msra.mxu0 %v8338
    %8629 = vmatprep.subr.bf16.mxu0 %v8347
    %8630 = vmatpush1.bf16.msra.mxu0 %v8346
    %8631 = vmatprep.mubr.bf16.mxu0 %v7665
    %8632 = vmatmul.mubr.bf16.gmra.mrb[0].mxu0 %v7664
    %v8633 = vpop.f32.mrb[0].mxu0
    %v8634 = vadd.f32 %v7823, %v8633
    %v8635 = vpop.f32.mrb[0].mxu0
    %v8636 = vadd.f32 %v7827, %v8635
    %v8637 = vpop.f32.mrb[0].mxu0
    %v8638 = vpop.f32.mrb[0].mxu0
    %8639 = vdwg.mxu0
    %8640 = vst [vmem:[#allocation2] sm:$0xff] %v8511
    %8641 = vst [vmem:[#allocation2 + $0x8] sm:$0xff] %v8513
    %8642 = vst [vmem:[#allocation2 + $0x10] sm:$0xff] %v8552
    %8643 = vst [vmem:[#allocation2 + $0x18] sm:$0xff] %v8554
    %8644 = vst [vmem:[#allocation2 + $0x20] sm:$0xff] %v8593
    %8645 = vst [vmem:[#allocation2 + $0x28] sm:$0xff] %v8595
    %8646 = vst [vmem:[#allocation2 + $0x30] sm:$0xff] %v8634
    %8647 = vst [vmem:[#allocation2 + $0x38] sm:$0xff] %v8636
    %v8648 = vld [vmem:[%s9] sm:$0xf]
    %v8649 = vld [vmem:[%s10] sm:$0xf]
    %v8650 = vld [vmem:[#allocation2] sm:$0x3]
    %v8651 = vld [vmem:[#allocation2 + $0x8] sm:$0x3]
    %v8652 = vld [vmem:[#allocation2 + $0x10] sm:$0x3]
    %v8653 = vld [vmem:[#allocation2 + $0x18] sm:$0x3]
    %v8654 = vld [vmem:[#allocation2 + $0x20] sm:$0x3]
    %v8655 = vld [vmem:[#allocation2 + $0x28] sm:$0x3]
    %v8656 = vld [vmem:[#allocation2 + $0x30] sm:$0x3]
    %v8657 = vld [vmem:[#allocation2 + $0x38] sm:$0x3]
    %v8660 = vunpack.c.l.s4 1983009808
    %v8661 = vunpack.c.0.s8 %v8660
    %v8662 = vlaneseq
    %v8663 = vshrl.u32 %v8662, 7
    %v8664 = vsub.s32 %v8661, %v8663
    %v8665 = vrot.slane %v8648, %v8664
    %v8666 = vcombine.high %v8665, %v8665
    %v8669 = vpack.c.bf16 %v8665, %v8665
    %v8670 = vpack.c.bf16 %v8666, %v8666
    %v8671 = vld [vmem:[#allocation4] sm:$0xff]
    %v8672 = vld [vmem:[#allocation4 + $0x8] sm:$0xff]
    %v8673 = vld [vmem:[#allocation4 + $0x10] sm:$0xff]
    %v8674 = vld [vmem:[#allocation4 + $0x18] sm:$0xff]
    %v8675 = vld [vmem:[#allocation4 + $0x20] sm:$0xff]
    %v8676 = vld [vmem:[#allocation4 + $0x28] sm:$0xff]
    %v8677 = vld [vmem:[#allocation4 + $0x30] sm:$0xff]
    %v8678 = vld [vmem:[#allocation4 + $0x38] sm:$0xff]
    %v8679 = vld [vmem:[#allocation4 + $0x40] sm:$0xff]
    %v8680 = vld [vmem:[#allocation4 + $0x48] sm:$0xff]
    %v8681 = vld [vmem:[#allocation4 + $0x50] sm:$0xff]
    %v8682 = vld [vmem:[#allocation4 + $0x58] sm:$0xff]
    %v8683 = vld [vmem:[#allocation4 + $0x60] sm:$0xff]
    %v8684 = vld [vmem:[#allocation4 + $0x68] sm:$0xff]
    %v8685 = vld [vmem:[#allocation4 + $0x70] sm:$0xff]
    %v8686 = vld [vmem:[#allocation4 + $0x78] sm:$0xff]
    %v8687 = vld [vmem:[#allocation4 + $0x80] sm:$0xff]
    %v8688 = vld [vmem:[#allocation4 + $0x88] sm:$0xff]
    %v8689 = vld [vmem:[#allocation4 + $0x90] sm:$0xff]
    %v8690 = vld [vmem:[#allocation4 + $0x98] sm:$0xff]
    %v8691 = vld [vmem:[#allocation4 + $0xa0] sm:$0xff]
    %v8692 = vld [vmem:[#allocation4 + $0xa8] sm:$0xff]
    %v8693 = vld [vmem:[#allocation4 + $0xb0] sm:$0xff]
    %v8694 = vld [vmem:[#allocation4 + $0xb8] sm:$0xff]
    %v8695 = vld [vmem:[#allocation4 + $0xc0] sm:$0xff]
    %v8696 = vld [vmem:[#allocation4 + $0xc8] sm:$0xff]
    %v8697 = vld [vmem:[#allocation4 + $0xd0] sm:$0xff]
    %v8698 = vld [vmem:[#allocation4 + $0xd8] sm:$0xff]
    %v8699 = vld [vmem:[#allocation4 + $0xe0] sm:$0xff]
    %v8700 = vld [vmem:[#allocation4 + $0xe8] sm:$0xff]
    %v8701 = vld [vmem:[#allocation4 + $0xf0] sm:$0xff]
    %v8702 = vld [vmem:[#allocation4 + $0xf8] sm:$0xff]
    %v8703 = vld [vmem:[#allocation4 + $0x100] sm:$0xff]
    %v8704 = vld [vmem:[#allocation4 + $0x108] sm:$0xff]
    %v8705 = vld [vmem:[#allocation4 + $0x110] sm:$0xff]
    %v8706 = vld [vmem:[#allocation4 + $0x118] sm:$0xff]
    %v8707 = vld [vmem:[#allocation4 + $0x120] sm:$0xff]
    %v8708 = vld [vmem:[#allocation4 + $0x128] sm:$0xff]
    %v8709 = vld [vmem:[#allocation4 + $0x130] sm:$0xff]
    %v8710 = vld [vmem:[#allocation4 + $0x138] sm:$0xff]
    %v8711 = vld [vmem:[#allocation4 + $0x140] sm:$0xff]
    %v8712 = vld [vmem:[#allocation4 + $0x148] sm:$0xff]
    %v8713 = vld [vmem:[#allocation4 + $0x150] sm:$0xff]
    %v8714 = vld [vmem:[#allocation4 + $0x158] sm:$0xff]
    %v8715 = vld [vmem:[#allocation4 + $0x160] sm:$0xff]
    %v8716 = vld [vmem:[#allocation4 + $0x168] sm:$0xff]
    %v8717 = vld [vmem:[#allocation4 + $0x170] sm:$0xff]
    %v8718 = vld [vmem:[#allocation4 + $0x178] sm:$0xff]
    %v8719 = vld [vmem:[#allocation4 + $0x180] sm:$0xff]
    %v8720 = vld [vmem:[#allocation4 + $0x188] sm:$0xff]
    %v8721 = vld [vmem:[#allocation4 + $0x190] sm:$0xff]
    %v8722 = vld [vmem:[#allocation4 + $0x198] sm:$0xff]
    %v8723 = vld [vmem:[#allocation4 + $0x1a0] sm:$0xff]
    %v8724 = vld [vmem:[#allocation4 + $0x1a8] sm:$0xff]
    %v8725 = vld [vmem:[#allocation4 + $0x1b0] sm:$0xff]
    %v8726 = vld [vmem:[#allocation4 + $0x1b8] sm:$0xff]
    %v8727 = vld [vmem:[#allocation4 + $0x1c0] sm:$0xff]
    %v8728 = vld [vmem:[#allocation4 + $0x1c8] sm:$0xff]
    %v8729 = vld [vmem:[#allocation4 + $0x1d0] sm:$0xff]
    %v8730 = vld [vmem:[#allocation4 + $0x1d8] sm:$0xff]
    %v8731 = vld [vmem:[#allocation4 + $0x1e0] sm:$0xff]
    %v8732 = vld [vmem:[#allocation4 + $0x1e8] sm:$0xff]
    %v8733 = vld [vmem:[#allocation4 + $0x1f0] sm:$0xff]
    %v8734 = vld [vmem:[#allocation4 + $0x1f8] sm:$0xff]
    %v8735 = vld [vmem:[#allocation4 + $0x200] sm:$0xff]
    %v8736 = vld [vmem:[#allocation4 + $0x208] sm:$0xff]
    %v8737 = vld [vmem:[#allocation4 + $0x210] sm:$0xff]
    %v8738 = vld [vmem:[#allocation4 + $0x218] sm:$0xff]
    %v8739 = vld [vmem:[#allocation4 + $0x220] sm:$0xff]
    %v8740 = vld [vmem:[#allocation4 + $0x228] sm:$0xff]
    %v8741 = vld [vmem:[#allocation4 + $0x230] sm:$0xff]
    %v8742 = vld [vmem:[#allocation4 + $0x238] sm:$0xff]
    %v8743 = vld [vmem:[#allocation4 + $0x240] sm:$0xff]
    %v8744 = vld [vmem:[#allocation4 + $0x248] sm:$0xff]
    %v8745 = vld [vmem:[#allocation4 + $0x250] sm:$0xff]
    %v8746 = vld [vmem:[#allocation4 + $0x258] sm:$0xff]
    %v8747 = vld [vmem:[#allocation4 + $0x260] sm:$0xff]
    %v8748 = vld [vmem:[#allocation4 + $0x268] sm:$0xff]
    %v8749 = vld [vmem:[#allocation4 + $0x270] sm:$0xff]
    %v8750 = vld [vmem:[#allocation4 + $0x278] sm:$0xff]
    %v8751 = vld [vmem:[#allocation4 + $0x280] sm:$0xff]
    %v8752 = vld [vmem:[#allocation4 + $0x288] sm:$0xff]
    %v8753 = vld [vmem:[#allocation4 + $0x290] sm:$0xff]
    %v8754 = vld [vmem:[#allocation4 + $0x298] sm:$0xff]
    %v8755 = vld [vmem:[#allocation4 + $0x2a0] sm:$0xff]
    %v8756 = vld [vmem:[#allocation4 + $0x2a8] sm:$0xff]
    %v8757 = vld [vmem:[#allocation4 + $0x2b0] sm:$0xff]
    %v8758 = vld [vmem:[#allocation4 + $0x2b8] sm:$0xff]
    %v8759 = vld [vmem:[#allocation4 + $0x2c0] sm:$0xff]
    %v8760 = vld [vmem:[#allocation4 + $0x2c8] sm:$0xff]
    %v8761 = vld [vmem:[#allocation4 + $0x2d0] sm:$0xff]
    %v8762 = vld [vmem:[#allocation4 + $0x2d8] sm:$0xff]
    %v8763 = vld [vmem:[#allocation4 + $0x2e0] sm:$0xff]
    %v8764 = vld [vmem:[#allocation4 + $0x2e8] sm:$0xff]
    %v8765 = vld [vmem:[#allocation4 + $0x2f0] sm:$0xff]
    %v8766 = vld [vmem:[#allocation4 + $0x2f8] sm:$0xff]
    %v8767 = vld [vmem:[#allocation4 + $0x300] sm:$0xff]
    %v8768 = vld [vmem:[#allocation4 + $0x308] sm:$0xff]
    %v8769 = vld [vmem:[#allocation4 + $0x310] sm:$0xff]
    %v8770 = vld [vmem:[#allocation4 + $0x318] sm:$0xff]
    %v8771 = vld [vmem:[#allocation4 + $0x320] sm:$0xff]
    %v8772 = vld [vmem:[#allocation4 + $0x328] sm:$0xff]
    %v8773 = vld [vmem:[#allocation4 + $0x330] sm:$0xff]
    %v8774 = vld [vmem:[#allocation4 + $0x338] sm:$0xff]
    %v8775 = vld [vmem:[#allocation4 + $0x340] sm:$0xff]
    %v8776 = vld [vmem:[#allocation4 + $0x348] sm:$0xff]
    %v8777 = vld [vmem:[#allocation4 + $0x350] sm:$0xff]
    %v8778 = vld [vmem:[#allocation4 + $0x358] sm:$0xff]
    %v8779 = vld [vmem:[#allocation4 + $0x360] sm:$0xff]
    %v8780 = vld [vmem:[#allocation4 + $0x368] sm:$0xff]
    %v8781 = vld [vmem:[#allocation4 + $0x370] sm:$0xff]
    %v8782 = vld [vmem:[#allocation4 + $0x378] sm:$0xff]
    %v8783 = vld [vmem:[#allocation4 + $0x380] sm:$0xff]
    %v8784 = vld [vmem:[#allocation4 + $0x388] sm:$0xff]
    %v8785 = vld [vmem:[#allocation4 + $0x390] sm:$0xff]
    %v8786 = vld [vmem:[#allocation4 + $0x398] sm:$0xff]
    %v8787 = vld [vmem:[#allocation4 + $0x3a0] sm:$0xff]
    %v8788 = vld [vmem:[#allocation4 + $0x3a8] sm:$0xff]
    %v8789 = vld [vmem:[#allocation4 + $0x3b0] sm:$0xff]
    %v8790 = vld [vmem:[#allocation4 + $0x3b8] sm:$0xff]
    %v8791 = vld [vmem:[#allocation4 + $0x3c0] sm:$0xff]
    %v8792 = vld [vmem:[#allocation4 + $0x3c8] sm:$0xff]
    %v8793 = vld [vmem:[#allocation4 + $0x3d0] sm:$0xff]
    %v8794 = vld [vmem:[#allocation4 + $0x3d8] sm:$0xff]
    %v8795 = vld [vmem:[#allocation4 + $0x3e0] sm:$0xff]
    %v8796 = vld [vmem:[#allocation4 + $0x3e8] sm:$0xff]
    %v8797 = vld [vmem:[#allocation4 + $0x3f0] sm:$0xff]
    %v8798 = vld [vmem:[#allocation4 + $0x3f8] sm:$0xff]
    %v8927 = vunpack.c.l.b16 %v8671
    %v8928 = vunpack.c.h.b16 %v8671
    %v8929 = vunpack.c.l.b16 %v8672
    %v8930 = vunpack.c.h.b16 %v8672
    %v8931 = vunpack.c.l.b16 %v8673
    %v8932 = vunpack.c.h.b16 %v8673
    %v8933 = vunpack.c.l.b16 %v8674
    %v8934 = vunpack.c.h.b16 %v8674
    %v8935 = vunpack.c.l.b16 %v8675
    %v8936 = vunpack.c.h.b16 %v8675
    %v8937 = vunpack.c.l.b16 %v8676
    %v8938 = vunpack.c.h.b16 %v8676
    %v8939 = vunpack.c.l.b16 %v8677
    %v8940 = vunpack.c.h.b16 %v8677
    %v8941 = vunpack.c.l.b16 %v8678
    %v8942 = vunpack.c.h.b16 %v8678
    %v8943 = vunpack.c.l.b16 %v8679
    %v8944 = vunpack.c.h.b16 %v8679
    %v8945 = vunpack.c.l.b16 %v8680
    %v8946 = vunpack.c.h.b16 %v8680
    %v8947 = vunpack.c.l.b16 %v8681
    %v8948 = vunpack.c.h.b16 %v8681
    %v8949 = vunpack.c.l.b16 %v8682
    %v8950 = vunpack.c.h.b16 %v8682
    %v8951 = vunpack.c.l.b16 %v8683
    %v8952 = vunpack.c.h.b16 %v8683
    %v8953 = vunpack.c.l.b16 %v8684
    %v8954 = vunpack.c.h.b16 %v8684
    %v8955 = vunpack.c.l.b16 %v8685
    %v8956 = vunpack.c.h.b16 %v8685
    %v8957 = vunpack.c.l.b16 %v8686
    %v8958 = vunpack.c.h.b16 %v8686
    %v8959 = vunpack.c.l.b16 %v8687
    %v8960 = vunpack.c.h.b16 %v8687
    %v8961 = vunpack.c.l.b16 %v8688
    %v8962 = vunpack.c.h.b16 %v8688
    %v8963 = vunpack.c.l.b16 %v8689
    %v8964 = vunpack.c.h.b16 %v8689
    %v8965 = vunpack.c.l.b16 %v8690
    %v8966 = vunpack.c.h.b16 %v8690
    %v8967 = vunpack.c.l.b16 %v8691
    %v8968 = vunpack.c.h.b16 %v8691
    %v8969 = vunpack.c.l.b16 %v8692
    %v8970 = vunpack.c.h.b16 %v8692
    %v8971 = vunpack.c.l.b16 %v8693
    %v8972 = vunpack.c.h.b16 %v8693
    %v8973 = vunpack.c.l.b16 %v8694
    %v8974 = vunpack.c.h.b16 %v8694
    %v8975 = vunpack.c.l.b16 %v8695
    %v8976 = vunpack.c.h.b16 %v8695
    %v8977 = vunpack.c.l.b16 %v8696
    %v8978 = vunpack.c.h.b16 %v8696
    %v8979 = vunpack.c.l.b16 %v8697
    %v8980 = vunpack.c.h.b16 %v8697
    %v8981 = vunpack.c.l.b16 %v8698
    %v8982 = vunpack.c.h.b16 %v8698
    %v8983 = vunpack.c.l.b16 %v8699
    %v8984 = vunpack.c.h.b16 %v8699
    %v8985 = vunpack.c.l.b16 %v8700
    %v8986 = vunpack.c.h.b16 %v8700
    %v8987 = vunpack.c.l.b16 %v8701
    %v8988 = vunpack.c.h.b16 %v8701
    %v8989 = vunpack.c.l.b16 %v8702
    %v8990 = vunpack.c.h.b16 %v8702
    %v8991 = vunpack.c.l.b16 %v8703
    %v8992 = vunpack.c.h.b16 %v8703
    %v8993 = vunpack.c.l.b16 %v8704
    %v8994 = vunpack.c.h.b16 %v8704
    %v8995 = vunpack.c.l.b16 %v8705
    %v8996 = vunpack.c.h.b16 %v8705
    %v8997 = vunpack.c.l.b16 %v8706
    %v8998 = vunpack.c.h.b16 %v8706
    %v8999 = vunpack.c.l.b16 %v8707
    %v9000 = vunpack.c.h.b16 %v8707
    %v9001 = vunpack.c.l.b16 %v8708
    %v9002 = vunpack.c.h.b16 %v8708
    %v9003 = vunpack.c.l.b16 %v8709
    %v9004 = vunpack.c.h.b16 %v8709
    %v9005 = vunpack.c.l.b16 %v8710
    %v9006 = vunpack.c.h.b16 %v8710
    %v9007 = vunpack.c.l.b16 %v8711
    %v9008 = vunpack.c.h.b16 %v8711
    %v9009 = vunpack.c.l.b16 %v8712
    %v9010 = vunpack.c.h.b16 %v8712
    %v9011 = vunpack.c.l.b16 %v8713
    %v9012 = vunpack.c.h.b16 %v8713
    %v9013 = vunpack.c.l.b16 %v8714
    %v9014 = vunpack.c.h.b16 %v8714
    %v9015 = vunpack.c.l.b16 %v8715
    %v9016 = vunpack.c.h.b16 %v8715
    %v9017 = vunpack.c.l.b16 %v8716
    %v9018 = vunpack.c.h.b16 %v8716
    %v9019 = vunpack.c.l.b16 %v8717
    %v9020 = vunpack.c.h.b16 %v8717
    %v9021 = vunpack.c.l.b16 %v8718
    %v9022 = vunpack.c.h.b16 %v8718
    %v9023 = vunpack.c.l.b16 %v8719
    %v9024 = vunpack.c.h.b16 %v8719
    %v9025 = vunpack.c.l.b16 %v8720
    %v9026 = vunpack.c.h.b16 %v8720
    %v9027 = vunpack.c.l.b16 %v8721
    %v9028 = vunpack.c.h.b16 %v8721
    %v9029 = vunpack.c.l.b16 %v8722
    %v9030 = vunpack.c.h.b16 %v8722
    %v9031 = vunpack.c.l.b16 %v8723
    %v9032 = vunpack.c.h.b16 %v8723
    %v9033 = vunpack.c.l.b16 %v8724
    %v9034 = vunpack.c.h.b16 %v8724
    %v9035 = vunpack.c.l.b16 %v8725
    %v9036 = vunpack.c.h.b16 %v8725
    %v9037 = vunpack.c.l.b16 %v8726
    %v9038 = vunpack.c.h.b16 %v8726
    %v9039 = vunpack.c.l.b16 %v8727
    %v9040 = vunpack.c.h.b16 %v8727
    %v9041 = vunpack.c.l.b16 %v8728
    %v9042 = vunpack.c.h.b16 %v8728
    %v9043 = vunpack.c.l.b16 %v8729
    %v9044 = vunpack.c.h.b16 %v8729
    %v9045 = vunpack.c.l.b16 %v8730
    %v9046 = vunpack.c.h.b16 %v8730
    %v9047 = vunpack.c.l.b16 %v8731
    %v9048 = vunpack.c.h.b16 %v8731
    %v9049 = vunpack.c.l.b16 %v8732
    %v9050 = vunpack.c.h.b16 %v8732
    %v9051 = vunpack.c.l.b16 %v8733
    %v9052 = vunpack.c.h.b16 %v8733
    %v9053 = vunpack.c.l.b16 %v8734
    %v9054 = vunpack.c.h.b16 %v8734
    %v9055 = vunpack.c.l.b16 %v8735
    %v9056 = vunpack.c.h.b16 %v8735
    %v9057 = vunpack.c.l.b16 %v8736
    %v9058 = vunpack.c.h.b16 %v8736
    %v9059 = vunpack.c.l.b16 %v8737
    %v9060 = vunpack.c.h.b16 %v8737
    %v9061 = vunpack.c.l.b16 %v8738
    %v9062 = vunpack.c.h.b16 %v8738
    %v9063 = vunpack.c.l.b16 %v8739
    %v9064 = vunpack.c.h.b16 %v8739
    %v9065 = vunpack.c.l.b16 %v8740
    %v9066 = vunpack.c.h.b16 %v8740
    %v9067 = vunpack.c.l.b16 %v8741
    %v9068 = vunpack.c.h.b16 %v8741
    %v9069 = vunpack.c.l.b16 %v8742
    %v9070 = vunpack.c.h.b16 %v8742
    %v9071 = vunpack.c.l.b16 %v8743
    %v9072 = vunpack.c.h.b16 %v8743
    %v9073 = vunpack.c.l.b16 %v8744
    %v9074 = vunpack.c.h.b16 %v8744
    %v9075 = vunpack.c.l.b16 %v8745
    %v9076 = vunpack.c.h.b16 %v8745
    %v9077 = vunpack.c.l.b16 %v8746
    %v9078 = vunpack.c.h.b16 %v8746
    %v9079 = vunpack.c.l.b16 %v8747
    %v9080 = vunpack.c.h.b16 %v8747
    %v9081 = vunpack.c.l.b16 %v8748
    %v9082 = vunpack.c.h.b16 %v8748
    %v9083 = vunpack.c.l.b16 %v8749
    %v9084 = vunpack.c.h.b16 %v8749
    %v9085 = vunpack.c.l.b16 %v8750
    %v9086 = vunpack.c.h.b16 %v8750
    %v9087 = vunpack.c.l.b16 %v8751
    %v9088 = vunpack.c.h.b16 %v8751
    %v9089 = vunpack.c.l.b16 %v8752
    %v9090 = vunpack.c.h.b16 %v8752
    %v9091 = vunpack.c.l.b16 %v8753
    %v9092 = vunpack.c.h.b16 %v8753
    %v9093 = vunpack.c.l.b16 %v8754
    %v9094 = vunpack.c.h.b16 %v8754
    %v9095 = vunpack.c.l.b16 %v8755
    %v9096 = vunpack.c.h.b16 %v8755
    %v9097 = vunpack.c.l.b16 %v8756
    %v9098 = vunpack.c.h.b16 %v8756
    %v9099 = vunpack.c.l.b16 %v8757
    %v9100 = vunpack.c.h.b16 %v8757
    %v9101 = vunpack.c.l.b16 %v8758
    %v9102 = vunpack.c.h.b16 %v8758
    %v9103 = vunpack.c.l.b16 %v8759
    %v9104 = vunpack.c.h.b16 %v8759
    %v9105 = vunpack.c.l.b16 %v8760
    %v9106 = vunpack.c.h.b16 %v8760
    %v9107 = vunpack.c.l.b16 %v8761
    %v9108 = vunpack.c.h.b16 %v8761
    %v9109 = vunpack.c.l.b16 %v8762
    %v9110 = vunpack.c.h.b16 %v8762
    %v9111 = vunpack.c.l.b16 %v8763
    %v9112 = vunpack.c.h.b16 %v8763
    %v9113 = vunpack.c.l.b16 %v8764
    %v9114 = vunpack.c.h.b16 %v8764
    %v9115 = vunpack.c.l.b16 %v8765
    %v9116 = vunpack.c.h.b16 %v8765
    %v9117 = vunpack.c.l.b16 %v8766
    %v9118 = vunpack.c.h.b16 %v8766
    %v9119 = vunpack.c.l.b16 %v8767
    %v9120 = vunpack.c.h.b16 %v8767
    %v9121 = vunpack.c.l.b16 %v8768
    %v9122 = vunpack.c.h.b16 %v8768
    %v9123 = vunpack.c.l.b16 %v8769
    %v9124 = vunpack.c.h.b16 %v8769
    %v9125 = vunpack.c.l.b16 %v8770
    %v9126 = vunpack.c.h.b16 %v8770
    %v9127 = vunpack.c.l.b16 %v8771
    %v9128 = vunpack.c.h.b16 %v8771
    %v9129 = vunpack.c.l.b16 %v8772
    %v9130 = vunpack.c.h.b16 %v8772
    %v9131 = vunpack.c.l.b16 %v8773
    %v9132 = vunpack.c.h.b16 %v8773
    %v9133 = vunpack.c.l.b16 %v8774
    %v9134 = vunpack.c.h.b16 %v8774
    %v9135 = vunpack.c.l.b16 %v8775
    %v9136 = vunpack.c.h.b16 %v8775
    %v9137 = vunpack.c.l.b16 %v8776
    %v9138 = vunpack.c.h.b16 %v8776
    %v9139 = vunpack.c.l.b16 %v8777
    %v9140 = vunpack.c.h.b16 %v8777
    %v9141 = vunpack.c.l.b16 %v8778
    %v9142 = vunpack.c.h.b16 %v8778
    %v9143 = vunpack.c.l.b16 %v8779
    %v9144 = vunpack.c.h.b16 %v8779
    %v9145 = vunpack.c.l.b16 %v8780
    %v9146 = vunpack.c.h.b16 %v8780
    %v9147 = vunpack.c.l.b16 %v8781
    %v9148 = vunpack.c.h.b16 %v8781
    %v9149 = vunpack.c.l.b16 %v8782
    %v9150 = vunpack.c.h.b16 %v8782
    %v9151 = vunpack.c.l.b16 %v8783
    %v9152 = vunpack.c.h.b16 %v8783
    %v9153 = vunpack.c.l.b16 %v8784
    %v9154 = vunpack.c.h.b16 %v8784
    %v9155 = vunpack.c.l.b16 %v8785
    %v9156 = vunpack.c.h.b16 %v8785
    %v9157 = vunpack.c.l.b16 %v8786
    %v9158 = vunpack.c.h.b16 %v8786
    %v9159 = vunpack.c.l.b16 %v8787
    %v9160 = vunpack.c.h.b16 %v8787
    %v9161 = vunpack.c.l.b16 %v8788
    %v9162 = vunpack.c.h.b16 %v8788
    %v9163 = vunpack.c.l.b16 %v8789
    %v9164 = vunpack.c.h.b16 %v8789
    %v9165 = vunpack.c.l.b16 %v8790
    %v9166 = vunpack.c.h.b16 %v8790
    %v9167 = vunpack.c.l.b16 %v8791
    %v9168 = vunpack.c.h.b16 %v8791
    %v9169 = vunpack.c.l.b16 %v8792
    %v9170 = vunpack.c.h.b16 %v8792
    %v9171 = vunpack.c.l.b16 %v8793
    %v9172 = vunpack.c.h.b16 %v8793
    %v9173 = vunpack.c.l.b16 %v8794
    %v9174 = vunpack.c.h.b16 %v8794
    %v9175 = vunpack.c.l.b16 %v8795
    %v9176 = vunpack.c.h.b16 %v8795
    %v9177 = vunpack.c.l.b16 %v8796
    %v9178 = vunpack.c.h.b16 %v8796
    %v9179 = vunpack.c.l.b16 %v8797
    %v9180 = vunpack.c.h.b16 %v8797
    %v9181 = vunpack.c.l.b16 %v8798
    %v9182 = vunpack.c.h.b16 %v8798
    %v9183 = vpack.c.b16 %v8935, %v8927
    %v9184 = vpack.c.b16 %v8936, %v8928
    %v9185 = vpack.c.b16 %v8937, %v8929
    %v9186 = vpack.c.b16 %v8938, %v8930
    %v9187 = vpack.c.b16 %v8939, %v8931
    %v9188 = vpack.c.b16 %v8940, %v8932
    %v9189 = vpack.c.b16 %v8941, %v8933
    %v9190 = vpack.c.b16 %v8942, %v8934
    %v9191 = vpack.c.b16 %v8951, %v8943
    %v9192 = vpack.c.b16 %v8952, %v8944
    %v9193 = vpack.c.b16 %v8953, %v8945
    %v9194 = vpack.c.b16 %v8954, %v8946
    %v9195 = vpack.c.b16 %v8955, %v8947
    %v9196 = vpack.c.b16 %v8956, %v8948
    %v9197 = vpack.c.b16 %v8957, %v8949
    %v9198 = vpack.c.b16 %v8958, %v8950
    %v9199 = vpack.c.b16 %v8967, %v8959
    %v9200 = vpack.c.b16 %v8968, %v8960
    %v9201 = vpack.c.b16 %v8969, %v8961
    %v9202 = vpack.c.b16 %v8970, %v8962
    %v9203 = vpack.c.b16 %v8971, %v8963
    %v9204 = vpack.c.b16 %v8972, %v8964
    %v9205 = vpack.c.b16 %v8973, %v8965
    %v9206 = vpack.c.b16 %v8974, %v8966
    %v9207 = vpack.c.b16 %v8983, %v8975
    %v9208 = vpack.c.b16 %v8984, %v8976
    %v9209 = vpack.c.b16 %v8985, %v8977
    %v9210 = vpack.c.b16 %v8986, %v8978
    %v9211 = vpack.c.b16 %v8987, %v8979
    %v9212 = vpack.c.b16 %v8988, %v8980
    %v9213 = vpack.c.b16 %v8989, %v8981
    %v9214 = vpack.c.b16 %v8990, %v8982
    %v9215 = vpack.c.b16 %v8999, %v8991
    %v9216 = vpack.c.b16 %v9000, %v8992
    %v9217 = vpack.c.b16 %v9001, %v8993
    %v9218 = vpack.c.b16 %v9002, %v8994
    %v9219 = vpack.c.b16 %v9003, %v8995
    %v9220 = vpack.c.b16 %v9004, %v8996
    %v9221 = vpack.c.b16 %v9005, %v8997
    %v9222 = vpack.c.b16 %v9006, %v8998
    %v9223 = vpack.c.b16 %v9015, %v9007
    %v9224 = vpack.c.b16 %v9016, %v9008
    %v9225 = vpack.c.b16 %v9017, %v9009
    %v9226 = vpack.c.b16 %v9018, %v9010
    %v9227 = vpack.c.b16 %v9019, %v9011
    %v9228 = vpack.c.b16 %v9020, %v9012
    %v9229 = vpack.c.b16 %v9021, %v9013
    %v9230 = vpack.c.b16 %v9022, %v9014
    %v9231 = vpack.c.b16 %v9031, %v9023
    %v9232 = vpack.c.b16 %v9032, %v9024
    %v9233 = vpack.c.b16 %v9033, %v9025
    %v9234 = vpack.c.b16 %v9034, %v9026
    %v9235 = vpack.c.b16 %v9035, %v9027
    %v9236 = vpack.c.b16 %v9036, %v9028
    %v9237 = vpack.c.b16 %v9037, %v9029
    %v9238 = vpack.c.b16 %v9038, %v9030
    %v9239 = vpack.c.b16 %v9047, %v9039
    %v9240 = vpack.c.b16 %v9048, %v9040
    %v9241 = vpack.c.b16 %v9049, %v9041
    %v9242 = vpack.c.b16 %v9050, %v9042
    %v9243 = vpack.c.b16 %v9051, %v9043
    %v9244 = vpack.c.b16 %v9052, %v9044
    %v9245 = vpack.c.b16 %v9053, %v9045
    %v9246 = vpack.c.b16 %v9054, %v9046
    %v9247 = vpack.c.b16 %v9063, %v9055
    %v9248 = vpack.c.b16 %v9064, %v9056
    %v9249 = vpack.c.b16 %v9065, %v9057
    %v9250 = vpack.c.b16 %v9066, %v9058
    %v9251 = vpack.c.b16 %v9067, %v9059
    %v9252 = vpack.c.b16 %v9068, %v9060
    %v9253 = vpack.c.b16 %v9069, %v9061
    %v9254 = vpack.c.b16 %v9070, %v9062
    %v9255 = vpack.c.b16 %v9079, %v9071
    %v9256 = vpack.c.b16 %v9080, %v9072
    %v9257 = vpack.c.b16 %v9081, %v9073
    %v9258 = vpack.c.b16 %v9082, %v9074
    %v9259 = vpack.c.b16 %v9083, %v9075
    %v9260 = vpack.c.b16 %v9084, %v9076
    %v9261 = vpack.c.b16 %v9085, %v9077
    %v9262 = vpack.c.b16 %v9086, %v9078
    %v9263 = vpack.c.b16 %v9095, %v9087
    %v9264 = vpack.c.b16 %v9096, %v9088
    %v9265 = vpack.c.b16 %v9097, %v9089
    %v9266 = vpack.c.b16 %v9098, %v9090
    %v9267 = vpack.c.b16 %v9099, %v9091
    %v9268 = vpack.c.b16 %v9100, %v9092
    %v9269 = vpack.c.b16 %v9101, %v9093
    %v9270 = vpack.c.b16 %v9102, %v9094
    %v9271 = vpack.c.b16 %v9111, %v9103
    %v9272 = vpack.c.b16 %v9112, %v9104
    %v9273 = vpack.c.b16 %v9113, %v9105
    %v9274 = vpack.c.b16 %v9114, %v9106
    %v9275 = vpack.c.b16 %v9115, %v9107
    %v9276 = vpack.c.b16 %v9116, %v9108
    %v9277 = vpack.c.b16 %v9117, %v9109
    %v9278 = vpack.c.b16 %v9118, %v9110
    %v9279 = vpack.c.b16 %v9127, %v9119
    %v9280 = vpack.c.b16 %v9128, %v9120
    %v9281 = vpack.c.b16 %v9129, %v9121
    %v9282 = vpack.c.b16 %v9130, %v9122
    %v9283 = vpack.c.b16 %v9131, %v9123
    %v9284 = vpack.c.b16 %v9132, %v9124
    %v9285 = vpack.c.b16 %v9133, %v9125
    %v9286 = vpack.c.b16 %v9134, %v9126
    %v9287 = vpack.c.b16 %v9143, %v9135
    %v9288 = vpack.c.b16 %v9144, %v9136
    %v9289 = vpack.c.b16 %v9145, %v9137
    %v9290 = vpack.c.b16 %v9146, %v9138
    %v9291 = vpack.c.b16 %v9147, %v9139
    %v9292 = vpack.c.b16 %v9148, %v9140
    %v9293 = vpack.c.b16 %v9149, %v9141
    %v9294 = vpack.c.b16 %v9150, %v9142
    %v9295 = vpack.c.b16 %v9159, %v9151
    %v9296 = vpack.c.b16 %v9160, %v9152
    %v9297 = vpack.c.b16 %v9161, %v9153
    %v9298 = vpack.c.b16 %v9162, %v9154
    %v9299 = vpack.c.b16 %v9163, %v9155
    %v9300 = vpack.c.b16 %v9164, %v9156
    %v9301 = vpack.c.b16 %v9165, %v9157
    %v9302 = vpack.c.b16 %v9166, %v9158
    %v9303 = vpack.c.b16 %v9175, %v9167
    %v9304 = vpack.c.b16 %v9176, %v9168
    %v9305 = vpack.c.b16 %v9177, %v9169
    %v9306 = vpack.c.b16 %v9178, %v9170
    %v9307 = vpack.c.b16 %v9179, %v9171
    %v9308 = vpack.c.b16 %v9180, %v9172
    %v9309 = vpack.c.b16 %v9181, %v9173
    %v9310 = vpack.c.b16 %v9182, %v9174
    %9439 = vmatprep.subr.bf16.mxu0 %v9184
    %9440 = vmatpush1.bf16.msra.mxu0 %v9183
    %9441 = vmatprep.subr.bf16.mxu0 %v9192
    %9442 = vmatpush1.bf16.msra.mxu0 %v9191
    %9443 = vmatprep.subr.bf16.mxu0 %v9200
    %9444 = vmatpush1.bf16.msra.mxu0 %v9199
    %9445 = vmatprep.subr.bf16.mxu0 %v9208
    %9446 = vmatpush1.bf16.msra.mxu0 %v9207
    %9447 = vmatprep.subr.bf16.mxu0 %v9216
    %9448 = vmatpush1.bf16.msra.mxu0 %v9215
    %9449 = vmatprep.subr.bf16.mxu0 %v9224
    %9450 = vmatpush1.bf16.msra.mxu0 %v9223
    %9451 = vmatprep.subr.bf16.mxu0 %v9232
    %9452 = vmatpush1.bf16.msra.mxu0 %v9231
    %9453 = vmatprep.subr.bf16.mxu0 %v9240
    %9454 = vmatpush1.bf16.msra.mxu0 %v9239
    %9455 = vmatprep.subr.bf16.mxu0 %v9248
    %9456 = vmatpush1.bf16.msra.mxu0 %v9247
    %9457 = vmatprep.subr.bf16.mxu0 %v9256
    %9458 = vmatpush1.bf16.msra.mxu0 %v9255
    %9459 = vmatprep.subr.bf16.mxu0 %v9264
    %9460 = vmatpush1.bf16.msra.mxu0 %v9263
    %9461 = vmatprep.subr.bf16.mxu0 %v9272
    %9462 = vmatpush1.bf16.msra.mxu0 %v9271
    %9463 = vmatprep.subr.bf16.mxu0 %v9280
    %9464 = vmatpush1.bf16.msra.mxu0 %v9279
    %9465 = vmatprep.subr.bf16.mxu0 %v9288
    %9466 = vmatpush1.bf16.msra.mxu0 %v9287
    %9467 = vmatprep.subr.bf16.mxu0 %v9296
    %9468 = vmatpush1.bf16.msra.mxu0 %v9295
    %9469 = vmatprep.subr.bf16.mxu0 %v9304
    %9470 = vmatpush1.bf16.msra.mxu0 %v9303
    %9471 = vmatprep.mubr.bf16.mxu0 %v8670
    %9472 = vmatmul.mubr.bf16.gmra.mrb[0].mxu0 %v8669
    %v9473 = vpop.f32.mrb[0].mxu0
    %v9474 = vadd.f32 0.0, %v9473
    %v9475 = vpop.f32.mrb[0].mxu0
    %v9476 = vadd.f32 0.0, %v9475
    %v9477 = vpop.f32.mrb[0].mxu0
    %v9478 = vpop.f32.mrb[0].mxu0
    %9479 = vdwg.mxu0
    %9480 = vmatprep.subr.bf16.mxu0 %v9186
    %9481 = vmatpush1.bf16.msra.mxu0 %v9185
    %9482 = vmatprep.subr.bf16.mxu0 %v9194
    %9483 = vmatpush1.bf16.msra.mxu0 %v9193
    %9484 = vmatprep.subr.bf16.mxu0 %v9202
    %9485 = vmatpush1.bf16.msra.mxu0 %v9201
    %9486 = vmatprep.subr.bf16.mxu0 %v9210
    %9487 = vmatpush1.bf16.msra.mxu0 %v9209
    %9488 = vmatprep.subr.bf16.mxu0 %v9218
    %9489 = vmatpush1.bf16.msra.mxu0 %v9217
    %9490 = vmatprep.subr.bf16.mxu0 %v9226
    %9491 = vmatpush1.bf16.msra.mxu0 %v9225
    %9492 = vmatprep.subr.bf16.mxu0 %v9234
    %9493 = vmatpush1.bf16.msra.mxu0 %v9233
    %9494 = vmatprep.subr.bf16.mxu0 %v9242
    %9495 = vmatpush1.bf16.msra.mxu0 %v9241
    %9496 = vmatprep.subr.bf16.mxu0 %v9250
    %9497 = vmatpush1.bf16.msra.mxu0 %v9249
    %9498 = vmatprep.subr.bf16.mxu0 %v9258
    %9499 = vmatpush1.bf16.msra.mxu0 %v9257
    %9500 = vmatprep.subr.bf16.mxu0 %v9266
    %9501 = vmatpush1.bf16.msra.mxu0 %v9265
    %9502 = vmatprep.subr.bf16.mxu0 %v9274
    %9503 = vmatpush1.bf16.msra.mxu0 %v9273
    %9504 = vmatprep.subr.bf16.mxu0 %v9282
    %9505 = vmatpush1.bf16.msra.mxu0 %v9281
    %9506 = vmatprep.subr.bf16.mxu0 %v9290
    %9507 = vmatpush1.bf16.msra.mxu0 %v9289
    %9508 = vmatprep.subr.bf16.mxu0 %v9298
    %9509 = vmatpush1.bf16.msra.mxu0 %v9297
    %9510 = vmatprep.subr.bf16.mxu0 %v9306
    %9511 = vmatpush1.bf16.msra.mxu0 %v9305
    %9512 = vmatprep.mubr.bf16.mxu0 %v8670
    %9513 = vmatmul.mubr.bf16.gmra.mrb[0].mxu0 %v8669
    %v9514 = vpop.f32.mrb[0].mxu0
    %v9515 = vadd.f32 0.0, %v9514
    %v9516 = vpop.f32.mrb[0].mxu0
    %v9517 = vadd.f32 0.0, %v9516
    %v9518 = vpop.f32.mrb[0].mxu0
    %v9519 = vpop.f32.mrb[0].mxu0
    %9520 = vdwg.mxu0
    %9521 = vmatprep.subr.bf16.mxu0 %v9188
    %9522 = vmatpush1.bf16.msra.mxu0 %v9187
    %9523 = vmatprep.subr.bf16.mxu0 %v9196
    %9524 = vmatpush1.bf16.msra.mxu0 %v9195
    %9525 = vmatprep.subr.bf16.mxu0 %v9204
    %9526 = vmatpush1.bf16.msra.mxu0 %v9203
    %9527 = vmatprep.subr.bf16.mxu0 %v9212
    %9528 = vmatpush1.bf16.msra.mxu0 %v9211
    %9529 = vmatprep.subr.bf16.mxu0 %v9220
    %9530 = vmatpush1.bf16.msra.mxu0 %v9219
    %9531 = vmatprep.subr.bf16.mxu0 %v9228
    %9532 = vmatpush1.bf16.msra.mxu0 %v9227
    %9533 = vmatprep.subr.bf16.mxu0 %v9236
    %9534 = vmatpush1.bf16.msra.mxu0 %v9235
    %9535 = vmatprep.subr.bf16.mxu0 %v9244
    %9536 = vmatpush1.bf16.msra.mxu0 %v9243
    %9537 = vmatprep.subr.bf16.mxu0 %v9252
    %9538 = vmatpush1.bf16.msra.mxu0 %v9251
    %9539 = vmatprep.subr.bf16.mxu0 %v9260
    %9540 = vmatpush1.bf16.msra.mxu0 %v9259
    %9541 = vmatprep.subr.bf16.mxu0 %v9268
    %9542 = vmatpush1.bf16.msra.mxu0 %v9267
    %9543 = vmatprep.subr.bf16.mxu0 %v9276
    %9544 = vmatpush1.bf16.msra.mxu0 %v9275
    %9545 = vmatprep.subr.bf16.mxu0 %v9284
    %9546 = vmatpush1.bf16.msra.mxu0 %v9283
    %9547 = vmatprep.subr.bf16.mxu0 %v9292
    %9548 = vmatpush1.bf16.msra.mxu0 %v9291
    %9549 = vmatprep.subr.bf16.mxu0 %v9300
    %9550 = vmatpush1.bf16.msra.mxu0 %v9299
    %9551 = vmatprep.subr.bf16.mxu0 %v9308
    %9552 = vmatpush1.bf16.msra.mxu0 %v9307
    %9553 = vmatprep.mubr.bf16.mxu0 %v8670
    %9554 = vmatmul.mubr.bf16.gmra.mrb[0].mxu0 %v8669
    %v9555 = vpop.f32.mrb[0].mxu0
    %v9556 = vadd.f32 0.0, %v9555
    %v9557 = vpop.f32.mrb[0].mxu0
    %v9558 = vadd.f32 0.0, %v9557
    %v9559 = vpop.f32.mrb[0].mxu0
    %v9560 = vpop.f32.mrb[0].mxu0
    %9561 = vdwg.mxu0
    %9562 = vmatprep.subr.bf16.mxu0 %v9190
    %9563 = vmatpush1.bf16.msra.mxu0 %v9189
    %9564 = vmatprep.subr.bf16.mxu0 %v9198
    %9565 = vmatpush1.bf16.msra.mxu0 %v9197
    %9566 = vmatprep.subr.bf16.mxu0 %v9206
    %9567 = vmatpush1.bf16.msra.mxu0 %v9205
    %9568 = vmatprep.subr.bf16.mxu0 %v9214
    %9569 = vmatpush1.bf16.msra.mxu0 %v9213
    %9570 = vmatprep.subr.bf16.mxu0 %v9222
    %9571 = vmatpush1.bf16.msra.mxu0 %v9221
    %9572 = vmatprep.subr.bf16.mxu0 %v9230
    %9573 = vmatpush1.bf16.msra.mxu0 %v9229
    %9574 = vmatprep.subr.bf16.mxu0 %v9238
    %9575 = vmatpush1.bf16.msra.mxu0 %v9237
    %9576 = vmatprep.subr.bf16.mxu0 %v9246
    %9577 = vmatpush1.bf16.msra.mxu0 %v9245
    %9578 = vmatprep.subr.bf16.mxu0 %v9254
    %9579 = vmatpush1.bf16.msra.mxu0 %v9253
    %9580 = vmatprep.subr.bf16.mxu0 %v9262
    %9581 = vmatpush1.bf16.msra.mxu0 %v9261
    %9582 = vmatprep.subr.bf16.mxu0 %v9270
    %9583 = vmatpush1.bf16.msra.mxu0 %v9269
    %9584 = vmatprep.subr.bf16.mxu0 %v9278
    %9585 = vmatpush1.bf16.msra.mxu0 %v9277
    %9586 = vmatprep.subr.bf16.mxu0 %v9286
    %9587 = vmatpush1.bf16.msra.mxu0 %v9285
    %9588 = vmatprep.subr.bf16.mxu0 %v9294
    %9589 = vmatpush1.bf16.msra.mxu0 %v9293
    %9590 = vmatprep.subr.bf16.mxu0 %v9302
    %9591 = vmatpush1.bf16.msra.mxu0 %v9301
    %9592 = vmatprep.subr.bf16.mxu0 %v9310
    %9593 = vmatpush1.bf16.msra.mxu0 %v9309
    %9594 = vmatprep.mubr.bf16.mxu0 %v8670
    %9595 = vmatmul.mubr.bf16.gmra.mrb[0].mxu0 %v8669
    %v9596 = vpop.f32.mrb[0].mxu0
    %v9597 = vadd.f32 0.0, %v9596
    %v9598 = vpop.f32.mrb[0].mxu0
    %v9599 = vadd.f32 0.0, %v9598
    %v9600 = vpop.f32.mrb[0].mxu0
    %v9601 = vpop.f32.mrb[0].mxu0
    %9602 = vdwg.mxu0
    %v9603 = vadd.f32 %v8650, %v9474
    %v9604 = vadd.f32 %v8651, %v9476
    %v9605 = vadd.f32 %v8652, %v9515
    %v9606 = vadd.f32 %v8653, %v9517
    %v9607 = vadd.f32 %v8654, %v9556
    %v9608 = vadd.f32 %v8655, %v9558
    %v9609 = vadd.f32 %v8656, %v9597
    %v9610 = vadd.f32 %v8657, %v9599
    %v9611 = vxor.u32 %v9603, 2147483648
    %v9612 = vxor.u32 %v9604, 2147483648
    %v9613 = vxor.u32 %v9605, 2147483648
    %v9614 = vxor.u32 %v9606, 2147483648
    %v9615 = vxor.u32 %v9607, 2147483648
    %v9616 = vxor.u32 %v9608, 2147483648
    %v9617 = vmul.f32 %v9611, 1.442695
    %v9618 = vpow.pop %v9617
    %v9619 = vmul.f32 %v9612, 1.442695
    %v9620 = vpow.pop %v9619
    %v9621 = vmul.f32 %v9613, 1.442695
    %v9622 = vpow.pop %v9621
    %v9623 = vmul.f32 %v9614, 1.442695
    %v9624 = vpow.pop %v9623
    %v9625 = vmul.f32 %v9615, 1.442695
    %v9626 = vpow.pop %v9625
    %v9627 = vmul.f32 %v9616, 1.442695
    %v9628 = vpow.pop %v9627
    %v9629 = vadd.f32 %v9618, 1.0
    %v9630 = vadd.f32 %v9620, 1.0
    %v9631 = vadd.f32 %v9622, 1.0
    %v9632 = vadd.f32 %v9624, 1.0
    %v9633 = vadd.f32 %v9626, 1.0
    %v9634 = vadd.f32 %v9628, 1.0
    %v9635 = vrcp.pop %v9629
    %v9636 = vmul.f32 1.0, %v9635
    %v9637 = vrcp.pop %v9630
    %v9638 = vmul.f32 1.0, %v9637
    %v9639 = vrcp.pop %v9631
    %v9640 = vmul.f32 1.0, %v9639
    %v9641 = vrcp.pop %v9632
    %v9642 = vmul.f32 1.0, %v9641
    %v9643 = vrcp.pop %v9633
    %v9644 = vmul.f32 1.0, %v9643
    %v9645 = vrcp.pop %v9634
    %v9646 = vmul.f32 1.0, %v9645
    %v9647 = vtanh.pop %v9609
    %v9648 = vtanh.pop %v9610
    %v9651 = vunpack.c.l.s4 1983009808
    %v9652 = vunpack.c.0.s8 %v9651
    %v9653 = vlaneseq
    %v9654 = vshrl.u32 %v9653, 7
    %v9655 = vsub.s32 %v9652, %v9654
    %v9656 = vrot.slane %v8649, %v9655
    %v9657 = vcombine.high %v9656, %v9656
    %v9660 = vmul.f32 %v9640, %v9656
    %v9661 = vmul.f32 %v9642, %v9657
    %v9662 = vmul.f32 %v9636, %v9647
    %v9663 = vmul.f32 %v9638, %v9648
    %v9664 = vadd.f32 %v9660, %v9662
    %v9665 = vadd.f32 %v9661, %v9663
    %v9666 = vtanh.pop %v9664
    %v9667 = vtanh.pop %v9665
    %v9668 = vmul.f32 %v9644, %v9666
    %v9669 = vmul.f32 %v9646, %v9667
    %9670 = vst [vmem:[#allocation3] sm:$0x3] %v9668
    %9671 = vst [vmem:[#allocation3 + $0x8] sm:$0x3] %v9669
    %v9672 = vld [vmem:[#allocation2] sm:$0xc]
    %v9673 = vld [vmem:[#allocation2 + $0x8] sm:$0xc]
    %v9674 = vld [vmem:[#allocation2 + $0x10] sm:$0xc]
    %v9675 = vld [vmem:[#allocation2 + $0x18] sm:$0xc]
    %v9676 = vld [vmem:[#allocation2 + $0x20] sm:$0xc]
    %v9677 = vld [vmem:[#allocation2 + $0x28] sm:$0xc]
    %v9678 = vld [vmem:[#allocation2 + $0x30] sm:$0xc]
    %v9679 = vld [vmem:[#allocation2 + $0x38] sm:$0xc]
    %v9680 = vpack.c.bf16 %v9668, %v9668
    %v9681 = vpack.c.bf16 %v9669, %v9669
    %v9682 = vld [vmem:[#allocation4] sm:$0xff]
    %v9683 = vld [vmem:[#allocation4 + $0x8] sm:$0xff]
    %v9684 = vld [vmem:[#allocation4 + $0x10] sm:$0xff]
    %v9685 = vld [vmem:[#allocation4 + $0x18] sm:$0xff]
    %v9686 = vld [vmem:[#allocation4 + $0x20] sm:$0xff]
    %v9687 = vld [vmem:[#allocation4 + $0x28] sm:$0xff]
    %v9688 = vld [vmem:[#allocation4 + $0x30] sm:$0xff]
    %v9689 = vld [vmem:[#allocation4 + $0x38] sm:$0xff]
    %v9690 = vld [vmem:[#allocation4 + $0x40] sm:$0xff]
    %v9691 = vld [vmem:[#allocation4 + $0x48] sm:$0xff]
    %v9692 = vld [vmem:[#allocation4 + $0x50] sm:$0xff]
    %v9693 = vld [vmem:[#allocation4 + $0x58] sm:$0xff]
    %v9694 = vld [vmem:[#allocation4 + $0x60] sm:$0xff]
    %v9695 = vld [vmem:[#allocation4 + $0x68] sm:$0xff]
    %v9696 = vld [vmem:[#allocation4 + $0x70] sm:$0xff]
    %v9697 = vld [vmem:[#allocation4 + $0x78] sm:$0xff]
    %v9698 = vld [vmem:[#allocation4 + $0x80] sm:$0xff]
    %v9699 = vld [vmem:[#allocation4 + $0x88] sm:$0xff]
    %v9700 = vld [vmem:[#allocation4 + $0x90] sm:$0xff]
    %v9701 = vld [vmem:[#allocation4 + $0x98] sm:$0xff]
    %v9702 = vld [vmem:[#allocation4 + $0xa0] sm:$0xff]
    %v9703 = vld [vmem:[#allocation4 + $0xa8] sm:$0xff]
    %v9704 = vld [vmem:[#allocation4 + $0xb0] sm:$0xff]
    %v9705 = vld [vmem:[#allocation4 + $0xb8] sm:$0xff]
    %v9706 = vld [vmem:[#allocation4 + $0xc0] sm:$0xff]
    %v9707 = vld [vmem:[#allocation4 + $0xc8] sm:$0xff]
    %v9708 = vld [vmem:[#allocation4 + $0xd0] sm:$0xff]
    %v9709 = vld [vmem:[#allocation4 + $0xd8] sm:$0xff]
    %v9710 = vld [vmem:[#allocation4 + $0xe0] sm:$0xff]
    %v9711 = vld [vmem:[#allocation4 + $0xe8] sm:$0xff]
    %v9712 = vld [vmem:[#allocation4 + $0xf0] sm:$0xff]
    %v9713 = vld [vmem:[#allocation4 + $0xf8] sm:$0xff]
    %v9714 = vld [vmem:[#allocation4 + $0x100] sm:$0xff]
    %v9715 = vld [vmem:[#allocation4 + $0x108] sm:$0xff]
    %v9716 = vld [vmem:[#allocation4 + $0x110] sm:$0xff]
    %v9717 = vld [vmem:[#allocation4 + $0x118] sm:$0xff]
    %v9718 = vld [vmem:[#allocation4 + $0x120] sm:$0xff]
    %v9719 = vld [vmem:[#allocation4 + $0x128] sm:$0xff]
    %v9720 = vld [vmem:[#allocation4 + $0x130] sm:$0xff]
    %v9721 = vld [vmem:[#allocation4 + $0x138] sm:$0xff]
    %v9722 = vld [vmem:[#allocation4 + $0x140] sm:$0xff]
    %v9723 = vld [vmem:[#allocation4 + $0x148] sm:$0xff]
    %v9724 = vld [vmem:[#allocation4 + $0x150] sm:$0xff]
    %v9725 = vld [vmem:[#allocation4 + $0x158] sm:$0xff]
    %v9726 = vld [vmem:[#allocation4 + $0x160] sm:$0xff]
    %v9727 = vld [vmem:[#allocation4 + $0x168] sm:$0xff]
    %v9728 = vld [vmem:[#allocation4 + $0x170] sm:$0xff]
    %v9729 = vld [vmem:[#allocation4 + $0x178] sm:$0xff]
    %v9730 = vld [vmem:[#allocation4 + $0x180] sm:$0xff]
    %v9731 = vld [vmem:[#allocation4 + $0x188] sm:$0xff]
    %v9732 = vld [vmem:[#allocation4 + $0x190] sm:$0xff]
    %v9733 = vld [vmem:[#allocation4 + $0x198] sm:$0xff]
    %v9734 = vld [vmem:[#allocation4 + $0x1a0] sm:$0xff]
    %v9735 = vld [vmem:[#allocation4 + $0x1a8] sm:$0xff]
    %v9736 = vld [vmem:[#allocation4 + $0x1b0] sm:$0xff]
    %v9737 = vld [vmem:[#allocation4 + $0x1b8] sm:$0xff]
    %v9738 = vld [vmem:[#allocation4 + $0x1c0] sm:$0xff]
    %v9739 = vld [vmem:[#allocation4 + $0x1c8] sm:$0xff]
    %v9740 = vld [vmem:[#allocation4 + $0x1d0] sm:$0xff]
    %v9741 = vld [vmem:[#allocation4 + $0x1d8] sm:$0xff]
    %v9742 = vld [vmem:[#allocation4 + $0x1e0] sm:$0xff]
    %v9743 = vld [vmem:[#allocation4 + $0x1e8] sm:$0xff]
    %v9744 = vld [vmem:[#allocation4 + $0x1f0] sm:$0xff]
    %v9745 = vld [vmem:[#allocation4 + $0x1f8] sm:$0xff]
    %v9746 = vld [vmem:[#allocation4 + $0x200] sm:$0xff]
    %v9747 = vld [vmem:[#allocation4 + $0x208] sm:$0xff]
    %v9748 = vld [vmem:[#allocation4 + $0x210] sm:$0xff]
    %v9749 = vld [vmem:[#allocation4 + $0x218] sm:$0xff]
    %v9750 = vld [vmem:[#allocation4 + $0x220] sm:$0xff]
    %v9751 = vld [vmem:[#allocation4 + $0x228] sm:$0xff]
    %v9752 = vld [vmem:[#allocation4 + $0x230] sm:$0xff]
    %v9753 = vld [vmem:[#allocation4 + $0x238] sm:$0xff]
    %v9754 = vld [vmem:[#allocation4 + $0x240] sm:$0xff]
    %v9755 = vld [vmem:[#allocation4 + $0x248] sm:$0xff]
    %v9756 = vld [vmem:[#allocation4 + $0x250] sm:$0xff]
    %v9757 = vld [vmem:[#allocation4 + $0x258] sm:$0xff]
    %v9758 = vld [vmem:[#allocation4 + $0x260] sm:$0xff]
    %v9759 = vld [vmem:[#allocation4 + $0x268] sm:$0xff]
    %v9760 = vld [vmem:[#allocation4 + $0x270] sm:$0xff]
    %v9761 = vld [vmem:[#allocation4 + $0x278] sm:$0xff]
    %v9762 = vld [vmem:[#allocation4 + $0x280] sm:$0xff]
    %v9763 = vld [vmem:[#allocation4 + $0x288] sm:$0xff]
    %v9764 = vld [vmem:[#allocation4 + $0x290] sm:$0xff]
    %v9765 = vld [vmem:[#allocation4 + $0x298] sm:$0xff]
    %v9766 = vld [vmem:[#allocation4 + $0x2a0] sm:$0xff]
    %v9767 = vld [vmem:[#allocation4 + $0x2a8] sm:$0xff]
    %v9768 = vld [vmem:[#allocation4 + $0x2b0] sm:$0xff]
    %v9769 = vld [vmem:[#allocation4 + $0x2b8] sm:$0xff]
    %v9770 = vld [vmem:[#allocation4 + $0x2c0] sm:$0xff]
    %v9771 = vld [vmem:[#allocation4 + $0x2c8] sm:$0xff]
    %v9772 = vld [vmem:[#allocation4 + $0x2d0] sm:$0xff]
    %v9773 = vld [vmem:[#allocation4 + $0x2d8] sm:$0xff]
    %v9774 = vld [vmem:[#allocation4 + $0x2e0] sm:$0xff]
    %v9775 = vld [vmem:[#allocation4 + $0x2e8] sm:$0xff]
    %v9776 = vld [vmem:[#allocation4 + $0x2f0] sm:$0xff]
    %v9777 = vld [vmem:[#allocation4 + $0x2f8] sm:$0xff]
    %v9778 = vld [vmem:[#allocation4 + $0x300] sm:$0xff]
    %v9779 = vld [vmem:[#allocation4 + $0x308] sm:$0xff]
    %v9780 = vld [vmem:[#allocation4 + $0x310] sm:$0xff]
    %v9781 = vld [vmem:[#allocation4 + $0x318] sm:$0xff]
    %v9782 = vld [vmem:[#allocation4 + $0x320] sm:$0xff]
    %v9783 = vld [vmem:[#allocation4 + $0x328] sm:$0xff]
    %v9784 = vld [vmem:[#allocation4 + $0x330] sm:$0xff]
    %v9785 = vld [vmem:[#allocation4 + $0x338] sm:$0xff]
    %v9786 = vld [vmem:[#allocation4 + $0x340] sm:$0xff]
    %v9787 = vld [vmem:[#allocation4 + $0x348] sm:$0xff]
    %v9788 = vld [vmem:[#allocation4 + $0x350] sm:$0xff]
    %v9789 = vld [vmem:[#allocation4 + $0x358] sm:$0xff]
    %v9790 = vld [vmem:[#allocation4 + $0x360] sm:$0xff]
    %v9791 = vld [vmem:[#allocation4 + $0x368] sm:$0xff]
    %v9792 = vld [vmem:[#allocation4 + $0x370] sm:$0xff]
    %v9793 = vld [vmem:[#allocation4 + $0x378] sm:$0xff]
    %v9794 = vld [vmem:[#allocation4 + $0x380] sm:$0xff]
    %v9795 = vld [vmem:[#allocation4 + $0x388] sm:$0xff]
    %v9796 = vld [vmem:[#allocation4 + $0x390] sm:$0xff]
    %v9797 = vld [vmem:[#allocation4 + $0x398] sm:$0xff]
    %v9798 = vld [vmem:[#allocation4 + $0x3a0] sm:$0xff]
    %v9799 = vld [vmem:[#allocation4 + $0x3a8] sm:$0xff]
    %v9800 = vld [vmem:[#allocation4 + $0x3b0] sm:$0xff]
    %v9801 = vld [vmem:[#allocation4 + $0x3b8] sm:$0xff]
    %v9802 = vld [vmem:[#allocation4 + $0x3c0] sm:$0xff]
    %v9803 = vld [vmem:[#allocation4 + $0x3c8] sm:$0xff]
    %v9804 = vld [vmem:[#allocation4 + $0x3d0] sm:$0xff]
    %v9805 = vld [vmem:[#allocation4 + $0x3d8] sm:$0xff]
    %v9806 = vld [vmem:[#allocation4 + $0x3e0] sm:$0xff]
    %v9807 = vld [vmem:[#allocation4 + $0x3e8] sm:$0xff]
    %v9808 = vld [vmem:[#allocation4 + $0x3f0] sm:$0xff]
    %v9809 = vld [vmem:[#allocation4 + $0x3f8] sm:$0xff]
    %v9938 = vunpack.c.l.b16 %v9682
    %v9939 = vunpack.c.h.b16 %v9682
    %v9940 = vunpack.c.l.b16 %v9683
    %v9941 = vunpack.c.h.b16 %v9683
    %v9942 = vunpack.c.l.b16 %v9684
    %v9943 = vunpack.c.h.b16 %v9684
    %v9944 = vunpack.c.l.b16 %v9685
    %v9945 = vunpack.c.h.b16 %v9685
    %v9946 = vunpack.c.l.b16 %v9686
    %v9947 = vunpack.c.h.b16 %v9686
    %v9948 = vunpack.c.l.b16 %v9687
    %v9949 = vunpack.c.h.b16 %v9687
    %v9950 = vunpack.c.l.b16 %v9688
    %v9951 = vunpack.c.h.b16 %v9688
    %v9952 = vunpack.c.l.b16 %v9689
    %v9953 = vunpack.c.h.b16 %v9689
    %v9954 = vunpack.c.l.b16 %v9690
    %v9955 = vunpack.c.h.b16 %v9690
    %v9956 = vunpack.c.l.b16 %v9691
    %v9957 = vunpack.c.h.b16 %v9691
    %v9958 = vunpack.c.l.b16 %v9692
    %v9959 = vunpack.c.h.b16 %v9692
    %v9960 = vunpack.c.l.b16 %v9693
    %v9961 = vunpack.c.h.b16 %v9693
    %v9962 = vunpack.c.l.b16 %v9694
    %v9963 = vunpack.c.h.b16 %v9694
    %v9964 = vunpack.c.l.b16 %v9695
    %v9965 = vunpack.c.h.b16 %v9695
    %v9966 = vunpack.c.l.b16 %v9696
    %v9967 = vunpack.c.h.b16 %v9696
    %v9968 = vunpack.c.l.b16 %v9697
    %v9969 = vunpack.c.h.b16 %v9697
    %v9970 = vunpack.c.l.b16 %v9698
    %v9971 = vunpack.c.h.b16 %v9698
    %v9972 = vunpack.c.l.b16 %v9699
    %v9973 = vunpack.c.h.b16 %v9699
    %v9974 = vunpack.c.l.b16 %v9700
    %v9975 = vunpack.c.h.b16 %v9700
    %v9976 = vunpack.c.l.b16 %v9701
    %v9977 = vunpack.c.h.b16 %v9701
    %v9978 = vunpack.c.l.b16 %v9702
    %v9979 = vunpack.c.h.b16 %v9702
    %v9980 = vunpack.c.l.b16 %v9703
    %v9981 = vunpack.c.h.b16 %v9703
    %v9982 = vunpack.c.l.b16 %v9704
    %v9983 = vunpack.c.h.b16 %v9704
    %v9984 = vunpack.c.l.b16 %v9705
    %v9985 = vunpack.c.h.b16 %v9705
    %v9986 = vunpack.c.l.b16 %v9706
    %v9987 = vunpack.c.h.b16 %v9706
    %v9988 = vunpack.c.l.b16 %v9707
    %v9989 = vunpack.c.h.b16 %v9707
    %v9990 = vunpack.c.l.b16 %v9708
    %v9991 = vunpack.c.h.b16 %v9708
    %v9992 = vunpack.c.l.b16 %v9709
    %v9993 = vunpack.c.h.b16 %v9709
    %v9994 = vunpack.c.l.b16 %v9710
    %v9995 = vunpack.c.h.b16 %v9710
    %v9996 = vunpack.c.l.b16 %v9711
    %v9997 = vunpack.c.h.b16 %v9711
    %v9998 = vunpack.c.l.b16 %v9712
    %v9999 = vunpack.c.h.b16 %v9712
    %v10000 = vunpack.c.l.b16 %v9713
    %v10001 = vunpack.c.h.b16 %v9713
    %v10002 = vunpack.c.l.b16 %v9714
    %v10003 = vunpack.c.h.b16 %v9714
    %v10004 = vunpack.c.l.b16 %v9715
    %v10005 = vunpack.c.h.b16 %v9715
    %v10006 = vunpack.c.l.b16 %v9716
    %v10007 = vunpack.c.h.b16 %v9716
    %v10008 = vunpack.c.l.b16 %v9717
    %v10009 = vunpack.c.h.b16 %v9717
    %v10010 = vunpack.c.l.b16 %v9718
    %v10011 = vunpack.c.h.b16 %v9718
    %v10012 = vunpack.c.l.b16 %v9719
    %v10013 = vunpack.c.h.b16 %v9719
    %v10014 = vunpack.c.l.b16 %v9720
    %v10015 = vunpack.c.h.b16 %v9720
    %v10016 = vunpack.c.l.b16 %v9721
    %v10017 = vunpack.c.h.b16 %v9721
    %v10018 = vunpack.c.l.b16 %v9722
    %v10019 = vunpack.c.h.b16 %v9722
    %v10020 = vunpack.c.l.b16 %v9723
    %v10021 = vunpack.c.h.b16 %v9723
    %v10022 = vunpack.c.l.b16 %v9724
    %v10023 = vunpack.c.h.b16 %v9724
    %v10024 = vunpack.c.l.b16 %v9725
    %v10025 = vunpack.c.h.b16 %v9725
    %v10026 = vunpack.c.l.b16 %v9726
    %v10027 = vunpack.c.h.b16 %v9726
    %v10028 = vunpack.c.l.b16 %v9727
    %v10029 = vunpack.c.h.b16 %v9727
    %v10030 = vunpack.c.l.b16 %v9728
    %v10031 = vunpack.c.h.b16 %v9728
    %v10032 = vunpack.c.l.b16 %v9729
    %v10033 = vunpack.c.h.b16 %v9729
    %v10034 = vunpack.c.l.b16 %v9730
    %v10035 = vunpack.c.h.b16 %v9730
    %v10036 = vunpack.c.l.b16 %v9731
    %v10037 = vunpack.c.h.b16 %v9731
    %v10038 = vunpack.c.l.b16 %v9732
    %v10039 = vunpack.c.h.b16 %v9732
    %v10040 = vunpack.c.l.b16 %v9733
    %v10041 = vunpack.c.h.b16 %v9733
    %v10042 = vunpack.c.l.b16 %v9734
    %v10043 = vunpack.c.h.b16 %v9734
    %v10044 = vunpack.c.l.b16 %v9735
    %v10045 = vunpack.c.h.b16 %v9735
    %v10046 = vunpack.c.l.b16 %v9736
    %v10047 = vunpack.c.h.b16 %v9736
    %v10048 = vunpack.c.l.b16 %v9737
    %v10049 = vunpack.c.h.b16 %v9737
    %v10050 = vunpack.c.l.b16 %v9738
    %v10051 = vunpack.c.h.b16 %v9738
    %v10052 = vunpack.c.l.b16 %v9739
    %v10053 = vunpack.c.h.b16 %v9739
    %v10054 = vunpack.c.l.b16 %v9740
    %v10055 = vunpack.c.h.b16 %v9740
    %v10056 = vunpack.c.l.b16 %v9741
    %v10057 = vunpack.c.h.b16 %v9741
    %v10058 = vunpack.c.l.b16 %v9742
    %v10059 = vunpack.c.h.b16 %v9742
    %v10060 = vunpack.c.l.b16 %v9743
    %v10061 = vunpack.c.h.b16 %v9743
    %v10062 = vunpack.c.l.b16 %v9744
    %v10063 = vunpack.c.h.b16 %v9744
    %v10064 = vunpack.c.l.b16 %v9745
    %v10065 = vunpack.c.h.b16 %v9745
    %v10066 = vunpack.c.l.b16 %v9746
    %v10067 = vunpack.c.h.b16 %v9746
    %v10068 = vunpack.c.l.b16 %v9747
    %v10069 = vunpack.c.h.b16 %v9747
    %v10070 = vunpack.c.l.b16 %v9748
    %v10071 = vunpack.c.h.b16 %v9748
    %v10072 = vunpack.c.l.b16 %v9749
    %v10073 = vunpack.c.h.b16 %v9749
    %v10074 = vunpack.c.l.b16 %v9750
    %v10075 = vunpack.c.h.b16 %v9750
    %v10076 = vunpack.c.l.b16 %v9751
    %v10077 = vunpack.c.h.b16 %v9751
    %v10078 = vunpack.c.l.b16 %v9752
    %v10079 = vunpack.c.h.b16 %v9752
    %v10080 = vunpack.c.l.b16 %v9753
    %v10081 = vunpack.c.h.b16 %v9753
    %v10082 = vunpack.c.l.b16 %v9754
    %v10083 = vunpack.c.h.b16 %v9754
    %v10084 = vunpack.c.l.b16 %v9755
    %v10085 = vunpack.c.h.b16 %v9755
    %v10086 = vunpack.c.l.b16 %v9756
    %v10087 = vunpack.c.h.b16 %v9756
    %v10088 = vunpack.c.l.b16 %v9757
    %v10089 = vunpack.c.h.b16 %v9757
    %v10090 = vunpack.c.l.b16 %v9758
    %v10091 = vunpack.c.h.b16 %v9758
    %v10092 = vunpack.c.l.b16 %v9759
    %v10093 = vunpack.c.h.b16 %v9759
    %v10094 = vunpack.c.l.b16 %v9760
    %v10095 = vunpack.c.h.b16 %v9760
    %v10096 = vunpack.c.l.b16 %v9761
    %v10097 = vunpack.c.h.b16 %v9761
    %v10098 = vunpack.c.l.b16 %v9762
    %v10099 = vunpack.c.h.b16 %v9762
    %v10100 = vunpack.c.l.b16 %v9763
    %v10101 = vunpack.c.h.b16 %v9763
    %v10102 = vunpack.c.l.b16 %v9764
    %v10103 = vunpack.c.h.b16 %v9764
    %v10104 = vunpack.c.l.b16 %v9765
    %v10105 = vunpack.c.h.b16 %v9765
    %v10106 = vunpack.c.l.b16 %v9766
    %v10107 = vunpack.c.h.b16 %v9766
    %v10108 = vunpack.c.l.b16 %v9767
    %v10109 = vunpack.c.h.b16 %v9767
    %v10110 = vunpack.c.l.b16 %v9768
    %v10111 = vunpack.c.h.b16 %v9768
    %v10112 = vunpack.c.l.b16 %v9769
    %v10113 = vunpack.c.h.b16 %v9769
    %v10114 = vunpack.c.l.b16 %v9770
    %v10115 = vunpack.c.h.b16 %v9770
    %v10116 = vunpack.c.l.b16 %v9771
    %v10117 = vunpack.c.h.b16 %v9771
    %v10118 = vunpack.c.l.b16 %v9772
    %v10119 = vunpack.c.h.b16 %v9772
    %v10120 = vunpack.c.l.b16 %v9773
    %v10121 = vunpack.c.h.b16 %v9773
    %v10122 = vunpack.c.l.b16 %v9774
    %v10123 = vunpack.c.h.b16 %v9774
    %v10124 = vunpack.c.l.b16 %v9775
    %v10125 = vunpack.c.h.b16 %v9775
    %v10126 = vunpack.c.l.b16 %v9776
    %v10127 = vunpack.c.h.b16 %v9776
    %v10128 = vunpack.c.l.b16 %v9777
    %v10129 = vunpack.c.h.b16 %v9777
    %v10130 = vunpack.c.l.b16 %v9778
    %v10131 = vunpack.c.h.b16 %v9778
    %v10132 = vunpack.c.l.b16 %v9779
    %v10133 = vunpack.c.h.b16 %v9779
    %v10134 = vunpack.c.l.b16 %v9780
    %v10135 = vunpack.c.h.b16 %v9780
    %v10136 = vunpack.c.l.b16 %v9781
    %v10137 = vunpack.c.h.b16 %v9781
    %v10138 = vunpack.c.l.b16 %v9782
    %v10139 = vunpack.c.h.b16 %v9782
    %v10140 = vunpack.c.l.b16 %v9783
    %v10141 = vunpack.c.h.b16 %v9783
    %v10142 = vunpack.c.l.b16 %v9784
    %v10143 = vunpack.c.h.b16 %v9784
    %v10144 = vunpack.c.l.b16 %v9785
    %v10145 = vunpack.c.h.b16 %v9785
    %v10146 = vunpack.c.l.b16 %v9786
    %v10147 = vunpack.c.h.b16 %v9786
    %v10148 = vunpack.c.l.b16 %v9787
    %v10149 = vunpack.c.h.b16 %v9787
    %v10150 = vunpack.c.l.b16 %v9788
    %v10151 = vunpack.c.h.b16 %v9788
    %v10152 = vunpack.c.l.b16 %v9789
    %v10153 = vunpack.c.h.b16 %v9789
    %v10154 = vunpack.c.l.b16 %v9790
    %v10155 = vunpack.c.h.b16 %v9790
    %v10156 = vunpack.c.l.b16 %v9791
    %v10157 = vunpack.c.h.b16 %v9791
    %v10158 = vunpack.c.l.b16 %v9792
    %v10159 = vunpack.c.h.b16 %v9792
    %v10160 = vunpack.c.l.b16 %v9793
    %v10161 = vunpack.c.h.b16 %v9793
    %v10162 = vunpack.c.l.b16 %v9794
    %v10163 = vunpack.c.h.b16 %v9794
    %v10164 = vunpack.c.l.b16 %v9795
    %v10165 = vunpack.c.h.b16 %v9795
    %v10166 = vunpack.c.l.b16 %v9796
    %v10167 = vunpack.c.h.b16 %v9796
    %v10168 = vunpack.c.l.b16 %v9797
    %v10169 = vunpack.c.h.b16 %v9797
    %v10170 = vunpack.c.l.b16 %v9798
    %v10171 = vunpack.c.h.b16 %v9798
    %v10172 = vunpack.c.l.b16 %v9799
    %v10173 = vunpack.c.h.b16 %v9799
    %v10174 = vunpack.c.l.b16 %v9800
    %v10175 = vunpack.c.h.b16 %v9800
    %v10176 = vunpack.c.l.b16 %v9801
    %v10177 = vunpack.c.h.b16 %v9801
    %v10178 = vunpack.c.l.b16 %v9802
    %v10179 = vunpack.c.h.b16 %v9802
    %v10180 = vunpack.c.l.b16 %v9803
    %v10181 = vunpack.c.h.b16 %v9803
    %v10182 = vunpack.c.l.b16 %v9804
    %v10183 = vunpack.c.h.b16 %v9804
    %v10184 = vunpack.c.l.b16 %v9805
    %v10185 = vunpack.c.h.b16 %v9805
    %v10186 = vunpack.c.l.b16 %v9806
    %v10187 = vunpack.c.h.b16 %v9806
    %v10188 = vunpack.c.l.b16 %v9807
    %v10189 = vunpack.c.h.b16 %v9807
    %v10190 = vunpack.c.l.b16 %v9808
    %v10191 = vunpack.c.h.b16 %v9808
    %v10192 = vunpack.c.l.b16 %v9809
    %v10193 = vunpack.c.h.b16 %v9809
    %v10194 = vpack.c.b16 %v9946, %v9938
    %v10195 = vpack.c.b16 %v9947, %v9939
    %v10196 = vpack.c.b16 %v9948, %v9940
    %v10197 = vpack.c.b16 %v9949, %v9941
    %v10198 = vpack.c.b16 %v9950, %v9942
    %v10199 = vpack.c.b16 %v9951, %v9943
    %v10200 = vpack.c.b16 %v9952, %v9944
    %v10201 = vpack.c.b16 %v9953, %v9945
    %v10202 = vpack.c.b16 %v9962, %v9954
    %v10203 = vpack.c.b16 %v9963, %v9955
    %v10204 = vpack.c.b16 %v9964, %v9956
    %v10205 = vpack.c.b16 %v9965, %v9957
    %v10206 = vpack.c.b16 %v9966, %v9958
    %v10207 = vpack.c.b16 %v9967, %v9959
    %v10208 = vpack.c.b16 %v9968, %v9960
    %v10209 = vpack.c.b16 %v9969, %v9961
    %v10210 = vpack.c.b16 %v9978, %v9970
    %v10211 = vpack.c.b16 %v9979, %v9971
    %v10212 = vpack.c.b16 %v9980, %v9972
    %v10213 = vpack.c.b16 %v9981, %v9973
    %v10214 = vpack.c.b16 %v9982, %v9974
    %v10215 = vpack.c.b16 %v9983, %v9975
    %v10216 = vpack.c.b16 %v9984, %v9976
    %v10217 = vpack.c.b16 %v9985, %v9977
    %v10218 = vpack.c.b16 %v9994, %v9986
    %v10219 = vpack.c.b16 %v9995, %v9987
    %v10220 = vpack.c.b16 %v9996, %v9988
    %v10221 = vpack.c.b16 %v9997, %v9989
    %v10222 = vpack.c.b16 %v9998, %v9990
    %v10223 = vpack.c.b16 %v9999, %v9991
    %v10224 = vpack.c.b16 %v10000, %v9992
    %v10225 = vpack.c.b16 %v10001, %v9993
    %v10226 = vpack.c.b16 %v10010, %v10002
    %v10227 = vpack.c.b16 %v10011, %v10003
    %v10228 = vpack.c.b16 %v10012, %v10004
    %v10229 = vpack.c.b16 %v10013, %v10005
    %v10230 = vpack.c.b16 %v10014, %v10006
    %v10231 = vpack.c.b16 %v10015, %v10007
    %v10232 = vpack.c.b16 %v10016, %v10008
    %v10233 = vpack.c.b16 %v10017, %v10009
    %v10234 = vpack.c.b16 %v10026, %v10018
    %v10235 = vpack.c.b16 %v10027, %v10019
    %v10236 = vpack.c.b16 %v10028, %v10020
    %v10237 = vpack.c.b16 %v10029, %v10021
    %v10238 = vpack.c.b16 %v10030, %v10022
    %v10239 = vpack.c.b16 %v10031, %v10023
    %v10240 = vpack.c.b16 %v10032, %v10024
    %v10241 = vpack.c.b16 %v10033, %v10025
    %v10242 = vpack.c.b16 %v10042, %v10034
    %v10243 = vpack.c.b16 %v10043, %v10035
    %v10244 = vpack.c.b16 %v10044, %v10036
    %v10245 = vpack.c.b16 %v10045, %v10037
    %v10246 = vpack.c.b16 %v10046, %v10038
    %v10247 = vpack.c.b16 %v10047, %v10039
    %v10248 = vpack.c.b16 %v10048, %v10040
    %v10249 = vpack.c.b16 %v10049, %v10041
    %v10250 = vpack.c.b16 %v10058, %v10050
    %v10251 = vpack.c.b16 %v10059, %v10051
    %v10252 = vpack.c.b16 %v10060, %v10052
    %v10253 = vpack.c.b16 %v10061, %v10053
    %v10254 = vpack.c.b16 %v10062, %v10054
    %v10255 = vpack.c.b16 %v10063, %v10055
    %v10256 = vpack.c.b16 %v10064, %v10056
    %v10257 = vpack.c.b16 %v10065, %v10057
    %v10258 = vpack.c.b16 %v10074, %v10066
    %v10259 = vpack.c.b16 %v10075, %v10067
    %v10260 = vpack.c.b16 %v10076, %v10068
    %v10261 = vpack.c.b16 %v10077, %v10069
    %v10262 = vpack.c.b16 %v10078, %v10070
    %v10263 = vpack.c.b16 %v10079, %v10071
    %v10264 = vpack.c.b16 %v10080, %v10072
    %v10265 = vpack.c.b16 %v10081, %v10073
    %v10266 = vpack.c.b16 %v10090, %v10082
    %v10267 = vpack.c.b16 %v10091, %v10083
    %v10268 = vpack.c.b16 %v10092, %v10084
    %v10269 = vpack.c.b16 %v10093, %v10085
    %v10270 = vpack.c.b16 %v10094, %v10086
    %v10271 = vpack.c.b16 %v10095, %v10087
    %v10272 = vpack.c.b16 %v10096, %v10088
    %v10273 = vpack.c.b16 %v10097, %v10089
    %v10274 = vpack.c.b16 %v10106, %v10098
    %v10275 = vpack.c.b16 %v10107, %v10099
    %v10276 = vpack.c.b16 %v10108, %v10100
    %v10277 = vpack.c.b16 %v10109, %v10101
    %v10278 = vpack.c.b16 %v10110, %v10102
    %v10279 = vpack.c.b16 %v10111, %v10103
    %v10280 = vpack.c.b16 %v10112, %v10104
    %v10281 = vpack.c.b16 %v10113, %v10105
    %v10282 = vpack.c.b16 %v10122, %v10114
    %v10283 = vpack.c.b16 %v10123, %v10115
    %v10284 = vpack.c.b16 %v10124, %v10116
    %v10285 = vpack.c.b16 %v10125, %v10117
    %v10286 = vpack.c.b16 %v10126, %v10118
    %v10287 = vpack.c.b16 %v10127, %v10119
    %v10288 = vpack.c.b16 %v10128, %v10120
    %v10289 = vpack.c.b16 %v10129, %v10121
    %v10290 = vpack.c.b16 %v10138, %v10130
    %v10291 = vpack.c.b16 %v10139, %v10131
    %v10292 = vpack.c.b16 %v10140, %v10132
    %v10293 = vpack.c.b16 %v10141, %v10133
    %v10294 = vpack.c.b16 %v10142, %v10134
    %v10295 = vpack.c.b16 %v10143, %v10135
    %v10296 = vpack.c.b16 %v10144, %v10136
    %v10297 = vpack.c.b16 %v10145, %v10137
    %v10298 = vpack.c.b16 %v10154, %v10146
    %v10299 = vpack.c.b16 %v10155, %v10147
    %v10300 = vpack.c.b16 %v10156, %v10148
    %v10301 = vpack.c.b16 %v10157, %v10149
    %v10302 = vpack.c.b16 %v10158, %v10150
    %v10303 = vpack.c.b16 %v10159, %v10151
    %v10304 = vpack.c.b16 %v10160, %v10152
    %v10305 = vpack.c.b16 %v10161, %v10153
    %v10306 = vpack.c.b16 %v10170, %v10162
    %v10307 = vpack.c.b16 %v10171, %v10163
    %v10308 = vpack.c.b16 %v10172, %v10164
    %v10309 = vpack.c.b16 %v10173, %v10165
    %v10310 = vpack.c.b16 %v10174, %v10166
    %v10311 = vpack.c.b16 %v10175, %v10167
    %v10312 = vpack.c.b16 %v10176, %v10168
    %v10313 = vpack.c.b16 %v10177, %v10169
    %v10314 = vpack.c.b16 %v10186, %v10178
    %v10315 = vpack.c.b16 %v10187, %v10179
    %v10316 = vpack.c.b16 %v10188, %v10180
    %v10317 = vpack.c.b16 %v10189, %v10181
    %v10318 = vpack.c.b16 %v10190, %v10182
    %v10319 = vpack.c.b16 %v10191, %v10183
    %v10320 = vpack.c.b16 %v10192, %v10184
    %v10321 = vpack.c.b16 %v10193, %v10185
    %10450 = vmatprep.subr.bf16.mxu0 %v10195
    %10451 = vmatpush1.bf16.msra.mxu0 %v10194
    %10452 = vmatprep.subr.bf16.mxu0 %v10203
    %10453 = vmatpush1.bf16.msra.mxu0 %v10202
    %10454 = vmatprep.subr.bf16.mxu0 %v10211
    %10455 = vmatpush1.bf16.msra.mxu0 %v10210
    %10456 = vmatprep.subr.bf16.mxu0 %v10219
    %10457 = vmatpush1.bf16.msra.mxu0 %v10218
    %10458 = vmatprep.subr.bf16.mxu0 %v10227
    %10459 = vmatpush1.bf16.msra.mxu0 %v10226
    %10460 = vmatprep.subr.bf16.mxu0 %v10235
    %10461 = vmatpush1.bf16.msra.mxu0 %v10234
    %10462 = vmatprep.subr.bf16.mxu0 %v10243
    %10463 = vmatpush1.bf16.msra.mxu0 %v10242
    %10464 = vmatprep.subr.bf16.mxu0 %v10251
    %10465 = vmatpush1.bf16.msra.mxu0 %v10250
    %10466 = vmatprep.subr.bf16.mxu0 %v10259
    %10467 = vmatpush1.bf16.msra.mxu0 %v10258
    %10468 = vmatprep.subr.bf16.mxu0 %v10267
    %10469 = vmatpush1.bf16.msra.mxu0 %v10266
    %10470 = vmatprep.subr.bf16.mxu0 %v10275
    %10471 = vmatpush1.bf16.msra.mxu0 %v10274
    %10472 = vmatprep.subr.bf16.mxu0 %v10283
    %10473 = vmatpush1.bf16.msra.mxu0 %v10282
    %10474 = vmatprep.subr.bf16.mxu0 %v10291
    %10475 = vmatpush1.bf16.msra.mxu0 %v10290
    %10476 = vmatprep.subr.bf16.mxu0 %v10299
    %10477 = vmatpush1.bf16.msra.mxu0 %v10298
    %10478 = vmatprep.subr.bf16.mxu0 %v10307
    %10479 = vmatpush1.bf16.msra.mxu0 %v10306
    %10480 = vmatprep.subr.bf16.mxu0 %v10315
    %10481 = vmatpush1.bf16.msra.mxu0 %v10314
    %10482 = vmatprep.mubr.bf16.mxu0 %v9681
    %10483 = vmatmul.mubr.bf16.gmra.mrb[0].mxu0 %v9680
    %v10484 = vpop.f32.mrb[0].mxu0
    %v10485 = vadd.f32 0.0, %v10484
    %v10486 = vpop.f32.mrb[0].mxu0
    %v10487 = vadd.f32 0.0, %v10486
    %v10488 = vpop.f32.mrb[0].mxu0
    %v10489 = vpop.f32.mrb[0].mxu0
    %10490 = vdwg.mxu0
    %10491 = vmatprep.subr.bf16.mxu0 %v10197
    %10492 = vmatpush1.bf16.msra.mxu0 %v10196
    %10493 = vmatprep.subr.bf16.mxu0 %v10205
    %10494 = vmatpush1.bf16.msra.mxu0 %v10204
    %10495 = vmatprep.subr.bf16.mxu0 %v10213
    %10496 = vmatpush1.bf16.msra.mxu0 %v10212
    %10497 = vmatprep.subr.bf16.mxu0 %v10221
    %10498 = vmatpush1.bf16.msra.mxu0 %v10220
    %10499 = vmatprep.subr.bf16.mxu0 %v10229
    %10500 = vmatpush1.bf16.msra.mxu0 %v10228
    %10501 = vmatprep.subr.bf16.mxu0 %v10237
    %10502 = vmatpush1.bf16.msra.mxu0 %v10236
    %10503 = vmatprep.subr.bf16.mxu0 %v10245
    %10504 = vmatpush1.bf16.msra.mxu0 %v10244
    %10505 = vmatprep.subr.bf16.mxu0 %v10253
    %10506 = vmatpush1.bf16.msra.mxu0 %v10252
    %10507 = vmatprep.subr.bf16.mxu0 %v10261
    %10508 = vmatpush1.bf16.msra.mxu0 %v10260
    %10509 = vmatprep.subr.bf16.mxu0 %v10269
    %10510 = vmatpush1.bf16.msra.mxu0 %v10268
    %10511 = vmatprep.subr.bf16.mxu0 %v10277
    %10512 = vmatpush1.bf16.msra.mxu0 %v10276
    %10513 = vmatprep.subr.bf16.mxu0 %v10285
    %10514 = vmatpush1.bf16.msra.mxu0 %v10284
    %10515 = vmatprep.subr.bf16.mxu0 %v10293
    %10516 = vmatpush1.bf16.msra.mxu0 %v10292
    %10517 = vmatprep.subr.bf16.mxu0 %v10301
    %10518 = vmatpush1.bf16.msra.mxu0 %v10300
    %10519 = vmatprep.subr.bf16.mxu0 %v10309
    %10520 = vmatpush1.bf16.msra.mxu0 %v10308
    %10521 = vmatprep.subr.bf16.mxu0 %v10317
    %10522 = vmatpush1.bf16.msra.mxu0 %v10316
    %10523 = vmatprep.mubr.bf16.mxu0 %v9681
    %10524 = vmatmul.mubr.bf16.gmra.mrb[0].mxu0 %v9680
    %v10525 = vpop.f32.mrb[0].mxu0
    %v10526 = vadd.f32 0.0, %v10525
    %v10527 = vpop.f32.mrb[0].mxu0
    %v10528 = vadd.f32 0.0, %v10527
    %v10529 = vpop.f32.mrb[0].mxu0
    %v10530 = vpop.f32.mrb[0].mxu0
    %10531 = vdwg.mxu0
    %10532 = vmatprep.subr.bf16.mxu0 %v10199
    %10533 = vmatpush1.bf16.msra.mxu0 %v10198
    %10534 = vmatprep.subr.bf16.mxu0 %v10207
    %10535 = vmatpush1.bf16.msra.mxu0 %v10206
    %10536 = vmatprep.subr.bf16.mxu0 %v10215
    %10537 = vmatpush1.bf16.msra.mxu0 %v10214
    %10538 = vmatprep.subr.bf16.mxu0 %v10223
    %10539 = vmatpush1.bf16.msra.mxu0 %v10222
    %10540 = vmatprep.subr.bf16.mxu0 %v10231
    %10541 = vmatpush1.bf16.msra.mxu0 %v10230
    %10542 = vmatprep.subr.bf16.mxu0 %v10239
    %10543 = vmatpush1.bf16.msra.mxu0 %v10238
    %10544 = vmatprep.subr.bf16.mxu0 %v10247
    %10545 = vmatpush1.bf16.msra.mxu0 %v10246
    %10546 = vmatprep.subr.bf16.mxu0 %v10255
    %10547 = vmatpush1.bf16.msra.mxu0 %v10254
    %10548 = vmatprep.subr.bf16.mxu0 %v10263
    %10549 = vmatpush1.bf16.msra.mxu0 %v10262
    %10550 = vmatprep.subr.bf16.mxu0 %v10271
    %10551 = vmatpush1.bf16.msra.mxu0 %v10270
    %10552 = vmatprep.subr.bf16.mxu0 %v10279
    %10553 = vmatpush1.bf16.msra.mxu0 %v10278
    %10554 = vmatprep.subr.bf16.mxu0 %v10287
    %10555 = vmatpush1.bf16.msra.mxu0 %v10286
    %10556 = vmatprep.subr.bf16.mxu0 %v10295
    %10557 = vmatpush1.bf16.msra.mxu0 %v10294
    %10558 = vmatprep.subr.bf16.mxu0 %v10303
    %10559 = vmatpush1.bf16.msra.mxu0 %v10302
    %10560 = vmatprep.subr.bf16.mxu0 %v10311
    %10561 = vmatpush1.bf16.msra.mxu0 %v10310
    %10562 = vmatprep.subr.bf16.mxu0 %v10319
    %10563 = vmatpush1.bf16.msra.mxu0 %v10318
    %10564 = vmatprep.mubr.bf16.mxu0 %v9681
    %10565 = vmatmul.mubr.bf16.gmra.mrb[0].mxu0 %v9680
    %v10566 = vpop.f32.mrb[0].mxu0
    %v10567 = vadd.f32 0.0, %v10566
    %v10568 = vpop.f32.mrb[0].mxu0
    %v10569 = vadd.f32 0.0, %v10568
    %v10570 = vpop.f32.mrb[0].mxu0
    %v10571 = vpop.f32.mrb[0].mxu0
    %10572 = vdwg.mxu0
    %10573 = vmatprep.subr.bf16.mxu0 %v10201
    %10574 = vmatpush1.bf16.msra.mxu0 %v10200
    %10575 = vmatprep.subr.bf16.mxu0 %v10209
    %10576 = vmatpush1.bf16.msra.mxu0 %v10208
    %10577 = vmatprep.subr.bf16.mxu0 %v10217
    %10578 = vmatpush1.bf16.msra.mxu0 %v10216
    %10579 = vmatprep.subr.bf16.mxu0 %v10225
    %10580 = vmatpush1.bf16.msra.mxu0 %v10224
    %10581 = vmatprep.subr.bf16.mxu0 %v10233
    %10582 = vmatpush1.bf16.msra.mxu0 %v10232
    %10583 = vmatprep.subr.bf16.mxu0 %v10241
    %10584 = vmatpush1.bf16.msra.mxu0 %v10240
    %10585 = vmatprep.subr.bf16.mxu0 %v10249
    %10586 = vmatpush1.bf16.msra.mxu0 %v10248
    %10587 = vmatprep.subr.bf16.mxu0 %v10257
    %10588 = vmatpush1.bf16.msra.mxu0 %v10256
    %10589 = vmatprep.subr.bf16.mxu0 %v10265
    %10590 = vmatpush1.bf16.msra.mxu0 %v10264
    %10591 = vmatprep.subr.bf16.mxu0 %v10273
    %10592 = vmatpush1.bf16.msra.mxu0 %v10272
    %10593 = vmatprep.subr.bf16.mxu0 %v10281
    %10594 = vmatpush1.bf16.msra.mxu0 %v10280
    %10595 = vmatprep.subr.bf16.mxu0 %v10289
    %10596 = vmatpush1.bf16.msra.mxu0 %v10288
    %10597 = vmatprep.subr.bf16.mxu0 %v10297
    %10598 = vmatpush1.bf16.msra.mxu0 %v10296
    %10599 = vmatprep.subr.bf16.mxu0 %v10305
    %10600 = vmatpush1.bf16.msra.mxu0 %v10304
    %10601 = vmatprep.subr.bf16.mxu0 %v10313
    %10602 = vmatpush1.bf16.msra.mxu0 %v10312
    %10603 = vmatprep.subr.bf16.mxu0 %v10321
    %10604 = vmatpush1.bf16.msra.mxu0 %v10320
    %10605 = vmatprep.mubr.bf16.mxu0 %v9681
    %10606 = vmatmul.mubr.bf16.gmra.mrb[0].mxu0 %v9680
    %v10607 = vpop.f32.mrb[0].mxu0
    %v10608 = vadd.f32 0.0, %v10607
    %v10609 = vpop.f32.mrb[0].mxu0
    %v10610 = vadd.f32 0.0, %v10609
    %v10611 = vpop.f32.mrb[0].mxu0
    %v10612 = vpop.f32.mrb[0].mxu0
    %10613 = vdwg.mxu0
    %v10622 = vrot.slane %v10485, 6
    %v10623 = vrot.slane %v10487, 6
    %v10624 = vrot.slane %v10526, 6
    %v10625 = vrot.slane %v10528, 6
    %v10626 = vrot.slane %v10567, 6
    %v10627 = vrot.slane %v10569, 6
    %v10628 = vrot.slane %v10608, 6
    %v10629 = vrot.slane %v10610, 6
    %v10638 = vadd.f32 %v9672, %v10622
    %v10639 = vadd.f32 %v9673, %v10623
    %v10640 = vadd.f32 %v9674, %v10624
    %v10641 = vadd.f32 %v9675, %v10625
    %v10642 = vadd.f32 %v9676, %v10626
    %v10643 = vadd.f32 %v9677, %v10627
    %v10644 = vadd.f32 %v9678, %v10628
    %v10645 = vadd.f32 %v9679, %v10629
    %v10646 = vxor.u32 %v10638, 2147483648
    %v10647 = vxor.u32 %v10639, 2147483648
    %v10648 = vxor.u32 %v10640, 2147483648
    %v10649 = vxor.u32 %v10641, 2147483648
    %v10650 = vxor.u32 %v10642, 2147483648
    %v10651 = vxor.u32 %v10643, 2147483648
    %v10652 = vmul.f32 %v10646, 1.442695
    %v10653 = vpow.pop %v10652
    %v10654 = vmul.f32 %v10647, 1.442695
    %v10655 = vpow.pop %v10654
    %v10656 = vmul.f32 %v10648, 1.442695
    %v10657 = vpow.pop %v10656
    %v10658 = vmul.f32 %v10649, 1.442695
    %v10659 = vpow.pop %v10658
    %v10660 = vmul.f32 %v10650, 1.442695
    %v10661 = vpow.pop %v10660
    %v10662 = vmul.f32 %v10651, 1.442695
    %v10663 = vpow.pop %v10662
    %v10664 = vadd.f32 %v10653, 1.0
    %v10665 = vadd.f32 %v10655, 1.0
    %v10666 = vadd.f32 %v10657, 1.0
    %v10667 = vadd.f32 %v10659, 1.0
    %v10668 = vadd.f32 %v10661, 1.0
    %v10669 = vadd.f32 %v10663, 1.0
    %v10670 = vrcp.pop %v10664
    %v10671 = vmul.f32 1.0, %v10670
    %v10672 = vrcp.pop %v10665
    %v10673 = vmul.f32 1.0, %v10672
    %v10674 = vrcp.pop %v10666
    %v10675 = vmul.f32 1.0, %v10674
    %v10676 = vrcp.pop %v10667
    %v10677 = vmul.f32 1.0, %v10676
    %v10678 = vrcp.pop %v10668
    %v10679 = vmul.f32 1.0, %v10678
    %v10680 = vrcp.pop %v10669
    %v10681 = vmul.f32 1.0, %v10680
    %v10682 = vtanh.pop %v10644
    %v10683 = vtanh.pop %v10645
    %v10686 = vrot.slane %v9664, 6
    %v10687 = vrot.slane %v9665, 6
    %v10690 = vmul.f32 %v10675, %v10686
    %v10691 = vmul.f32 %v10677, %v10687
    %v10692 = vmul.f32 %v10671, %v10682
    %v10693 = vmul.f32 %v10673, %v10683
    %v10694 = vadd.f32 %v10690, %v10692
    %v10695 = vadd.f32 %v10691, %v10693
    %v10696 = vtanh.pop %v10694
    %v10697 = vtanh.pop %v10695
    %v10698 = vmul.f32 %v10679, %v10696
    %v10699 = vmul.f32 %v10681, %v10697
    %10700 = vst [vmem:[#allocation3] sm:$0xc] %v10698
    %10701 = vst [vmem:[#allocation3 + $0x8] sm:$0xc] %v10699
    %v10702 = vld [vmem:[#allocation2] sm:$0x30]
    %v10703 = vld [vmem:[#allocation2 + $0x8] sm:$0x30]
    %v10704 = vld [vmem:[#allocation2 + $0x10] sm:$0x30]
    %v10705 = vld [vmem:[#allocation2 + $0x18] sm:$0x30]
    %v10706 = vld [vmem:[#allocation2 + $0x20] sm:$0x30]
    %v10707 = vld [vmem:[#allocation2 + $0x28] sm:$0x30]
    %v10708 = vld [vmem:[#allocation2 + $0x30] sm:$0x30]
    %v10709 = vld [vmem:[#allocation2 + $0x38] sm:$0x30]
    %v10710 = vpack.c.bf16 %v10698, %v10698
    %v10711 = vpack.c.bf16 %v10699, %v10699
    %v10712 = vld [vmem:[#allocation4] sm:$0xff]
    %v10713 = vld [vmem:[#allocation4 + $0x8] sm:$0xff]
    %v10714 = vld [vmem:[#allocation4 + $0x10] sm:$0xff]
    %v10715 = vld [vmem:[#allocation4 + $0x18] sm:$0xff]
    %v10716 = vld [vmem:[#allocation4 + $0x20] sm:$0xff]
    %v10717 = vld [vmem:[#allocation4 + $0x28] sm:$0xff]
    %v10718 = vld [vmem:[#allocation4 + $0x30] sm:$0xff]
    %v10719 = vld [vmem:[#allocation4 + $0x38] sm:$0xff]
    %v10720 = vld [vmem:[#allocation4 + $0x40] sm:$0xff]
    %v10721 = vld [vmem:[#allocation4 + $0x48] sm:$0xff]
    %v10722 = vld [vmem:[#allocation4 + $0x50] sm:$0xff]
    %v10723 = vld [vmem:[#allocation4 + $0x58] sm:$0xff]
    %v10724 = vld [vmem:[#allocation4 + $0x60] sm:$0xff]
    %v10725 = vld [vmem:[#allocation4 + $0x68] sm:$0xff]
    %v10726 = vld [vmem:[#allocation4 + $0x70] sm:$0xff]
    %v10727 = vld [vmem:[#allocation4 + $0x78] sm:$0xff]
    %v10728 = vld [vmem:[#allocation4 + $0x80] sm:$0xff]
    %v10729 = vld [vmem:[#allocation4 + $0x88] sm:$0xff]
    %v10730 = vld [vmem:[#allocation4 + $0x90] sm:$0xff]
    %v10731 = vld [vmem:[#allocation4 + $0x98] sm:$0xff]
    %v10732 = vld [vmem:[#allocation4 + $0xa0] sm:$0xff]
    %v10733 = vld [vmem:[#allocation4 + $0xa8] sm:$0xff]
    %v10734 = vld [vmem:[#allocation4 + $0xb0] sm:$0xff]
    %v10735 = vld [vmem:[#allocation4 + $0xb8] sm:$0xff]
    %v10736 = vld [vmem:[#allocation4 + $0xc0] sm:$0xff]
    %v10737 = vld [vmem:[#allocation4 + $0xc8] sm:$0xff]
    %v10738 = vld [vmem:[#allocation4 + $0xd0] sm:$0xff]
    %v10739 = vld [vmem:[#allocation4 + $0xd8] sm:$0xff]
    %v10740 = vld [vmem:[#allocation4 + $0xe0] sm:$0xff]
    %v10741 = vld [vmem:[#allocation4 + $0xe8] sm:$0xff]
    %v10742 = vld [vmem:[#allocation4 + $0xf0] sm:$0xff]
    %v10743 = vld [vmem:[#allocation4 + $0xf8] sm:$0xff]
    %v10744 = vld [vmem:[#allocation4 + $0x100] sm:$0xff]
    %v10745 = vld [vmem:[#allocation4 + $0x108] sm:$0xff]
    %v10746 = vld [vmem:[#allocation4 + $0x110] sm:$0xff]
    %v10747 = vld [vmem:[#allocation4 + $0x118] sm:$0xff]
    %v10748 = vld [vmem:[#allocation4 + $0x120] sm:$0xff]
    %v10749 = vld [vmem:[#allocation4 + $0x128] sm:$0xff]
    %v10750 = vld [vmem:[#allocation4 + $0x130] sm:$0xff]
    %v10751 = vld [vmem:[#allocation4 + $0x138] sm:$0xff]
    %v10752 = vld [vmem:[#allocation4 + $0x140] sm:$0xff]
    %v10753 = vld [vmem:[#allocation4 + $0x148] sm:$0xff]
    %v10754 = vld [vmem:[#allocation4 + $0x150] sm:$0xff]
    %v10755 = vld [vmem:[#allocation4 + $0x158] sm:$0xff]
    %v10756 = vld [vmem:[#allocation4 + $0x160] sm:$0xff]
    %v10757 = vld [vmem:[#allocation4 + $0x168] sm:$0xff]
    %v10758 = vld [vmem:[#allocation4 + $0x170] sm:$0xff]
    %v10759 = vld [vmem:[#allocation4 + $0x178] sm:$0xff]
    %v10760 = vld [vmem:[#allocation4 + $0x180] sm:$0xff]
    %v10761 = vld [vmem:[#allocation4 + $0x188] sm:$0xff]
    %v10762 = vld [vmem:[#allocation4 + $0x190] sm:$0xff]
    %v10763 = vld [vmem:[#allocation4 + $0x198] sm:$0xff]
    %v10764 = vld [vmem:[#allocation4 + $0x1a0] sm:$0xff]
    %v10765 = vld [vmem:[#allocation4 + $0x1a8] sm:$0xff]
    %v10766 = vld [vmem:[#allocation4 + $0x1b0] sm:$0xff]
    %v10767 = vld [vmem:[#allocation4 + $0x1b8] sm:$0xff]
    %v10768 = vld [vmem:[#allocation4 + $0x1c0] sm:$0xff]
    %v10769 = vld [vmem:[#allocation4 + $0x1c8] sm:$0xff]
    %v10770 = vld [vmem:[#allocation4 + $0x1d0] sm:$0xff]
    %v10771 = vld [vmem:[#allocation4 + $0x1d8] sm:$0xff]
    %v10772 = vld [vmem:[#allocation4 + $0x1e0] sm:$0xff]
    %v10773 = vld [vmem:[#allocation4 + $0x1e8] sm:$0xff]
    %v10774 = vld [vmem:[#allocation4 + $0x1f0] sm:$0xff]
    %v10775 = vld [vmem:[#allocation4 + $0x1f8] sm:$0xff]
    %v10776 = vld [vmem:[#allocation4 + $0x200] sm:$0xff]
    %v10777 = vld [vmem:[#allocation4 + $0x208] sm:$0xff]
    %v10778 = vld [vmem:[#allocation4 + $0x210] sm:$0xff]
    %v10779 = vld [vmem:[#allocation4 + $0x218] sm:$0xff]
    %v10780 = vld [vmem:[#allocation4 + $0x220] sm:$0xff]
    %v10781 = vld [vmem:[#allocation4 + $0x228] sm:$0xff]
    %v10782 = vld [vmem:[#allocation4 + $0x230] sm:$0xff]
    %v10783 = vld [vmem:[#allocation4 + $0x238] sm:$0xff]
    %v10784 = vld [vmem:[#allocation4 + $0x240] sm:$0xff]
    %v10785 = vld [vmem:[#allocation4 + $0x248] sm:$0xff]
    %v10786 = vld [vmem:[#allocation4 + $0x250] sm:$0xff]
    %v10787 = vld [vmem:[#allocation4 + $0x258] sm:$0xff]
    %v10788 = vld [vmem:[#allocation4 + $0x260] sm:$0xff]
    %v10789 = vld [vmem:[#allocation4 + $0x268] sm:$0xff]
    %v10790 = vld [vmem:[#allocation4 + $0x270] sm:$0xff]
    %v10791 = vld [vmem:[#allocation4 + $0x278] sm:$0xff]
    %v10792 = vld [vmem:[#allocation4 + $0x280] sm:$0xff]
    %v10793 = vld [vmem:[#allocation4 + $0x288] sm:$0xff]
    %v10794 = vld [vmem:[#allocation4 + $0x290] sm:$0xff]
    %v10795 = vld [vmem:[#allocation4 + $0x298] sm:$0xff]
    %v10796 = vld [vmem:[#allocation4 + $0x2a0] sm:$0xff]
    %v10797 = vld [vmem:[#allocation4 + $0x2a8] sm:$0xff]
    %v10798 = vld [vmem:[#allocation4 + $0x2b0] sm:$0xff]
    %v10799 = vld [vmem:[#allocation4 + $0x2b8] sm:$0xff]
    %v10800 = vld [vmem:[#allocation4 + $0x2c0] sm:$0xff]
    %v10801 = vld [vmem:[#allocation4 + $0x2c8] sm:$0xff]
    %v10802 = vld [vmem:[#allocation4 + $0x2d0] sm:$0xff]
    %v10803 = vld [vmem:[#allocation4 + $0x2d8] sm:$0xff]
    %v10804 = vld [vmem:[#allocation4 + $0x2e0] sm:$0xff]
    %v10805 = vld [vmem:[#allocation4 + $0x2e8] sm:$0xff]
    %v10806 = vld [vmem:[#allocation4 + $0x2f0] sm:$0xff]
    %v10807 = vld [vmem:[#allocation4 + $0x2f8] sm:$0xff]
    %v10808 = vld [vmem:[#allocation4 + $0x300] sm:$0xff]
    %v10809 = vld [vmem:[#allocation4 + $0x308] sm:$0xff]
    %v10810 = vld [vmem:[#allocation4 + $0x310] sm:$0xff]
    %v10811 = vld [vmem:[#allocation4 + $0x318] sm:$0xff]
    %v10812 = vld [vmem:[#allocation4 + $0x320] sm:$0xff]
    %v10813 = vld [vmem:[#allocation4 + $0x328] sm:$0xff]
    %v10814 = vld [vmem:[#allocation4 + $0x330] sm:$0xff]
    %v10815 = vld [vmem:[#allocation4 + $0x338] sm:$0xff]
    %v10816 = vld [vmem:[#allocation4 + $0x340] sm:$0xff]
    %v10817 = vld [vmem:[#allocation4 + $0x348] sm:$0xff]
    %v10818 = vld [vmem:[#allocation4 + $0x350] sm:$0xff]
    %v10819 = vld [vmem:[#allocation4 + $0x358] sm:$0xff]
    %v10820 = vld [vmem:[#allocation4 + $0x360] sm:$0xff]
    %v10821 = vld [vmem:[#allocation4 + $0x368] sm:$0xff]
    %v10822 = vld [vmem:[#allocation4 + $0x370] sm:$0xff]
    %v10823 = vld [vmem:[#allocation4 + $0x378] sm:$0xff]
    %v10824 = vld [vmem:[#allocation4 + $0x380] sm:$0xff]
    %v10825 = vld [vmem:[#allocation4 + $0x388] sm:$0xff]
    %v10826 = vld [vmem:[#allocation4 + $0x390] sm:$0xff]
    %v10827 = vld [vmem:[#allocation4 + $0x398] sm:$0xff]
    %v10828 = vld [vmem:[#allocation4 + $0x3a0] sm:$0xff]
    %v10829 = vld [vmem:[#allocation4 + $0x3a8] sm:$0xff]
    %v10830 = vld [vmem:[#allocation4 + $0x3b0] sm:$0xff]
    %v10831 = vld [vmem:[#allocation4 + $0x3b8] sm:$0xff]
    %v10832 = vld [vmem:[#allocation4 + $0x3c0] sm:$0xff]
    %v10833 = vld [vmem:[#allocation4 + $0x3c8] sm:$0xff]
    %v10834 = vld [vmem:[#allocation4 + $0x3d0] sm:$0xff]
    %v10835 = vld [vmem:[#allocation4 + $0x3d8] sm:$0xff]
    %v10836 = vld [vmem:[#allocation4 + $0x3e0] sm:$0xff]
    %v10837 = vld [vmem:[#allocation4 + $0x3e8] sm:$0xff]
    %v10838 = vld [vmem:[#allocation4 + $0x3f0] sm:$0xff]
    %v10839 = vld [vmem:[#allocation4 + $0x3f8] sm:$0xff]
    %v10842 = vrot.slane %v10710, 1
    %v10843 = vrot.slane %v10711, 1
    %v10974 = vunpack.c.l.b16 %v10712
    %v10975 = vunpack.c.h.b16 %v10712
    %v10976 = vunpack.c.l.b16 %v10713
    %v10977 = vunpack.c.h.b16 %v10713
    %v10978 = vunpack.c.l.b16 %v10714
    %v10979 = vunpack.c.h.b16 %v10714
    %v10980 = vunpack.c.l.b16 %v10715
    %v10981 = vunpack.c.h.b16 %v10715
    %v10982 = vunpack.c.l.b16 %v10716
    %v10983 = vunpack.c.h.b16 %v10716
    %v10984 = vunpack.c.l.b16 %v10717
    %v10985 = vunpack.c.h.b16 %v10717
    %v10986 = vunpack.c.l.b16 %v10718
    %v10987 = vunpack.c.h.b16 %v10718
    %v10988 = vunpack.c.l.b16 %v10719
    %v10989 = vunpack.c.h.b16 %v10719
    %v10990 = vunpack.c.l.b16 %v10720
    %v10991 = vunpack.c.h.b16 %v10720
    %v10992 = vunpack.c.l.b16 %v10721
    %v10993 = vunpack.c.h.b16 %v10721
    %v10994 = vunpack.c.l.b16 %v10722
    %v10995 = vunpack.c.h.b16 %v10722
    %v10996 = vunpack.c.l.b16 %v10723
    %v10997 = vunpack.c.h.b16 %v10723
    %v10998 = vunpack.c.l.b16 %v10724
    %v10999 = vunpack.c.h.b16 %v10724
    %v11000 = vunpack.c.l.b16 %v10725
    %v11001 = vunpack.c.h.b16 %v10725
    %v11002 = vunpack.c.l.b16 %v10726
    %v11003 = vunpack.c.h.b16 %v10726
    %v11004 = vunpack.c.l.b16 %v10727
    %v11005 = vunpack.c.h.b16 %v10727
    %v11006 = vunpack.c.l.b16 %v10728
    %v11007 = vunpack.c.h.b16 %v10728
    %v11008 = vunpack.c.l.b16 %v10729
    %v11009 = vunpack.c.h.b16 %v10729
    %v11010 = vunpack.c.l.b16 %v10730
    %v11011 = vunpack.c.h.b16 %v10730
    %v11012 = vunpack.c.l.b16 %v10731
    %v11013 = vunpack.c.h.b16 %v10731
    %v11014 = vunpack.c.l.b16 %v10732
    %v11015 = vunpack.c.h.b16 %v10732
    %v11016 = vunpack.c.l.b16 %v10733
    %v11017 = vunpack.c.h.b16 %v10733
    %v11018 = vunpack.c.l.b16 %v10734
    %v11019 = vunpack.c.h.b16 %v10734
    %v11020 = vunpack.c.l.b16 %v10735
    %v11021 = vunpack.c.h.b16 %v10735
    %v11022 = vunpack.c.l.b16 %v10736
    %v11023 = vunpack.c.h.b16 %v10736
    %v11024 = vunpack.c.l.b16 %v10737
    %v11025 = vunpack.c.h.b16 %v10737
    %v11026 = vunpack.c.l.b16 %v10738
    %v11027 = vunpack.c.h.b16 %v10738
    %v11028 = vunpack.c.l.b16 %v10739
    %v11029 = vunpack.c.h.b16 %v10739
    %v11030 = vunpack.c.l.b16 %v10740
    %v11031 = vunpack.c.h.b16 %v10740
    %v11032 = vunpack.c.l.b16 %v10741
    %v11033 = vunpack.c.h.b16 %v10741
    %v11034 = vunpack.c.l.b16 %v10742
    %v11035 = vunpack.c.h.b16 %v10742
    %v11036 = vunpack.c.l.b16 %v10743
    %v11037 = vunpack.c.h.b16 %v10743
    %v11038 = vunpack.c.l.b16 %v10744
    %v11039 = vunpack.c.h.b16 %v10744
    %v11040 = vunpack.c.l.b16 %v10745
    %v11041 = vunpack.c.h.b16 %v10745
    %v11042 = vunpack.c.l.b16 %v10746
    %v11043 = vunpack.c.h.b16 %v10746
    %v11044 = vunpack.c.l.b16 %v10747
    %v11045 = vunpack.c.h.b16 %v10747
    %v11046 = vunpack.c.l.b16 %v10748
    %v11047 = vunpack.c.h.b16 %v10748
    %v11048 = vunpack.c.l.b16 %v10749
    %v11049 = vunpack.c.h.b16 %v10749
    %v11050 = vunpack.c.l.b16 %v10750
    %v11051 = vunpack.c.h.b16 %v10750
    %v11052 = vunpack.c.l.b16 %v10751
    %v11053 = vunpack.c.h.b16 %v10751
    %v11054 = vunpack.c.l.b16 %v10752
    %v11055 = vunpack.c.h.b16 %v10752
    %v11056 = vunpack.c.l.b16 %v10753
    %v11057 = vunpack.c.h.b16 %v10753
    %v11058 = vunpack.c.l.b16 %v10754
    %v11059 = vunpack.c.h.b16 %v10754
    %v11060 = vunpack.c.l.b16 %v10755
    %v11061 = vunpack.c.h.b16 %v10755
    %v11062 = vunpack.c.l.b16 %v10756
    %v11063 = vunpack.c.h.b16 %v10756
    %v11064 = vunpack.c.l.b16 %v10757
    %v11065 = vunpack.c.h.b16 %v10757
    %v11066 = vunpack.c.l.b16 %v10758
    %v11067 = vunpack.c.h.b16 %v10758
    %v11068 = vunpack.c.l.b16 %v10759
    %v11069 = vunpack.c.h.b16 %v10759
    %v11070 = vunpack.c.l.b16 %v10760
    %v11071 = vunpack.c.h.b16 %v10760
    %v11072 = vunpack.c.l.b16 %v10761
    %v11073 = vunpack.c.h.b16 %v10761
    %v11074 = vunpack.c.l.b16 %v10762
    %v11075 = vunpack.c.h.b16 %v10762
    %v11076 = vunpack.c.l.b16 %v10763
    %v11077 = vunpack.c.h.b16 %v10763
    %v11078 = vunpack.c.l.b16 %v10764
    %v11079 = vunpack.c.h.b16 %v10764
    %v11080 = vunpack.c.l.b16 %v10765
    %v11081 = vunpack.c.h.b16 %v10765
    %v11082 = vunpack.c.l.b16 %v10766
    %v11083 = vunpack.c.h.b16 %v10766
    %v11084 = vunpack.c.l.b16 %v10767
    %v11085 = vunpack.c.h.b16 %v10767
    %v11086 = vunpack.c.l.b16 %v10768
    %v11087 = vunpack.c.h.b16 %v10768
    %v11088 = vunpack.c.l.b16 %v10769
    %v11089 = vunpack.c.h.b16 %v10769
    %v11090 = vunpack.c.l.b16 %v10770
    %v11091 = vunpack.c.h.b16 %v10770
    %v11092 = vunpack.c.l.b16 %v10771
    %v11093 = vunpack.c.h.b16 %v10771
    %v11094 = vunpack.c.l.b16 %v10772
    %v11095 = vunpack.c.h.b16 %v10772
    %v11096 = vunpack.c.l.b16 %v10773
    %v11097 = vunpack.c.h.b16 %v10773
    %v11098 = vunpack.c.l.b16 %v10774
    %v11099 = vunpack.c.h.b16 %v10774
    %v11100 = vunpack.c.l.b16 %v10775
    %v11101 = vunpack.c.h.b16 %v10775
    %v11102 = vunpack.c.l.b16 %v10776
    %v11103 = vunpack.c.h.b16 %v10776
    %v11104 = vunpack.c.l.b16 %v10777
    %v11105 = vunpack.c.h.b16 %v10777
    %v11106 = vunpack.c.l.b16 %v10778
    %v11107 = vunpack.c.h.b16 %v10778
    %v11108 = vunpack.c.l.b16 %v10779
    %v11109 = vunpack.c.h.b16 %v10779
    %v11110 = vunpack.c.l.b16 %v10780
    %v11111 = vunpack.c.h.b16 %v10780
    %v11112 = vunpack.c.l.b16 %v10781
    %v11113 = vunpack.c.h.b16 %v10781
    %v11114 = vunpack.c.l.b16 %v10782
    %v11115 = vunpack.c.h.b16 %v10782
    %v11116 = vunpack.c.l.b16 %v10783
    %v11117 = vunpack.c.h.b16 %v10783
    %v11118 = vunpack.c.l.b16 %v10784
    %v11119 = vunpack.c.h.b16 %v10784
    %v11120 = vunpack.c.l.b16 %v10785
    %v11121 = vunpack.c.h.b16 %v10785
    %v11122 = vunpack.c.l.b16 %v10786
    %v11123 = vunpack.c.h.b16 %v10786
    %v11124 = vunpack.c.l.b16 %v10787
    %v11125 = vunpack.c.h.b16 %v10787
    %v11126 = vunpack.c.l.b16 %v10788
    %v11127 = vunpack.c.h.b16 %v10788
    %v11128 = vunpack.c.l.b16 %v10789
    %v11129 = vunpack.c.h.b16 %v10789
    %v11130 = vunpack.c.l.b16 %v10790
    %v11131 = vunpack.c.h.b16 %v10790
    %v11132 = vunpack.c.l.b16 %v10791
    %v11133 = vunpack.c.h.b16 %v10791
    %v11134 = vunpack.c.l.b16 %v10792
    %v11135 = vunpack.c.h.b16 %v10792
    %v11136 = vunpack.c.l.b16 %v10793
    %v11137 = vunpack.c.h.b16 %v10793
    %v11138 = vunpack.c.l.b16 %v10794
    %v11139 = vunpack.c.h.b16 %v10794
    %v11140 = vunpack.c.l.b16 %v10795
    %v11141 = vunpack.c.h.b16 %v10795
    %v11142 = vunpack.c.l.b16 %v10796
    %v11143 = vunpack.c.h.b16 %v10796
    %v11144 = vunpack.c.l.b16 %v10797
    %v11145 = vunpack.c.h.b16 %v10797
    %v11146 = vunpack.c.l.b16 %v10798
    %v11147 = vunpack.c.h.b16 %v10798
    %v11148 = vunpack.c.l.b16 %v10799
    %v11149 = vunpack.c.h.b16 %v10799
    %v11150 = vunpack.c.l.b16 %v10800
    %v11151 = vunpack.c.h.b16 %v10800
    %v11152 = vunpack.c.l.b16 %v10801
    %v11153 = vunpack.c.h.b16 %v10801
    %v11154 = vunpack.c.l.b16 %v10802
    %v11155 = vunpack.c.h.b16 %v10802
    %v11156 = vunpack.c.l.b16 %v10803
    %v11157 = vunpack.c.h.b16 %v10803
    %v11158 = vunpack.c.l.b16 %v10804
    %v11159 = vunpack.c.h.b16 %v10804
    %v11160 = vunpack.c.l.b16 %v10805
    %v11161 = vunpack.c.h.b16 %v10805
    %v11162 = vunpack.c.l.b16 %v10806
    %v11163 = vunpack.c.h.b16 %v10806
    %v11164 = vunpack.c.l.b16 %v10807
    %v11165 = vunpack.c.h.b16 %v10807
    %v11166 = vunpack.c.l.b16 %v10808
    %v11167 = vunpack.c.h.b16 %v10808
    %v11168 = vunpack.c.l.b16 %v10809
    %v11169 = vunpack.c.h.b16 %v10809
    %v11170 = vunpack.c.l.b16 %v10810
    %v11171 = vunpack.c.h.b16 %v10810
    %v11172 = vunpack.c.l.b16 %v10811
    %v11173 = vunpack.c.h.b16 %v10811
    %v11174 = vunpack.c.l.b16 %v10812
    %v11175 = vunpack.c.h.b16 %v10812
    %v11176 = vunpack.c.l.b16 %v10813
    %v11177 = vunpack.c.h.b16 %v10813
    %v11178 = vunpack.c.l.b16 %v10814
    %v11179 = vunpack.c.h.b16 %v10814
    %v11180 = vunpack.c.l.b16 %v10815
    %v11181 = vunpack.c.h.b16 %v10815
    %v11182 = vunpack.c.l.b16 %v10816
    %v11183 = vunpack.c.h.b16 %v10816
    %v11184 = vunpack.c.l.b16 %v10817
    %v11185 = vunpack.c.h.b16 %v10817
    %v11186 = vunpack.c.l.b16 %v10818
    %v11187 = vunpack.c.h.b16 %v10818
    %v11188 = vunpack.c.l.b16 %v10819
    %v11189 = vunpack.c.h.b16 %v10819
    %v11190 = vunpack.c.l.b16 %v10820
    %v11191 = vunpack.c.h.b16 %v10820
    %v11192 = vunpack.c.l.b16 %v10821
    %v11193 = vunpack.c.h.b16 %v10821
    %v11194 = vunpack.c.l.b16 %v10822
    %v11195 = vunpack.c.h.b16 %v10822
    %v11196 = vunpack.c.l.b16 %v10823
    %v11197 = vunpack.c.h.b16 %v10823
    %v11198 = vunpack.c.l.b16 %v10824
    %v11199 = vunpack.c.h.b16 %v10824
    %v11200 = vunpack.c.l.b16 %v10825
    %v11201 = vunpack.c.h.b16 %v10825
    %v11202 = vunpack.c.l.b16 %v10826
    %v11203 = vunpack.c.h.b16 %v10826
    %v11204 = vunpack.c.l.b16 %v10827
    %v11205 = vunpack.c.h.b16 %v10827
    %v11206 = vunpack.c.l.b16 %v10828
    %v11207 = vunpack.c.h.b16 %v10828
    %v11208 = vunpack.c.l.b16 %v10829
    %v11209 = vunpack.c.h.b16 %v10829
    %v11210 = vunpack.c.l.b16 %v10830
    %v11211 = vunpack.c.h.b16 %v10830
    %v11212 = vunpack.c.l.b16 %v10831
    %v11213 = vunpack.c.h.b16 %v10831
    %v11214 = vunpack.c.l.b16 %v10832
    %v11215 = vunpack.c.h.b16 %v10832
    %v11216 = vunpack.c.l.b16 %v10833
    %v11217 = vunpack.c.h.b16 %v10833
    %v11218 = vunpack.c.l.b16 %v10834
    %v11219 = vunpack.c.h.b16 %v10834
    %v11220 = vunpack.c.l.b16 %v10835
    %v11221 = vunpack.c.h.b16 %v10835
    %v11222 = vunpack.c.l.b16 %v10836
    %v11223 = vunpack.c.h.b16 %v10836
    %v11224 = vunpack.c.l.b16 %v10837
    %v11225 = vunpack.c.h.b16 %v10837
    %v11226 = vunpack.c.l.b16 %v10838
    %v11227 = vunpack.c.h.b16 %v10838
    %v11228 = vunpack.c.l.b16 %v10839
    %v11229 = vunpack.c.h.b16 %v10839
    %v11230 = vpack.c.b16 %v10982, %v10974
    %v11231 = vpack.c.b16 %v10983, %v10975
    %v11232 = vpack.c.b16 %v10984, %v10976
    %v11233 = vpack.c.b16 %v10985, %v10977
    %v11234 = vpack.c.b16 %v10986, %v10978
    %v11235 = vpack.c.b16 %v10987, %v10979
    %v11236 = vpack.c.b16 %v10988, %v10980
    %v11237 = vpack.c.b16 %v10989, %v10981
    %v11238 = vpack.c.b16 %v10998, %v10990
    %v11239 = vpack.c.b16 %v10999, %v10991
    %v11240 = vpack.c.b16 %v11000, %v10992
    %v11241 = vpack.c.b16 %v11001, %v10993
    %v11242 = vpack.c.b16 %v11002, %v10994
    %v11243 = vpack.c.b16 %v11003, %v10995
    %v11244 = vpack.c.b16 %v11004, %v10996
    %v11245 = vpack.c.b16 %v11005, %v10997
    %v11246 = vpack.c.b16 %v11014, %v11006
    %v11247 = vpack.c.b16 %v11015, %v11007
    %v11248 = vpack.c.b16 %v11016, %v11008
    %v11249 = vpack.c.b16 %v11017, %v11009
    %v11250 = vpack.c.b16 %v11018, %v11010
    %v11251 = vpack.c.b16 %v11019, %v11011
    %v11252 = vpack.c.b16 %v11020, %v11012
    %v11253 = vpack.c.b16 %v11021, %v11013
    %v11254 = vpack.c.b16 %v11030, %v11022
    %v11255 = vpack.c.b16 %v11031, %v11023
    %v11256 = vpack.c.b16 %v11032, %v11024
    %v11257 = vpack.c.b16 %v11033, %v11025
    %v11258 = vpack.c.b16 %v11034, %v11026
    %v11259 = vpack.c.b16 %v11035, %v11027
    %v11260 = vpack.c.b16 %v11036, %v11028
    %v11261 = vpack.c.b16 %v11037, %v11029
    %v11262 = vpack.c.b16 %v11046, %v11038
    %v11263 = vpack.c.b16 %v11047, %v11039
    %v11264 = vpack.c.b16 %v11048, %v11040
    %v11265 = vpack.c.b16 %v11049, %v11041
    %v11266 = vpack.c.b16 %v11050, %v11042
    %v11267 = vpack.c.b16 %v11051, %v11043
    %v11268 = vpack.c.b16 %v11052, %v11044
    %v11269 = vpack.c.b16 %v11053, %v11045
    %v11270 = vpack.c.b16 %v11062, %v11054
    %v11271 = vpack.c.b16 %v11063, %v11055
    %v11272 = vpack.c.b16 %v11064, %v11056
    %v11273 = vpack.c.b16 %v11065, %v11057
    %v11274 = vpack.c.b16 %v11066, %v11058
    %v11275 = vpack.c.b16 %v11067, %v11059
    %v11276 = vpack.c.b16 %v11068, %v11060
    %v11277 = vpack.c.b16 %v11069, %v11061
    %v11278 = vpack.c.b16 %v11078, %v11070
    %v11279 = vpack.c.b16 %v11079, %v11071
    %v11280 = vpack.c.b16 %v11080, %v11072
    %v11281 = vpack.c.b16 %v11081, %v11073
    %v11282 = vpack.c.b16 %v11082, %v11074
    %v11283 = vpack.c.b16 %v11083, %v11075
    %v11284 = vpack.c.b16 %v11084, %v11076
    %v11285 = vpack.c.b16 %v11085, %v11077
    %v11286 = vpack.c.b16 %v11094, %v11086
    %v11287 = vpack.c.b16 %v11095, %v11087
    %v11288 = vpack.c.b16 %v11096, %v11088
    %v11289 = vpack.c.b16 %v11097, %v11089
    %v11290 = vpack.c.b16 %v11098, %v11090
    %v11291 = vpack.c.b16 %v11099, %v11091
    %v11292 = vpack.c.b16 %v11100, %v11092
    %v11293 = vpack.c.b16 %v11101, %v11093
    %v11294 = vpack.c.b16 %v11110, %v11102
    %v11295 = vpack.c.b16 %v11111, %v11103
    %v11296 = vpack.c.b16 %v11112, %v11104
    %v11297 = vpack.c.b16 %v11113, %v11105
    %v11298 = vpack.c.b16 %v11114, %v11106
    %v11299 = vpack.c.b16 %v11115, %v11107
    %v11300 = vpack.c.b16 %v11116, %v11108
    %v11301 = vpack.c.b16 %v11117, %v11109
    %v11302 = vpack.c.b16 %v11126, %v11118
    %v11303 = vpack.c.b16 %v11127, %v11119
    %v11304 = vpack.c.b16 %v11128, %v11120
    %v11305 = vpack.c.b16 %v11129, %v11121
    %v11306 = vpack.c.b16 %v11130, %v11122
    %v11307 = vpack.c.b16 %v11131, %v11123
    %v11308 = vpack.c.b16 %v11132, %v11124
    %v11309 = vpack.c.b16 %v11133, %v11125
    %v11310 = vpack.c.b16 %v11142, %v11134
    %v11311 = vpack.c.b16 %v11143, %v11135
    %v11312 = vpack.c.b16 %v11144, %v11136
    %v11313 = vpack.c.b16 %v11145, %v11137
    %v11314 = vpack.c.b16 %v11146, %v11138
    %v11315 = vpack.c.b16 %v11147, %v11139
    %v11316 = vpack.c.b16 %v11148, %v11140
    %v11317 = vpack.c.b16 %v11149, %v11141
    %v11318 = vpack.c.b16 %v11158, %v11150
    %v11319 = vpack.c.b16 %v11159, %v11151
    %v11320 = vpack.c.b16 %v11160, %v11152
    %v11321 = vpack.c.b16 %v11161, %v11153
    %v11322 = vpack.c.b16 %v11162, %v11154
    %v11323 = vpack.c.b16 %v11163, %v11155
    %v11324 = vpack.c.b16 %v11164, %v11156
    %v11325 = vpack.c.b16 %v11165, %v11157
    %v11326 = vpack.c.b16 %v11174, %v11166
    %v11327 = vpack.c.b16 %v11175, %v11167
    %v11328 = vpack.c.b16 %v11176, %v11168
    %v11329 = vpack.c.b16 %v11177, %v11169
    %v11330 = vpack.c.b16 %v11178, %v11170
    %v11331 = vpack.c.b16 %v11179, %v11171
    %v11332 = vpack.c.b16 %v11180, %v11172
    %v11333 = vpack.c.b16 %v11181, %v11173
    %v11334 = vpack.c.b16 %v11190, %v11182
    %v11335 = vpack.c.b16 %v11191, %v11183
    %v11336 = vpack.c.b16 %v11192, %v11184
    %v11337 = vpack.c.b16 %v11193, %v11185
    %v11338 = vpack.c.b16 %v11194, %v11186
    %v11339 = vpack.c.b16 %v11195, %v11187
    %v11340 = vpack.c.b16 %v11196, %v11188
    %v11341 = vpack.c.b16 %v11197, %v11189
    %v11342 = vpack.c.b16 %v11206, %v11198
    %v11343 = vpack.c.b16 %v11207, %v11199
    %v11344 = vpack.c.b16 %v11208, %v11200
    %v11345 = vpack.c.b16 %v11209, %v11201
    %v11346 = vpack.c.b16 %v11210, %v11202
    %v11347 = vpack.c.b16 %v11211, %v11203
    %v11348 = vpack.c.b16 %v11212, %v11204
    %v11349 = vpack.c.b16 %v11213, %v11205
    %v11350 = vpack.c.b16 %v11222, %v11214
    %v11351 = vpack.c.b16 %v11223, %v11215
    %v11352 = vpack.c.b16 %v11224, %v11216
    %v11353 = vpack.c.b16 %v11225, %v11217
    %v11354 = vpack.c.b16 %v11226, %v11218
    %v11355 = vpack.c.b16 %v11227, %v11219
    %v11356 = vpack.c.b16 %v11228, %v11220
    %v11357 = vpack.c.b16 %v11229, %v11221
    %11486 = vmatprep.subr.bf16.mxu0 %v11231
    %11487 = vmatpush1.bf16.msra.mxu0 %v11230
    %11488 = vmatprep.subr.bf16.mxu0 %v11239
    %11489 = vmatpush1.bf16.msra.mxu0 %v11238
    %11490 = vmatprep.subr.bf16.mxu0 %v11247
    %11491 = vmatpush1.bf16.msra.mxu0 %v11246
    %11492 = vmatprep.subr.bf16.mxu0 %v11255
    %11493 = vmatpush1.bf16.msra.mxu0 %v11254
    %11494 = vmatprep.subr.bf16.mxu0 %v11263
    %11495 = vmatpush1.bf16.msra.mxu0 %v11262
    %11496 = vmatprep.subr.bf16.mxu0 %v11271
    %11497 = vmatpush1.bf16.msra.mxu0 %v11270
    %11498 = vmatprep.subr.bf16.mxu0 %v11279
    %11499 = vmatpush1.bf16.msra.mxu0 %v11278
    %11500 = vmatprep.subr.bf16.mxu0 %v11287
    %11501 = vmatpush1.bf16.msra.mxu0 %v11286
    %11502 = vmatprep.subr.bf16.mxu0 %v11295
    %11503 = vmatpush1.bf16.msra.mxu0 %v11294
    %11504 = vmatprep.subr.bf16.mxu0 %v11303
    %11505 = vmatpush1.bf16.msra.mxu0 %v11302
    %11506 = vmatprep.subr.bf16.mxu0 %v11311
    %11507 = vmatpush1.bf16.msra.mxu0 %v11310
    %11508 = vmatprep.subr.bf16.mxu0 %v11319
    %11509 = vmatpush1.bf16.msra.mxu0 %v11318
    %11510 = vmatprep.subr.bf16.mxu0 %v11327
    %11511 = vmatpush1.bf16.msra.mxu0 %v11326
    %11512 = vmatprep.subr.bf16.mxu0 %v11335
    %11513 = vmatpush1.bf16.msra.mxu0 %v11334
    %11514 = vmatprep.subr.bf16.mxu0 %v11343
    %11515 = vmatpush1.bf16.msra.mxu0 %v11342
    %11516 = vmatprep.subr.bf16.mxu0 %v11351
    %11517 = vmatpush1.bf16.msra.mxu0 %v11350
    %11518 = vmatprep.mubr.bf16.mxu0 %v10843
    %11519 = vmatmul.mubr.bf16.gmra.mrb[0].mxu0 %v10842
    %v11520 = vpop.f32.mrb[0].mxu0
    %v11521 = vadd.f32 0.0, %v11520
    %v11522 = vpop.f32.mrb[0].mxu0
    %v11523 = vadd.f32 0.0, %v11522
    %v11524 = vpop.f32.mrb[0].mxu0
    %v11525 = vpop.f32.mrb[0].mxu0
    %11526 = vdwg.mxu0
    %11527 = vmatprep.subr.bf16.mxu0 %v11233
    %11528 = vmatpush1.bf16.msra.mxu0 %v11232
    %11529 = vmatprep.subr.bf16.mxu0 %v11241
    %11530 = vmatpush1.bf16.msra.mxu0 %v11240
    %11531 = vmatprep.subr.bf16.mxu0 %v11249
    %11532 = vmatpush1.bf16.msra.mxu0 %v11248
    %11533 = vmatprep.subr.bf16.mxu0 %v11257
    %11534 = vmatpush1.bf16.msra.mxu0 %v11256
    %11535 = vmatprep.subr.bf16.mxu0 %v11265
    %11536 = vmatpush1.bf16.msra.mxu0 %v11264
    %11537 = vmatprep.subr.bf16.mxu0 %v11273
    %11538 = vmatpush1.bf16.msra.mxu0 %v11272
    %11539 = vmatprep.subr.bf16.mxu0 %v11281
    %11540 = vmatpush1.bf16.msra.mxu0 %v11280
    %11541 = vmatprep.subr.bf16.mxu0 %v11289
    %11542 = vmatpush1.bf16.msra.mxu0 %v11288
    %11543 = vmatprep.subr.bf16.mxu0 %v11297
    %11544 = vmatpush1.bf16.msra.mxu0 %v11296
    %11545 = vmatprep.subr.bf16.mxu0 %v11305
    %11546 = vmatpush1.bf16.msra.mxu0 %v11304
    %11547 = vmatprep.subr.bf16.mxu0 %v11313
    %11548 = vmatpush1.bf16.msra.mxu0 %v11312
    %11549 = vmatprep.subr.bf16.mxu0 %v11321
    %11550 = vmatpush1.bf16.msra.mxu0 %v11320
    %11551 = vmatprep.subr.bf16.mxu0 %v11329
    %11552 = vmatpush1.bf16.msra.mxu0 %v11328
    %11553 = vmatprep.subr.bf16.mxu0 %v11337
    %11554 = vmatpush1.bf16.msra.mxu0 %v11336
    %11555 = vmatprep.subr.bf16.mxu0 %v11345
    %11556 = vmatpush1.bf16.msra.mxu0 %v11344
    %11557 = vmatprep.subr.bf16.mxu0 %v11353
    %11558 = vmatpush1.bf16.msra.mxu0 %v11352
    %11559 = vmatprep.mubr.bf16.mxu0 %v10843
    %11560 = vmatmul.mubr.bf16.gmra.mrb[0].mxu0 %v10842
    %v11561 = vpop.f32.mrb[0].mxu0
    %v11562 = vadd.f32 0.0, %v11561
    %v11563 = vpop.f32.mrb[0].mxu0
    %v11564 = vadd.f32 0.0, %v11563
    %v11565 = vpop.f32.mrb[0].mxu0
    %v11566 = vpop.f32.mrb[0].mxu0
    %11567 = vdwg.mxu0
    %11568 = vmatprep.subr.bf16.mxu0 %v11235
    %11569 = vmatpush1.bf16.msra.mxu0 %v11234
    %11570 = vmatprep.subr.bf16.mxu0 %v11243
    %11571 = vmatpush1.bf16.msra.mxu0 %v11242
    %11572 = vmatprep.subr.bf16.mxu0 %v11251
    %11573 = vmatpush1.bf16.msra.mxu0 %v11250
    %11574 = vmatprep.subr.bf16.mxu0 %v11259
    %11575 = vmatpush1.bf16.msra.mxu0 %v11258
    %11576 = vmatprep.subr.bf16.mxu0 %v11267
    %11577 = vmatpush1.bf16.msra.mxu0 %v11266
    %11578 = vmatprep.subr.bf16.mxu0 %v11275
    %11579 = vmatpush1.bf16.msra.mxu0 %v11274
    %11580 = vmatprep.subr.bf16.mxu0 %v11283
    %11581 = vmatpush1.bf16.msra.mxu0 %v11282
    %11582 = vmatprep.subr.bf16.mxu0 %v11291
    %11583 = vmatpush1.bf16.msra.mxu0 %v11290
    %11584 = vmatprep.subr.bf16.mxu0 %v11299
    %11585 = vmatpush1.bf16.msra.mxu0 %v11298
    %11586 = vmatprep.subr.bf16.mxu0 %v11307
    %11587 = vmatpush1.bf16.msra.mxu0 %v11306
    %11588 = vmatprep.subr.bf16.mxu0 %v11315
    %11589 = vmatpush1.bf16.msra.mxu0 %v11314
    %11590 = vmatprep.subr.bf16.mxu0 %v11323
    %11591 = vmatpush1.bf16.msra.mxu0 %v11322
    %11592 = vmatprep.subr.bf16.mxu0 %v11331
    %11593 = vmatpush1.bf16.msra.mxu0 %v11330
    %11594 = vmatprep.subr.bf16.mxu0 %v11339
    %11595 = vmatpush1.bf16.msra.mxu0 %v11338
    %11596 = vmatprep.subr.bf16.mxu0 %v11347
    %11597 = vmatpush1.bf16.msra.mxu0 %v11346
    %11598 = vmatprep.subr.bf16.mxu0 %v11355
    %11599 = vmatpush1.bf16.msra.mxu0 %v11354
    %11600 = vmatprep.mubr.bf16.mxu0 %v10843
    %11601 = vmatmul.mubr.bf16.gmra.mrb[0].mxu0 %v10842
    %v11602 = vpop.f32.mrb[0].mxu0
    %v11603 = vadd.f32 0.0, %v11602
    %v11604 = vpop.f32.mrb[0].mxu0
    %v11605 = vadd.f32 0.0, %v11604
    %v11606 = vpop.f32.mrb[0].mxu0
    %v11607 = vpop.f32.mrb[0].mxu0
    %11608 = vdwg.mxu0
    %11609 = vmatprep.subr.bf16.mxu0 %v11237
    %11610 = vmatpush1.bf16.msra.mxu0 %v11236
    %11611 = vmatprep.subr.bf16.mxu0 %v11245
    %11612 = vmatpush1.bf16.msra.mxu0 %v11244
    %11613 = vmatprep.subr.bf16.mxu0 %v11253
    %11614 = vmatpush1.bf16.msra.mxu0 %v11252
    %11615 = vmatprep.subr.bf16.mxu0 %v11261
    %11616 = vmatpush1.bf16.msra.mxu0 %v11260
    %11617 = vmatprep.subr.bf16.mxu0 %v11269
    %11618 = vmatpush1.bf16.msra.mxu0 %v11268
    %11619 = vmatprep.subr.bf16.mxu0 %v11277
    %11620 = vmatpush1.bf16.msra.mxu0 %v11276
    %11621 = vmatprep.subr.bf16.mxu0 %v11285
    %11622 = vmatpush1.bf16.msra.mxu0 %v11284
    %11623 = vmatprep.subr.bf16.mxu0 %v11293
    %11624 = vmatpush1.bf16.msra.mxu0 %v11292
    %11625 = vmatprep.subr.bf16.mxu0 %v11301
    %11626 = vmatpush1.bf16.msra.mxu0 %v11300
    %11627 = vmatprep.subr.bf16.mxu0 %v11309
    %11628 = vmatpush1.bf16.msra.mxu0 %v11308
    %11629 = vmatprep.subr.bf16.mxu0 %v11317
    %11630 = vmatpush1.bf16.msra.mxu0 %v11316
    %11631 = vmatprep.subr.bf16.mxu0 %v11325
    %11632 = vmatpush1.bf16.msra.mxu0 %v11324
    %11633 = vmatprep.subr.bf16.mxu0 %v11333
    %11634 = vmatpush1.bf16.msra.mxu0 %v11332
    %11635 = vmatprep.subr.bf16.mxu0 %v11341
    %11636 = vmatpush1.bf16.msra.mxu0 %v11340
    %11637 = vmatprep.subr.bf16.mxu0 %v11349
    %11638 = vmatpush1.bf16.msra.mxu0 %v11348
    %11639 = vmatprep.subr.bf16.mxu0 %v11357
    %11640 = vmatpush1.bf16.msra.mxu0 %v11356
    %11641 = vmatprep.mubr.bf16.mxu0 %v10843
    %11642 = vmatmul.mubr.bf16.gmra.mrb[0].mxu0 %v10842
    %v11643 = vpop.f32.mrb[0].mxu0
    %v11644 = vadd.f32 0.0, %v11643
    %v11645 = vpop.f32.mrb[0].mxu0
    %v11646 = vadd.f32 0.0, %v11645
    %v11647 = vpop.f32.mrb[0].mxu0
    %v11648 = vpop.f32.mrb[0].mxu0
    %11649 = vdwg.mxu0
    %v11658 = vrot.slane %v11521, 4
    %v11659 = vrot.slane %v11523, 4
    %v11660 = vrot.slane %v11562, 4
    %v11661 = vrot.slane %v11564, 4
    %v11662 = vrot.slane %v11603, 4
    %v11663 = vrot.slane %v11605, 4
    %v11664 = vrot.slane %v11644, 4
    %v11665 = vrot.slane %v11646, 4
    %v11674 = vadd.f32 %v10702, %v11658
    %v11675 = vadd.f32 %v10703, %v11659
    %v11676 = vadd.f32 %v10704, %v11660
    %v11677 = vadd.f32 %v10705, %v11661
    %v11678 = vadd.f32 %v10706, %v11662
    %v11679 = vadd.f32 %v10707, %v11663
    %v11680 = vadd.f32 %v10708, %v11664
    %v11681 = vadd.f32 %v10709, %v11665
    %v11682 = vxor.u32 %v11674, 2147483648
    %v11683 = vxor.u32 %v11675, 2147483648
    %v11684 = vxor.u32 %v11676, 2147483648
    %v11685 = vxor.u32 %v11677, 2147483648
    %v11686 = vxor.u32 %v11678, 2147483648
    %v11687 = vxor.u32 %v11679, 2147483648
    %v11688 = vmul.f32 %v11682, 1.442695
    %v11689 = vpow.pop %v11688
    %v11690 = vmul.f32 %v11683, 1.442695
    %v11691 = vpow.pop %v11690
    %v11692 = vmul.f32 %v11684, 1.442695
    %v11693 = vpow.pop %v11692
    %v11694 = vmul.f32 %v11685, 1.442695
    %v11695 = vpow.pop %v11694
    %v11696 = vmul.f32 %v11686, 1.442695
    %v11697 = vpow.pop %v11696
    %v11698 = vmul.f32 %v11687, 1.442695
    %v11699 = vpow.pop %v11698
    %v11700 = vadd.f32 %v11689, 1.0
    %v11701 = vadd.f32 %v11691, 1.0
    %v11702 = vadd.f32 %v11693, 1.0
    %v11703 = vadd.f32 %v11695, 1.0
    %v11704 = vadd.f32 %v11697, 1.0
    %v11705 = vadd.f32 %v11699, 1.0
    %v11706 = vrcp.pop %v11700
    %v11707 = vmul.f32 1.0, %v11706
    %v11708 = vrcp.pop %v11701
    %v11709 = vmul.f32 1.0, %v11708
    %v11710 = vrcp.pop %v11702
    %v11711 = vmul.f32 1.0, %v11710
    %v11712 = vrcp.pop %v11703
    %v11713 = vmul.f32 1.0, %v11712
    %v11714 = vrcp.pop %v11704
    %v11715 = vmul.f32 1.0, %v11714
    %v11716 = vrcp.pop %v11705
    %v11717 = vmul.f32 1.0, %v11716
    %v11718 = vtanh.pop %v11680
    %v11719 = vtanh.pop %v11681
    %v11722 = vrot.slane %v10694, 6
    %v11723 = vrot.slane %v10695, 6
    %v11726 = vmul.f32 %v11711, %v11722
    %v11727 = vmul.f32 %v11713, %v11723
    %v11728 = vmul.f32 %v11707, %v11718
    %v11729 = vmul.f32 %v11709, %v11719
    %v11730 = vadd.f32 %v11726, %v11728
    %v11731 = vadd.f32 %v11727, %v11729
    %v11732 = vtanh.pop %v11730
    %v11733 = vtanh.pop %v11731
    %v11734 = vmul.f32 %v11715, %v11732
    %v11735 = vmul.f32 %v11717, %v11733
    %11736 = vst [vmem:[#allocation3] sm:$0x30] %v11734
    %11737 = vst [vmem:[#allocation3 + $0x8] sm:$0x30] %v11735
    %v11738 = vld [vmem:[#allocation2] sm:$0xc0]
    %v11739 = vld [vmem:[#allocation2 + $0x8] sm:$0xc0]
    %v11740 = vld [vmem:[#allocation2 + $0x10] sm:$0xc0]
    %v11741 = vld [vmem:[#allocation2 + $0x18] sm:$0xc0]
    %v11742 = vld [vmem:[#allocation2 + $0x20] sm:$0xc0]
    %v11743 = vld [vmem:[#allocation2 + $0x28] sm:$0xc0]
    %v11744 = vld [vmem:[#allocation2 + $0x30] sm:$0xc0]
    %v11745 = vld [vmem:[#allocation2 + $0x38] sm:$0xc0]
    %v11746 = vpack.c.bf16 %v11734, %v11734
    %v11747 = vpack.c.bf16 %v11735, %v11735
    %v11748 = vld [vmem:[#allocation4] sm:$0xff]
    %v11749 = vld [vmem:[#allocation4 + $0x8] sm:$0xff]
    %v11750 = vld [vmem:[#allocation4 + $0x10] sm:$0xff]
    %v11751 = vld [vmem:[#allocation4 + $0x18] sm:$0xff]
    %v11752 = vld [vmem:[#allocation4 + $0x20] sm:$0xff]
    %v11753 = vld [vmem:[#allocation4 + $0x28] sm:$0xff]
    %v11754 = vld [vmem:[#allocation4 + $0x30] sm:$0xff]
    %v11755 = vld [vmem:[#allocation4 + $0x38] sm:$0xff]
    %v11756 = vld [vmem:[#allocation4 + $0x40] sm:$0xff]
    %v11757 = vld [vmem:[#allocation4 + $0x48] sm:$0xff]
    %v11758 = vld [vmem:[#allocation4 + $0x50] sm:$0xff]
    %v11759 = vld [vmem:[#allocation4 + $0x58] sm:$0xff]
    %v11760 = vld [vmem:[#allocation4 + $0x60] sm:$0xff]
    %v11761 = vld [vmem:[#allocation4 + $0x68] sm:$0xff]
    %v11762 = vld [vmem:[#allocation4 + $0x70] sm:$0xff]
    %v11763 = vld [vmem:[#allocation4 + $0x78] sm:$0xff]
    %v11764 = vld [vmem:[#allocation4 + $0x80] sm:$0xff]
    %v11765 = vld [vmem:[#allocation4 + $0x88] sm:$0xff]
    %v11766 = vld [vmem:[#allocation4 + $0x90] sm:$0xff]
    %v11767 = vld [vmem:[#allocation4 + $0x98] sm:$0xff]
    %v11768 = vld [vmem:[#allocation4 + $0xa0] sm:$0xff]
    %v11769 = vld [vmem:[#allocation4 + $0xa8] sm:$0xff]
    %v11770 = vld [vmem:[#allocation4 + $0xb0] sm:$0xff]
    %v11771 = vld [vmem:[#allocation4 + $0xb8] sm:$0xff]
    %v11772 = vld [vmem:[#allocation4 + $0xc0] sm:$0xff]
    %v11773 = vld [vmem:[#allocation4 + $0xc8] sm:$0xff]
    %v11774 = vld [vmem:[#allocation4 + $0xd0] sm:$0xff]
    %v11775 = vld [vmem:[#allocation4 + $0xd8] sm:$0xff]
    %v11776 = vld [vmem:[#allocation4 + $0xe0] sm:$0xff]
    %v11777 = vld [vmem:[#allocation4 + $0xe8] sm:$0xff]
    %v11778 = vld [vmem:[#allocation4 + $0xf0] sm:$0xff]
    %v11779 = vld [vmem:[#allocation4 + $0xf8] sm:$0xff]
    %v11780 = vld [vmem:[#allocation4 + $0x100] sm:$0xff]
    %v11781 = vld [vmem:[#allocation4 + $0x108] sm:$0xff]
    %v11782 = vld [vmem:[#allocation4 + $0x110] sm:$0xff]
    %v11783 = vld [vmem:[#allocation4 + $0x118] sm:$0xff]
    %v11784 = vld [vmem:[#allocation4 + $0x120] sm:$0xff]
    %v11785 = vld [vmem:[#allocation4 + $0x128] sm:$0xff]
    %v11786 = vld [vmem:[#allocation4 + $0x130] sm:$0xff]
    %v11787 = vld [vmem:[#allocation4 + $0x138] sm:$0xff]
    %v11788 = vld [vmem:[#allocation4 + $0x140] sm:$0xff]
    %v11789 = vld [vmem:[#allocation4 + $0x148] sm:$0xff]
    %v11790 = vld [vmem:[#allocation4 + $0x150] sm:$0xff]
    %v11791 = vld [vmem:[#allocation4 + $0x158] sm:$0xff]
    %v11792 = vld [vmem:[#allocation4 + $0x160] sm:$0xff]
    %v11793 = vld [vmem:[#allocation4 + $0x168] sm:$0xff]
    %v11794 = vld [vmem:[#allocation4 + $0x170] sm:$0xff]
    %v11795 = vld [vmem:[#allocation4 + $0x178] sm:$0xff]
    %v11796 = vld [vmem:[#allocation4 + $0x180] sm:$0xff]
    %v11797 = vld [vmem:[#allocation4 + $0x188] sm:$0xff]
    %v11798 = vld [vmem:[#allocation4 + $0x190] sm:$0xff]
    %v11799 = vld [vmem:[#allocation4 + $0x198] sm:$0xff]
    %v11800 = vld [vmem:[#allocation4 + $0x1a0] sm:$0xff]
    %v11801 = vld [vmem:[#allocation4 + $0x1a8] sm:$0xff]
    %v11802 = vld [vmem:[#allocation4 + $0x1b0] sm:$0xff]
    %v11803 = vld [vmem:[#allocation4 + $0x1b8] sm:$0xff]
    %v11804 = vld [vmem:[#allocation4 + $0x1c0] sm:$0xff]
    %v11805 = vld [vmem:[#allocation4 + $0x1c8] sm:$0xff]
    %v11806 = vld [vmem:[#allocation4 + $0x1d0] sm:$0xff]
    %v11807 = vld [vmem:[#allocation4 + $0x1d8] sm:$0xff]
    %v11808 = vld [vmem:[#allocation4 + $0x1e0] sm:$0xff]
    %v11809 = vld [vmem:[#allocation4 + $0x1e8] sm:$0xff]
    %v11810 = vld [vmem:[#allocation4 + $0x1f0] sm:$0xff]
    %v11811 = vld [vmem:[#allocation4 + $0x1f8] sm:$0xff]
    %v11812 = vld [vmem:[#allocation4 + $0x200] sm:$0xff]
    %v11813 = vld [vmem:[#allocation4 + $0x208] sm:$0xff]
    %v11814 = vld [vmem:[#allocation4 + $0x210] sm:$0xff]
    %v11815 = vld [vmem:[#allocation4 + $0x218] sm:$0xff]
    %v11816 = vld [vmem:[#allocation4 + $0x220] sm:$0xff]
    %v11817 = vld [vmem:[#allocation4 + $0x228] sm:$0xff]
    %v11818 = vld [vmem:[#allocation4 + $0x230] sm:$0xff]
    %v11819 = vld [vmem:[#allocation4 + $0x238] sm:$0xff]
    %v11820 = vld [vmem:[#allocation4 + $0x240] sm:$0xff]
    %v11821 = vld [vmem:[#allocation4 + $0x248] sm:$0xff]
    %v11822 = vld [vmem:[#allocation4 + $0x250] sm:$0xff]
    %v11823 = vld [vmem:[#allocation4 + $0x258] sm:$0xff]
    %v11824 = vld [vmem:[#allocation4 + $0x260] sm:$0xff]
    %v11825 = vld [vmem:[#allocation4 + $0x268] sm:$0xff]
    %v11826 = vld [vmem:[#allocation4 + $0x270] sm:$0xff]
    %v11827 = vld [vmem:[#allocation4 + $0x278] sm:$0xff]
    %v11828 = vld [vmem:[#allocation4 + $0x280] sm:$0xff]
    %v11829 = vld [vmem:[#allocation4 + $0x288] sm:$0xff]
    %v11830 = vld [vmem:[#allocation4 + $0x290] sm:$0xff]
    %v11831 = vld [vmem:[#allocation4 + $0x298] sm:$0xff]
    %v11832 = vld [vmem:[#allocation4 + $0x2a0] sm:$0xff]
    %v11833 = vld [vmem:[#allocation4 + $0x2a8] sm:$0xff]
    %v11834 = vld [vmem:[#allocation4 + $0x2b0] sm:$0xff]
    %v11835 = vld [vmem:[#allocation4 + $0x2b8] sm:$0xff]
    %v11836 = vld [vmem:[#allocation4 + $0x2c0] sm:$0xff]
    %v11837 = vld [vmem:[#allocation4 + $0x2c8] sm:$0xff]
    %v11838 = vld [vmem:[#allocation4 + $0x2d0] sm:$0xff]
    %v11839 = vld [vmem:[#allocation4 + $0x2d8] sm:$0xff]
    %v11840 = vld [vmem:[#allocation4 + $0x2e0] sm:$0xff]
    %v11841 = vld [vmem:[#allocation4 + $0x2e8] sm:$0xff]
    %v11842 = vld [vmem:[#allocation4 + $0x2f0] sm:$0xff]
    %v11843 = vld [vmem:[#allocation4 + $0x2f8] sm:$0xff]
    %v11844 = vld [vmem:[#allocation4 + $0x300] sm:$0xff]
    %v11845 = vld [vmem:[#allocation4 + $0x308] sm:$0xff]
    %v11846 = vld [vmem:[#allocation4 + $0x310] sm:$0xff]
    %v11847 = vld [vmem:[#allocation4 + $0x318] sm:$0xff]
    %v11848 = vld [vmem:[#allocation4 + $0x320] sm:$0xff]
    %v11849 = vld [vmem:[#allocation4 + $0x328] sm:$0xff]
    %v11850 = vld [vmem:[#allocation4 + $0x330] sm:$0xff]
    %v11851 = vld [vmem:[#allocation4 + $0x338] sm:$0xff]
    %v11852 = vld [vmem:[#allocation4 + $0x340] sm:$0xff]
    %v11853 = vld [vmem:[#allocation4 + $0x348] sm:$0xff]
    %v11854 = vld [vmem:[#allocation4 + $0x350] sm:$0xff]
    %v11855 = vld [vmem:[#allocation4 + $0x358] sm:$0xff]
    %v11856 = vld [vmem:[#allocation4 + $0x360] sm:$0xff]
    %v11857 = vld [vmem:[#allocation4 + $0x368] sm:$0xff]
    %v11858 = vld [vmem:[#allocation4 + $0x370] sm:$0xff]
    %v11859 = vld [vmem:[#allocation4 + $0x378] sm:$0xff]
    %v11860 = vld [vmem:[#allocation4 + $0x380] sm:$0xff]
    %v11861 = vld [vmem:[#allocation4 + $0x388] sm:$0xff]
    %v11862 = vld [vmem:[#allocation4 + $0x390] sm:$0xff]
    %v11863 = vld [vmem:[#allocation4 + $0x398] sm:$0xff]
    %v11864 = vld [vmem:[#allocation4 + $0x3a0] sm:$0xff]
    %v11865 = vld [vmem:[#allocation4 + $0x3a8] sm:$0xff]
    %v11866 = vld [vmem:[#allocation4 + $0x3b0] sm:$0xff]
    %v11867 = vld [vmem:[#allocation4 + $0x3b8] sm:$0xff]
    %v11868 = vld [vmem:[#allocation4 + $0x3c0] sm:$0xff]
    %v11869 = vld [vmem:[#allocation4 + $0x3c8] sm:$0xff]
    %v11870 = vld [vmem:[#allocation4 + $0x3d0] sm:$0xff]
    %v11871 = vld [vmem:[#allocation4 + $0x3d8] sm:$0xff]
    %v11872 = vld [vmem:[#allocation4 + $0x3e0] sm:$0xff]
    %v11873 = vld [vmem:[#allocation4 + $0x3e8] sm:$0xff]
    %v11874 = vld [vmem:[#allocation4 + $0x3f0] sm:$0xff]
    %v11875 = vld [vmem:[#allocation4 + $0x3f8] sm:$0xff]
    %v11878 = vrot.slane %v11746, 2
    %v11879 = vrot.slane %v11747, 2
    %v12010 = vunpack.c.l.b16 %v11748
    %v12011 = vunpack.c.h.b16 %v11748
    %v12012 = vunpack.c.l.b16 %v11749
    %v12013 = vunpack.c.h.b16 %v11749
    %v12014 = vunpack.c.l.b16 %v11750
    %v12015 = vunpack.c.h.b16 %v11750
    %v12016 = vunpack.c.l.b16 %v11751
    %v12017 = vunpack.c.h.b16 %v11751
    %v12018 = vunpack.c.l.b16 %v11752
    %v12019 = vunpack.c.h.b16 %v11752
    %v12020 = vunpack.c.l.b16 %v11753
    %v12021 = vunpack.c.h.b16 %v11753
    %v12022 = vunpack.c.l.b16 %v11754
    %v12023 = vunpack.c.h.b16 %v11754
    %v12024 = vunpack.c.l.b16 %v11755
    %v12025 = vunpack.c.h.b16 %v11755
    %v12026 = vunpack.c.l.b16 %v11756
    %v12027 = vunpack.c.h.b16 %v11756
    %v12028 = vunpack.c.l.b16 %v11757
    %v12029 = vunpack.c.h.b16 %v11757
    %v12030 = vunpack.c.l.b16 %v11758
    %v12031 = vunpack.c.h.b16 %v11758
    %v12032 = vunpack.c.l.b16 %v11759
    %v12033 = vunpack.c.h.b16 %v11759
    %v12034 = vunpack.c.l.b16 %v11760
    %v12035 = vunpack.c.h.b16 %v11760
    %v12036 = vunpack.c.l.b16 %v11761
    %v12037 = vunpack.c.h.b16 %v11761
    %v12038 = vunpack.c.l.b16 %v11762
    %v12039 = vunpack.c.h.b16 %v11762
    %v12040 = vunpack.c.l.b16 %v11763
    %v12041 = vunpack.c.h.b16 %v11763
    %v12042 = vunpack.c.l.b16 %v11764
    %v12043 = vunpack.c.h.b16 %v11764
    %v12044 = vunpack.c.l.b16 %v11765
    %v12045 = vunpack.c.h.b16 %v11765
    %v12046 = vunpack.c.l.b16 %v11766
    %v12047 = vunpack.c.h.b16 %v11766
    %v12048 = vunpack.c.l.b16 %v11767
    %v12049 = vunpack.c.h.b16 %v11767
    %v12050 = vunpack.c.l.b16 %v11768
    %v12051 = vunpack.c.h.b16 %v11768
    %v12052 = vunpack.c.l.b16 %v11769
    %v12053 = vunpack.c.h.b16 %v11769
    %v12054 = vunpack.c.l.b16 %v11770
    %v12055 = vunpack.c.h.b16 %v11770
    %v12056 = vunpack.c.l.b16 %v11771
    %v12057 = vunpack.c.h.b16 %v11771
    %v12058 = vunpack.c.l.b16 %v11772
    %v12059 = vunpack.c.h.b16 %v11772
    %v12060 = vunpack.c.l.b16 %v11773
    %v12061 = vunpack.c.h.b16 %v11773
    %v12062 = vunpack.c.l.b16 %v11774
    %v12063 = vunpack.c.h.b16 %v11774
    %v12064 = vunpack.c.l.b16 %v11775
    %v12065 = vunpack.c.h.b16 %v11775
    %v12066 = vunpack.c.l.b16 %v11776
    %v12067 = vunpack.c.h.b16 %v11776
    %v12068 = vunpack.c.l.b16 %v11777
    %v12069 = vunpack.c.h.b16 %v11777
    %v12070 = vunpack.c.l.b16 %v11778
    %v12071 = vunpack.c.h.b16 %v11778
    %v12072 = vunpack.c.l.b16 %v11779
    %v12073 = vunpack.c.h.b16 %v11779
    %v12074 = vunpack.c.l.b16 %v11780
    %v12075 = vunpack.c.h.b16 %v11780
    %v12076 = vunpack.c.l.b16 %v11781
    %v12077 = vunpack.c.h.b16 %v11781
    %v12078 = vunpack.c.l.b16 %v11782
    %v12079 = vunpack.c.h.b16 %v11782
    %v12080 = vunpack.c.l.b16 %v11783
    %v12081 = vunpack.c.h.b16 %v11783
    %v12082 = vunpack.c.l.b16 %v11784
    %v12083 = vunpack.c.h.b16 %v11784
    %v12084 = vunpack.c.l.b16 %v11785
    %v12085 = vunpack.c.h.b16 %v11785
    %v12086 = vunpack.c.l.b16 %v11786
    %v12087 = vunpack.c.h.b16 %v11786
    %v12088 = vunpack.c.l.b16 %v11787
    %v12089 = vunpack.c.h.b16 %v11787
    %v12090 = vunpack.c.l.b16 %v11788
    %v12091 = vunpack.c.h.b16 %v11788
    %v12092 = vunpack.c.l.b16 %v11789
    %v12093 = vunpack.c.h.b16 %v11789
    %v12094 = vunpack.c.l.b16 %v11790
    %v12095 = vunpack.c.h.b16 %v11790
    %v12096 = vunpack.c.l.b16 %v11791
    %v12097 = vunpack.c.h.b16 %v11791
    %v12098 = vunpack.c.l.b16 %v11792
    %v12099 = vunpack.c.h.b16 %v11792
    %v12100 = vunpack.c.l.b16 %v11793
    %v12101 = vunpack.c.h.b16 %v11793
    %v12102 = vunpack.c.l.b16 %v11794
    %v12103 = vunpack.c.h.b16 %v11794
    %v12104 = vunpack.c.l.b16 %v11795
    %v12105 = vunpack.c.h.b16 %v11795
    %v12106 = vunpack.c.l.b16 %v11796
    %v12107 = vunpack.c.h.b16 %v11796
    %v12108 = vunpack.c.l.b16 %v11797
    %v12109 = vunpack.c.h.b16 %v11797
    %v12110 = vunpack.c.l.b16 %v11798
    %v12111 = vunpack.c.h.b16 %v11798
    %v12112 = vunpack.c.l.b16 %v11799
    %v12113 = vunpack.c.h.b16 %v11799
    %v12114 = vunpack.c.l.b16 %v11800
    %v12115 = vunpack.c.h.b16 %v11800
    %v12116 = vunpack.c.l.b16 %v11801
    %v12117 = vunpack.c.h.b16 %v11801
    %v12118 = vunpack.c.l.b16 %v11802
    %v12119 = vunpack.c.h.b16 %v11802
    %v12120 = vunpack.c.l.b16 %v11803
    %v12121 = vunpack.c.h.b16 %v11803
    %v12122 = vunpack.c.l.b16 %v11804
    %v12123 = vunpack.c.h.b16 %v11804
    %v12124 = vunpack.c.l.b16 %v11805
    %v12125 = vunpack.c.h.b16 %v11805
    %v12126 = vunpack.c.l.b16 %v11806
    %v12127 = vunpack.c.h.b16 %v11806
    %v12128 = vunpack.c.l.b16 %v11807
    %v12129 = vunpack.c.h.b16 %v11807
    %v12130 = vunpack.c.l.b16 %v11808
    %v12131 = vunpack.c.h.b16 %v11808
    %v12132 = vunpack.c.l.b16 %v11809
    %v12133 = vunpack.c.h.b16 %v11809
    %v12134 = vunpack.c.l.b16 %v11810
    %v12135 = vunpack.c.h.b16 %v11810
    %v12136 = vunpack.c.l.b16 %v11811
    %v12137 = vunpack.c.h.b16 %v11811
    %v12138 = vunpack.c.l.b16 %v11812
    %v12139 = vunpack.c.h.b16 %v11812
    %v12140 = vunpack.c.l.b16 %v11813
    %v12141 = vunpack.c.h.b16 %v11813
    %v12142 = vunpack.c.l.b16 %v11814
    %v12143 = vunpack.c.h.b16 %v11814
    %v12144 = vunpack.c.l.b16 %v11815
    %v12145 = vunpack.c.h.b16 %v11815
    %v12146 = vunpack.c.l.b16 %v11816
    %v12147 = vunpack.c.h.b16 %v11816
    %v12148 = vunpack.c.l.b16 %v11817
    %v12149 = vunpack.c.h.b16 %v11817
    %v12150 = vunpack.c.l.b16 %v11818
    %v12151 = vunpack.c.h.b16 %v11818
    %v12152 = vunpack.c.l.b16 %v11819
    %v12153 = vunpack.c.h.b16 %v11819
    %v12154 = vunpack.c.l.b16 %v11820
    %v12155 = vunpack.c.h.b16 %v11820
    %v12156 = vunpack.c.l.b16 %v11821
    %v12157 = vunpack.c.h.b16 %v11821
    %v12158 = vunpack.c.l.b16 %v11822
    %v12159 = vunpack.c.h.b16 %v11822
    %v12160 = vunpack.c.l.b16 %v11823
    %v12161 = vunpack.c.h.b16 %v11823
    %v12162 = vunpack.c.l.b16 %v11824
    %v12163 = vunpack.c.h.b16 %v11824
    %v12164 = vunpack.c.l.b16 %v11825
    %v12165 = vunpack.c.h.b16 %v11825
    %v12166 = vunpack.c.l.b16 %v11826
    %v12167 = vunpack.c.h.b16 %v11826
    %v12168 = vunpack.c.l.b16 %v11827
    %v12169 = vunpack.c.h.b16 %v11827
    %v12170 = vunpack.c.l.b16 %v11828
    %v12171 = vunpack.c.h.b16 %v11828
    %v12172 = vunpack.c.l.b16 %v11829
    %v12173 = vunpack.c.h.b16 %v11829
    %v12174 = vunpack.c.l.b16 %v11830
    %v12175 = vunpack.c.h.b16 %v11830
    %v12176 = vunpack.c.l.b16 %v11831
    %v12177 = vunpack.c.h.b16 %v11831
    %v12178 = vunpack.c.l.b16 %v11832
    %v12179 = vunpack.c.h.b16 %v11832
    %v12180 = vunpack.c.l.b16 %v11833
    %v12181 = vunpack.c.h.b16 %v11833
    %v12182 = vunpack.c.l.b16 %v11834
    %v12183 = vunpack.c.h.b16 %v11834
    %v12184 = vunpack.c.l.b16 %v11835
    %v12185 = vunpack.c.h.b16 %v11835
    %v12186 = vunpack.c.l.b16 %v11836
    %v12187 = vunpack.c.h.b16 %v11836
    %v12188 = vunpack.c.l.b16 %v11837
    %v12189 = vunpack.c.h.b16 %v11837
    %v12190 = vunpack.c.l.b16 %v11838
    %v12191 = vunpack.c.h.b16 %v11838
    %v12192 = vunpack.c.l.b16 %v11839
    %v12193 = vunpack.c.h.b16 %v11839
    %v12194 = vunpack.c.l.b16 %v11840
    %v12195 = vunpack.c.h.b16 %v11840
    %v12196 = vunpack.c.l.b16 %v11841
    %v12197 = vunpack.c.h.b16 %v11841
    %v12198 = vunpack.c.l.b16 %v11842
    %v12199 = vunpack.c.h.b16 %v11842
    %v12200 = vunpack.c.l.b16 %v11843
    %v12201 = vunpack.c.h.b16 %v11843
    %v12202 = vunpack.c.l.b16 %v11844
    %v12203 = vunpack.c.h.b16 %v11844
    %v12204 = vunpack.c.l.b16 %v11845
    %v12205 = vunpack.c.h.b16 %v11845
    %v12206 = vunpack.c.l.b16 %v11846
    %v12207 = vunpack.c.h.b16 %v11846
    %v12208 = vunpack.c.l.b16 %v11847
    %v12209 = vunpack.c.h.b16 %v11847
    %v12210 = vunpack.c.l.b16 %v11848
    %v12211 = vunpack.c.h.b16 %v11848
    %v12212 = vunpack.c.l.b16 %v11849
    %v12213 = vunpack.c.h.b16 %v11849
    %v12214 = vunpack.c.l.b16 %v11850
    %v12215 = vunpack.c.h.b16 %v11850
    %v12216 = vunpack.c.l.b16 %v11851
    %v12217 = vunpack.c.h.b16 %v11851
    %v12218 = vunpack.c.l.b16 %v11852
    %v12219 = vunpack.c.h.b16 %v11852
    %v12220 = vunpack.c.l.b16 %v11853
    %v12221 = vunpack.c.h.b16 %v11853
    %v12222 = vunpack.c.l.b16 %v11854
    %v12223 = vunpack.c.h.b16 %v11854
    %v12224 = vunpack.c.l.b16 %v11855
    %v12225 = vunpack.c.h.b16 %v11855
    %v12226 = vunpack.c.l.b16 %v11856
    %v12227 = vunpack.c.h.b16 %v11856
    %v12228 = vunpack.c.l.b16 %v11857
    %v12229 = vunpack.c.h.b16 %v11857
    %v12230 = vunpack.c.l.b16 %v11858
    %v12231 = vunpack.c.h.b16 %v11858
    %v12232 = vunpack.c.l.b16 %v11859
    %v12233 = vunpack.c.h.b16 %v11859
    %v12234 = vunpack.c.l.b16 %v11860
    %v12235 = vunpack.c.h.b16 %v11860
    %v12236 = vunpack.c.l.b16 %v11861
    %v12237 = vunpack.c.h.b16 %v11861
    %v12238 = vunpack.c.l.b16 %v11862
    %v12239 = vunpack.c.h.b16 %v11862
    %v12240 = vunpack.c.l.b16 %v11863
    %v12241 = vunpack.c.h.b16 %v11863
    %v12242 = vunpack.c.l.b16 %v11864
    %v12243 = vunpack.c.h.b16 %v11864
    %v12244 = vunpack.c.l.b16 %v11865
    %v12245 = vunpack.c.h.b16 %v11865
    %v12246 = vunpack.c.l.b16 %v11866
    %v12247 = vunpack.c.h.b16 %v11866
    %v12248 = vunpack.c.l.b16 %v11867
    %v12249 = vunpack.c.h.b16 %v11867
    %v12250 = vunpack.c.l.b16 %v11868
    %v12251 = vunpack.c.h.b16 %v11868
    %v12252 = vunpack.c.l.b16 %v11869
    %v12253 = vunpack.c.h.b16 %v11869
    %v12254 = vunpack.c.l.b16 %v11870
    %v12255 = vunpack.c.h.b16 %v11870
    %v12256 = vunpack.c.l.b16 %v11871
    %v12257 = vunpack.c.h.b16 %v11871
    %v12258 = vunpack.c.l.b16 %v11872
    %v12259 = vunpack.c.h.b16 %v11872
    %v12260 = vunpack.c.l.b16 %v11873
    %v12261 = vunpack.c.h.b16 %v11873
    %v12262 = vunpack.c.l.b16 %v11874
    %v12263 = vunpack.c.h.b16 %v11874
    %v12264 = vunpack.c.l.b16 %v11875
    %v12265 = vunpack.c.h.b16 %v11875
    %v12266 = vpack.c.b16 %v12018, %v12010
    %v12267 = vpack.c.b16 %v12019, %v12011
    %v12268 = vpack.c.b16 %v12020, %v12012
    %v12269 = vpack.c.b16 %v12021, %v12013
    %v12270 = vpack.c.b16 %v12022, %v12014
    %v12271 = vpack.c.b16 %v12023, %v12015
    %v12272 = vpack.c.b16 %v12024, %v12016
    %v12273 = vpack.c.b16 %v12025, %v12017
    %v12274 = vpack.c.b16 %v12034, %v12026
    %v12275 = vpack.c.b16 %v12035, %v12027
    %v12276 = vpack.c.b16 %v12036, %v12028
    %v12277 = vpack.c.b16 %v12037, %v12029
    %v12278 = vpack.c.b16 %v12038, %v12030
    %v12279 = vpack.c.b16 %v12039, %v12031
    %v12280 = vpack.c.b16 %v12040, %v12032
    %v12281 = vpack.c.b16 %v12041, %v12033
    %v12282 = vpack.c.b16 %v12050, %v12042
    %v12283 = vpack.c.b16 %v12051, %v12043
    %v12284 = vpack.c.b16 %v12052, %v12044
    %v12285 = vpack.c.b16 %v12053, %v12045
    %v12286 = vpack.c.b16 %v12054, %v12046
    %v12287 = vpack.c.b16 %v12055, %v12047
    %v12288 = vpack.c.b16 %v12056, %v12048
    %v12289 = vpack.c.b16 %v12057, %v12049
    %v12290 = vpack.c.b16 %v12066, %v12058
    %v12291 = vpack.c.b16 %v12067, %v12059
    %v12292 = vpack.c.b16 %v12068, %v12060
    %v12293 = vpack.c.b16 %v12069, %v12061
    %v12294 = vpack.c.b16 %v12070, %v12062
    %v12295 = vpack.c.b16 %v12071, %v12063
    %v12296 = vpack.c.b16 %v12072, %v12064
    %v12297 = vpack.c.b16 %v12073, %v12065
    %v12298 = vpack.c.b16 %v12082, %v12074
    %v12299 = vpack.c.b16 %v12083, %v12075
    %v12300 = vpack.c.b16 %v12084, %v12076
    %v12301 = vpack.c.b16 %v12085, %v12077
    %v12302 = vpack.c.b16 %v12086, %v12078
    %v12303 = vpack.c.b16 %v12087, %v12079
    %v12304 = vpack.c.b16 %v12088, %v12080
    %v12305 = vpack.c.b16 %v12089, %v12081
    %v12306 = vpack.c.b16 %v12098, %v12090
    %v12307 = vpack.c.b16 %v12099, %v12091
    %v12308 = vpack.c.b16 %v12100, %v12092
    %v12309 = vpack.c.b16 %v12101, %v12093
    %v12310 = vpack.c.b16 %v12102, %v12094
    %v12311 = vpack.c.b16 %v12103, %v12095
    %v12312 = vpack.c.b16 %v12104, %v12096
    %v12313 = vpack.c.b16 %v12105, %v12097
    %v12314 = vpack.c.b16 %v12114, %v12106
    %v12315 = vpack.c.b16 %v12115, %v12107
    %v12316 = vpack.c.b16 %v12116, %v12108
    %v12317 = vpack.c.b16 %v12117, %v12109
    %v12318 = vpack.c.b16 %v12118, %v12110
    %v12319 = vpack.c.b16 %v12119, %v12111
    %v12320 = vpack.c.b16 %v12120, %v12112
    %v12321 = vpack.c.b16 %v12121, %v12113
    %v12322 = vpack.c.b16 %v12130, %v12122
    %v12323 = vpack.c.b16 %v12131, %v12123
    %v12324 = vpack.c.b16 %v12132, %v12124
    %v12325 = vpack.c.b16 %v12133, %v12125
    %v12326 = vpack.c.b16 %v12134, %v12126
    %v12327 = vpack.c.b16 %v12135, %v12127
    %v12328 = vpack.c.b16 %v12136, %v12128
    %v12329 = vpack.c.b16 %v12137, %v12129
    %v12330 = vpack.c.b16 %v12146, %v12138
    %v12331 = vpack.c.b16 %v12147, %v12139
    %v12332 = vpack.c.b16 %v12148, %v12140
    %v12333 = vpack.c.b16 %v12149, %v12141
    %v12334 = vpack.c.b16 %v12150, %v12142
    %v12335 = vpack.c.b16 %v12151, %v12143
    %v12336 = vpack.c.b16 %v12152, %v12144
    %v12337 = vpack.c.b16 %v12153, %v12145
    %v12338 = vpack.c.b16 %v12162, %v12154
    %v12339 = vpack.c.b16 %v12163, %v12155
    %v12340 = vpack.c.b16 %v12164, %v12156
    %v12341 = vpack.c.b16 %v12165, %v12157
    %v12342 = vpack.c.b16 %v12166, %v12158
    %v12343 = vpack.c.b16 %v12167, %v12159
    %v12344 = vpack.c.b16 %v12168, %v12160
    %v12345 = vpack.c.b16 %v12169, %v12161
    %v12346 = vpack.c.b16 %v12178, %v12170
    %v12347 = vpack.c.b16 %v12179, %v12171
    %v12348 = vpack.c.b16 %v12180, %v12172
    %v12349 = vpack.c.b16 %v12181, %v12173
    %v12350 = vpack.c.b16 %v12182, %v12174
    %v12351 = vpack.c.b16 %v12183, %v12175
    %v12352 = vpack.c.b16 %v12184, %v12176
    %v12353 = vpack.c.b16 %v12185, %v12177
    %v12354 = vpack.c.b16 %v12194, %v12186
    %v12355 = vpack.c.b16 %v12195, %v12187
    %v12356 = vpack.c.b16 %v12196, %v12188
    %v12357 = vpack.c.b16 %v12197, %v12189
    %v12358 = vpack.c.b16 %v12198, %v12190
    %v12359 = vpack.c.b16 %v12199, %v12191
    %v12360 = vpack.c.b16 %v12200, %v12192
    %v12361 = vpack.c.b16 %v12201, %v12193
    %v12362 = vpack.c.b16 %v12210, %v12202
    %v12363 = vpack.c.b16 %v12211, %v12203
    %v12364 = vpack.c.b16 %v12212, %v12204
    %v12365 = vpack.c.b16 %v12213, %v12205
    %v12366 = vpack.c.b16 %v12214, %v12206
    %v12367 = vpack.c.b16 %v12215, %v12207
    %v12368 = vpack.c.b16 %v12216, %v12208
    %v12369 = vpack.c.b16 %v12217, %v12209
    %v12370 = vpack.c.b16 %v12226, %v12218
    %v12371 = vpack.c.b16 %v12227, %v12219
    %v12372 = vpack.c.b16 %v12228, %v12220
    %v12373 = vpack.c.b16 %v12229, %v12221
    %v12374 = vpack.c.b16 %v12230, %v12222
    %v12375 = vpack.c.b16 %v12231, %v12223
    %v12376 = vpack.c.b16 %v12232, %v12224
    %v12377 = vpack.c.b16 %v12233, %v12225
    %v12378 = vpack.c.b16 %v12242, %v12234
    %v12379 = vpack.c.b16 %v12243, %v12235
    %v12380 = vpack.c.b16 %v12244, %v12236
    %v12381 = vpack.c.b16 %v12245, %v12237
    %v12382 = vpack.c.b16 %v12246, %v12238
    %v12383 = vpack.c.b16 %v12247, %v12239
    %v12384 = vpack.c.b16 %v12248, %v12240
    %v12385 = vpack.c.b16 %v12249, %v12241
    %v12386 = vpack.c.b16 %v12258, %v12250
    %v12387 = vpack.c.b16 %v12259, %v12251
    %v12388 = vpack.c.b16 %v12260, %v12252
    %v12389 = vpack.c.b16 %v12261, %v12253
    %v12390 = vpack.c.b16 %v12262, %v12254
    %v12391 = vpack.c.b16 %v12263, %v12255
    %v12392 = vpack.c.b16 %v12264, %v12256
    %v12393 = vpack.c.b16 %v12265, %v12257
    %12522 = vmatprep.subr.bf16.mxu0 %v12267
    %12523 = vmatpush1.bf16.msra.mxu0 %v12266
    %12524 = vmatprep.subr.bf16.mxu0 %v12275
    %12525 = vmatpush1.bf16.msra.mxu0 %v12274
    %12526 = vmatprep.subr.bf16.mxu0 %v12283
    %12527 = vmatpush1.bf16.msra.mxu0 %v12282
    %12528 = vmatprep.subr.bf16.mxu0 %v12291
    %12529 = vmatpush1.bf16.msra.mxu0 %v12290
    %12530 = vmatprep.subr.bf16.mxu0 %v12299
    %12531 = vmatpush1.bf16.msra.mxu0 %v12298
    %12532 = vmatprep.subr.bf16.mxu0 %v12307
    %12533 = vmatpush1.bf16.msra.mxu0 %v12306
    %12534 = vmatprep.subr.bf16.mxu0 %v12315
    %12535 = vmatpush1.bf16.msra.mxu0 %v12314
    %12536 = vmatprep.subr.bf16.mxu0 %v12323
    %12537 = vmatpush1.bf16.msra.mxu0 %v12322
    %12538 = vmatprep.subr.bf16.mxu0 %v12331
    %12539 = vmatpush1.bf16.msra.mxu0 %v12330
    %12540 = vmatprep.subr.bf16.mxu0 %v12339
    %12541 = vmatpush1.bf16.msra.mxu0 %v12338
    %12542 = vmatprep.subr.bf16.mxu0 %v12347
    %12543 = vmatpush1.bf16.msra.mxu0 %v12346
    %12544 = vmatprep.subr.bf16.mxu0 %v12355
    %12545 = vmatpush1.bf16.msra.mxu0 %v12354
    %12546 = vmatprep.subr.bf16.mxu0 %v12363
    %12547 = vmatpush1.bf16.msra.mxu0 %v12362
    %12548 = vmatprep.subr.bf16.mxu0 %v12371
    %12549 = vmatpush1.bf16.msra.mxu0 %v12370
    %12550 = vmatprep.subr.bf16.mxu0 %v12379
    %12551 = vmatpush1.bf16.msra.mxu0 %v12378
    %12552 = vmatprep.subr.bf16.mxu0 %v12387
    %12553 = vmatpush1.bf16.msra.mxu0 %v12386
    %12554 = vmatprep.mubr.bf16.mxu0 %v11879
    %12555 = vmatmul.mubr.bf16.gmra.mrb[0].mxu0 %v11878
    %v12556 = vpop.f32.mrb[0].mxu0
    %v12557 = vadd.f32 0.0, %v12556
    %v12558 = vpop.f32.mrb[0].mxu0
    %v12559 = vadd.f32 0.0, %v12558
    %v12560 = vpop.f32.mrb[0].mxu0
    %v12561 = vpop.f32.mrb[0].mxu0
    %12562 = vdwg.mxu0
    %12563 = vmatprep.subr.bf16.mxu0 %v12269
    %12564 = vmatpush1.bf16.msra.mxu0 %v12268
    %12565 = vmatprep.subr.bf16.mxu0 %v12277
    %12566 = vmatpush1.bf16.msra.mxu0 %v12276
    %12567 = vmatprep.subr.bf16.mxu0 %v12285
    %12568 = vmatpush1.bf16.msra.mxu0 %v12284
    %12569 = vmatprep.subr.bf16.mxu0 %v12293
    %12570 = vmatpush1.bf16.msra.mxu0 %v12292
    %12571 = vmatprep.subr.bf16.mxu0 %v12301
    %12572 = vmatpush1.bf16.msra.mxu0 %v12300
    %12573 = vmatprep.subr.bf16.mxu0 %v12309
    %12574 = vmatpush1.bf16.msra.mxu0 %v12308
    %12575 = vmatprep.subr.bf16.mxu0 %v12317
    %12576 = vmatpush1.bf16.msra.mxu0 %v12316
    %12577 = vmatprep.subr.bf16.mxu0 %v12325
    %12578 = vmatpush1.bf16.msra.mxu0 %v12324
    %12579 = vmatprep.subr.bf16.mxu0 %v12333
    %12580 = vmatpush1.bf16.msra.mxu0 %v12332
    %12581 = vmatprep.subr.bf16.mxu0 %v12341
    %12582 = vmatpush1.bf16.msra.mxu0 %v12340
    %12583 = vmatprep.subr.bf16.mxu0 %v12349
    %12584 = vmatpush1.bf16.msra.mxu0 %v12348
    %12585 = vmatprep.subr.bf16.mxu0 %v12357
    %12586 = vmatpush1.bf16.msra.mxu0 %v12356
    %12587 = vmatprep.subr.bf16.mxu0 %v12365
    %12588 = vmatpush1.bf16.msra.mxu0 %v12364
    %12589 = vmatprep.subr.bf16.mxu0 %v12373
    %12590 = vmatpush1.bf16.msra.mxu0 %v12372
    %12591 = vmatprep.subr.bf16.mxu0 %v12381
    %12592 = vmatpush1.bf16.msra.mxu0 %v12380
    %12593 = vmatprep.subr.bf16.mxu0 %v12389
    %12594 = vmatpush1.bf16.msra.mxu0 %v12388
    %12595 = vmatprep.mubr.bf16.mxu0 %v11879
    %12596 = vmatmul.mubr.bf16.gmra.mrb[0].mxu0 %v11878
    %v12597 = vpop.f32.mrb[0].mxu0
    %v12598 = vadd.f32 0.0, %v12597
    %v12599 = vpop.f32.mrb[0].mxu0
    %v12600 = vadd.f32 0.0, %v12599
    %v12601 = vpop.f32.mrb[0].mxu0
    %v12602 = vpop.f32.mrb[0].mxu0
    %12603 = vdwg.mxu0
    %12604 = vmatprep.subr.bf16.mxu0 %v12271
    %12605 = vmatpush1.bf16.msra.mxu0 %v12270
    %12606 = vmatprep.subr.bf16.mxu0 %v12279
    %12607 = vmatpush1.bf16.msra.mxu0 %v12278
    %12608 = vmatprep.subr.bf16.mxu0 %v12287
    %12609 = vmatpush1.bf16.msra.mxu0 %v12286
    %12610 = vmatprep.subr.bf16.mxu0 %v12295
    %12611 = vmatpush1.bf16.msra.mxu0 %v12294
    %12612 = vmatprep.subr.bf16.mxu0 %v12303
    %12613 = vmatpush1.bf16.msra.mxu0 %v12302
    %12614 = vmatprep.subr.bf16.mxu0 %v12311
    %12615 = vmatpush1.bf16.msra.mxu0 %v12310
    %12616 = vmatprep.subr.bf16.mxu0 %v12319
    %12617 = vmatpush1.bf16.msra.mxu0 %v12318
    %12618 = vmatprep.subr.bf16.mxu0 %v12327
    %12619 = vmatpush1.bf16.msra.mxu0 %v12326
    %12620 = vmatprep.subr.bf16.mxu0 %v12335
    %12621 = vmatpush1.bf16.msra.mxu0 %v12334
    %12622 = vmatprep.subr.bf16.mxu0 %v12343
    %12623 = vmatpush1.bf16.msra.mxu0 %v12342
    %12624 = vmatprep.subr.bf16.mxu0 %v12351
    %12625 = vmatpush1.bf16.msra.mxu0 %v12350
    %12626 = vmatprep.subr.bf16.mxu0 %v12359
    %12627 = vmatpush1.bf16.msra.mxu0 %v12358
    %12628 = vmatprep.subr.bf16.mxu0 %v12367
    %12629 = vmatpush1.bf16.msra.mxu0 %v12366
    %12630 = vmatprep.subr.bf16.mxu0 %v12375
    %12631 = vmatpush1.bf16.msra.mxu0 %v12374
    %12632 = vmatprep.subr.bf16.mxu0 %v12383
    %12633 = vmatpush1.bf16.msra.mxu0 %v12382
    %12634 = vmatprep.subr.bf16.mxu0 %v12391
    %12635 = vmatpush1.bf16.msra.mxu0 %v12390
    %12636 = vmatprep.mubr.bf16.mxu0 %v11879
    %12637 = vmatmul.mubr.bf16.gmra.mrb[0].mxu0 %v11878
    %v12638 = vpop.f32.mrb[0].mxu0
    %v12639 = vadd.f32 0.0, %v12638
    %v12640 = vpop.f32.mrb[0].mxu0
    %v12641 = vadd.f32 0.0, %v12640
    %v12642 = vpop.f32.mrb[0].mxu0
    %v12643 = vpop.f32.mrb[0].mxu0
    %12644 = vdwg.mxu0
    %12645 = vmatprep.subr.bf16.mxu0 %v12273
    %12646 = vmatpush1.bf16.msra.mxu0 %v12272
    %12647 = vmatprep.subr.bf16.mxu0 %v12281
    %12648 = vmatpush1.bf16.msra.mxu0 %v12280
    %12649 = vmatprep.subr.bf16.mxu0 %v12289
    %12650 = vmatpush1.bf16.msra.mxu0 %v12288
    %12651 = vmatprep.subr.bf16.mxu0 %v12297
    %12652 = vmatpush1.bf16.msra.mxu0 %v12296
    %12653 = vmatprep.subr.bf16.mxu0 %v12305
    %12654 = vmatpush1.bf16.msra.mxu0 %v12304
    %12655 = vmatprep.subr.bf16.mxu0 %v12313
    %12656 = vmatpush1.bf16.msra.mxu0 %v12312
    %12657 = vmatprep.subr.bf16.mxu0 %v12321
    %12658 = vmatpush1.bf16.msra.mxu0 %v12320
    %12659 = vmatprep.subr.bf16.mxu0 %v12329
    %12660 = vmatpush1.bf16.msra.mxu0 %v12328
    %12661 = vmatprep.subr.bf16.mxu0 %v12337
    %12662 = vmatpush1.bf16.msra.mxu0 %v12336
    %12663 = vmatprep.subr.bf16.mxu0 %v12345
    %12664 = vmatpush1.bf16.msra.mxu0 %v12344
    %12665 = vmatprep.subr.bf16.mxu0 %v12353
    %12666 = vmatpush1.bf16.msra.mxu0 %v12352
    %12667 = vmatprep.subr.bf16.mxu0 %v12361
    %12668 = vmatpush1.bf16.msra.mxu0 %v12360
    %12669 = vmatprep.subr.bf16.mxu0 %v12369
    %12670 = vmatpush1.bf16.msra.mxu0 %v12368
    %12671 = vmatprep.subr.bf16.mxu0 %v12377
    %12672 = vmatpush1.bf16.msra.mxu0 %v12376
    %12673 = vmatprep.subr.bf16.mxu0 %v12385
    %12674 = vmatpush1.bf16.msra.mxu0 %v12384
    %12675 = vmatprep.subr.bf16.mxu0 %v12393
    %12676 = vmatpush1.bf16.msra.mxu0 %v12392
    %12677 = vmatprep.mubr.bf16.mxu0 %v11879
    %12678 = vmatmul.mubr.bf16.gmra.mrb[0].mxu0 %v11878
    %v12679 = vpop.f32.mrb[0].mxu0
    %v12680 = vadd.f32 0.0, %v12679
    %v12681 = vpop.f32.mrb[0].mxu0
    %v12682 = vadd.f32 0.0, %v12681
    %v12683 = vpop.f32.mrb[0].mxu0
    %v12684 = vpop.f32.mrb[0].mxu0
    %12685 = vdwg.mxu0
    %v12694 = vrot.slane %v12557, 2
    %v12695 = vrot.slane %v12559, 2
    %v12696 = vrot.slane %v12598, 2
    %v12697 = vrot.slane %v12600, 2
    %v12698 = vrot.slane %v12639, 2
    %v12699 = vrot.slane %v12641, 2
    %v12700 = vrot.slane %v12680, 2
    %v12701 = vrot.slane %v12682, 2
    %v12710 = vadd.f32 %v11738, %v12694
    %v12711 = vadd.f32 %v11739, %v12695
    %v12712 = vadd.f32 %v11740, %v12696
    %v12713 = vadd.f32 %v11741, %v12697
    %v12714 = vadd.f32 %v11742, %v12698
    %v12715 = vadd.f32 %v11743, %v12699
    %v12716 = vadd.f32 %v11744, %v12700
    %v12717 = vadd.f32 %v11745, %v12701
    %v12718 = vxor.u32 %v12710, 2147483648
    %v12719 = vxor.u32 %v12711, 2147483648
    %v12720 = vxor.u32 %v12712, 2147483648
    %v12721 = vxor.u32 %v12713, 2147483648
    %v12722 = vxor.u32 %v12714, 2147483648
    %v12723 = vxor.u32 %v12715, 2147483648
    %v12724 = vmul.f32 %v12718, 1.442695
    %v12725 = vpow.pop %v12724
    %v12726 = vmul.f32 %v12719, 1.442695
    %v12727 = vpow.pop %v12726
    %v12728 = vmul.f32 %v12720, 1.442695
    %v12729 = vpow.pop %v12728
    %v12730 = vmul.f32 %v12721, 1.442695
    %v12731 = vpow.pop %v12730
    %v12732 = vmul.f32 %v12722, 1.442695
    %v12733 = vpow.pop %v12732
    %v12734 = vmul.f32 %v12723, 1.442695
    %v12735 = vpow.pop %v12734
    %v12736 = vadd.f32 %v12725, 1.0
    %v12737 = vadd.f32 %v12727, 1.0
    %v12738 = vadd.f32 %v12729, 1.0
    %v12739 = vadd.f32 %v12731, 1.0
    %v12740 = vadd.f32 %v12733, 1.0
    %v12741 = vadd.f32 %v12735, 1.0
    %v12742 = vrcp.pop %v12736
    %v12743 = vmul.f32 1.0, %v12742
    %v12744 = vrcp.pop %v12737
    %v12745 = vmul.f32 1.0, %v12744
    %v12746 = vrcp.pop %v12738
    %v12747 = vmul.f32 1.0, %v12746
    %v12748 = vrcp.pop %v12739
    %v12749 = vmul.f32 1.0, %v12748
    %v12750 = vrcp.pop %v12740
    %v12751 = vmul.f32 1.0, %v12750
    %v12752 = vrcp.pop %v12741
    %v12753 = vmul.f32 1.0, %v12752
    %v12754 = vtanh.pop %v12716
    %v12755 = vtanh.pop %v12717
    %v12758 = vrot.slane %v11730, 6
    %v12759 = vrot.slane %v11731, 6
    %v12762 = vmul.f32 %v12747, %v12758
    %v12763 = vmul.f32 %v12749, %v12759
    %v12764 = vmul.f32 %v12743, %v12754
    %v12765 = vmul.f32 %v12745, %v12755
    %v12766 = vadd.f32 %v12762, %v12764
    %v12767 = vadd.f32 %v12763, %v12765
    %v12768 = vtanh.pop %v12766
    %v12769 = vtanh.pop %v12767
    %v12770 = vmul.f32 %v12751, %v12768
    %v12771 = vmul.f32 %v12753, %v12769
    %12772 = vst [vmem:[#allocation3] sm:$0xc0] %v12770
    %12773 = vst [vmem:[#allocation3 + $0x8] sm:$0xc0] %v12771
    %v12776 = vcombine.high %v12770, %v12771
    %v12778 = vunpack.c.l.s4 1983009808
    %v12779 = vunpack.c.0.s8 %v12778
    %v12780 = vlaneseq
    %v12781 = vshrl.u32 %v12780, 7
    %v12782 = vsub.s32 %v12779, %v12781
    %v12783 = vrot.slane %v12776, %v12782
    %v12784 = vcombine.high %v12783, %v12783
    %12786 = vst [vmem:[#allocation7] sm:$0xf] %v12784
    %v12789 = vcombine.high %v12766, %v12767
    %v12791 = vunpack.c.l.s4 1983009808
    %v12792 = vunpack.c.0.s8 %v12791
    %v12793 = vlaneseq
    %v12794 = vshrl.u32 %v12793, 7
    %v12795 = vsub.s32 %v12792, %v12794
    %v12796 = vrot.slane %v12789, %v12795
    %v12797 = vcombine.high %v12796, %v12796
    %12799 = vst [vmem:[#allocation8] sm:$0xf] %v12797
    %v12800 = vld [vmem:[#allocation3] sm:$0xff]
    %v12801 = vld [vmem:[#allocation3 + $0x8] sm:$0xff]
    %v12802 = vpack.c.bf16 %v12800, %v12800
    %v12803 = vpack.c.bf16 %v12801, %v12801
    %v12804 = vld [vmem:[%s11] sm:$0xff]
    %v12805 = vld [vmem:[%s11 + $0x8] sm:$0xf]
    %v12806 = vld [vmem:[%s11 + $0xc] sm:$0xff]
    %v12807 = vld [vmem:[%s11 + $0x14] sm:$0xf]
    %v12808 = vld [vmem:[%s11 + $0x18] sm:$0xff]
    %v12809 = vld [vmem:[%s11 + $0x20] sm:$0xf]
    %v12810 = vld [vmem:[%s11 + $0x24] sm:$0xff]
    %v12811 = vld [vmem:[%s11 + $0x2c] sm:$0xf]
    %v12812 = vld [vmem:[%s11 + $0x30] sm:$0xff]
    %v12813 = vld [vmem:[%s11 + $0x38] sm:$0xf]
    %v12814 = vld [vmem:[%s11 + $0x3c] sm:$0xff]
    %v12815 = vld [vmem:[%s11 + $0x44] sm:$0xf]
    %v12816 = vld [vmem:[%s11 + $0x48] sm:$0xff]
    %v12817 = vld [vmem:[%s11 + $0x50] sm:$0xf]
    %v12818 = vld [vmem:[%s11 + $0x54] sm:$0xff]
    %v12819 = vld [vmem:[%s11 + $0x5c] sm:$0xf]
    %v12820 = vld [vmem:[%s11 + $0x60] sm:$0xff]
    %v12821 = vld [vmem:[%s11 + $0x68] sm:$0xf]
    %v12822 = vld [vmem:[%s11 + $0x6c] sm:$0xff]
    %v12823 = vld [vmem:[%s11 + $0x74] sm:$0xf]
    %v12824 = vld [vmem:[%s11 + $0x78] sm:$0xff]
    %v12825 = vld [vmem:[%s11 + $0x80] sm:$0xf]
    %v12826 = vld [vmem:[%s11 + $0x84] sm:$0xff]
    %v12827 = vld [vmem:[%s11 + $0x8c] sm:$0xf]
    %v12828 = vld [vmem:[%s11 + $0x90] sm:$0xff]
    %v12829 = vld [vmem:[%s11 + $0x98] sm:$0xf]
    %v12830 = vld [vmem:[%s11 + $0x9c] sm:$0xff]
    %v12831 = vld [vmem:[%s11 + $0xa4] sm:$0xf]
    %v12832 = vld [vmem:[%s11 + $0xa8] sm:$0xff]
    %v12833 = vld [vmem:[%s11 + $0xb0] sm:$0xf]
    %v12834 = vld [vmem:[%s11 + $0xb4] sm:$0xff]
    %v12835 = vld [vmem:[%s11 + $0xbc] sm:$0xf]
    %v12836 = vld [vmem:[%s11 + $0xc0] sm:$0xff]
    %v12837 = vld [vmem:[%s11 + $0xc8] sm:$0xf]
    %v12838 = vld [vmem:[%s11 + $0xcc] sm:$0xff]
    %v12839 = vld [vmem:[%s11 + $0xd4] sm:$0xf]
    %v12840 = vld [vmem:[%s11 + $0xd8] sm:$0xff]
    %v12841 = vld [vmem:[%s11 + $0xe0] sm:$0xf]
    %v12842 = vld [vmem:[%s11 + $0xe4] sm:$0xff]
    %v12843 = vld [vmem:[%s11 + $0xec] sm:$0xf]
    %v12844 = vld [vmem:[%s11 + $0xf0] sm:$0xff]
    %v12845 = vld [vmem:[%s11 + $0xf8] sm:$0xf]
    %v12846 = vld [vmem:[%s11 + $0xfc] sm:$0xff]
    %v12847 = vld [vmem:[%s11 + $0x104] sm:$0xf]
    %v12848 = vld [vmem:[%s11 + $0x108] sm:$0xff]
    %v12849 = vld [vmem:[%s11 + $0x110] sm:$0xf]
    %v12850 = vld [vmem:[%s11 + $0x114] sm:$0xff]
    %v12851 = vld [vmem:[%s11 + $0x11c] sm:$0xf]
    %v12852 = vld [vmem:[%s11 + $0x120] sm:$0xff]
    %v12853 = vld [vmem:[%s11 + $0x128] sm:$0xf]
    %v12854 = vld [vmem:[%s11 + $0x12c] sm:$0xff]
    %v12855 = vld [vmem:[%s11 + $0x134] sm:$0xf]
    %v12856 = vld [vmem:[%s11 + $0x138] sm:$0xff]
    %v12857 = vld [vmem:[%s11 + $0x140] sm:$0xf]
    %v12858 = vld [vmem:[%s11 + $0x144] sm:$0xff]
    %v12859 = vld [vmem:[%s11 + $0x14c] sm:$0xf]
    %v12860 = vld [vmem:[%s11 + $0x150] sm:$0xff]
    %v12861 = vld [vmem:[%s11 + $0x158] sm:$0xf]
    %v12862 = vld [vmem:[%s11 + $0x15c] sm:$0xff]
    %v12863 = vld [vmem:[%s11 + $0x164] sm:$0xf]
    %v12864 = vld [vmem:[%s11 + $0x168] sm:$0xff]
    %v12865 = vld [vmem:[%s11 + $0x170] sm:$0xf]
    %v12866 = vld [vmem:[%s11 + $0x174] sm:$0xff]
    %v12867 = vld [vmem:[%s11 + $0x17c] sm:$0xf]
    %v12868 = vld [vmem:[%s12] sm:$0x7]
    %v12870 = vlaneseq
    %v12871 = vshrl.u32 %v12870, 7
    %v12872 = vsub.s32 0, %v12871
    %v12873 = vrot.slane %v12868, %v12872
    %v12874 = vlaneseq
    %v12875 = vshrl.u32 %v12874, 7
    %v12876 = vsub.s32 1, %v12875
    %v12877 = vrot.slane %v12868, %v12876
    %v12878 = vlaneseq
    %v12879 = vshrl.u32 %v12878, 7
    %v12880 = vsub.s32 2, %v12879
    %v12881 = vrot.slane %v12868, %v12880
    %v12949 = vunpack.c.l.b16 %v12804
    %v12950 = vunpack.c.h.b16 %v12804
    %v12951 = vunpack.c.l.b16 %v12805
    %v12952 = vunpack.c.l.b16 %v12806
    %v12953 = vunpack.c.h.b16 %v12806
    %v12954 = vunpack.c.l.b16 %v12807
    %v12955 = vunpack.c.l.b16 %v12808
    %v12956 = vunpack.c.h.b16 %v12808
    %v12957 = vunpack.c.l.b16 %v12809
    %v12958 = vunpack.c.l.b16 %v12810
    %v12959 = vunpack.c.h.b16 %v12810
    %v12960 = vunpack.c.l.b16 %v12811
    %v12961 = vunpack.c.l.b16 %v12812
    %v12962 = vunpack.c.h.b16 %v12812
    %v12963 = vunpack.c.l.b16 %v12813
    %v12964 = vunpack.c.l.b16 %v12814
    %v12965 = vunpack.c.h.b16 %v12814
    %v12966 = vunpack.c.l.b16 %v12815
    %v12967 = vunpack.c.l.b16 %v12816
    %v12968 = vunpack.c.h.b16 %v12816
    %v12969 = vunpack.c.l.b16 %v12817
    %v12970 = vunpack.c.l.b16 %v12818
    %v12971 = vunpack.c.h.b16 %v12818
    %v12972 = vunpack.c.l.b16 %v12819
    %v12973 = vunpack.c.l.b16 %v12820
    %v12974 = vunpack.c.h.b16 %v12820
    %v12975 = vunpack.c.l.b16 %v12821
    %v12976 = vunpack.c.l.b16 %v12822
    %v12977 = vunpack.c.h.b16 %v12822
    %v12978 = vunpack.c.l.b16 %v12823
    %v12979 = vunpack.c.l.b16 %v12824
    %v12980 = vunpack.c.h.b16 %v12824
    %v12981 = vunpack.c.l.b16 %v12825
    %v12982 = vunpack.c.l.b16 %v12826
    %v12983 = vunpack.c.h.b16 %v12826
    %v12984 = vunpack.c.l.b16 %v12827
    %v12985 = vunpack.c.l.b16 %v12828
    %v12986 = vunpack.c.h.b16 %v12828
    %v12987 = vunpack.c.l.b16 %v12829
    %v12988 = vunpack.c.l.b16 %v12830
    %v12989 = vunpack.c.h.b16 %v12830
    %v12990 = vunpack.c.l.b16 %v12831
    %v12991 = vunpack.c.l.b16 %v12832
    %v12992 = vunpack.c.h.b16 %v12832
    %v12993 = vunpack.c.l.b16 %v12833
    %v12994 = vunpack.c.l.b16 %v12834
    %v12995 = vunpack.c.h.b16 %v12834
    %v12996 = vunpack.c.l.b16 %v12835
    %v12997 = vunpack.c.l.b16 %v12836
    %v12998 = vunpack.c.h.b16 %v12836
    %v12999 = vunpack.c.l.b16 %v12837
    %v13000 = vunpack.c.l.b16 %v12838
    %v13001 = vunpack.c.h.b16 %v12838
    %v13002 = vunpack.c.l.b16 %v12839
    %v13003 = vunpack.c.l.b16 %v12840
    %v13004 = vunpack.c.h.b16 %v12840
    %v13005 = vunpack.c.l.b16 %v12841
    %v13006 = vunpack.c.l.b16 %v12842
    %v13007 = vunpack.c.h.b16 %v12842
    %v13008 = vunpack.c.l.b16 %v12843
    %v13009 = vunpack.c.l.b16 %v12844
    %v13010 = vunpack.c.h.b16 %v12844
    %v13011 = vunpack.c.l.b16 %v12845
    %v13012 = vunpack.c.l.b16 %v12846
    %v13013 = vunpack.c.h.b16 %v12846
    %v13014 = vunpack.c.l.b16 %v12847
    %v13015 = vunpack.c.l.b16 %v12848
    %v13016 = vunpack.c.h.b16 %v12848
    %v13017 = vunpack.c.l.b16 %v12849
    %v13018 = vunpack.c.l.b16 %v12850
    %v13019 = vunpack.c.h.b16 %v12850
    %v13020 = vunpack.c.l.b16 %v12851
    %v13021 = vunpack.c.l.b16 %v12852
    %v13022 = vunpack.c.h.b16 %v12852
    %v13023 = vunpack.c.l.b16 %v12853
    %v13024 = vunpack.c.l.b16 %v12854
    %v13025 = vunpack.c.h.b16 %v12854
    %v13026 = vunpack.c.l.b16 %v12855
    %v13027 = vunpack.c.l.b16 %v12856
    %v13028 = vunpack.c.h.b16 %v12856
    %v13029 = vunpack.c.l.b16 %v12857
    %v13030 = vunpack.c.l.b16 %v12858
    %v13031 = vunpack.c.h.b16 %v12858
    %v13032 = vunpack.c.l.b16 %v12859
    %v13033 = vunpack.c.l.b16 %v12860
    %v13034 = vunpack.c.h.b16 %v12860
    %v13035 = vunpack.c.l.b16 %v12861
    %v13036 = vunpack.c.l.b16 %v12862
    %v13037 = vunpack.c.h.b16 %v12862
    %v13038 = vunpack.c.l.b16 %v12863
    %v13039 = vunpack.c.l.b16 %v12864
    %v13040 = vunpack.c.h.b16 %v12864
    %v13041 = vunpack.c.l.b16 %v12865
    %v13042 = vunpack.c.l.b16 %v12866
    %v13043 = vunpack.c.h.b16 %v12866
    %v13044 = vunpack.c.l.b16 %v12867
    %v13045 = vpack.c.b16 %v12952, %v12949
    %v13046 = vpack.c.b16 %v12953, %v12950
    %v13047 = vpack.c.b16 %v12954, %v12951
    %v13048 = vpack.c.b16 %v12958, %v12955
    %v13049 = vpack.c.b16 %v12959, %v12956
    %v13050 = vpack.c.b16 %v12960, %v12957
    %v13051 = vpack.c.b16 %v12964, %v12961
    %v13052 = vpack.c.b16 %v12965, %v12962
    %v13053 = vpack.c.b16 %v12966, %v12963
    %v13054 = vpack.c.b16 %v12970, %v12967
    %v13055 = vpack.c.b16 %v12971, %v12968
    %v13056 = vpack.c.b16 %v12972, %v12969
    %v13057 = vpack.c.b16 %v12976, %v12973
    %v13058 = vpack.c.b16 %v12977, %v12974
    %v13059 = vpack.c.b16 %v12978, %v12975
    %v13060 = vpack.c.b16 %v12982, %v12979
    %v13061 = vpack.c.b16 %v12983, %v12980
    %v13062 = vpack.c.b16 %v12984, %v12981
    %v13063 = vpack.c.b16 %v12988, %v12985
    %v13064 = vpack.c.b16 %v12989, %v12986
    %v13065 = vpack.c.b16 %v12990, %v12987
    %v13066 = vpack.c.b16 %v12994, %v12991
    %v13067 = vpack.c.b16 %v12995, %v12992
    %v13068 = vpack.c.b16 %v12996, %v12993
    %v13069 = vpack.c.b16 %v13000, %v12997
    %v13070 = vpack.c.b16 %v13001, %v12998
    %v13071 = vpack.c.b16 %v13002, %v12999
    %v13072 = vpack.c.b16 %v13006, %v13003
    %v13073 = vpack.c.b16 %v13007, %v13004
    %v13074 = vpack.c.b16 %v13008, %v13005
    %v13075 = vpack.c.b16 %v13012, %v13009
    %v13076 = vpack.c.b16 %v13013, %v13010
    %v13077 = vpack.c.b16 %v13014, %v13011
    %v13078 = vpack.c.b16 %v13018, %v13015
    %v13079 = vpack.c.b16 %v13019, %v13016
    %v13080 = vpack.c.b16 %v13020, %v13017
    %v13081 = vpack.c.b16 %v13024, %v13021
    %v13082 = vpack.c.b16 %v13025, %v13022
    %v13083 = vpack.c.b16 %v13026, %v13023
    %v13084 = vpack.c.b16 %v13030, %v13027
    %v13085 = vpack.c.b16 %v13031, %v13028
    %v13086 = vpack.c.b16 %v13032, %v13029
    %v13087 = vpack.c.b16 %v13036, %v13033
    %v13088 = vpack.c.b16 %v13037, %v13034
    %v13089 = vpack.c.b16 %v13038, %v13035
    %v13090 = vpack.c.b16 %v13042, %v13039
    %v13091 = vpack.c.b16 %v13043, %v13040
    %v13092 = vpack.c.b16 %v13044, %v13041
    %13141 = vmatprep.subr.bf16.mxu0 %v13046
    %13142 = vmatpush1.bf16.msra.mxu0 %v13045
    %13143 = vmatprep.subr.bf16.mxu0 %v13049
    %13144 = vmatpush1.bf16.msra.mxu0 %v13048
    %13145 = vmatprep.subr.bf16.mxu0 %v13052
    %13146 = vmatpush1.bf16.msra.mxu0 %v13051
    %13147 = vmatprep.subr.bf16.mxu0 %v13055
    %13148 = vmatpush1.bf16.msra.mxu0 %v13054
    %13149 = vmatprep.subr.bf16.mxu0 %v13058
    %13150 = vmatpush1.bf16.msra.mxu0 %v13057
    %13151 = vmatprep.subr.bf16.mxu0 %v13061
    %13152 = vmatpush1.bf16.msra.mxu0 %v13060
    %13153 = vmatprep.subr.bf16.mxu0 %v13064
    %13154 = vmatpush1.bf16.msra.mxu0 %v13063
    %13155 = vmatprep.subr.bf16.mxu0 %v13067
    %13156 = vmatpush1.bf16.msra.mxu0 %v13066
    %13157 = vmatprep.subr.bf16.mxu0 %v13070
    %13158 = vmatpush1.bf16.msra.mxu0 %v13069
    %13159 = vmatprep.subr.bf16.mxu0 %v13073
    %13160 = vmatpush1.bf16.msra.mxu0 %v13072
    %13161 = vmatprep.subr.bf16.mxu0 %v13076
    %13162 = vmatpush1.bf16.msra.mxu0 %v13075
    %13163 = vmatprep.subr.bf16.mxu0 %v13079
    %13164 = vmatpush1.bf16.msra.mxu0 %v13078
    %13165 = vmatprep.subr.bf16.mxu0 %v13082
    %13166 = vmatpush1.bf16.msra.mxu0 %v13081
    %13167 = vmatprep.subr.bf16.mxu0 %v13085
    %13168 = vmatpush1.bf16.msra.mxu0 %v13084
    %13169 = vmatprep.subr.bf16.mxu0 %v13088
    %13170 = vmatpush1.bf16.msra.mxu0 %v13087
    %13171 = vmatprep.subr.bf16.mxu0 %v13091
    %13172 = vmatpush1.bf16.msra.mxu0 %v13090
    %13173 = vmatprep.mubr.bf16.mxu0 %v12803
    %13174 = vmatmul.mubr.bf16.gmra.mrb[0].mxu0 %v12802
    %v13175 = vpop.f32.mrb[0].mxu0
    %v13176 = vadd.f32 %v12873, %v13175
    %v13177 = vpop.f32.mrb[0].mxu0
    %v13178 = vadd.f32 %v12877, %v13177
    %v13179 = vpop.f32.mrb[0].mxu0
    %v13180 = vpop.f32.mrb[0].mxu0
    %13181 = vdwg.mxu0
    %13182 = vmatprep.subr.bf16.mxu0 0
    %13183 = vmatpush1.bf16.msra.mxu0 %v13047
    %13184 = vmatprep.subr.bf16.mxu0 0
    %13185 = vmatpush1.bf16.msra.mxu0 %v13050
    %13186 = vmatprep.subr.bf16.mxu0 0
    %13187 = vmatpush1.bf16.msra.mxu0 %v13053
    %13188 = vmatprep.subr.bf16.mxu0 0
    %13189 = vmatpush1.bf16.msra.mxu0 %v13056
    %13190 = vmatprep.subr.bf16.mxu0 0
    %13191 = vmatpush1.bf16.msra.mxu0 %v13059
    %13192 = vmatprep.subr.bf16.mxu0 0
    %13193 = vmatpush1.bf16.msra.mxu0 %v13062
    %13194 = vmatprep.subr.bf16.mxu0 0
    %13195 = vmatpush1.bf16.msra.mxu0 %v13065
    %13196 = vmatprep.subr.bf16.mxu0 0
    %13197 = vmatpush1.bf16.msra.mxu0 %v13068
    %13198 = vmatprep.subr.bf16.mxu0 0
    %13199 = vmatpush1.bf16.msra.mxu0 %v13071
    %13200 = vmatprep.subr.bf16.mxu0 0
    %13201 = vmatpush1.bf16.msra.mxu0 %v13074
    %13202 = vmatprep.subr.bf16.mxu0 0
    %13203 = vmatpush1.bf16.msra.mxu0 %v13077
    %13204 = vmatprep.subr.bf16.mxu0 0
    %13205 = vmatpush1.bf16.msra.mxu0 %v13080
    %13206 = vmatprep.subr.bf16.mxu0 0
    %13207 = vmatpush1.bf16.msra.mxu0 %v13083
    %13208 = vmatprep.subr.bf16.mxu0 0
    %13209 = vmatpush1.bf16.msra.mxu0 %v13086
    %13210 = vmatprep.subr.bf16.mxu0 0
    %13211 = vmatpush1.bf16.msra.mxu0 %v13089
    %13212 = vmatprep.subr.bf16.mxu0 0
    %13213 = vmatpush1.bf16.msra.mxu0 %v13092
    %13214 = vmatprep.mubr.bf16.mxu0 %v12803
    %13215 = vmatmul.mubr.bf16.gmra.mrb[0].mxu0 %v12802
    %v13216 = vpop.f32.mrb[0].mxu0
    %v13217 = vadd.f32 %v12881, %v13216
    %v13218 = vpop.f32.mrb[0].mxu0
    %v13219 = vpop.f32.mrb[0].mxu0
    %v13220 = vpop.f32.mrb[0].mxu0
    %13221 = vdwg.mxu0
    %13222 = vst [vmem:[%s15] sm:$0xff] %v13176
    %13223 = vst [vmem:[%s15 + $0x8] sm:$0xff] %v13178
    %13224 = vst [vmem:[%s15 + $0x10] sm:$0xff] %v13217
    %v13225 = vmax.f32 %v13178, 0.0
    %v13226 = vmax.f32 %v13217, 0.0
    %v13227 = vpack.c.bf16 %v13225, %v13225
    %v13228 = vpack.c.bf16 %v13226, %v13226
    %v13229 = vld [vmem:[%s13] sm:$0xf]
    %v13230 = vld [vmem:[%s13 + $0x4] sm:$0xf]
    %v13231 = vld [vmem:[%s13 + $0x8] sm:$0xf]
    %v13232 = vld [vmem:[%s13 + $0xc] sm:$0xf]
    %v13233 = vld [vmem:[%s13 + $0x10] sm:$0xf]
    %v13234 = vld [vmem:[%s13 + $0x14] sm:$0xf]
    %v13235 = vld [vmem:[%s13 + $0x18] sm:$0xf]
    %v13236 = vld [vmem:[%s13 + $0x1c] sm:$0xf]
    %v13237 = vld [vmem:[%s13 + $0x20] sm:$0xf]
    %v13238 = vld [vmem:[%s13 + $0x24] sm:$0xf]
    %v13239 = vld [vmem:[%s13 + $0x28] sm:$0xf]
    %v13240 = vld [vmem:[%s13 + $0x2c] sm:$0xf]
    %v13241 = vld [vmem:[%s13 + $0x30] sm:$0xf]
    %v13242 = vld [vmem:[%s13 + $0x34] sm:$0xf]
    %v13243 = vld [vmem:[%s13 + $0x38] sm:$0xf]
    %v13244 = vld [vmem:[%s13 + $0x3c] sm:$0xf]
    %v13245 = vld [vmem:[%s13 + $0x40] sm:$0xf]
    %v13246 = vld [vmem:[%s13 + $0x44] sm:$0xf]
    %v13247 = vld [vmem:[%s13 + $0x48] sm:$0xf]
    %v13248 = vld [vmem:[%s13 + $0x4c] sm:$0xf]
    %v13249 = vld [vmem:[%s13 + $0x50] sm:$0xf]
    %v13250 = vld [vmem:[%s13 + $0x54] sm:$0xf]
    %v13251 = vld [vmem:[%s13 + $0x58] sm:$0xf]
    %v13252 = vld [vmem:[%s13 + $0x5c] sm:$0xf]
    %v13253 = vld [vmem:[%s13 + $0x60] sm:$0xf]
    %v13254 = vld [vmem:[%s13 + $0x64] sm:$0xf]
    %v13255 = vld [vmem:[%s13 + $0x68] sm:$0xf]
    %v13256 = vld [vmem:[%s13 + $0x6c] sm:$0xf]
    %v13257 = vld [vmem:[%s13 + $0x70] sm:$0xf]
    %v13258 = vld [vmem:[%s13 + $0x74] sm:$0xf]
    %v13259 = vld [vmem:[%s13 + $0x78] sm:$0xf]
    %v13260 = vld [vmem:[%s13 + $0x7c] sm:$0xf]
    %v13261 = vld [vmem:[%s14] sm:$0x1]
    %v13263 = vlaneseq
    %v13264 = vshrl.u32 %v13263, 7
    %v13265 = vsub.s32 0, %v13264
    %v13266 = vrot.slane %v13261, %v13265
    %v13300 = vunpack.c.l.b16 %v13229
    %v13301 = vunpack.c.l.b16 %v13230
    %v13302 = vunpack.c.l.b16 %v13231
    %v13303 = vunpack.c.l.b16 %v13232
    %v13304 = vunpack.c.l.b16 %v13233
    %v13305 = vunpack.c.l.b16 %v13234
    %v13306 = vunpack.c.l.b16 %v13235
    %v13307 = vunpack.c.l.b16 %v13236
    %v13308 = vunpack.c.l.b16 %v13237
    %v13309 = vunpack.c.l.b16 %v13238
    %v13310 = vunpack.c.l.b16 %v13239
    %v13311 = vunpack.c.l.b16 %v13240
    %v13312 = vunpack.c.l.b16 %v13241
    %v13313 = vunpack.c.l.b16 %v13242
    %v13314 = vunpack.c.l.b16 %v13243
    %v13315 = vunpack.c.l.b16 %v13244
    %v13316 = vunpack.c.l.b16 %v13245
    %v13317 = vunpack.c.l.b16 %v13246
    %v13318 = vunpack.c.l.b16 %v13247
    %v13319 = vunpack.c.l.b16 %v13248
    %v13320 = vunpack.c.l.b16 %v13249
    %v13321 = vunpack.c.l.b16 %v13250
    %v13322 = vunpack.c.l.b16 %v13251
    %v13323 = vunpack.c.l.b16 %v13252
    %v13324 = vunpack.c.l.b16 %v13253
    %v13325 = vunpack.c.l.b16 %v13254
    %v13326 = vunpack.c.l.b16 %v13255
    %v13327 = vunpack.c.l.b16 %v13256
    %v13328 = vunpack.c.l.b16 %v13257
    %v13329 = vunpack.c.l.b16 %v13258
    %v13330 = vunpack.c.l.b16 %v13259
    %v13331 = vunpack.c.l.b16 %v13260
    %v13332 = vpack.c.b16 %v13301, %v13300
    %v13333 = vpack.c.b16 %v13303, %v13302
    %v13334 = vpack.c.b16 %v13305, %v13304
    %v13335 = vpack.c.b16 %v13307, %v13306
    %v13336 = vpack.c.b16 %v13309, %v13308
    %v13337 = vpack.c.b16 %v13311, %v13310
    %v13338 = vpack.c.b16 %v13313, %v13312
    %v13339 = vpack.c.b16 %v13315, %v13314
    %v13340 = vpack.c.b16 %v13317, %v13316
    %v13341 = vpack.c.b16 %v13319, %v13318
    %v13342 = vpack.c.b16 %v13321, %v13320
    %v13343 = vpack.c.b16 %v13323, %v13322
    %v13344 = vpack.c.b16 %v13325, %v13324
    %v13345 = vpack.c.b16 %v13327, %v13326
    %v13346 = vpack.c.b16 %v13329, %v13328
    %v13347 = vpack.c.b16 %v13331, %v13330
    %13364 = vmatprep.subr.bf16.mxu0 0
    %13365 = vmatpush1.bf16.msra.mxu0 %v13332
    %13366 = vmatprep.subr.bf16.mxu0 0
    %13367 = vmatpush1.bf16.msra.mxu0 %v13333
    %13368 = vmatprep.subr.bf16.mxu0 0
    %13369 = vmatpush1.bf16.msra.mxu0 %v13334
    %13370 = vmatprep.subr.bf16.mxu0 0
    %13371 = vmatpush1.bf16.msra.mxu0 %v13335
    %13372 = vmatprep.subr.bf16.mxu0 0
    %13373 = vmatpush1.bf16.msra.mxu0 %v13336
    %13374 = vmatprep.subr.bf16.mxu0 0
    %13375 = vmatpush1.bf16.msra.mxu0 %v13337
    %13376 = vmatprep.subr.bf16.mxu0 0
    %13377 = vmatpush1.bf16.msra.mxu0 %v13338
    %13378 = vmatprep.subr.bf16.mxu0 0
    %13379 = vmatpush1.bf16.msra.mxu0 %v13339
    %13380 = vmatprep.subr.bf16.mxu0 0
    %13381 = vmatpush1.bf16.msra.mxu0 %v13340
    %13382 = vmatprep.subr.bf16.mxu0 0
    %13383 = vmatpush1.bf16.msra.mxu0 %v13341
    %13384 = vmatprep.subr.bf16.mxu0 0
    %13385 = vmatpush1.bf16.msra.mxu0 %v13342
    %13386 = vmatprep.subr.bf16.mxu0 0
    %13387 = vmatpush1.bf16.msra.mxu0 %v13343
    %13388 = vmatprep.subr.bf16.mxu0 0
    %13389 = vmatpush1.bf16.msra.mxu0 %v13344
    %13390 = vmatprep.subr.bf16.mxu0 0
    %13391 = vmatpush1.bf16.msra.mxu0 %v13345
    %13392 = vmatprep.subr.bf16.mxu0 0
    %13393 = vmatpush1.bf16.msra.mxu0 %v13346
    %13394 = vmatprep.subr.bf16.mxu0 0
    %13395 = vmatpush1.bf16.msra.mxu0 %v13347
    %13396 = vmatprep.mubr.bf16.mxu0 %v13228
    %13397 = vmatmul.mubr.bf16.gmra.mrb[0].mxu0 %v13227
    %v13398 = vpop.f32.mrb[0].mxu0
    %v13399 = vadd.f32 %v13266, %v13398
    %v13400 = vpop.f32.mrb[0].mxu0
    %v13401 = vpop.f32.mrb[0].mxu0
    %v13402 = vpop.f32.mrb[0].mxu0
    %13403 = vdwg.mxu0
    %13404 = vst [vmem:[%s16] sm:$0xff] %v13399
    // Predicated region
    $region66: #{effnet_forward.1} parent=1 // pred_check
      _
    $region67: #{effnet_forward.1} parent=1 // pred_check_branch
      %13406 = sbr.rel (0) target = $region69
    $region68: #{effnet_forward.1} parent=1 // pred_region
      _
    $region69: #{effnet_forward.1} parent=1 // pred_fallthru
      _
    // Predicated region
    $region70: #{effnet_forward.1} parent=1 // pred_check
      _
    $region71: #{effnet_forward.1} parent=1 // pred_check_branch
      %13408 = sbr.rel (0) target = $region73
    $region72: #{effnet_forward.1} parent=1 // pred_region
      _
    $region73: #{effnet_forward.1} parent=1 // pred_fallthru
      _
    // Predicated region
    $region74: #{effnet_forward.1} parent=1 // pred_check
      _
    $region75: #{effnet_forward.1} parent=1 // pred_check_branch
      %13410 = sbr.rel (0) target = $region77
    $region76: #{effnet_forward.1} parent=1 // pred_region
      %s13412 = ssub.s32 64, 64
      %13413 = vsyncadd [#allocation6], %s13412
      %s13415 = sshll.u32 [#allocation7], 4
      %s13416 = int_to_ptr.vmem [resolvable:$true] %s13415
      %13418 = dma.vmem_to_hbm [thread:$0]  %s13416, 64, %s17, [#allocation6]
    $region77: #{effnet_forward.1} parent=1 // pred_fallthru
      _
    // Predicated region
    $region78: #{effnet_forward.1} parent=1 // pred_check
      _
    $region79: #{effnet_forward.1} parent=1 // pred_check_branch
      %13420 = sbr.rel (0) target = $region81
    $region80: #{effnet_forward.1} parent=1 // pred_region
      %s13422 = ssub.s32 64, 64
      %13423 = vsyncadd [#allocation9], %s13422
      %s13425 = sshll.u32 [#allocation8], 4
      %s13426 = int_to_ptr.vmem [resolvable:$true] %s13425
      %13428 = dma.vmem_to_hbm [thread:$0]  %s13426, 64, %s18, [#allocation9]
    $region81: #{effnet_forward.1} parent=1 // pred_fallthru
      _
    // Predicated region
    $region82: #{effnet_forward.1} parent=1 // pred_check
      _
    $region83: #{effnet_forward.1} parent=1 // pred_check_branch
      %13430 = sbr.rel (0) target = $region85
    $region84: #{effnet_forward.1} parent=1 // pred_region
      _
    $region85: #{effnet_forward.1} parent=1 // pred_fallthru
      _
    // Predicated region
    $region86: #{effnet_forward.1} parent=1 // pred_check
      _
    $region87: #{effnet_forward.1} parent=1 // pred_check_branch
      %13432 = sbr.rel (0) target = $region89
    $region88: #{effnet_forward.1} parent=1 // pred_region
      _
    $region89: #{effnet_forward.1} parent=1 // pred_fallthru
      _
    // Predicated region
    $region90: #{effnet_forward.1} parent=1 // pred_check
      _
    $region91: #{effnet_forward.1} parent=1 // pred_check_branch
      %13434 = sbr.rel (0) target = $region93
    $region92: #{effnet_forward.1} parent=1 // pred_region
      %13435 = dma.done [#allocation6], 64
    $region93: #{effnet_forward.1} parent=1 // pred_fallthru
      _
    // Predicated region
    $region94: #{effnet_forward.1} parent=1 // pred_check
      _
    $region95: #{effnet_forward.1} parent=1 // pred_check_branch
      %13437 = sbr.rel (0) target = $region97
    $region96: #{effnet_forward.1} parent=1 // pred_region
      %13438 = dma.done [#allocation9], 64
    $region97: #{effnet_forward.1} parent=1 // pred_fallthru
      _
    %13439 = vsyncpa [#allocation5], 1
    %13440 = vsyncpa [#allocation6], 1
    %13441 = vsyncpa [#allocation9], 1

</llo_original>
